<compile_context>
chip_gen: v5e
topology: v5e:2x2
jax: 0.10.0
libtpu: 0.0.40
codegen_flags: <defaults>
</compile_context>

<pallas_src>
import functools

import jax
import jax.numpy as jnp
from jax.experimental import pallas as pl
from jax.experimental.pallas import tpu as pltpu

# ----------------------------------------------------------------------------
# Scaled-down (but structurally faithful) DenseNet3D configuration.
# ----------------------------------------------------------------------------
IN_CHANNELS = 1
NUM_CLASSES = 1
NUM_INIT_FEATURES = 16
GROWTH_RATE = 8
BLOCK_CONFIG = (2, 2, 2, 2)
BN_SIZE = 2
CONV1_T_SIZE = 3            # stem kernel (3, 7, 7), stride (1, 2, 2), pad (1, 3, 3)
SIGMOID_FINISH = False

_MAX_TM = 512               # lane tile for the GEMM-style kernels

# bf16 activations + bf16 MXU matmuls on real TPUs; f32 on CPU / interpret
# backends whose dot runtime does not support BF16 x BF16 = F32.
_ON_TPU = jax.default_backend() == "tpu"
_COMPUTE_DTYPE = jnp.bfloat16 if _ON_TPU else jnp.float32


def _round_up(x, m):
    return ((x + m - 1) // m) * m


def _lane_tile(m):
    """Pick a lane tile (multiple of 128, <= _MAX_TM) and the padded extent."""
    tm = min(_MAX_TM, _round_up(m, 128))
    return tm, _round_up(m, tm)


# ----------------------------------------------------------------------------
# Pallas kernels
# ----------------------------------------------------------------------------
def _fused_gemm_kernel(*refs, prologue, epilogue, relu_out):
    """o = [relu]( so*(W @ [relu(si*x+bi)]) + bo );  x:(K,TM) W:(Cout,K) o:(Cout,TM)."""
    x_ref, w_ref = refs[0], refs[1]
    idx = 2
    if prologue:
        si_ref, bi_ref = refs[idx], refs[idx + 1]
        idx += 2
    if epilogue:
        so_ref, bo_ref = refs[idx], refs[idx + 1]
        idx += 2
    o_ref = refs[idx]

    x = x_ref[...]                                               # (K, TM)
    if prologue:                                                 # BN+ReLU on the conv input
        x = jnp.maximum(x.astype(jnp.float32) * si_ref[...] + bi_ref[...], 0.0)
    x = x.astype(_COMPUTE_DTYPE)
    w = w_ref[...].astype(_COMPUTE_DTYPE)
    acc = jnp.dot(w, x, preferred_element_type=jnp.float32)      # (Cout, TM) f32
    if epilogue:                                                 # BN on the conv output
        acc = acc * so_ref[...] + bo_ref[...]
    if relu_out:
        acc = jnp.maximum(acc, 0.0)
    o_ref[...] = acc.astype(o_ref.dtype)


def _transition_kernel(x_ref, s_ref, b_ref, w_ref, o_ref):
    # x: (C, 8, TM) window-gathered activations. BN+ReLU -> 2x2x2 mean -> 1x1x1 conv.
    x = x_ref[...].astype(jnp.float32)
    x = jnp.maximum(x * s_ref[...] + b_ref[...], 0.0)
    pooled = (jnp.sum(x, axis=1) * 0.125).astype(_COMPUTE_DTYPE)  # (C, TM)
    w = w_ref[...].astype(_COMPUTE_DTYPE)
    acc = jnp.dot(w, pooled, preferred_element_type=jnp.float32)
    o_ref[...] = acc.astype(o_ref.dtype)


def _gap_fc_kernel(x_ref, s_ref, b_ref, w_ref, fcb_ref, o_ref, acc_ref, *, true_s, ts):
    # Final norm5 + ReLU + global average pool + Linear, tiled over the spatial axis.
    si = pl.program_id(0)

    @pl.when(si == 0)
    def _init():
        acc_ref[...] = jnp.zeros_like(acc_ref)

    x = x_ref[...].astype(jnp.float32)                           # (C, N, TS)
    x = jnp.maximum(x * s_ref[...] + b_ref[...], 0.0)
    pos = si * ts + jax.lax.broadcasted_iota(jnp.int32, x.shape, 2)
    x = jnp.where(pos < true_s, x, 0.0)                          # mask spatial padding
    acc_ref[...] += jnp.sum(x, axis=2)                           # (C, N)

    @pl.when(si == pl.num_programs(0) - 1)
    def _finish():
        pooled = acc_ref[...] * (1.0 / true_s)                   # (C, N)
        w = w_ref[...]                                           # (classes, C) f32
        logits = jnp.sum(w[:, :, None] * pooled[None, :, :], axis=1) + fcb_ref[...]
        o_ref[...] = logits


# ----------------------------------------------------------------------------
# Kernel wrappers (padding / BlockSpec glue)
# ----------------------------------------------------------------------------
def fused_gemm(x, wt, prologue=None, epilogue=None, relu_out=False):
    """x: (K, M), wt: (Cout, K) -> (Cout, M) in _COMPUTE_DTYPE (f32 accumulation)."""
    K, M = x.shape
    cout = wt.shape[0]
    tm, mp = _lane_tile(M)
    if mp != M:
        x = jnp.pad(x, ((0, 0), (0, mp - M)))

    inputs = [x, wt]
    in_specs = [
        pl.BlockSpec((K, tm), lambda i: (0, i)),
        pl.BlockSpec((cout, K), lambda i: (0, 0)),
    ]
    if prologue is not None:
        s, b = prologue
        inputs += [s.reshape(K, 1).astype(jnp.float32),
                   b.reshape(K, 1).astype(jnp.float32)]
        in_specs += [pl.BlockSpec((K, 1), lambda i: (0, 0)),
                     pl.BlockSpec((K, 1), lambda i: (0, 0))]
    if epilogue is not None:
        s, b = epilogue
        inputs += [s.reshape(cout, 1).astype(jnp.float32),
                   b.reshape(cout, 1).astype(jnp.float32)]
        in_specs += [pl.BlockSpec((cout, 1), lambda i: (0, 0)),
                     pl.BlockSpec((cout, 1), lambda i: (0, 0))]

    kern = functools.partial(_fused_gemm_kernel,
                             prologue=prologue is not None,
                             epilogue=epilogue is not None,
                             relu_out=relu_out)
    out = pl.pallas_call(
        kern,
        out_shape=jax.ShapeDtypeStruct((cout, mp), _COMPUTE_DTYPE),
        grid=(mp // tm,),
        in_specs=in_specs,
        out_specs=pl.BlockSpec((cout, tm), lambda i: (0, i)),
        compiler_params=pltpu.CompilerParams(dimension_semantics=("parallel",)),
    )(*inputs)
    return out[:, :M]


def _im2col_cf(h, kd, kh, kw, stride, padding):
    """h: (C, N, D, H, W) -> patches (kd*kh*kw*C, N*Do*Ho*Wo); rows tap-major."""
    C, N, D, H, W = h.shape
    sd, sh, sw = stride
    pd, ph, pw = padding
    hp = jnp.pad(h, ((0, 0), (0, 0), (pd, pd), (ph, ph), (pw, pw)))
    do = (D + 2 * pd - kd) // sd + 1
    ho = (H + 2 * ph - kh) // sh + 1
    wo = (W + 2 * pw - kw) // sw + 1
    taps = []
    for a in range(kd):
        for b in range(kh):
            for c in range(kw):
                taps.append(
                    hp[:, :, a:a + sd * do:sd, b:b + sh * ho:sh, c:c + sw * wo:sw]
                    .reshape(C, N * do * ho * wo))
    return jnp.concatenate(taps, axis=0), (do, ho, wo)


def conv3d_pallas(h, w, stride, padding, prologue=None, epilogue=None, relu_out=False):
    """h: (C, N, D, H, W); w: (kd, kh, kw, Cin, Cout) f32; bias-free conv."""
    C, N, D, H, W = h.shape
    kd, kh, kw, cin, cout = w.shape
    if (kd, kh, kw) == (1, 1, 1) and stride == (1, 1, 1) and padding == (0, 0, 0):
        x = h.reshape(C, N * D * H * W)
        do, ho, wo = D, H, W
    else:
        x, (do, ho, wo) = _im2col_cf(h, kd, kh, kw, stride, padding)
    K = kd * kh * kw * cin
    if prologue is not None and K != C:           # per-channel affine tiled per tap
        s, b = prologue
        prologue = (jnp.tile(s, K // C), jnp.tile(b, K // C))
    wt = jnp.transpose(w.reshape(K, cout)).astype(_COMPUTE_DTYPE)  # (Cout, K)
    out = fused_gemm(x, wt, prologue=prologue, epilogue=epilogue, relu_out=relu_out)
    return out.reshape(cout, N, do, ho, wo)


def transition_pallas(h, bn, w):
    """Transition: BN -> ReLU -> 1x1x1 conv -> AvgPool3d(2), as one fused kernel
    (pool and 1x1 conv commute, so the kernel pools first and matmuls 8x fewer rows)."""
    C, N, D, H, W = h.shape
    d2, h2, w2 = D // 2, H // 2, W // 2            # PyTorch AvgPool3d floors odd dims
    hc = h[:, :, :2 * d2, :2 * h2, :2 * w2]
    xw = hc.reshape(C, N, d2, 2, h2, 2, w2, 2)
    xw = jnp.transpose(xw, (0, 3, 5, 7, 1, 2, 4, 6)).reshape(C, 8, N * d2 * h2 * w2)
    M = N * d2 * h2 * w2
    tm, mp = _lane_tile(M)
    if mp != M:
        xw = jnp.pad(xw, ((0, 0), (0, 0), (0, mp - M)))
    scale, shift = bn
    cout = w.shape[-1]
    wt = jnp.transpose(w.reshape(C, cout)).astype(_COMPUTE_DTYPE)  # (Cout, C)
    out = pl.pallas_call(
        _transition_kernel,
        out_shape=jax.ShapeDtypeStruct((cout, mp), _COMPUTE_DTYPE),
        grid=(mp // tm,),
        in_specs=[
            pl.BlockSpec((C, 8, tm), lambda i: (0, 0, i)),
            pl.BlockSpec((C, 1, 1), lambda i: (0, 0, 0)),
            pl.BlockSpec((C, 1, 1), lambda i: (0, 0, 0)),
            pl.BlockSpec((cout, C), lambda i: (0, 0)),
        ],
        out_specs=pl.BlockSpec((cout, tm), lambda i: (0, i)),
        compiler_params=pltpu.CompilerParams(dimension_semantics=("parallel",)),
    )(xw, scale.reshape(C, 1, 1).astype(jnp.float32),
      shift.reshape(C, 1, 1).astype(jnp.float32), wt)
    return out[:, :M].reshape(cout, N, d2, h2, w2)


def gap_fc_pallas(h, bn, fc_w, fc_b):
    """Final BN -> ReLU -> adaptive_avg_pool3d((1,1,1)) -> Linear, one fused kernel."""
    C, N, D, H, W = h.shape
    S = D * H * W
    x = h.reshape(C, N, S)
    ts, sp = _lane_tile(S)
    if sp != S:
        x = jnp.pad(x, ((0, 0), (0, 0), (0, sp - S)))
    scale, shift = bn
    n_classes = fc_w.shape[1]
    wt = jnp.transpose(fc_w).astype(jnp.float32)                  # (classes, C)
    kern = functools.partial(_gap_fc_kernel, true_s=S, ts=ts)
    out = pl.pallas_call(
        kern,
        out_shape=jax.ShapeDtypeStruct((n_classes, N), jnp.float32),
        grid=(sp // ts,),
        in_specs=[
            pl.BlockSpec((C, N, ts), lambda i: (0, 0, i)),
            pl.BlockSpec((C, 1, 1), lambda i: (0, 0, 0)),
            pl.BlockSpec((C, 1, 1), lambda i: (0, 0, 0)),
            pl.BlockSpec((n_classes, C), lambda i: (0, 0)),
            pl.BlockSpec((n_classes, 1), lambda i: (0, 0)),
        ],
        out_specs=pl.BlockSpec((n_classes, N), lambda i: (0, 0)),
        scratch_shapes=[pltpu.VMEM((C, N), jnp.float32)],
        compiler_params=pltpu.CompilerParams(dimension_semantics=("arbitrary",)),
    )(x, scale.reshape(C, 1, 1).astype(jnp.float32),
      shift.reshape(C, 1, 1).astype(jnp.float32),
      wt, fc_b.reshape(n_classes, 1).astype(jnp.float32))
    return jnp.transpose(out)                                     # (N, classes)


# ----------------------------------------------------------------------------
# Forward pass (Pallas path)
# ----------------------------------------------------------------------------
def forward_pallas(params, x, sigmoid_finish=SIGMOID_FINISH):
    # x: (batch, channels, slice_count, height, width)  [PyTorch NCDHW]
    h = jnp.transpose(x, (1, 0, 2, 3, 4)).astype(_COMPUTE_DTYPE)  # (C, N, D, H, W)

    # Stem conv (3,7,7)/(1,2,2)/(1,3,3); BN1+ReLU fused into the GEMM epilogue;
    # max-pool skipped (no_max_pool=True).
    h = conv3d_pallas(h, params["conv1_w"], (1, 2, 2), (1, 3, 3),
                      epilogue=params["bn1"], relu_out=True)

    for block in params["blocks"]:
        for layer in block["layers"]:
            # BN1+ReLU (prologue) -> 1x1x1 conv -> BN2+ReLU (epilogue): one kernel.
            y = conv3d_pallas(h, layer["conv1_w"], (1, 1, 1), (0, 0, 0),
                              prologue=layer["bn1"], epilogue=layer["bn2"],
                              relu_out=True)
            # 3x3x3 conv (pre-activation already applied by the previous epilogue).
            y = conv3d_pallas(y, layer["conv2_w"], (1, 1, 1), (1, 1, 1))
            # dropout(p=0.1) is identity in eval mode.
            h = jnp.concatenate([h, y], axis=0)                   # dense connectivity
        if "trans_conv_w" in block:
            h = transition_pallas(h, block["trans_bn"], block["trans_conv_w"])

    # norm5 + F.relu + adaptive_avg_pool3d + flatten + classifier: one kernel.
    out = gap_fc_pallas(h, params["bn_final"], params["fc_w"], params["fc_b"])
    if sigmoid_finish:
        out = jax.nn.sigmoid(out)
    return out


# ----------------------------------------------------------------------------
# Pure-JAX f32 reference (independent ops; source of truth for correctness)
# ----------------------------------------------------------------------------
def _bn_relu_ref(x, scale, shift):
    return jnp.maximum(x * scale.reshape(1, -1, 1, 1, 1)
                       + shift.reshape(1, -1, 1, 1, 1), 0.0)


def _conv3d_ref(x, w, stride, padding):
    return jax.lax.conv_general_dilated(
        x, w, window_strides=stride, padding=[(p, p) for p in padding],
        dimension_numbers=("NCDHW", "DHWIO", "NCDHW"),
        precision=jax.lax.Precision.HIGHEST)


def _avg_pool_ref(x):
    n, c, d, h, w = x.shape
    d2, h2, w2 = d // 2, h // 2, w // 2
    x = x[:, :, :2 * d2, :2 * h2, :2 * w2]
    return jnp.mean(x.reshape(n, c, d2, 2, h2, 2, w2, 2), axis=(3, 5, 7))


def forward_reference(params, x, sigmoid_finish=SIGMOID_FINISH):
    h = x.astype(jnp.float32)
    h = _conv3d_ref(h, params["conv1_w"], (1, 2, 2), (1, 3, 3))
    h = _bn_relu_ref(h, *params["bn1"])
    for block in params["blocks"]:
        for layer in block["layers"]:
            y = _bn_relu_ref(h, *layer["bn1"])
            y = _conv3d_ref(y, layer["conv1_w"], (1, 1, 1), (0, 0, 0))
            y = _bn_relu_ref(y, *layer["bn2"])
            y = _conv3d_ref(y, layer["conv2_w"], (1, 1, 1), (1, 1, 1))
            h = jnp.concatenate([h, y], axis=1)
        if "trans_conv_w" in block:
            h = _bn_relu_ref(h, *block["trans_bn"])
            h = _conv3d_ref(h, block["trans_conv_w"], (1, 1, 1), (0, 0, 0))
            h = _avg_pool_ref(h)
    h = _bn_relu_ref(h, *params["bn_final"])
    pooled = jnp.mean(h, axis=(2, 3, 4))                          # (N, C)
    out = pooled @ params["fc_w"] + params["fc_b"]
    if sigmoid_finish:
        out = jax.nn.sigmoid(out)
    return out


# ----------------------------------------------------------------------------
# Deterministic parameter initialization (eval-mode BN folded to scale/shift)
# ----------------------------------------------------------------------------
def _make_bn(key, c):
    k1, k2, k3, k4 = jax.random.split(key, 4)
    gamma = 1.0 + 0.1 * jax.random.normal(k1, (c,), jnp.float32)
    beta = 0.1 * jax.random.normal(k2, (c,), jnp.float32)
    mean = 0.1 * jax.random.normal(k3, (c,), jnp.float32)
    var = 1.0 + 0.1 * jnp.abs(jax.random.normal(k4, (c,), jnp.float32))
    scale = gamma / jnp.sqrt(var + 1e-5)
    shift = beta - mean * scale
    return scale, shift


def _make_conv_w(key, kd, kh, kw, cin, cout):
    fan_in = kd * kh * kw * cin
    return jax.random.normal(key, (kd, kh, kw, cin, cout), jnp.float32) / jnp.sqrt(
        float(fan_in))


def init_params(key):
    keys = iter(jax.random.split(key, 256))
    nk = lambda: next(keys)
    params = {}
    params["conv1_w"] = _make_conv_w(nk(), CONV1_T_SIZE, 7, 7, IN_CHANNELS,
                                     NUM_INIT_FEATURES)
    params["bn1"] = _make_bn(nk(), NUM_INIT_FEATURES)

    blocks = []
    c = NUM_INIT_FEATURES
    for bi, n_layers in enumerate(BLOCK_CONFIG):
        layers = []
        for _ in range(n_layers):
            inter = BN_SIZE * GROWTH_RATE
            layers.append({
                "bn1": _make_bn(nk(), c),
                "conv1_w": _make_conv_w(nk(), 1, 1, 1, c, inter),
                "bn2": _make_bn(nk(), inter),
                "conv2_w": _make_conv_w(nk(), 3, 3, 3, inter, GROWTH_RATE),
            })
            c += GROWTH_RATE
        block = {"layers": layers}
        if bi != len(BLOCK_CONFIG) - 1:
            block["trans_bn"] = _make_bn(nk(), c)
            block["trans_conv_w"] = _make_conv_w(nk(), 1, 1, 1, c, c // 2)
            c = c // 2
        blocks.append(block)
    params["blocks"] = blocks

    params["bn_final"] = _make_bn(nk(), c)
    params["fc_w"] = 0.1 * jax.random.normal(nk(), (c, NUM_CLASSES), jnp.float32)
    params["fc_b"] = 0.1 * jax.random.normal(nk(), (NUM_CLASSES,), jnp.float32)
    return params


# ----------------------------------------------------------------------------
if __name__ == "__main__":
    key = jax.random.PRNGKey(0)
    pkey, xkey = jax.random.split(key)
    params = init_params(pkey)

    # (batch=2, in_channels=1, slice_count=8, height=16, width=16)
    x = jax.random.normal(xkey, (2, IN_CHANNELS, 8, 16, 16), jnp.float32)

    fwd_pallas = jax.jit(forward_pallas)
    fwd_ref = jax.jit(forward_reference)

    out = jax.block_until_ready(fwd_pallas(params, x))
    ref = jax.block_until_ready(fwd_ref(params, x))

    assert out.shape == (2, NUM_CLASSES), out.shape
    assert bool(jnp.all(jnp.isfinite(out)))
    # Pallas path may store activations / run the MXU in bf16; compare loosely to f32.
    assert jnp.allclose(out, ref, rtol=5e-2, atol=5e-2), (out, ref)

    print("KERNEL_OK")
</pallas_src>

<mosaic_0001>
module attributes {stable_mosaic.version = 11 : i64} {
  func.func @_fused_gemm_kernel(%arg0: i32, %arg1: memref<147x512xf32, #tpu.memory_space<vmem>>, %arg2: memref<16x147xf32, #tpu.memory_space<vmem>>, %arg3: memref<16x1xf32, #tpu.memory_space<vmem>>, %arg4: memref<16x1xf32, #tpu.memory_space<vmem>>, %arg5: memref<16x512xf32, #tpu.memory_space<vmem>>) attributes {dimension_semantics = [#tpu.dimension_semantics<parallel>], iteration_bounds = array<i64: 2>, scalar_prefetch = 0 : i64, scratch_operands = 0 : i64, tpu.core_type = #tpu.core_type<tc>, window_params = [{transform_indices = @transform_0, window_bounds = array<i64: 147, 512>}, {pipeline_mode = #tpu.pipeline_mode<synchronous>, transform_indices = @transform_1, window_bounds = array<i64: 16, 147>}, {pipeline_mode = #tpu.pipeline_mode<synchronous>, transform_indices = @transform_2, window_bounds = array<i64: 16, 1>}, {pipeline_mode = #tpu.pipeline_mode<synchronous>, transform_indices = @transform_3, window_bounds = array<i64: 16, 1>}, {transform_indices = @transform_4, window_bounds = array<i64: 16, 512>}]} {
    %c0 = arith.constant 0 : index
    %c0_0 = arith.constant 0 : index
    %0 = vector.load %arg1[%c0, %c0_0] : memref<147x512xf32, #tpu.memory_space<vmem>>, vector<147x512xf32>
    %c0_1 = arith.constant 0 : index
    %c0_2 = arith.constant 0 : index
    %1 = vector.load %arg2[%c0_1, %c0_2] : memref<16x147xf32, #tpu.memory_space<vmem>>, vector<16x147xf32>
    %cst = arith.constant dense<0.000000e+00> : vector<16x512xf32>
    %2 = tpu.matmul %1, %0, %cst {dimension_numbers = #tpu.dot_dimension_numbers<[1], [0], [0], [1], [0, 0, 1, 1], [], []>} : vector<16x147xf32>, vector<147x512xf32>, vector<16x512xf32> -> vector<16x512xf32>
    %c0_3 = arith.constant 0 : index
    %c0_4 = arith.constant 0 : index
    %3 = vector.load %arg3[%c0_3, %c0_4] : memref<16x1xf32, #tpu.memory_space<vmem>>, vector<16x1xf32>
    %4 = vector.broadcast %3 : vector<16x1xf32> to vector<16x512xf32>
    %5 = arith.mulf %2, %4 : vector<16x512xf32>
    %c0_5 = arith.constant 0 : index
    %c0_6 = arith.constant 0 : index
    %6 = vector.load %arg4[%c0_5, %c0_6] : memref<16x1xf32, #tpu.memory_space<vmem>>, vector<16x1xf32>
    %7 = vector.broadcast %6 : vector<16x1xf32> to vector<16x512xf32>
    %8 = arith.addf %5, %7 : vector<16x512xf32>
    %cst_7 = arith.constant 0.000000e+00 : f32
    %9 = vector.broadcast %cst_7 : f32 to vector<16x512xf32>
    %10 = arith.maximumf %8, %9 : vector<16x512xf32>
    %c0_8 = arith.constant 0 : index
    %c0_9 = arith.constant 0 : index
    %11 = vector.load %arg5[%c0_8, %c0_9] : memref<16x512xf32, #tpu.memory_space<vmem>>, vector<16x512xf32>
    tpu.vector_store %arg5[%c0_8, %c0_9], %10 {strides = array<i32>} : memref<16x512xf32, #tpu.memory_space<vmem>>, vector<16x512xf32>,
    return
  }
  func.func @transform_0(%arg0: i32) -> (i32, i32) {
    %c0_i32 = arith.constant 0 : i32
    %c0_i32_0 = arith.constant 0 : i32
    return %c0_i32, %arg0 : i32, i32
  }
  func.func @transform_1(%arg0: i32) -> (i32, i32) {
    %c0_i32 = arith.constant 0 : i32
    %c0_i32_0 = arith.constant 0 : i32
    %c0_i32_1 = arith.constant 0 : i32
    return %c0_i32, %c0_i32_0 : i32, i32
  }
  func.func @transform_2(%arg0: i32) -> (i32, i32) {
    %c0_i32 = arith.constant 0 : i32
    %c0_i32_0 = arith.constant 0 : i32
    %c0_i32_1 = arith.constant 0 : i32
    return %c0_i32, %c0_i32_0 : i32, i32
  }
  func.func @transform_3(%arg0: i32) -> (i32, i32) {
    %c0_i32 = arith.constant 0 : i32
    %c0_i32_0 = arith.constant 0 : i32
    %c0_i32_1 = arith.constant 0 : i32
    return %c0_i32, %c0_i32_0 : i32, i32
  }
  func.func @transform_4(%arg0: i32) -> (i32, i32) {
    %c0_i32 = arith.constant 0 : i32
    %c0_i32_0 = arith.constant 0 : i32
    return %c0_i32, %arg0 : i32, i32
  }
}

module attributes {stable_mosaic.version = 11 : i64} {
  func.func @_fused_gemm_kernel(%arg0: i32, %arg1: memref<16x512xf32, #tpu.memory_space<vmem>>, %arg2: memref<16x16xf32, #tpu.memory_space<vmem>>, %arg3: memref<16x1xf32, #tpu.memory_space<vmem>>, %arg4: memref<16x1xf32, #tpu.memory_space<vmem>>, %arg5: memref<16x1xf32, #tpu.memory_space<vmem>>, %arg6: memref<16x1xf32, #tpu.memory_space<vmem>>, %arg7: memref<16x512xf32, #tpu.memory_space<vmem>>) attributes {dimension_semantics = [#tpu.dimension_semantics<parallel>], iteration_bounds = array<i64: 2>, scalar_prefetch = 0 : i64, scratch_operands = 0 : i64, tpu.core_type = #tpu.core_type<tc>, window_params = [{transform_indices = @transform_0, window_bounds = array<i64: 16, 512>}, {pipeline_mode = #tpu.pipeline_mode<synchronous>, transform_indices = @transform_1, window_bounds = array<i64: 16, 16>}, {pipeline_mode = #tpu.pipeline_mode<synchronous>, transform_indices = @transform_2, window_bounds = array<i64: 16, 1>}, {pipeline_mode = #tpu.pipeline_mode<synchronous>, transform_indices = @transform_3, window_bounds = array<i64: 16, 1>}, {pipeline_mode = #tpu.pipeline_mode<synchronous>, transform_indices = @transform_4, window_bounds = array<i64: 16, 1>}, {pipeline_mode = #tpu.pipeline_mode<synchronous>, transform_indices = @transform_5, window_bounds = array<i64: 16, 1>}, {transform_indices = @transform_6, window_bounds = array<i64: 16, 512>}]} {
    %c0 = arith.constant 0 : index
    %c0_0 = arith.constant 0 : index
    %0 = vector.load %arg1[%c0, %c0_0] : memref<16x512xf32, #tpu.memory_space<vmem>>, vector<16x512xf32>
    %c0_1 = arith.constant 0 : index
    %c0_2 = arith.constant 0 : index
    %1 = vector.load %arg3[%c0_1, %c0_2] : memref<16x1xf32, #tpu.memory_space<vmem>>, vector<16x1xf32>
    %2 = vector.broadcast %1 : vector<16x1xf32> to vector<16x512xf32>
    %3 = arith.mulf %0, %2 : vector<16x512xf32>
    %c0_3 = arith.constant 0 : index
    %c0_4 = arith.constant 0 : index
    %4 = vector.load %arg4[%c0_3, %c0_4] : memref<16x1xf32, #tpu.memory_space<vmem>>, vector<16x1xf32>
    %5 = vector.broadcast %4 : vector<16x1xf32> to vector<16x512xf32>
    %6 = arith.addf %3, %5 : vector<16x512xf32>
    %cst = arith.constant 0.000000e+00 : f32
    %7 = vector.broadcast %cst : f32 to vector<16x512xf32>
    %8 = arith.maximumf %6, %7 : vector<16x512xf32>
    %c0_5 = arith.constant 0 : index
    %c0_6 = arith.constant 0 : index
    %9 = vector.load %arg2[%c0_5, %c0_6] : memref<16x16xf32, #tpu.memory_space<vmem>>, vector<16x16xf32>
    %cst_7 = arith.constant dense<0.000000e+00> : vector<16x512xf32>
    %10 = tpu.matmul %9, %8, %cst_7 {dimension_numbers = #tpu.dot_dimension_numbers<[1], [0], [0], [1], [0, 0, 1, 1], [], []>} : vector<16x16xf32>, vector<16x512xf32>, vector<16x512xf32> -> vector<16x512xf32>
    %c0_8 = arith.constant 0 : index
    %c0_9 = arith.constant 0 : index
    %11 = vector.load %arg5[%c0_8, %c0_9] : memref<16x1xf32, #tpu.memory_space<vmem>>, vector<16x1xf32>
    %12 = vector.broadcast %11 : vector<16x1xf32> to vector<16x512xf32>
    %13 = arith.mulf %10, %12 : vector<16x512xf32>
    %c0_10 = arith.constant 0 : index
    %c0_11 = arith.constant 0 : index
    %14 = vector.load %arg6[%c0_10, %c0_11] : memref<16x1xf32, #tpu.memory_space<vmem>>, vector<16x1xf32>
    %15 = vector.broadcast %14 : vector<16x1xf32> to vector<16x512xf32>
    %16 = arith.addf %13, %15 : vector<16x512xf32>
    %cst_12 = arith.constant 0.000000e+00 : f32
    %17 = vector.broadcast %cst_12 : f32 to vector<16x512xf32>
    %18 = arith.maximumf %16, %17 : vector<16x512xf32>
    %c0_13 = arith.constant 0 : index
    %c0_14 = arith.constant 0 : index
    %19 = vector.load %arg7[%c0_13, %c0_14] : memref<16x512xf32, #tpu.memory_space<vmem>>, vector<16x512xf32>
    tpu.vector_store %arg7[%c0_13, %c0_14], %18 {strides = array<i32>} : memref<16x512xf32, #tpu.memory_space<vmem>>, vector<16x512xf32>,
    return
  }
  func.func @transform_0(%arg0: i32) -> (i32, i32) {
    %c0_i32 = arith.constant 0 : i32
    %c0_i32_0 = arith.constant 0 : i32
    return %c0_i32, %arg0 : i32, i32
  }
  func.func @transform_1(%arg0: i32) -> (i32, i32) {
    %c0_i32 = arith.constant 0 : i32
    %c0_i32_0 = arith.constant 0 : i32
    %c0_i32_1 = arith.constant 0 : i32
    return %c0_i32, %c0_i32_0 : i32, i32
  }
  func.func @transform_2(%arg0: i32) -> (i32, i32) {
    %c0_i32 = arith.constant 0 : i32
    %c0_i32_0 = arith.constant 0 : i32
    %c0_i32_1 = arith.constant 0 : i32
    return %c0_i32, %c0_i32_0 : i32, i32
  }
  func.func @transform_3(%arg0: i32) -> (i32, i32) {
    %c0_i32 = arith.constant 0 : i32
    %c0_i32_0 = arith.constant 0 : i32
    %c0_i32_1 = arith.constant 0 : i32
    return %c0_i32, %c0_i32_0 : i32, i32
  }
  func.func @transform_4(%arg0: i32) -> (i32, i32) {
    %c0_i32 = arith.constant 0 : i32
    %c0_i32_0 = arith.constant 0 : i32
    %c0_i32_1 = arith.constant 0 : i32
    return %c0_i32, %c0_i32_0 : i32, i32
  }
  func.func @transform_5(%arg0: i32) -> (i32, i32) {
    %c0_i32 = arith.constant 0 : i32
    %c0_i32_0 = arith.constant 0 : i32
    %c0_i32_1 = arith.constant 0 : i32
    return %c0_i32, %c0_i32_0 : i32, i32
  }
  func.func @transform_6(%arg0: i32) -> (i32, i32) {
    %c0_i32 = arith.constant 0 : i32
    %c0_i32_0 = arith.constant 0 : i32
    return %c0_i32, %arg0 : i32, i32
  }
}

module attributes {stable_mosaic.version = 11 : i64} {
  func.func @_fused_gemm_kernel(%arg0: i32, %arg1: memref<432x512xf32, #tpu.memory_space<vmem>>, %arg2: memref<8x432xf32, #tpu.memory_space<vmem>>, %arg3: memref<8x512xf32, #tpu.memory_space<vmem>>) attributes {dimension_semantics = [#tpu.dimension_semantics<parallel>], iteration_bounds = array<i64: 2>, scalar_prefetch = 0 : i64, scratch_operands = 0 : i64, tpu.core_type = #tpu.core_type<tc>, window_params = [{transform_indices = @transform_0, window_bounds = array<i64: 432, 512>}, {pipeline_mode = #tpu.pipeline_mode<synchronous>, transform_indices = @transform_1, window_bounds = array<i64: 8, 432>}, {transform_indices = @transform_2, window_bounds = array<i64: 8, 512>}]} {
    %c0 = arith.constant 0 : index
    %c0_0 = arith.constant 0 : index
    %0 = vector.load %arg1[%c0, %c0_0] : memref<432x512xf32, #tpu.memory_space<vmem>>, vector<432x512xf32>
    %c0_1 = arith.constant 0 : index
    %c0_2 = arith.constant 0 : index
    %1 = vector.load %arg2[%c0_1, %c0_2] : memref<8x432xf32, #tpu.memory_space<vmem>>, vector<8x432xf32>
    %cst = arith.constant dense<0.000000e+00> : vector<8x512xf32>
    %2 = tpu.matmul %1, %0, %cst {dimension_numbers = #tpu.dot_dimension_numbers<[1], [0], [0], [1], [0, 0, 1, 1], [], []>} : vector<8x432xf32>, vector<432x512xf32>, vector<8x512xf32> -> vector<8x512xf32>
    %c0_3 = arith.constant 0 : index
    %c0_4 = arith.constant 0 : index
    %3 = vector.load %arg3[%c0_3, %c0_4] : memref<8x512xf32, #tpu.memory_space<vmem>>, vector<8x512xf32>
    tpu.vector_store %arg3[%c0_3, %c0_4], %2 {strides = array<i32>} : memref<8x512xf32, #tpu.memory_space<vmem>>, vector<8x512xf32>,
    return
  }
  func.func @transform_0(%arg0: i32) -> (i32, i32) {
    %c0_i32 = arith.constant 0 : i32
    %c0_i32_0 = arith.constant 0 : i32
    return %c0_i32, %arg0 : i32, i32
  }
  func.func @transform_1(%arg0: i32) -> (i32, i32) {
    %c0_i32 = arith.constant 0 : i32
    %c0_i32_0 = arith.constant 0 : i32
    %c0_i32_1 = arith.constant 0 : i32
    return %c0_i32, %c0_i32_0 : i32, i32
  }
  func.func @transform_2(%arg0: i32) -> (i32, i32) {
    %c0_i32 = arith.constant 0 : i32
    %c0_i32_0 = arith.constant 0 : i32
    return %c0_i32, %arg0 : i32, i32
  }
}

module attributes {stable_mosaic.version = 11 : i64} {
  func.func @_fused_gemm_kernel(%arg0: i32, %arg1: memref<24x512xf32, #tpu.memory_space<vmem>>, %arg2: memref<16x24xf32, #tpu.memory_space<vmem>>, %arg3: memref<24x1xf32, #tpu.memory_space<vmem>>, %arg4: memref<24x1xf32, #tpu.memory_space<vmem>>, %arg5: memref<16x1xf32, #tpu.memory_space<vmem>>, %arg6: memref<16x1xf32, #tpu.memory_space<vmem>>, %arg7: memref<16x512xf32, #tpu.memory_space<vmem>>) attributes {dimension_semantics = [#tpu.dimension_semantics<parallel>], iteration_bounds = array<i64: 2>, scalar_prefetch = 0 : i64, scratch_operands = 0 : i64, tpu.core_type = #tpu.core_type<tc>, window_params = [{transform_indices = @transform_0, window_bounds = array<i64: 24, 512>}, {pipeline_mode = #tpu.pipeline_mode<synchronous>, transform_indices = @transform_1, window_bounds = array<i64: 16, 24>}, {pipeline_mode = #tpu.pipeline_mode<synchronous>, transform_indices = @transform_2, window_bounds = array<i64: 24, 1>}, {pipeline_mode = #tpu.pipeline_mode<synchronous>, transform_indices = @transform_3, window_bounds = array<i64: 24, 1>}, {pipeline_mode = #tpu.pipeline_mode<synchronous>, transform_indices = @transform_4, window_bounds = array<i64: 16, 1>}, {pipeline_mode = #tpu.pipeline_mode<synchronous>, transform_indices = @transform_5, window_bounds = array<i64: 16, 1>}, {transform_indices = @transform_6, window_bounds = array<i64: 16, 512>}]} {
    %c0 = arith.constant 0 : index
    %c0_0 = arith.constant 0 : index
    %0 = vector.load %arg1[%c0, %c0_0] : memref<24x512xf32, #tpu.memory_space<vmem>>, vector<24x512xf32>
    %c0_1 = arith.constant 0 : index
    %c0_2 = arith.constant 0 : index
    %1 = vector.load %arg3[%c0_1, %c0_2] : memref<24x1xf32, #tpu.memory_space<vmem>>, vector<24x1xf32>
    %2 = vector.broadcast %1 : vector<24x1xf32> to vector<24x512xf32>
    %3 = arith.mulf %0, %2 : vector<24x512xf32>
    %c0_3 = arith.constant 0 : index
    %c0_4 = arith.constant 0 : index
    %4 = vector.load %arg4[%c0_3, %c0_4] : memref<24x1xf32, #tpu.memory_space<vmem>>, vector<24x1xf32>
    %5 = vector.broadcast %4 : vector<24x1xf32> to vector<24x512xf32>
    %6 = arith.addf %3, %5 : vector<24x512xf32>
    %cst = arith.constant 0.000000e+00 : f32
    %7 = vector.broadcast %cst : f32 to vector<24x512xf32>
    %8 = arith.maximumf %6, %7 : vector<24x512xf32>
    %c0_5 = arith.constant 0 : index
    %c0_6 = arith.constant 0 : index
    %9 = vector.load %arg2[%c0_5, %c0_6] : memref<16x24xf32, #tpu.memory_space<vmem>>, vector<16x24xf32>
    %cst_7 = arith.constant dense<0.000000e+00> : vector<16x512xf32>
    %10 = tpu.matmul %9, %8, %cst_7 {dimension_numbers = #tpu.dot_dimension_numbers<[1], [0], [0], [1], [0, 0, 1, 1], [], []>} : vector<16x24xf32>, vector<24x512xf32>, vector<16x512xf32> -> vector<16x512xf32>
    %c0_8 = arith.constant 0 : index
    %c0_9 = arith.constant 0 : index
    %11 = vector.load %arg5[%c0_8, %c0_9] : memref<16x1xf32, #tpu.memory_space<vmem>>, vector<16x1xf32>
    %12 = vector.broadcast %11 : vector<16x1xf32> to vector<16x512xf32>
    %13 = arith.mulf %10, %12 : vector<16x512xf32>
    %c0_10 = arith.constant 0 : index
    %c0_11 = arith.constant 0 : index
    %14 = vector.load %arg6[%c0_10, %c0_11] : memref<16x1xf32, #tpu.memory_space<vmem>>, vector<16x1xf32>
    %15 = vector.broadcast %14 : vector<16x1xf32> to vector<16x512xf32>
    %16 = arith.addf %13, %15 : vector<16x512xf32>
    %cst_12 = arith.constant 0.000000e+00 : f32
    %17 = vector.broadcast %cst_12 : f32 to vector<16x512xf32>
    %18 = arith.maximumf %16, %17 : vector<16x512xf32>
    %c0_13 = arith.constant 0 : index
    %c0_14 = arith.constant 0 : index
    %19 = vector.load %arg7[%c0_13, %c0_14] : memref<16x512xf32, #tpu.memory_space<vmem>>, vector<16x512xf32>
    tpu.vector_store %arg7[%c0_13, %c0_14], %18 {strides = array<i32>} : memref<16x512xf32, #tpu.memory_space<vmem>>, vector<16x512xf32>,
    return
  }
  func.func @transform_0(%arg0: i32) -> (i32, i32) {
    %c0_i32 = arith.constant 0 : i32
    %c0_i32_0 = arith.constant 0 : i32
    return %c0_i32, %arg0 : i32, i32
  }
  func.func @transform_1(%arg0: i32) -> (i32, i32) {
    %c0_i32 = arith.constant 0 : i32
    %c0_i32_0 = arith.constant 0 : i32
    %c0_i32_1 = arith.constant 0 : i32
    return %c0_i32, %c0_i32_0 : i32, i32
  }
  func.func @transform_2(%arg0: i32) -> (i32, i32) {
    %c0_i32 = arith.constant 0 : i32
    %c0_i32_0 = arith.constant 0 : i32
    %c0_i32_1 = arith.constant 0 : i32
    return %c0_i32, %c0_i32_0 : i32, i32
  }
  func.func @transform_3(%arg0: i32) -> (i32, i32) {
    %c0_i32 = arith.constant 0 : i32
    %c0_i32_0 = arith.constant 0 : i32
    %c0_i32_1 = arith.constant 0 : i32
    return %c0_i32, %c0_i32_0 : i32, i32
  }
  func.func @transform_4(%arg0: i32) -> (i32, i32) {
    %c0_i32 = arith.constant 0 : i32
    %c0_i32_0 = arith.constant 0 : i32
    %c0_i32_1 = arith.constant 0 : i32
    return %c0_i32, %c0_i32_0 : i32, i32
  }
  func.func @transform_5(%arg0: i32) -> (i32, i32) {
    %c0_i32 = arith.constant 0 : i32
    %c0_i32_0 = arith.constant 0 : i32
    %c0_i32_1 = arith.constant 0 : i32
    return %c0_i32, %c0_i32_0 : i32, i32
  }
  func.func @transform_6(%arg0: i32) -> (i32, i32) {
    %c0_i32 = arith.constant 0 : i32
    %c0_i32_0 = arith.constant 0 : i32
    return %c0_i32, %arg0 : i32, i32
  }
}

module attributes {stable_mosaic.version = 11 : i64} {
  func.func @_transition_kernel(%arg0: i32, %arg1: memref<32x8x128xf32, #tpu.memory_space<vmem>>, %arg2: memref<32x1x1xf32, #tpu.memory_space<vmem>>, %arg3: memref<32x1x1xf32, #tpu.memory_space<vmem>>, %arg4: memref<16x32xf32, #tpu.memory_space<vmem>>, %arg5: memref<16x128xf32, #tpu.memory_space<vmem>>) attributes {dimension_semantics = [#tpu.dimension_semantics<parallel>], iteration_bounds = array<i64: 1>, scalar_prefetch = 0 : i64, scratch_operands = 0 : i64, tpu.core_type = #tpu.core_type<tc>, window_params = [{transform_indices = @transform_0, window_bounds = array<i64: 32, 8, 128>}, {pipeline_mode = #tpu.pipeline_mode<synchronous>, transform_indices = @transform_1, window_bounds = array<i64: 32, 1, 1>}, {pipeline_mode = #tpu.pipeline_mode<synchronous>, transform_indices = @transform_2, window_bounds = array<i64: 32, 1, 1>}, {pipeline_mode = #tpu.pipeline_mode<synchronous>, transform_indices = @transform_3, window_bounds = array<i64: 16, 32>}, {transform_indices = @transform_4, window_bounds = array<i64: 16, 128>}]} {
    %c0 = arith.constant 0 : index
    %c0_0 = arith.constant 0 : index
    %c0_1 = arith.constant 0 : index
    %0 = vector.load %arg1[%c0, %c0_0, %c0_1] : memref<32x8x128xf32, #tpu.memory_space<vmem>>, vector<32x8x128xf32>
    %c0_2 = arith.constant 0 : index
    %c0_3 = arith.constant 0 : index
    %c0_4 = arith.constant 0 : index
    %1 = vector.load %arg2[%c0_2, %c0_3, %c0_4] : memref<32x1x1xf32, #tpu.memory_space<vmem>>, vector<32x1x1xf32>
    %2 = vector.broadcast %1 : vector<32x1x1xf32> to vector<32x8x128xf32>
    %3 = arith.mulf %0, %2 : vector<32x8x128xf32>
    %c0_5 = arith.constant 0 : index
    %c0_6 = arith.constant 0 : index
    %c0_7 = arith.constant 0 : index
    %4 = vector.load %arg3[%c0_5, %c0_6, %c0_7] : memref<32x1x1xf32, #tpu.memory_space<vmem>>, vector<32x1x1xf32>
    %5 = vector.broadcast %4 : vector<32x1x1xf32> to vector<32x8x128xf32>
    %6 = arith.addf %3, %5 : vector<32x8x128xf32>
    %cst = arith.constant 0.000000e+00 : f32
    %7 = vector.broadcast %cst : f32 to vector<32x8x128xf32>
    %8 = arith.maximumf %6, %7 : vector<32x8x128xf32>
    %cst_8 = arith.constant dense<0.000000e+00> : vector<32x128xf32>
    %9 = vector.multi_reduction <add>, %8, %cst_8 [1] : vector<32x8x128xf32> to vector<32x128xf32>
    %cst_9 = arith.constant 1.250000e-01 : f32
    %10 = vector.broadcast %cst_9 : f32 to vector<32x128xf32>
    %11 = arith.mulf %9, %10 : vector<32x128xf32>
    %c0_10 = arith.constant 0 : index
    %c0_11 = arith.constant 0 : index
    %12 = vector.load %arg4[%c0_10, %c0_11] : memref<16x32xf32, #tpu.memory_space<vmem>>, vector<16x32xf32>
    %cst_12 = arith.constant dense<0.000000e+00> : vector<16x128xf32>
    %13 = tpu.matmul %12, %11, %cst_12 {dimension_numbers = #tpu.dot_dimension_numbers<[1], [0], [0], [1], [0, 0, 1, 1], [], []>} : vector<16x32xf32>, vector<32x128xf32>, vector<16x128xf32> -> vector<16x128xf32>
    %c0_13 = arith.constant 0 : index
    %c0_14 = arith.constant 0 : index
    %14 = vector.load %arg5[%c0_13, %c0_14] : memref<16x128xf32, #tpu.memory_space<vmem>>, vector<16x128xf32>
    tpu.vector_store %arg5[%c0_13, %c0_14], %13 {strides = array<i32>} : memref<16x128xf32, #tpu.memory_space<vmem>>, vector<16x128xf32>,
    return
  }
  func.func @transform_0(%arg0: i32) -> (i32, i32, i32) {
    %c0_i32 = arith.constant 0 : i32
    %c0_i32_0 = arith.constant 0 : i32
    %c0_i32_1 = arith.constant 0 : i32
    return %c0_i32, %c0_i32_0, %arg0 : i32, i32, i32
  }
  func.func @transform_1(%arg0: i32) -> (i32, i32, i32) {
    %c0_i32 = arith.constant 0 : i32
    %c0_i32_0 = arith.constant 0 : i32
    %c0_i32_1 = arith.constant 0 : i32
    %c0_i32_2 = arith.constant 0 : i32
    return %c0_i32, %c0_i32_0, %c0_i32_1 : i32, i32, i32
  }
  func.func @transform_2(%arg0: i32) -> (i32, i32, i32) {
    %c0_i32 = arith.constant 0 : i32
    %c0_i32_0 = arith.constant 0 : i32
    %c0_i32_1 = arith.constant 0 : i32
    %c0_i32_2 = arith.constant 0 : i32
    return %c0_i32, %c0_i32_0, %c0_i32_1 : i32, i32, i32
  }
  func.func @transform_3(%arg0: i32) -> (i32, i32) {
    %c0_i32 = arith.constant 0 : i32
    %c0_i32_0 = arith.constant 0 : i32
    %c0_i32_1 = arith.constant 0 : i32
    return %c0_i32, %c0_i32_0 : i32, i32
  }
  func.func @transform_4(%arg0: i32) -> (i32, i32) {
    %c0_i32 = arith.constant 0 : i32
    %c0_i32_0 = arith.constant 0 : i32
    return %c0_i32, %arg0 : i32, i32
  }
}

module attributes {stable_mosaic.version = 11 : i64} {
  func.func @_fused_gemm_kernel(%arg0: i32, %arg1: memref<16x128xf32, #tpu.memory_space<vmem>>, %arg2: memref<16x16xf32, #tpu.memory_space<vmem>>, %arg3: memref<16x1xf32, #tpu.memory_space<vmem>>, %arg4: memref<16x1xf32, #tpu.memory_space<vmem>>, %arg5: memref<16x1xf32, #tpu.memory_space<vmem>>, %arg6: memref<16x1xf32, #tpu.memory_space<vmem>>, %arg7: memref<16x128xf32, #tpu.memory_space<vmem>>) attributes {dimension_semantics = [#tpu.dimension_semantics<parallel>], iteration_bounds = array<i64: 1>, scalar_prefetch = 0 : i64, scratch_operands = 0 : i64, tpu.core_type = #tpu.core_type<tc>, window_params = [{transform_indices = @transform_0, window_bounds = array<i64: 16, 128>}, {pipeline_mode = #tpu.pipeline_mode<synchronous>, transform_indices = @transform_1, window_bounds = array<i64: 16, 16>}, {pipeline_mode = #tpu.pipeline_mode<synchronous>, transform_indices = @transform_2, window_bounds = array<i64: 16, 1>}, {pipeline_mode = #tpu.pipeline_mode<synchronous>, transform_indices = @transform_3, window_bounds = array<i64: 16, 1>}, {pipeline_mode = #tpu.pipeline_mode<synchronous>, transform_indices = @transform_4, window_bounds = array<i64: 16, 1>}, {pipeline_mode = #tpu.pipeline_mode<synchronous>, transform_indices = @transform_5, window_bounds = array<i64: 16, 1>}, {transform_indices = @transform_6, window_bounds = array<i64: 16, 128>}]} {
    %c0 = arith.constant 0 : index
    %c0_0 = arith.constant 0 : index
    %0 = vector.load %arg1[%c0, %c0_0] : memref<16x128xf32, #tpu.memory_space<vmem>>, vector<16x128xf32>
    %c0_1 = arith.constant 0 : index
    %c0_2 = arith.constant 0 : index
    %1 = vector.load %arg3[%c0_1, %c0_2] : memref<16x1xf32, #tpu.memory_space<vmem>>, vector<16x1xf32>
    %2 = vector.broadcast %1 : vector<16x1xf32> to vector<16x128xf32>
    %3 = arith.mulf %0, %2 : vector<16x128xf32>
    %c0_3 = arith.constant 0 : index
    %c0_4 = arith.constant 0 : index
    %4 = vector.load %arg4[%c0_3, %c0_4] : memref<16x1xf32, #tpu.memory_space<vmem>>, vector<16x1xf32>
    %5 = vector.broadcast %4 : vector<16x1xf32> to vector<16x128xf32>
    %6 = arith.addf %3, %5 : vector<16x128xf32>
    %cst = arith.constant 0.000000e+00 : f32
    %7 = vector.broadcast %cst : f32 to vector<16x128xf32>
    %8 = arith.maximumf %6, %7 : vector<16x128xf32>
    %c0_5 = arith.constant 0 : index
    %c0_6 = arith.constant 0 : index
    %9 = vector.load %arg2[%c0_5, %c0_6] : memref<16x16xf32, #tpu.memory_space<vmem>>, vector<16x16xf32>
    %cst_7 = arith.constant dense<0.000000e+00> : vector<16x128xf32>
    %10 = tpu.matmul %9, %8, %cst_7 {dimension_numbers = #tpu.dot_dimension_numbers<[1], [0], [0], [1], [0, 0, 1, 1], [], []>} : vector<16x16xf32>, vector<16x128xf32>, vector<16x128xf32> -> vector<16x128xf32>
    %c0_8 = arith.constant 0 : index
    %c0_9 = arith.constant 0 : index
    %11 = vector.load %arg5[%c0_8, %c0_9] : memref<16x1xf32, #tpu.memory_space<vmem>>, vector<16x1xf32>
    %12 = vector.broadcast %11 : vector<16x1xf32> to vector<16x128xf32>
    %13 = arith.mulf %10, %12 : vector<16x128xf32>
    %c0_10 = arith.constant 0 : index
    %c0_11 = arith.constant 0 : index
    %14 = vector.load %arg6[%c0_10, %c0_11] : memref<16x1xf32, #tpu.memory_space<vmem>>, vector<16x1xf32>
    %15 = vector.broadcast %14 : vector<16x1xf32> to vector<16x128xf32>
    %16 = arith.addf %13, %15 : vector<16x128xf32>
    %cst_12 = arith.constant 0.000000e+00 : f32
    %17 = vector.broadcast %cst_12 : f32 to vector<16x128xf32>
    %18 = arith.maximumf %16, %17 : vector<16x128xf32>
    %c0_13 = arith.constant 0 : index
    %c0_14 = arith.constant 0 : index
    %19 = vector.load %arg7[%c0_13, %c0_14] : memref<16x128xf32, #tpu.memory_space<vmem>>, vector<16x128xf32>
    tpu.vector_store %arg7[%c0_13, %c0_14], %18 {strides = array<i32>} : memref<16x128xf32, #tpu.memory_space<vmem>>, vector<16x128xf32>,
    return
  }
  func.func @transform_0(%arg0: i32) -> (i32, i32) {
    %c0_i32 = arith.constant 0 : i32
    %c0_i32_0 = arith.constant 0 : i32
    return %c0_i32, %arg0 : i32, i32
  }
  func.func @transform_1(%arg0: i32) -> (i32, i32) {
    %c0_i32 = arith.constant 0 : i32
    %c0_i32_0 = arith.constant 0 : i32
    %c0_i32_1 = arith.constant 0 : i32
    return %c0_i32, %c0_i32_0 : i32, i32
  }
  func.func @transform_2(%arg0: i32) -> (i32, i32) {
    %c0_i32 = arith.constant 0 : i32
    %c0_i32_0 = arith.constant 0 : i32
    %c0_i32_1 = arith.constant 0 : i32
    return %c0_i32, %c0_i32_0 : i32, i32
  }
  func.func @transform_3(%arg0: i32) -> (i32, i32) {
    %c0_i32 = arith.constant 0 : i32
    %c0_i32_0 = arith.constant 0 : i32
    %c0_i32_1 = arith.constant 0 : i32
    return %c0_i32, %c0_i32_0 : i32, i32
  }
  func.func @transform_4(%arg0: i32) -> (i32, i32) {
    %c0_i32 = arith.constant 0 : i32
    %c0_i32_0 = arith.constant 0 : i32
    %c0_i32_1 = arith.constant 0 : i32
    return %c0_i32, %c0_i32_0 : i32, i32
  }
  func.func @transform_5(%arg0: i32) -> (i32, i32) {
    %c0_i32 = arith.constant 0 : i32
    %c0_i32_0 = arith.constant 0 : i32
    %c0_i32_1 = arith.constant 0 : i32
    return %c0_i32, %c0_i32_0 : i32, i32
  }
  func.func @transform_6(%arg0: i32) -> (i32, i32) {
    %c0_i32 = arith.constant 0 : i32
    %c0_i32_0 = arith.constant 0 : i32
    return %c0_i32, %arg0 : i32, i32
  }
}

module attributes {stable_mosaic.version = 11 : i64} {
  func.func @_fused_gemm_kernel(%arg0: i32, %arg1: memref<432x128xf32, #tpu.memory_space<vmem>>, %arg2: memref<8x432xf32, #tpu.memory_space<vmem>>, %arg3: memref<8x128xf32, #tpu.memory_space<vmem>>) attributes {dimension_semantics = [#tpu.dimension_semantics<parallel>], iteration_bounds = array<i64: 1>, scalar_prefetch = 0 : i64, scratch_operands = 0 : i64, tpu.core_type = #tpu.core_type<tc>, window_params = [{transform_indices = @transform_0, window_bounds = array<i64: 432, 128>}, {pipeline_mode = #tpu.pipeline_mode<synchronous>, transform_indices = @transform_1, window_bounds = array<i64: 8, 432>}, {transform_indices = @transform_2, window_bounds = array<i64: 8, 128>}]} {
    %c0 = arith.constant 0 : index
    %c0_0 = arith.constant 0 : index
    %0 = vector.load %arg1[%c0, %c0_0] : memref<432x128xf32, #tpu.memory_space<vmem>>, vector<432x128xf32>
    %c0_1 = arith.constant 0 : index
    %c0_2 = arith.constant 0 : index
    %1 = vector.load %arg2[%c0_1, %c0_2] : memref<8x432xf32, #tpu.memory_space<vmem>>, vector<8x432xf32>
    %cst = arith.constant dense<0.000000e+00> : vector<8x128xf32>
    %2 = tpu.matmul %1, %0, %cst {dimension_numbers = #tpu.dot_dimension_numbers<[1], [0], [0], [1], [0, 0, 1, 1], [], []>} : vector<8x432xf32>, vector<432x128xf32>, vector<8x128xf32> -> vector<8x128xf32>
    %c0_3 = arith.constant 0 : index
    %c0_4 = arith.constant 0 : index
    %3 = vector.load %arg3[%c0_3, %c0_4] : memref<8x128xf32, #tpu.memory_space<vmem>>, vector<8x128xf32>
    tpu.vector_store %arg3[%c0_3, %c0_4], %2 {strides = array<i32>} : memref<8x128xf32, #tpu.memory_space<vmem>>, vector<8x128xf32>,
    return
  }
  func.func @transform_0(%arg0: i32) -> (i32, i32) {
    %c0_i32 = arith.constant 0 : i32
    %c0_i32_0 = arith.constant 0 : i32
    return %c0_i32, %arg0 : i32, i32
  }
  func.func @transform_1(%arg0: i32) -> (i32, i32) {
    %c0_i32 = arith.constant 0 : i32
    %c0_i32_0 = arith.constant 0 : i32
    %c0_i32_1 = arith.constant 0 : i32
    return %c0_i32, %c0_i32_0 : i32, i32
  }
  func.func @transform_2(%arg0: i32) -> (i32, i32) {
    %c0_i32 = arith.constant 0 : i32
    %c0_i32_0 = arith.constant 0 : i32
    return %c0_i32, %arg0 : i32, i32
  }
}

module attributes {stable_mosaic.version = 11 : i64} {
  func.func @_fused_gemm_kernel(%arg0: i32, %arg1: memref<24x128xf32, #tpu.memory_space<vmem>>, %arg2: memref<16x24xf32, #tpu.memory_space<vmem>>, %arg3: memref<24x1xf32, #tpu.memory_space<vmem>>, %arg4: memref<24x1xf32, #tpu.memory_space<vmem>>, %arg5: memref<16x1xf32, #tpu.memory_space<vmem>>, %arg6: memref<16x1xf32, #tpu.memory_space<vmem>>, %arg7: memref<16x128xf32, #tpu.memory_space<vmem>>) attributes {dimension_semantics = [#tpu.dimension_semantics<parallel>], iteration_bounds = array<i64: 1>, scalar_prefetch = 0 : i64, scratch_operands = 0 : i64, tpu.core_type = #tpu.core_type<tc>, window_params = [{transform_indices = @transform_0, window_bounds = array<i64: 24, 128>}, {pipeline_mode = #tpu.pipeline_mode<synchronous>, transform_indices = @transform_1, window_bounds = array<i64: 16, 24>}, {pipeline_mode = #tpu.pipeline_mode<synchronous>, transform_indices = @transform_2, window_bounds = array<i64: 24, 1>}, {pipeline_mode = #tpu.pipeline_mode<synchronous>, transform_indices = @transform_3, window_bounds = array<i64: 24, 1>}, {pipeline_mode = #tpu.pipeline_mode<synchronous>, transform_indices = @transform_4, window_bounds = array<i64: 16, 1>}, {pipeline_mode = #tpu.pipeline_mode<synchronous>, transform_indices = @transform_5, window_bounds = array<i64: 16, 1>}, {transform_indices = @transform_6, window_bounds = array<i64: 16, 128>}]} {
    %c0 = arith.constant 0 : index
    %c0_0 = arith.constant 0 : index
    %0 = vector.load %arg1[%c0, %c0_0] : memref<24x128xf32, #tpu.memory_space<vmem>>, vector<24x128xf32>
    %c0_1 = arith.constant 0 : index
    %c0_2 = arith.constant 0 : index
    %1 = vector.load %arg3[%c0_1, %c0_2] : memref<24x1xf32, #tpu.memory_space<vmem>>, vector<24x1xf32>
    %2 = vector.broadcast %1 : vector<24x1xf32> to vector<24x128xf32>
    %3 = arith.mulf %0, %2 : vector<24x128xf32>
    %c0_3 = arith.constant 0 : index
    %c0_4 = arith.constant 0 : index
    %4 = vector.load %arg4[%c0_3, %c0_4] : memref<24x1xf32, #tpu.memory_space<vmem>>, vector<24x1xf32>
    %5 = vector.broadcast %4 : vector<24x1xf32> to vector<24x128xf32>
    %6 = arith.addf %3, %5 : vector<24x128xf32>
    %cst = arith.constant 0.000000e+00 : f32
    %7 = vector.broadcast %cst : f32 to vector<24x128xf32>
    %8 = arith.maximumf %6, %7 : vector<24x128xf32>
    %c0_5 = arith.constant 0 : index
    %c0_6 = arith.constant 0 : index
    %9 = vector.load %arg2[%c0_5, %c0_6] : memref<16x24xf32, #tpu.memory_space<vmem>>, vector<16x24xf32>
    %cst_7 = arith.constant dense<0.000000e+00> : vector<16x128xf32>
    %10 = tpu.matmul %9, %8, %cst_7 {dimension_numbers = #tpu.dot_dimension_numbers<[1], [0], [0], [1], [0, 0, 1, 1], [], []>} : vector<16x24xf32>, vector<24x128xf32>, vector<16x128xf32> -> vector<16x128xf32>
    %c0_8 = arith.constant 0 : index
    %c0_9 = arith.constant 0 : index
    %11 = vector.load %arg5[%c0_8, %c0_9] : memref<16x1xf32, #tpu.memory_space<vmem>>, vector<16x1xf32>
    %12 = vector.broadcast %11 : vector<16x1xf32> to vector<16x128xf32>
    %13 = arith.mulf %10, %12 : vector<16x128xf32>
    %c0_10 = arith.constant 0 : index
    %c0_11 = arith.constant 0 : index
    %14 = vector.load %arg6[%c0_10, %c0_11] : memref<16x1xf32, #tpu.memory_space<vmem>>, vector<16x1xf32>
    %15 = vector.broadcast %14 : vector<16x1xf32> to vector<16x128xf32>
    %16 = arith.addf %13, %15 : vector<16x128xf32>
    %cst_12 = arith.constant 0.000000e+00 : f32
    %17 = vector.broadcast %cst_12 : f32 to vector<16x128xf32>
    %18 = arith.maximumf %16, %17 : vector<16x128xf32>
    %c0_13 = arith.constant 0 : index
    %c0_14 = arith.constant 0 : index
    %19 = vector.load %arg7[%c0_13, %c0_14] : memref<16x128xf32, #tpu.memory_space<vmem>>, vector<16x128xf32>
    tpu.vector_store %arg7[%c0_13, %c0_14], %18 {strides = array<i32>} : memref<16x128xf32, #tpu.memory_space<vmem>>, vector<16x128xf32>,
    return
  }
  func.func @transform_0(%arg0: i32) -> (i32, i32) {
    %c0_i32 = arith.constant 0 : i32
    %c0_i32_0 = arith.constant 0 : i32
    return %c0_i32, %arg0 : i32, i32
  }
  func.func @transform_1(%arg0: i32) -> (i32, i32) {
    %c0_i32 = arith.constant 0 : i32
    %c0_i32_0 = arith.constant 0 : i32
    %c0_i32_1 = arith.constant 0 : i32
    return %c0_i32, %c0_i32_0 : i32, i32
  }
  func.func @transform_2(%arg0: i32) -> (i32, i32) {
    %c0_i32 = arith.constant 0 : i32
    %c0_i32_0 = arith.constant 0 : i32
    %c0_i32_1 = arith.constant 0 : i32
    return %c0_i32, %c0_i32_0 : i32, i32
  }
  func.func @transform_3(%arg0: i32) -> (i32, i32) {
    %c0_i32 = arith.constant 0 : i32
    %c0_i32_0 = arith.constant 0 : i32
    %c0_i32_1 = arith.constant 0 : i32
    return %c0_i32, %c0_i32_0 : i32, i32
  }
  func.func @transform_4(%arg0: i32) -> (i32, i32) {
    %c0_i32 = arith.constant 0 : i32
    %c0_i32_0 = arith.constant 0 : i32
    %c0_i32_1 = arith.constant 0 : i32
    return %c0_i32, %c0_i32_0 : i32, i32
  }
  func.func @transform_5(%arg0: i32) -> (i32, i32) {
    %c0_i32 = arith.constant 0 : i32
    %c0_i32_0 = arith.constant 0 : i32
    %c0_i32_1 = arith.constant 0 : i32
    return %c0_i32, %c0_i32_0 : i32, i32
  }
  func.func @transform_6(%arg0: i32) -> (i32, i32) {
    %c0_i32 = arith.constant 0 : i32
    %c0_i32_0 = arith.constant 0 : i32
    return %c0_i32, %arg0 : i32, i32
  }
}

module attributes {stable_mosaic.version = 11 : i64} {
  func.func @_gap_fc_kernel(%arg0: i32, %arg1: memref<32x2x128xf32, #tpu.memory_space<vmem>>, %arg2: memref<32x1x1xf32, #tpu.memory_space<vmem>>, %arg3: memref<32x1x1xf32, #tpu.memory_space<vmem>>, %arg4: memref<1x32xf32, #tpu.memory_space<vmem>>, %arg5: memref<1x1xf32, #tpu.memory_space<vmem>>, %arg6: memref<1x2xf32, #tpu.memory_space<vmem>>, %arg7: memref<32x2xf32, #tpu.memory_space<vmem>>) attributes {dimension_semantics = [#tpu.dimension_semantics<arbitrary>], iteration_bounds = array<i64: 1>, scalar_prefetch = 0 : i64, scratch_operands = 1 : i64, tpu.core_type = #tpu.core_type<tc>, window_params = [{transform_indices = @transform_0, window_bounds = array<i64: 32, 2, 128>}, {pipeline_mode = #tpu.pipeline_mode<synchronous>, transform_indices = @transform_1, window_bounds = array<i64: 32, 1, 1>}, {pipeline_mode = #tpu.pipeline_mode<synchronous>, transform_indices = @transform_2, window_bounds = array<i64: 32, 1, 1>}, {pipeline_mode = #tpu.pipeline_mode<synchronous>, transform_indices = @transform_3, window_bounds = array<i64: 1, 32>}, {pipeline_mode = #tpu.pipeline_mode<synchronous>, transform_indices = @transform_4, window_bounds = array<i64: 1, 1>}, {pipeline_mode = #tpu.pipeline_mode<synchronous>, transform_indices = @transform_5, window_bounds = array<i64: 1, 2>}]} {
    %c0_i32 = arith.constant 0 : i32
    %0 = arith.cmpi eq, %arg0, %c0_i32 : i32
    %1 = arith.extui %0 : i1 to i32
    %c0_i32_0 = arith.constant 0 : i32
    %2 = arith.cmpi ne, %1, %c0_i32_0 : i32
    scf.if %2 {
      %cst_17 = arith.constant 0.000000e+00 : f32
      %27 = vector.broadcast %cst_17 : f32 to vector<32x2xf32>
      %c0_18 = arith.constant 0 : index
      %c0_19 = arith.constant 0 : index
      %28 = vector.load %arg7[%c0_18, %c0_19] : memref<32x2xf32, #tpu.memory_space<vmem>>, vector<32x2xf32>
      tpu.vector_store %arg7[%c0_18, %c0_19], %27 {strides = array<i32>} : memref<32x2xf32, #tpu.memory_space<vmem>>, vector<32x2xf32>,
    } else {
    }
    %c0 = arith.constant 0 : index
    %c0_1 = arith.constant 0 : index
    %c0_2 = arith.constant 0 : index
    %3 = vector.load %arg1[%c0, %c0_1, %c0_2] : memref<32x2x128xf32, #tpu.memory_space<vmem>>, vector<32x2x128xf32>
    %c0_3 = arith.constant 0 : index
    %c0_4 = arith.constant 0 : index
    %c0_5 = arith.constant 0 : index
    %4 = vector.load %arg2[%c0_3, %c0_4, %c0_5] : memref<32x1x1xf32, #tpu.memory_space<vmem>>, vector<32x1x1xf32>
    %5 = vector.broadcast %4 : vector<32x1x1xf32> to vector<32x2x128xf32>
    %6 = arith.mulf %3, %5 : vector<32x2x128xf32>
    %c0_6 = arith.constant 0 : index
    %c0_7 = arith.constant 0 : index
    %c0_8 = arith.constant 0 : index
    %7 = vector.load %arg3[%c0_6, %c0_7, %c0_8] : memref<32x1x1xf32, #tpu.memory_space<vmem>>, vector<32x1x1xf32>
    %8 = vector.broadcast %7 : vector<32x1x1xf32> to vector<32x2x128xf32>
    %9 = arith.addf %6, %8 : vector<32x2x128xf32>
    %cst = arith.constant 0.000000e+00 : f32
    %10 = vector.broadcast %cst : f32 to vector<32x2x128xf32>
    %11 = arith.maximumf %9, %10 : vector<32x2x128xf32>
    %c128_i32 = arith.constant 128 : i32
    %12 = arith.muli %arg0, %c128_i32 : i32
    %13 = tpu.iota {dimensions = array<i32: 2>} : vector<32x2x128xi32>
    %14 = vector.broadcast %12 : i32 to vector<32x2x128xi32>
    %15 = arith.addi %14, %13 : vector<32x2x128xi32>
    %c1_i32 = arith.constant 1 : i32
    %16 = vector.broadcast %c1_i32 : i32 to vector<32x2x128xi32>
    %17 = arith.cmpi slt, %15, %16 : vector<32x2x128xi32>
    %cst_9 = arith.constant 0.000000e+00 : f32
    %18 = vector.broadcast %cst_9 : f32 to vector<32x2x128xf32>
    %19 = arith.select %17, %11, %18 : vector<32x2x128xi1>, vector<32x2x128xf32>
    %c0_10 = arith.constant 0 : index
    %c0_11 = arith.constant 0 : index
    %20 = vector.load %arg7[%c0_10, %c0_11] : memref<32x2xf32, #tpu.memory_space<vmem>>, vector<32x2xf32>
    %cst_12 = arith.constant dense<0.000000e+00> : vector<32x2xf32>
    %21 = vector.multi_reduction <add>, %19, %cst_12 [2] : vector<32x2x128xf32> to vector<32x2xf32>
    %22 = arith.addf %20, %21 : vector<32x2xf32>
    %c0_13 = arith.constant 0 : index
    %c0_14 = arith.constant 0 : index
    %23 = vector.load %arg7[%c0_13, %c0_14] : memref<32x2xf32, #tpu.memory_space<vmem>>, vector<32x2xf32>
    tpu.vector_store %arg7[%c0_13, %c0_14], %22 {strides = array<i32>} : memref<32x2xf32, #tpu.memory_space<vmem>>, vector<32x2xf32>,
    %c0_i32_15 = arith.constant 0 : i32
    %24 = arith.cmpi eq, %arg0, %c0_i32_15 : i32
    %25 = arith.extui %24 : i1 to i32
    %c0_i32_16 = arith.constant 0 : i32
    %26 = arith.cmpi ne, %25, %c0_i32_16 : i32
    scf.if %26 {
      %c0_17 = arith.constant 0 : index
      %c0_18 = arith.constant 0 : index
      %27 = vector.load %arg7[%c0_17, %c0_18] : memref<32x2xf32, #tpu.memory_space<vmem>>, vector<32x2xf32>
      %cst_19 = arith.constant 1.000000e+00 : f32
      %28 = vector.broadcast %cst_19 : f32 to vector<32x2xf32>
      %29 = arith.mulf %27, %28 : vector<32x2xf32>
      %c0_20 = arith.constant 0 : index
      %c0_21 = arith.constant 0 : index
      %30 = vector.load %arg4[%c0_20, %c0_21] : memref<1x32xf32, #tpu.memory_space<vmem>>, vector<1x32xf32>
      %31 = vector.shape_cast %30 : vector<1x32xf32> to vector<1x32x1xf32>
      %32 = vector.shape_cast %29 : vector<32x2xf32> to vector<1x32x2xf32>
      %33 = vector.broadcast %31 : vector<1x32x1xf32> to vector<1x32x2xf32>
      %34 = arith.mulf %33, %32 : vector<1x32x2xf32>
      %cst_22 = arith.constant dense<0.000000e+00> : vector<1x2xf32>
      %35 = vector.multi_reduction <add>, %34, %cst_22 [1] : vector<1x32x2xf32> to vector<1x2xf32>
      %c0_23 = arith.constant 0 : index
      %c0_24 = arith.constant 0 : index
      %36 = vector.load %arg5[%c0_23, %c0_24] : memref<1x1xf32, #tpu.memory_space<vmem>>, vector<1x1xf32>
      %37 = vector.broadcast %36 : vector<1x1xf32> to vector<1x2xf32>
      %38 = arith.addf %35, %37 : vector<1x2xf32>
      %c0_25 = arith.constant 0 : index
      %c0_26 = arith.constant 0 : index
      %39 = vector.load %arg6[%c0_25, %c0_26] : memref<1x2xf32, #tpu.memory_space<vmem>>, vector<1x2xf32>
      tpu.vector_store %arg6[%c0_25, %c0_26], %38 {strides = array<i32>} : memref<1x2xf32, #tpu.memory_space<vmem>>, vector<1x2xf32>,
    } else {
    }
    return
  }
  func.func @transform_0(%arg0: i32) -> (i32, i32, i32) {
    %c0_i32 = arith.constant 0 : i32
    %c0_i32_0 = arith.constant 0 : i32
    %c0_i32_1 = arith.constant 0 : i32
    return %c0_i32, %c0_i32_0, %arg0 : i32, i32, i32
  }
  func.func @transform_1(%arg0: i32) -> (i32, i32, i32) {
    %c0_i32 = arith.constant 0 : i32
    %c0_i32_0 = arith.constant 0 : i32
    %c0_i32_1 = arith.constant 0 : i32
    %c0_i32_2 = arith.constant 0 : i32
    return %c0_i32, %c0_i32_0, %c0_i32_1 : i32, i32, i32
  }
  func.func @transform_2(%arg0: i32) -> (i32, i32, i32) {
    %c0_i32 = arith.constant 0 : i32
    %c0_i32_0 = arith.constant 0 : i32
    %c0_i32_1 = arith.constant 0 : i32
    %c0_i32_2 = arith.constant 0 : i32
    return %c0_i32, %c0_i32_0, %c0_i32_1 : i32, i32, i32
  }
  func.func @transform_3(%arg0: i32) -> (i32, i32) {
    %c0_i32 = arith.constant 0 : i32
    %c0_i32_0 = arith.constant 0 : i32
    %c0_i32_1 = arith.constant 0 : i32
    return %c0_i32, %c0_i32_0 : i32, i32
  }
  func.func @transform_4(%arg0: i32) -> (i32, i32) {
    %c0_i32 = arith.constant 0 : i32
    %c0_i32_0 = arith.constant 0 : i32
    %c0_i32_1 = arith.constant 0 : i32
    return %c0_i32, %c0_i32_0 : i32, i32
  }
  func.func @transform_5(%arg0: i32) -> (i32, i32) {
    %c0_i32 = arith.constant 0 : i32
    %c0_i32_0 = arith.constant 0 : i32
    %c0_i32_1 = arith.constant 0 : i32
    return %c0_i32, %c0_i32_0 : i32, i32
  }
}

</mosaic_0001>

<llo_original>
// kernel: forward_pallas.22
$region0: #{forward_pallas.22}
  #allocation0 [shape = 'u32[]', space=smem, size = 0x4, offset = 0x4, fixed_abs, tag = 'smem constant byte address 0x4 - core index']
  #allocation1 [shape = 'u32[72,128]{1,0:T(1,128)}', space=vmem, size = 0x9000, scoped, tag = 'internal scratch']
  %s0 = inlined_call_operand.vmem [shape: f32[16,1024], index: 0, kind: input, shape index: {}]
  %s1 = inlined_call_operand.vmem [shape: f32[16,16], index: 1, kind: input, shape index: {}]
  %s2 = inlined_call_operand.vmem [shape: f32[16,1], index: 2, kind: input, shape index: {}]
  %s3 = inlined_call_operand.vmem [shape: f32[16,1], index: 3, kind: input, shape index: {}]
  %s4 = inlined_call_operand.vmem [shape: f32[16,1], index: 4, kind: input, shape index: {}]
  %s5 = inlined_call_operand.vmem [shape: f32[16,1], index: 5, kind: input, shape index: {}]
  %s6 = inlined_call_operand.vmem [shape: f32[16,1024], index: 6, kind: output, shape index: {}]
  %s7 = sld [smem:[#allocation0]]
  $region99: #{forward_pallas.22} parent=0
    _
  %s9 = ssub.s32 1, %s7
  %s10 = scalar_select 0, %s9, %s7
  $region1: #{forward_pallas.22} parent=0
    #allocation2 [shape = 'u8[65536]{0}', space=vmem, size = 0x10000, scoped, tag = 'input window, operand 0']
    #allocation3 [shape = 'u8[65536]{0}', space=vmem, size = 0x10000, scoped, tag = 'output window, operand 0']
    loop: start=0, step=1, limit=4
    $region2: #{forward_pallas.22} parent=1 // loop_pre_header
      _
    $region3: #{forward_pallas.22} parent=1 // loop_header
      %s12 = sphi 0, %s16
      %p13 = scmp.ge.s32.totalorder %s12, 4
      %s22 = sphi 0, %s24
      %s25 = sphi 0, %s22
      %s26 = sphi 0, %s25
      %s42 = sphi 0, %s26
      %s46 = sphi 0, %s46
      %s48 = sphi 0, %s46
      %s49 = sphi 0, %s48
      %s63 = sphi 0, %s49
      %s67 = sphi 0, %s67
      %s69 = sphi 0, %s67
      %s70 = sphi 0, %s69
      %s84 = sphi 0, %s70
      %s88 = sphi 0, %s88
      %s90 = sphi 0, %s88
      %s91 = sphi 0, %s90
      %s105 = sphi 0, %s91
      %s109 = sphi 0, %s109
      %s111 = sphi 0, %s109
      %s112 = sphi 0, %s111
      %s126 = sphi 0, %s112
      %s130 = sphi 0, %s130
      %s132 = sphi 0, %s130
      %s133 = sphi 0, %s132
      %s147 = sphi 0, %s133
      %s153 = sphi 0, %s155
      %s156 = sphi 0, %s153
      %s157 = sphi 0, %s156
      %s173 = sphi 0, %s157
    $region4: #{forward_pallas.22} parent=1 // loop_header_branch
      %15 = sbr.rel (%p13) target = $region8
    $region5: #{forward_pallas.22} parent=1 // loop_body
      %s17 = ssub.s32 %s12, 1
      %s18 = ssub.s32 %s12, 2
      %s19 = sadd.s32 %s12, 1
      %s20 = ssub.s32 %s12, %s19
      %p21 = scmp.eq.s32.totalorder %s20, 0
      %s23 = sadd.s32 %s22, 1
      %s24 = scalar_select %p21, %s22, %s23
      %p27 = pneg %p21
      %p28 = scmp.eq.s32.totalorder %s12, 1
      %p29 = por %p27, %p28
      %p30 = scmp.ne.s32.totalorder %s22, %s25
      %p31 = scmp.eq.s32.totalorder %s12, 0
      %p32 = por %p30, %p31
      %p33 = scmp.ne.s32.totalorder %s22, %s25
      %p34 = scmp.eq.s32.totalorder %s17, 1
      %p35 = por %p33, %p34
      %p36 = scmp.ne.s32.totalorder %s25, %s26
      %p37 = scmp.eq.s32.totalorder %s17, 0
      %p38 = por %p36, %p37
      %p39 = scmp.ne.s32.totalorder %s25, %s26
      %p40 = scmp.eq.s32.totalorder %s18, 1
      %p41 = por %p39, %p40
      %p43 = scmp.ne.s32.totalorder %s26, %s42
      %p44 = scmp.eq.s32.totalorder %s18, 0
      %p45 = por %p43, %p44
      %s47 = sadd.s32 %s46, 1
      %p50 = scmp.eq.s32.totalorder %s12, 1
      %p51 = scmp.ne.s32.totalorder %s46, %s48
      %p52 = scmp.eq.s32.totalorder %s12, 0
      %p53 = por %p51, %p52
      %p54 = scmp.ne.s32.totalorder %s46, %s48
      %p55 = scmp.eq.s32.totalorder %s17, 1
      %p56 = por %p54, %p55
      %p57 = scmp.ne.s32.totalorder %s48, %s49
      %p58 = scmp.eq.s32.totalorder %s17, 0
      %p59 = por %p57, %p58
      %p60 = scmp.ne.s32.totalorder %s48, %s49
      %p61 = scmp.eq.s32.totalorder %s18, 1
      %p62 = por %p60, %p61
      %p64 = scmp.ne.s32.totalorder %s49, %s63
      %p65 = scmp.eq.s32.totalorder %s18, 0
      %p66 = por %p64, %p65
      %s68 = sadd.s32 %s67, 1
      %p71 = scmp.eq.s32.totalorder %s12, 1
      %p72 = scmp.ne.s32.totalorder %s67, %s69
      %p73 = scmp.eq.s32.totalorder %s12, 0
      %p74 = por %p72, %p73
      %p75 = scmp.ne.s32.totalorder %s67, %s69
      %p76 = scmp.eq.s32.totalorder %s17, 1
      %p77 = por %p75, %p76
      %p78 = scmp.ne.s32.totalorder %s69, %s70
      %p79 = scmp.eq.s32.totalorder %s17, 0
      %p80 = por %p78, %p79
      %p81 = scmp.ne.s32.totalorder %s69, %s70
      %p82 = scmp.eq.s32.totalorder %s18, 1
      %p83 = por %p81, %p82
      %p85 = scmp.ne.s32.totalorder %s70, %s84
      %p86 = scmp.eq.s32.totalorder %s18, 0
      %p87 = por %p85, %p86
      %s89 = sadd.s32 %s88, 1
      %p92 = scmp.eq.s32.totalorder %s12, 1
      %p93 = scmp.ne.s32.totalorder %s88, %s90
      %p94 = scmp.eq.s32.totalorder %s12, 0
      %p95 = por %p93, %p94
      %p96 = scmp.ne.s32.totalorder %s88, %s90
      %p97 = scmp.eq.s32.totalorder %s17, 1
      %p98 = por %p96, %p97
      %p99 = scmp.ne.s32.totalorder %s90, %s91
      %p100 = scmp.eq.s32.totalorder %s17, 0
      %p101 = por %p99, %p100
      %p102 = scmp.ne.s32.totalorder %s90, %s91
      %p103 = scmp.eq.s32.totalorder %s18, 1
      %p104 = por %p102, %p103
      %p106 = scmp.ne.s32.totalorder %s91, %s105
      %p107 = scmp.eq.s32.totalorder %s18, 0
      %p108 = por %p106, %p107
      %s110 = sadd.s32 %s109, 1
      %p113 = scmp.eq.s32.totalorder %s12, 1
      %p114 = scmp.ne.s32.totalorder %s109, %s111
      %p115 = scmp.eq.s32.totalorder %s12, 0
      %p116 = por %p114, %p115
      %p117 = scmp.ne.s32.totalorder %s109, %s111
      %p118 = scmp.eq.s32.totalorder %s17, 1
      %p119 = por %p117, %p118
      %p120 = scmp.ne.s32.totalorder %s111, %s112
      %p121 = scmp.eq.s32.totalorder %s17, 0
      %p122 = por %p120, %p121
      %p123 = scmp.ne.s32.totalorder %s111, %s112
      %p124 = scmp.eq.s32.totalorder %s18, 1
      %p125 = por %p123, %p124
      %p127 = scmp.ne.s32.totalorder %s112, %s126
      %p128 = scmp.eq.s32.totalorder %s18, 0
      %p129 = por %p127, %p128
      %s131 = sadd.s32 %s130, 1
      %p134 = scmp.eq.s32.totalorder %s12, 1
      %p135 = scmp.ne.s32.totalorder %s130, %s132
      %p136 = scmp.eq.s32.totalorder %s12, 0
      %p137 = por %p135, %p136
      %p138 = scmp.ne.s32.totalorder %s130, %s132
      %p139 = scmp.eq.s32.totalorder %s17, 1
      %p140 = por %p138, %p139
      %p141 = scmp.ne.s32.totalorder %s132, %s133
      %p142 = scmp.eq.s32.totalorder %s17, 0
      %p143 = por %p141, %p142
      %p144 = scmp.ne.s32.totalorder %s132, %s133
      %p145 = scmp.eq.s32.totalorder %s18, 1
      %p146 = por %p144, %p145
      %p148 = scmp.ne.s32.totalorder %s133, %s147
      %p149 = scmp.eq.s32.totalorder %s18, 0
      %p150 = por %p148, %p149
      %s151 = ssub.s32 %s12, %s19
      %p152 = scmp.eq.s32.totalorder %s151, 0
      %s154 = sadd.s32 %s153, 1
      %s155 = scalar_select %p152, %s153, %s154
      %p158 = pneg %p152
      %p159 = scmp.eq.s32.totalorder %s12, 1
      %p160 = por %p158, %p159
      %p161 = scmp.ne.s32.totalorder %s153, %s156
      %p162 = scmp.eq.s32.totalorder %s12, 0
      %p163 = por %p161, %p162
      %p164 = scmp.ne.s32.totalorder %s153, %s156
      %p165 = scmp.eq.s32.totalorder %s17, 1
      %p166 = por %p164, %p165
      %p167 = scmp.ne.s32.totalorder %s156, %s157
      %p168 = scmp.eq.s32.totalorder %s17, 0
      %p169 = por %p167, %p168
      %p170 = scmp.ne.s32.totalorder %s156, %s157
      %p171 = scmp.eq.s32.totalorder %s18, 1
      %p172 = por %p170, %p171
      %p174 = scmp.ne.s32.totalorder %s157, %s173
      %p175 = scmp.eq.s32.totalorder %s18, 0
      %p176 = por %p174, %p175
      %p177 = scmp.le.s32.totalorder 1, %s12
      %p178 = scmp.lt.s32.totalorder %s12, 3
      %p179 = pnand %p177, %p178
      %p180 = pneg %p179
      // Predicated region
      $region9: #{forward_pallas.22} parent=5 // pred_check
        _
      $region10: #{forward_pallas.22} parent=5 // pred_check_branch
        %182 = sbr.rel (%p179) target = $region12
      $region11: #{forward_pallas.22} parent=5 // pred_region
        %s183 = ssub.s32 %s12, 1
        // Predicated region
        $region13: #{forward_pallas.22} parent=11 // pred_check
          %p184 = pneg %p59
        $region14: #{forward_pallas.22} parent=11 // pred_check_branch
          %186 = sbr.rel (%p184) target = $region16
        $region15: #{forward_pallas.22} parent=11 // pred_region
          _
        $region16: #{forward_pallas.22} parent=11 // pred_fallthru
          _
        // Predicated region
        $region17: #{forward_pallas.22} parent=11 // pred_check
          %p187 = pneg %p80
        $region18: #{forward_pallas.22} parent=11 // pred_check_branch
          %189 = sbr.rel (%p187) target = $region20
        $region19: #{forward_pallas.22} parent=11 // pred_region
          _
        $region20: #{forward_pallas.22} parent=11 // pred_fallthru
          _
        // Predicated region
        $region21: #{forward_pallas.22} parent=11 // pred_check
          %p190 = pneg %p101
        $region22: #{forward_pallas.22} parent=11 // pred_check_branch
          %192 = sbr.rel (%p190) target = $region24
        $region23: #{forward_pallas.22} parent=11 // pred_region
          _
        $region24: #{forward_pallas.22} parent=11 // pred_fallthru
          _
        // Predicated region
        $region25: #{forward_pallas.22} parent=11 // pred_check
          %p193 = pneg %p122
        $region26: #{forward_pallas.22} parent=11 // pred_check_branch
          %195 = sbr.rel (%p193) target = $region28
        $region27: #{forward_pallas.22} parent=11 // pred_region
          _
        $region28: #{forward_pallas.22} parent=11 // pred_fallthru
          _
        // Predicated region
        $region29: #{forward_pallas.22} parent=11 // pred_check
          %p196 = pneg %p143
        $region30: #{forward_pallas.22} parent=11 // pred_check_branch
          %198 = sbr.rel (%p196) target = $region32
        $region31: #{forward_pallas.22} parent=11 // pred_region
          _
        $region32: #{forward_pallas.22} parent=11 // pred_fallthru
          _
      $region12: #{forward_pallas.22} parent=5 // pred_fallthru
        _
      %p199 = scmp.lt.s32.totalorder %s12, 2
      // Predicated region
      $region33: #{forward_pallas.22} parent=5 // pred_check
        %p200 = pneg %p199
      $region34: #{forward_pallas.22} parent=5 // pred_check_branch
        %202 = sbr.rel (%p200) target = $region36
      $region35: #{forward_pallas.22} parent=5 // pred_region
        // Predicated region
        $region37: #{forward_pallas.22} parent=35 // pred_check
          %p203 = pneg %p32
        $region38: #{forward_pallas.22} parent=35 // pred_check_branch
          %205 = sbr.rel (%p203) target = $region40
        $region39: #{forward_pallas.22} parent=35 // pred_region
          %s206 = sand.u32 %s22, 1
          %s207 = sand.u32 %s22, 1
          %s208 = smul.addr %s207, 64
          %s209 = scalar_lea.vmem [#allocation2], %s208
          %s210 = smul.u32 4, %s12
          %s211 = smul.addr %s210, 8
          %s212 = scalar_lea.vmem %s0, %s211
          // Predicated region
          $region41: #{forward_pallas.22} parent=39 // pred_check
            _
          $region42: #{forward_pallas.22} parent=39 // pred_check_branch
            %214 = sbr.rel (0) target = $region44
          $region43: #{forward_pallas.22} parent=39 // pred_region
            // Predicated region
            $region45: #{forward_pallas.22} parent=43 // pred_check
              _
            $region46: #{forward_pallas.22} parent=43 // pred_check_branch
              %216 = sbr.rel (0) target = $region48
            $region47: #{forward_pallas.22} parent=43 // pred_region
              loop: start=0, step=1, limit=1
              $region49: #{forward_pallas.22} parent=47 // loop_pre_header
                _
              $region50: #{forward_pallas.22} parent=47 // loop_header
                %s218 = sphi 0, %s222
                %p219 = scmp.ge.s32.totalorder %s218, 1
                %s223 = sphi %s212, %s212
                %s224 = sphi %s209, %s209
              $region51: #{forward_pallas.22} parent=47 // loop_header_branch
                %221 = sbr.rel (%p219) target = $region55
              $region52: #{forward_pallas.22} parent=47 // loop_body
                %v225 = vld [vmem:[%s223] sm:$0xff]
                %226 = vst [vmem:[%s224] sm:$0xff] %v225
                %v227 = vld [vmem:[%s223 + $0x8] sm:$0xff]
                %228 = vst [vmem:[%s224 + $0x8] sm:$0xff] %v227
                %v229 = vld [vmem:[%s223 + $0x10] sm:$0xff]
                %230 = vst [vmem:[%s224 + $0x10] sm:$0xff] %v229
                %v231 = vld [vmem:[%s223 + $0x18] sm:$0xff]
                %232 = vst [vmem:[%s224 + $0x18] sm:$0xff] %v231
                %v233 = vld [vmem:[%s223 + $0x40] sm:$0xff]
                %234 = vst [vmem:[%s224 + $0x20] sm:$0xff] %v233
                %v235 = vld [vmem:[%s223 + $0x48] sm:$0xff]
                %236 = vst [vmem:[%s224 + $0x28] sm:$0xff] %v235
                %v237 = vld [vmem:[%s223 + $0x50] sm:$0xff]
                %238 = vst [vmem:[%s224 + $0x30] sm:$0xff] %v237
                %v239 = vld [vmem:[%s223 + $0x58] sm:$0xff]
                %240 = vst [vmem:[%s224 + $0x38] sm:$0xff] %v239
              $region53: #{forward_pallas.22} parent=47 // loop_footer
                %s222 = sadd.s32 1, %s218
              $region54: #{forward_pallas.22} parent=47 // loop_footer_branch
                %217 = sbr.rel target = $region50
              $region55: #{forward_pallas.22} parent=47 // loop_exit
                _
            $region48: #{forward_pallas.22} parent=43 // pred_fallthru
              _
            // Predicated region
            $region56: #{forward_pallas.22} parent=43 // pred_check
              _
            $region57: #{forward_pallas.22} parent=43 // pred_check_branch
              %242 = sbr.rel target = $region59
            $region58: #{forward_pallas.22} parent=43 // pred_region
              _
            $region59: #{forward_pallas.22} parent=43 // pred_fallthru
              _
          $region44: #{forward_pallas.22} parent=39 // pred_fallthru
            _
          %243 = vnop
        $region40: #{forward_pallas.22} parent=35 // pred_fallthru
          _
      $region36: #{forward_pallas.22} parent=5 // pred_fallthru
        _
      %p244 = scmp.le.s32.totalorder 1, %s12
      %p245 = scmp.lt.s32.totalorder %s12, 3
      %p246 = pnand %p244, %p245
      %p247 = pneg %p246
      // Predicated region
      $region60: #{forward_pallas.22} parent=5 // pred_check
        _
      $region61: #{forward_pallas.22} parent=5 // pred_check_branch
        %249 = sbr.rel (%p246) target = $region63
      $region62: #{forward_pallas.22} parent=5 // pred_region
        %s250 = ssub.s32 %s12, 1
        %s251 = sand.u32 %s25, 1
        %s252 = sand.u32 %s25, 1
        %s253 = smul.addr %s252, 64
        %s254 = scalar_lea.vmem [#allocation2], %s253
        // Predicated region
        $region64: #{forward_pallas.22} parent=62 // pred_check
          %p255 = pneg %p38
        $region65: #{forward_pallas.22} parent=62 // pred_check_branch
          %257 = sbr.rel (%p255) target = $region67
        $region66: #{forward_pallas.22} parent=62 // pred_region
          _
        $region67: #{forward_pallas.22} parent=62 // pred_fallthru
          _
        %s258 = sand.u32 %s25, 1
        %s259 = sand.u32 %s25, 1
        %s260 = smul.addr %s259, 64
        %s261 = scalar_lea.vmem [#allocation2], %s260
        %p262 = pneg %p38
        %p263 = pneg %p35
        %p264 = pneg %p59
        %p265 = pneg %p56
        %p266 = pneg %p80
        %p267 = pneg %p77
        %p268 = pneg %p101
        %p269 = pneg %p98
        %p270 = pneg %p122
        %p271 = pneg %p119
        %p272 = pneg %p143
        %p273 = pneg %p140
        %p274 = pneg %p169
        %p275 = pneg %p166
        %s276 = sand.u32 %s156, 1
        %s277 = sand.u32 %s156, 1
        %s278 = smul.addr %s277, 64
        %s279 = scalar_lea.vmem [#allocation3], %s278
        %s280 = smul.u32 4, %s17
        %s281 = smul.u32 4, %s17
        %v282 = vld [vmem:[%s254] sm:$0xff]
        %v283 = vld [vmem:[%s254 + $0x8] sm:$0xff]
        %v284 = vld [vmem:[%s254 + $0x10] sm:$0xff]
        %v285 = vld [vmem:[%s254 + $0x18] sm:$0xff]
        %v286 = vld [vmem:[%s254 + $0x20] sm:$0xff]
        %v287 = vld [vmem:[%s254 + $0x28] sm:$0xff]
        %v288 = vld [vmem:[%s254 + $0x30] sm:$0xff]
        %v289 = vld [vmem:[%s254 + $0x38] sm:$0xff]
        %v290 = vld [vmem:[%s2] sm:$0xff]
        %v291 = vld [vmem:[%s2 + $0x8] sm:$0xff]
        %293 = vset.pattern.permute.xlu0 0
        %294 = vperm.xlu0 %293, %v290
        %v295 = vpop.permute.xlu0 %294
        %298 = vset.pattern.permute.xlu0 0
        %299 = vperm.xlu0 %298, %v291
        %v300 = vpop.permute.xlu0 %299
        %v302 = vmul.f32 %v282, %v295
        %v303 = vmul.f32 %v283, %v295
        %v304 = vmul.f32 %v284, %v295
        %v305 = vmul.f32 %v285, %v295
        %v306 = vmul.f32 %v286, %v300
        %v307 = vmul.f32 %v287, %v300
        %v308 = vmul.f32 %v288, %v300
        %v309 = vmul.f32 %v289, %v300
        %v310 = vld [vmem:[%s3] sm:$0xff]
        %v311 = vld [vmem:[%s3 + $0x8] sm:$0xff]
        %313 = vset.pattern.permute.xlu0 0
        %314 = vperm.xlu0 %313, %v310
        %v315 = vpop.permute.xlu0 %314
        %318 = vset.pattern.permute.xlu0 0
        %319 = vperm.xlu0 %318, %v311
        %v320 = vpop.permute.xlu0 %319
        %v322 = vadd.f32 %v302, %v315
        %v323 = vadd.f32 %v303, %v315
        %v324 = vadd.f32 %v304, %v315
        %v325 = vadd.f32 %v305, %v315
        %v326 = vadd.f32 %v306, %v320
        %v327 = vadd.f32 %v307, %v320
        %v328 = vadd.f32 %v308, %v320
        %v329 = vadd.f32 %v309, %v320
        %v330 = vmax.f32 %v322, 0.0
        %v331 = vmax.f32 %v323, 0.0
        %v332 = vmax.f32 %v324, 0.0
        %v333 = vmax.f32 %v325, 0.0
        %v334 = vmax.f32 %v326, 0.0
        %v335 = vmax.f32 %v327, 0.0
        %v336 = vmax.f32 %v328, 0.0
        %v337 = vmax.f32 %v329, 0.0
        %v338 = vld [vmem:[%s1] sm:$0xff]
        %v339 = vld [vmem:[%s1 + $0x8] sm:$0xff]
        %vm340 = vcmask 130048
        %v342 = vsel %vm340, %v338, 0
        %v345 = vsel %vm340, %v339, 0
        %347 = vmatpush.msra.mxu0 0.0
        %348 = vmatpush.msra.mxu0 0.0
        %349 = vmatpush.msra.mxu0 0.0
        %350 = vmatpush.msra.mxu0 0.0
        %351 = vmatpush.msra.mxu0 0.0
        %352 = vmatpush.msra.mxu0 0.0
        %353 = vmatpush.msra.mxu0 0.0
        %354 = vmatpush.msra.mxu0 0.0
        %355 = vmatpush.msra.mxu0 0.0
        %356 = vmatpush.msra.mxu0 0.0
        %357 = vmatpush.msra.mxu0 0.0
        %358 = vmatpush.msra.mxu0 0.0
        %359 = vmatpush.msra.mxu0 0.0
        %360 = vmatpush.msra.mxu0 0.0
        %361 = vmatpush.msra.mxu0 %v334
        %362 = vmatpush.msra.mxu0 %v330
        %363 = vmatmul.f32.gmra.mxu0 %v342
        %v364 = vpop.f32.mrf.mxu0
        %v365 = vadd.f32 0.0, %v364
        %366 = vmatmul.f32.gmra.mxu0 %v345
        %v367 = vpop.f32.mrf.mxu0
        %v368 = vadd.f32 0.0, %v367
        %369 = vdwg.mxu0
        %370 = vmatpush.msra.mxu0 0.0
        %371 = vmatpush.msra.mxu0 0.0
        %372 = vmatpush.msra.mxu0 0.0
        %373 = vmatpush.msra.mxu0 0.0
        %374 = vmatpush.msra.mxu0 0.0
        %375 = vmatpush.msra.mxu0 0.0
        %376 = vmatpush.msra.mxu0 0.0
        %377 = vmatpush.msra.mxu0 0.0
        %378 = vmatpush.msra.mxu0 0.0
        %379 = vmatpush.msra.mxu0 0.0
        %380 = vmatpush.msra.mxu0 0.0
        %381 = vmatpush.msra.mxu0 0.0
        %382 = vmatpush.msra.mxu0 0.0
        %383 = vmatpush.msra.mxu0 0.0
        %384 = vmatpush.msra.mxu0 %v335
        %385 = vmatpush.msra.mxu0 %v331
        %386 = vmatmul.f32.gmra.mxu0 %v342
        %v387 = vpop.f32.mrf.mxu0
        %v388 = vadd.f32 0.0, %v387
        %389 = vmatmul.f32.gmra.mxu0 %v345
        %v390 = vpop.f32.mrf.mxu0
        %v391 = vadd.f32 0.0, %v390
        %392 = vdwg.mxu0
        %393 = vmatpush.msra.mxu0 0.0
        %394 = vmatpush.msra.mxu0 0.0
        %395 = vmatpush.msra.mxu0 0.0
        %396 = vmatpush.msra.mxu0 0.0
        %397 = vmatpush.msra.mxu0 0.0
        %398 = vmatpush.msra.mxu0 0.0
        %399 = vmatpush.msra.mxu0 0.0
        %400 = vmatpush.msra.mxu0 0.0
        %401 = vmatpush.msra.mxu0 0.0
        %402 = vmatpush.msra.mxu0 0.0
        %403 = vmatpush.msra.mxu0 0.0
        %404 = vmatpush.msra.mxu0 0.0
        %405 = vmatpush.msra.mxu0 0.0
        %406 = vmatpush.msra.mxu0 0.0
        %407 = vmatpush.msra.mxu0 %v336
        %408 = vmatpush.msra.mxu0 %v332
        %409 = vmatmul.f32.gmra.mxu0 %v342
        %v410 = vpop.f32.mrf.mxu0
        %v411 = vadd.f32 0.0, %v410
        %412 = vmatmul.f32.gmra.mxu0 %v345
        %v413 = vpop.f32.mrf.mxu0
        %v414 = vadd.f32 0.0, %v413
        %415 = vdwg.mxu0
        %416 = vmatpush.msra.mxu0 0.0
        %417 = vmatpush.msra.mxu0 0.0
        %418 = vmatpush.msra.mxu0 0.0
        %419 = vmatpush.msra.mxu0 0.0
        %420 = vmatpush.msra.mxu0 0.0
        %421 = vmatpush.msra.mxu0 0.0
        %422 = vmatpush.msra.mxu0 0.0
        %423 = vmatpush.msra.mxu0 0.0
        %424 = vmatpush.msra.mxu0 0.0
        %425 = vmatpush.msra.mxu0 0.0
        %426 = vmatpush.msra.mxu0 0.0
        %427 = vmatpush.msra.mxu0 0.0
        %428 = vmatpush.msra.mxu0 0.0
        %429 = vmatpush.msra.mxu0 0.0
        %430 = vmatpush.msra.mxu0 %v337
        %431 = vmatpush.msra.mxu0 %v333
        %432 = vmatmul.f32.gmra.mxu0 %v342
        %v433 = vpop.f32.mrf.mxu0
        %v434 = vadd.f32 0.0, %v433
        %435 = vmatmul.f32.gmra.mxu0 %v345
        %v436 = vpop.f32.mrf.mxu0
        %v437 = vadd.f32 0.0, %v436
        %438 = vdwg.mxu0
        %v439 = vld [vmem:[%s4] sm:$0xff]
        %v440 = vld [vmem:[%s4 + $0x8] sm:$0xff]
        %442 = vset.pattern.permute.xlu0 0
        %443 = vperm.xlu0 %442, %v439
        %v444 = vpop.permute.xlu0 %443
        %447 = vset.pattern.permute.xlu0 0
        %448 = vperm.xlu0 %447, %v440
        %v449 = vpop.permute.xlu0 %448
        %v451 = vmul.f32 %v365, %v444
        %v452 = vmul.f32 %v388, %v444
        %v453 = vmul.f32 %v411, %v444
        %v454 = vmul.f32 %v434, %v444
        %v455 = vmul.f32 %v368, %v449
        %v456 = vmul.f32 %v391, %v449
        %v457 = vmul.f32 %v414, %v449
        %v458 = vmul.f32 %v437, %v449
        %v459 = vld [vmem:[%s5] sm:$0xff]
        %v460 = vld [vmem:[%s5 + $0x8] sm:$0xff]
        %462 = vset.pattern.permute.xlu0 0
        %463 = vperm.xlu0 %462, %v459
        %v464 = vpop.permute.xlu0 %463
        %467 = vset.pattern.permute.xlu0 0
        %468 = vperm.xlu0 %467, %v460
        %v469 = vpop.permute.xlu0 %468
        %v471 = vadd.f32 %v451, %v464
        %v472 = vadd.f32 %v452, %v464
        %v473 = vadd.f32 %v453, %v464
        %v474 = vadd.f32 %v454, %v464
        %v475 = vadd.f32 %v455, %v469
        %v476 = vadd.f32 %v456, %v469
        %v477 = vadd.f32 %v457, %v469
        %v478 = vadd.f32 %v458, %v469
        %v479 = vmax.f32 %v471, 0.0
        %v480 = vmax.f32 %v472, 0.0
        %v481 = vmax.f32 %v473, 0.0
        %v482 = vmax.f32 %v474, 0.0
        %v483 = vmax.f32 %v475, 0.0
        %v484 = vmax.f32 %v476, 0.0
        %v485 = vmax.f32 %v477, 0.0
        %v486 = vmax.f32 %v478, 0.0
        %487 = vst [vmem:[%s279] sm:$0xff] %v479
        %488 = vst [vmem:[%s279 + $0x8] sm:$0xff] %v480
        %489 = vst [vmem:[%s279 + $0x10] sm:$0xff] %v481
        %490 = vst [vmem:[%s279 + $0x18] sm:$0xff] %v482
        %491 = vst [vmem:[%s279 + $0x20] sm:$0xff] %v483
        %492 = vst [vmem:[%s279 + $0x28] sm:$0xff] %v484
        %493 = vst [vmem:[%s279 + $0x30] sm:$0xff] %v485
        %494 = vst [vmem:[%s279 + $0x38] sm:$0xff] %v486
        %s495 = sand.u32 %s156, 1
        %s496 = sand.u32 %s156, 1
        %s497 = smul.addr %s496, 64
        %s498 = scalar_lea.vmem [#allocation3], %s497
        // Predicated region
        $region68: #{forward_pallas.22} parent=62 // pred_check
          %p499 = pneg %p166
        $region69: #{forward_pallas.22} parent=62 // pred_check_branch
          %501 = sbr.rel (%p499) target = $region71
        $region70: #{forward_pallas.22} parent=62 // pred_region
          %s502 = smul.u32 4, %s17
          %s503 = smul.addr %s502, 8
          %s504 = scalar_lea.vmem %s6, %s503
          // Predicated region
          $region72: #{forward_pallas.22} parent=70 // pred_check
            _
          $region73: #{forward_pallas.22} parent=70 // pred_check_branch
            %506 = sbr.rel (0) target = $region75
          $region74: #{forward_pallas.22} parent=70 // pred_region
            // Predicated region
            $region76: #{forward_pallas.22} parent=74 // pred_check
              _
            $region77: #{forward_pallas.22} parent=74 // pred_check_branch
              %508 = sbr.rel (0) target = $region79
            $region78: #{forward_pallas.22} parent=74 // pred_region
              loop: start=0, step=1, limit=1
              $region80: #{forward_pallas.22} parent=78 // loop_pre_header
                _
              $region81: #{forward_pallas.22} parent=78 // loop_header
                %s510 = sphi 0, %s514
                %p511 = scmp.ge.s32.totalorder %s510, 1
                %s515 = sphi %s498, %s498
                %s516 = sphi %s504, %s504
              $region82: #{forward_pallas.22} parent=78 // loop_header_branch
                %513 = sbr.rel (%p511) target = $region86
              $region83: #{forward_pallas.22} parent=78 // loop_body
                %v517 = vld [vmem:[%s515] sm:$0xff]
                %518 = vst [vmem:[%s516] sm:$0xff] %v517
                %v519 = vld [vmem:[%s515 + $0x8] sm:$0xff]
                %520 = vst [vmem:[%s516 + $0x8] sm:$0xff] %v519
                %v521 = vld [vmem:[%s515 + $0x10] sm:$0xff]
                %522 = vst [vmem:[%s516 + $0x10] sm:$0xff] %v521
                %v523 = vld [vmem:[%s515 + $0x18] sm:$0xff]
                %524 = vst [vmem:[%s516 + $0x18] sm:$0xff] %v523
                %v525 = vld [vmem:[%s515 + $0x20] sm:$0xff]
                %526 = vst [vmem:[%s516 + $0x40] sm:$0xff] %v525
                %v527 = vld [vmem:[%s515 + $0x28] sm:$0xff]
                %528 = vst [vmem:[%s516 + $0x48] sm:$0xff] %v527
                %v529 = vld [vmem:[%s515 + $0x30] sm:$0xff]
                %530 = vst [vmem:[%s516 + $0x50] sm:$0xff] %v529
                %v531 = vld [vmem:[%s515 + $0x38] sm:$0xff]
                %532 = vst [vmem:[%s516 + $0x58] sm:$0xff] %v531
              $region84: #{forward_pallas.22} parent=78 // loop_footer
                %s514 = sadd.s32 1, %s510
              $region85: #{forward_pallas.22} parent=78 // loop_footer_branch
                %509 = sbr.rel target = $region81
              $region86: #{forward_pallas.22} parent=78 // loop_exit
                _
            $region79: #{forward_pallas.22} parent=74 // pred_fallthru
              _
            // Predicated region
            $region87: #{forward_pallas.22} parent=74 // pred_check
              _
            $region88: #{forward_pallas.22} parent=74 // pred_check_branch
              %534 = sbr.rel target = $region90
            $region89: #{forward_pallas.22} parent=74 // pred_region
              _
            $region90: #{forward_pallas.22} parent=74 // pred_fallthru
              _
          $region75: #{forward_pallas.22} parent=70 // pred_fallthru
            _
          %535 = vnop
        $region71: #{forward_pallas.22} parent=62 // pred_fallthru
          _
      $region63: #{forward_pallas.22} parent=5 // pred_fallthru
        _
      %p536 = scmp.le.s32.totalorder 2, %s12
      // Predicated region
      $region91: #{forward_pallas.22} parent=5 // pred_check
        %p537 = pneg %p536
      $region92: #{forward_pallas.22} parent=5 // pred_check_branch
        %539 = sbr.rel (%p537) target = $region94
      $region93: #{forward_pallas.22} parent=5 // pred_region
        %s540 = ssub.s32 %s12, 2
        // Predicated region
        $region95: #{forward_pallas.22} parent=93 // pred_check
          %p541 = pneg %p172
        $region96: #{forward_pallas.22} parent=93 // pred_check_branch
          %543 = sbr.rel (%p541) target = $region98
        $region97: #{forward_pallas.22} parent=93 // pred_region
          %s544 = sand.u32 %s157, 1
          %s545 = sand.u32 %s157, 1
          %s546 = smul.addr %s545, 64
          %s547 = scalar_lea.vmem [#allocation3], %s546
        $region98: #{forward_pallas.22} parent=93 // pred_fallthru
          _
      $region94: #{forward_pallas.22} parent=5 // pred_fallthru
        _
    $region6: #{forward_pallas.22} parent=1 // loop_footer
      %s16 = sadd.s32 1, %s12
    $region7: #{forward_pallas.22} parent=1 // loop_footer_branch
      %11 = sbr.rel target = $region3
    $region8: #{forward_pallas.22} parent=1 // loop_exit
      _

// kernel: forward_pallas.21
$region0: #{forward_pallas.21}
  #allocation0 [shape = 'u32[]', space=smem, size = 0x4, offset = 0x4, fixed_abs, tag = 'smem constant byte address 0x4 - core index']
  #allocation1 [shape = 'u32[72,128]{1,0:T(1,128)}', space=vmem, size = 0x9000, scoped, tag = 'internal scratch']
  %s0 = inlined_call_operand.vmem [shape: f32[147,1024], index: 0, kind: input, shape index: {}]
  %s1 = inlined_call_operand.vmem [shape: f32[16,147], index: 1, kind: input, shape index: {}]
  %s2 = inlined_call_operand.vmem [shape: f32[16,1], index: 2, kind: input, shape index: {}]
  %s3 = inlined_call_operand.vmem [shape: f32[16,1], index: 3, kind: input, shape index: {}]
  %s4 = inlined_call_operand.vmem [shape: f32[16,1024], index: 4, kind: output, shape index: {}]
  %s5 = sld [smem:[#allocation0]]
  $region91: #{forward_pallas.21} parent=0
    _
  %s7 = ssub.s32 1, %s5
  %s8 = scalar_select 0, %s7, %s5
  $region1: #{forward_pallas.21} parent=0
    #allocation2 [shape = 'u8[622592]{0}', space=vmem, size = 0x98000, scoped, tag = 'input window, operand 0']
    #allocation3 [shape = 'u8[65536]{0}', space=vmem, size = 0x10000, scoped, tag = 'output window, operand 0']
    loop: start=0, step=1, limit=4
    $region2: #{forward_pallas.21} parent=1 // loop_pre_header
      _
    $region3: #{forward_pallas.21} parent=1 // loop_header
      %s10 = sphi 0, %s14
      %p11 = scmp.ge.s32.totalorder %s10, 4
      %s20 = sphi 0, %s22
      %s23 = sphi 0, %s20
      %s24 = sphi 0, %s23
      %s40 = sphi 0, %s24
      %s44 = sphi 0, %s44
      %s46 = sphi 0, %s44
      %s47 = sphi 0, %s46
      %s61 = sphi 0, %s47
      %s65 = sphi 0, %s65
      %s67 = sphi 0, %s65
      %s68 = sphi 0, %s67
      %s82 = sphi 0, %s68
      %s86 = sphi 0, %s86
      %s88 = sphi 0, %s86
      %s89 = sphi 0, %s88
      %s103 = sphi 0, %s89
      %s109 = sphi 0, %s111
      %s112 = sphi 0, %s109
      %s113 = sphi 0, %s112
      %s129 = sphi 0, %s113
    $region4: #{forward_pallas.21} parent=1 // loop_header_branch
      %13 = sbr.rel (%p11) target = $region8
    $region5: #{forward_pallas.21} parent=1 // loop_body
      %s15 = ssub.s32 %s10, 1
      %s16 = ssub.s32 %s10, 2
      %s17 = sadd.s32 %s10, 1
      %s18 = ssub.s32 %s10, %s17
      %p19 = scmp.eq.s32.totalorder %s18, 0
      %s21 = sadd.s32 %s20, 1
      %s22 = scalar_select %p19, %s20, %s21
      %p25 = pneg %p19
      %p26 = scmp.eq.s32.totalorder %s10, 1
      %p27 = por %p25, %p26
      %p28 = scmp.ne.s32.totalorder %s20, %s23
      %p29 = scmp.eq.s32.totalorder %s10, 0
      %p30 = por %p28, %p29
      %p31 = scmp.ne.s32.totalorder %s20, %s23
      %p32 = scmp.eq.s32.totalorder %s15, 1
      %p33 = por %p31, %p32
      %p34 = scmp.ne.s32.totalorder %s23, %s24
      %p35 = scmp.eq.s32.totalorder %s15, 0
      %p36 = por %p34, %p35
      %p37 = scmp.ne.s32.totalorder %s23, %s24
      %p38 = scmp.eq.s32.totalorder %s16, 1
      %p39 = por %p37, %p38
      %p41 = scmp.ne.s32.totalorder %s24, %s40
      %p42 = scmp.eq.s32.totalorder %s16, 0
      %p43 = por %p41, %p42
      %s45 = sadd.s32 %s44, 1
      %p48 = scmp.eq.s32.totalorder %s10, 1
      %p49 = scmp.ne.s32.totalorder %s44, %s46
      %p50 = scmp.eq.s32.totalorder %s10, 0
      %p51 = por %p49, %p50
      %p52 = scmp.ne.s32.totalorder %s44, %s46
      %p53 = scmp.eq.s32.totalorder %s15, 1
      %p54 = por %p52, %p53
      %p55 = scmp.ne.s32.totalorder %s46, %s47
      %p56 = scmp.eq.s32.totalorder %s15, 0
      %p57 = por %p55, %p56
      %p58 = scmp.ne.s32.totalorder %s46, %s47
      %p59 = scmp.eq.s32.totalorder %s16, 1
      %p60 = por %p58, %p59
      %p62 = scmp.ne.s32.totalorder %s47, %s61
      %p63 = scmp.eq.s32.totalorder %s16, 0
      %p64 = por %p62, %p63
      %s66 = sadd.s32 %s65, 1
      %p69 = scmp.eq.s32.totalorder %s10, 1
      %p70 = scmp.ne.s32.totalorder %s65, %s67
      %p71 = scmp.eq.s32.totalorder %s10, 0
      %p72 = por %p70, %p71
      %p73 = scmp.ne.s32.totalorder %s65, %s67
      %p74 = scmp.eq.s32.totalorder %s15, 1
      %p75 = por %p73, %p74
      %p76 = scmp.ne.s32.totalorder %s67, %s68
      %p77 = scmp.eq.s32.totalorder %s15, 0
      %p78 = por %p76, %p77
      %p79 = scmp.ne.s32.totalorder %s67, %s68
      %p80 = scmp.eq.s32.totalorder %s16, 1
      %p81 = por %p79, %p80
      %p83 = scmp.ne.s32.totalorder %s68, %s82
      %p84 = scmp.eq.s32.totalorder %s16, 0
      %p85 = por %p83, %p84
      %s87 = sadd.s32 %s86, 1
      %p90 = scmp.eq.s32.totalorder %s10, 1
      %p91 = scmp.ne.s32.totalorder %s86, %s88
      %p92 = scmp.eq.s32.totalorder %s10, 0
      %p93 = por %p91, %p92
      %p94 = scmp.ne.s32.totalorder %s86, %s88
      %p95 = scmp.eq.s32.totalorder %s15, 1
      %p96 = por %p94, %p95
      %p97 = scmp.ne.s32.totalorder %s88, %s89
      %p98 = scmp.eq.s32.totalorder %s15, 0
      %p99 = por %p97, %p98
      %p100 = scmp.ne.s32.totalorder %s88, %s89
      %p101 = scmp.eq.s32.totalorder %s16, 1
      %p102 = por %p100, %p101
      %p104 = scmp.ne.s32.totalorder %s89, %s103
      %p105 = scmp.eq.s32.totalorder %s16, 0
      %p106 = por %p104, %p105
      %s107 = ssub.s32 %s10, %s17
      %p108 = scmp.eq.s32.totalorder %s107, 0
      %s110 = sadd.s32 %s109, 1
      %s111 = scalar_select %p108, %s109, %s110
      %p114 = pneg %p108
      %p115 = scmp.eq.s32.totalorder %s10, 1
      %p116 = por %p114, %p115
      %p117 = scmp.ne.s32.totalorder %s109, %s112
      %p118 = scmp.eq.s32.totalorder %s10, 0
      %p119 = por %p117, %p118
      %p120 = scmp.ne.s32.totalorder %s109, %s112
      %p121 = scmp.eq.s32.totalorder %s15, 1
      %p122 = por %p120, %p121
      %p123 = scmp.ne.s32.totalorder %s112, %s113
      %p124 = scmp.eq.s32.totalorder %s15, 0
      %p125 = por %p123, %p124
      %p126 = scmp.ne.s32.totalorder %s112, %s113
      %p127 = scmp.eq.s32.totalorder %s16, 1
      %p128 = por %p126, %p127
      %p130 = scmp.ne.s32.totalorder %s113, %s129
      %p131 = scmp.eq.s32.totalorder %s16, 0
      %p132 = por %p130, %p131
      %p133 = scmp.le.s32.totalorder 1, %s10
      %p134 = scmp.lt.s32.totalorder %s10, 3
      %p135 = pnand %p133, %p134
      %p136 = pneg %p135
      // Predicated region
      $region9: #{forward_pallas.21} parent=5 // pred_check
        _
      $region10: #{forward_pallas.21} parent=5 // pred_check_branch
        %138 = sbr.rel (%p135) target = $region12
      $region11: #{forward_pallas.21} parent=5 // pred_region
        %s139 = ssub.s32 %s10, 1
        // Predicated region
        $region13: #{forward_pallas.21} parent=11 // pred_check
          %p140 = pneg %p57
        $region14: #{forward_pallas.21} parent=11 // pred_check_branch
          %142 = sbr.rel (%p140) target = $region16
        $region15: #{forward_pallas.21} parent=11 // pred_region
          _
        $region16: #{forward_pallas.21} parent=11 // pred_fallthru
          _
        // Predicated region
        $region17: #{forward_pallas.21} parent=11 // pred_check
          %p143 = pneg %p78
        $region18: #{forward_pallas.21} parent=11 // pred_check_branch
          %145 = sbr.rel (%p143) target = $region20
        $region19: #{forward_pallas.21} parent=11 // pred_region
          _
        $region20: #{forward_pallas.21} parent=11 // pred_fallthru
          _
        // Predicated region
        $region21: #{forward_pallas.21} parent=11 // pred_check
          %p146 = pneg %p99
        $region22: #{forward_pallas.21} parent=11 // pred_check_branch
          %148 = sbr.rel (%p146) target = $region24
        $region23: #{forward_pallas.21} parent=11 // pred_region
          _
        $region24: #{forward_pallas.21} parent=11 // pred_fallthru
          _
      $region12: #{forward_pallas.21} parent=5 // pred_fallthru
        _
      %p149 = scmp.lt.s32.totalorder %s10, 2
      // Predicated region
      $region25: #{forward_pallas.21} parent=5 // pred_check
        %p150 = pneg %p149
      $region26: #{forward_pallas.21} parent=5 // pred_check_branch
        %152 = sbr.rel (%p150) target = $region28
      $region27: #{forward_pallas.21} parent=5 // pred_region
        // Predicated region
        $region29: #{forward_pallas.21} parent=27 // pred_check
          %p153 = pneg %p30
        $region30: #{forward_pallas.21} parent=27 // pred_check_branch
          %155 = sbr.rel (%p153) target = $region32
        $region31: #{forward_pallas.21} parent=27 // pred_region
          %s156 = sand.u32 %s20, 1
          %s157 = sand.u32 %s20, 1
          %s158 = smul.addr %s157, 608
          %s159 = scalar_lea.vmem [#allocation2], %s158
          %s160 = smul.u32 4, %s10
          %s161 = smul.addr %s160, 8
          %s162 = scalar_lea.vmem %s0, %s161
          // Predicated region
          $region33: #{forward_pallas.21} parent=31 // pred_check
            _
          $region34: #{forward_pallas.21} parent=31 // pred_check_branch
            %164 = sbr.rel (0) target = $region36
          $region35: #{forward_pallas.21} parent=31 // pred_region
            // Predicated region
            $region37: #{forward_pallas.21} parent=35 // pred_check
              _
            $region38: #{forward_pallas.21} parent=35 // pred_check_branch
              %166 = sbr.rel (0) target = $region40
            $region39: #{forward_pallas.21} parent=35 // pred_region
              loop: start=0, step=1, limit=1
              $region41: #{forward_pallas.21} parent=39 // loop_pre_header
                _
              $region42: #{forward_pallas.21} parent=39 // loop_header
                %s168 = sphi 0, %s172
                %p169 = scmp.ge.s32.totalorder %s168, 1
                %s173 = sphi %s162, %s162
                %s174 = sphi %s159, %s159
              $region43: #{forward_pallas.21} parent=39 // loop_header_branch
                %171 = sbr.rel (%p169) target = $region47
              $region44: #{forward_pallas.21} parent=39 // loop_body
                %v175 = vld [vmem:[%s173] sm:$0xff]
                %176 = vst [vmem:[%s174] sm:$0xff] %v175
                %v177 = vld [vmem:[%s173 + $0x8] sm:$0xff]
                %178 = vst [vmem:[%s174 + $0x8] sm:$0xff] %v177
                %v179 = vld [vmem:[%s173 + $0x10] sm:$0xff]
                %180 = vst [vmem:[%s174 + $0x10] sm:$0xff] %v179
                %v181 = vld [vmem:[%s173 + $0x18] sm:$0xff]
                %182 = vst [vmem:[%s174 + $0x18] sm:$0xff] %v181
                %v183 = vld [vmem:[%s173 + $0x40] sm:$0xff]
                %184 = vst [vmem:[%s174 + $0x20] sm:$0xff] %v183
                %v185 = vld [vmem:[%s173 + $0x48] sm:$0xff]
                %186 = vst [vmem:[%s174 + $0x28] sm:$0xff] %v185
                %v187 = vld [vmem:[%s173 + $0x50] sm:$0xff]
                %188 = vst [vmem:[%s174 + $0x30] sm:$0xff] %v187
                %v189 = vld [vmem:[%s173 + $0x58] sm:$0xff]
                %190 = vst [vmem:[%s174 + $0x38] sm:$0xff] %v189
                %v191 = vld [vmem:[%s173 + $0x80] sm:$0xff]
                %192 = vst [vmem:[%s174 + $0x40] sm:$0xff] %v191
                %v193 = vld [vmem:[%s173 + $0x88] sm:$0xff]
                %194 = vst [vmem:[%s174 + $0x48] sm:$0xff] %v193
                %v195 = vld [vmem:[%s173 + $0x90] sm:$0xff]
                %196 = vst [vmem:[%s174 + $0x50] sm:$0xff] %v195
                %v197 = vld [vmem:[%s173 + $0x98] sm:$0xff]
                %198 = vst [vmem:[%s174 + $0x58] sm:$0xff] %v197
                %v199 = vld [vmem:[%s173 + $0xc0] sm:$0xff]
                %200 = vst [vmem:[%s174 + $0x60] sm:$0xff] %v199
                %v201 = vld [vmem:[%s173 + $0xc8] sm:$0xff]
                %202 = vst [vmem:[%s174 + $0x68] sm:$0xff] %v201
                %v203 = vld [vmem:[%s173 + $0xd0] sm:$0xff]
                %204 = vst [vmem:[%s174 + $0x70] sm:$0xff] %v203
                %v205 = vld [vmem:[%s173 + $0xd8] sm:$0xff]
                %206 = vst [vmem:[%s174 + $0x78] sm:$0xff] %v205
                %v207 = vld [vmem:[%s173 + $0x100] sm:$0xff]
                %208 = vst [vmem:[%s174 + $0x80] sm:$0xff] %v207
                %v209 = vld [vmem:[%s173 + $0x108] sm:$0xff]
                %210 = vst [vmem:[%s174 + $0x88] sm:$0xff] %v209
                %v211 = vld [vmem:[%s173 + $0x110] sm:$0xff]
                %212 = vst [vmem:[%s174 + $0x90] sm:$0xff] %v211
                %v213 = vld [vmem:[%s173 + $0x118] sm:$0xff]
                %214 = vst [vmem:[%s174 + $0x98] sm:$0xff] %v213
                %v215 = vld [vmem:[%s173 + $0x140] sm:$0xff]
                %216 = vst [vmem:[%s174 + $0xa0] sm:$0xff] %v215
                %v217 = vld [vmem:[%s173 + $0x148] sm:$0xff]
                %218 = vst [vmem:[%s174 + $0xa8] sm:$0xff] %v217
                %v219 = vld [vmem:[%s173 + $0x150] sm:$0xff]
                %220 = vst [vmem:[%s174 + $0xb0] sm:$0xff] %v219
                %v221 = vld [vmem:[%s173 + $0x158] sm:$0xff]
                %222 = vst [vmem:[%s174 + $0xb8] sm:$0xff] %v221
                %v223 = vld [vmem:[%s173 + $0x180] sm:$0xff]
                %224 = vst [vmem:[%s174 + $0xc0] sm:$0xff] %v223
                %v225 = vld [vmem:[%s173 + $0x188] sm:$0xff]
                %226 = vst [vmem:[%s174 + $0xc8] sm:$0xff] %v225
                %v227 = vld [vmem:[%s173 + $0x190] sm:$0xff]
                %228 = vst [vmem:[%s174 + $0xd0] sm:$0xff] %v227
                %v229 = vld [vmem:[%s173 + $0x198] sm:$0xff]
                %230 = vst [vmem:[%s174 + $0xd8] sm:$0xff] %v229
                %v231 = vld [vmem:[%s173 + $0x1c0] sm:$0xff]
                %232 = vst [vmem:[%s174 + $0xe0] sm:$0xff] %v231
                %v233 = vld [vmem:[%s173 + $0x1c8] sm:$0xff]
                %234 = vst [vmem:[%s174 + $0xe8] sm:$0xff] %v233
                %v235 = vld [vmem:[%s173 + $0x1d0] sm:$0xff]
                %236 = vst [vmem:[%s174 + $0xf0] sm:$0xff] %v235
                %v237 = vld [vmem:[%s173 + $0x1d8] sm:$0xff]
                %238 = vst [vmem:[%s174 + $0xf8] sm:$0xff] %v237
                %v239 = vld [vmem:[%s173 + $0x200] sm:$0xff]
                %240 = vst [vmem:[%s174 + $0x100] sm:$0xff] %v239
                %v241 = vld [vmem:[%s173 + $0x208] sm:$0xff]
                %242 = vst [vmem:[%s174 + $0x108] sm:$0xff] %v241
                %v243 = vld [vmem:[%s173 + $0x210] sm:$0xff]
                %244 = vst [vmem:[%s174 + $0x110] sm:$0xff] %v243
                %v245 = vld [vmem:[%s173 + $0x218] sm:$0xff]
                %246 = vst [vmem:[%s174 + $0x118] sm:$0xff] %v245
                %v247 = vld [vmem:[%s173 + $0x240] sm:$0xff]
                %248 = vst [vmem:[%s174 + $0x120] sm:$0xff] %v247
                %v249 = vld [vmem:[%s173 + $0x248] sm:$0xff]
                %250 = vst [vmem:[%s174 + $0x128] sm:$0xff] %v249
                %v251 = vld [vmem:[%s173 + $0x250] sm:$0xff]
                %252 = vst [vmem:[%s174 + $0x130] sm:$0xff] %v251
                %v253 = vld [vmem:[%s173 + $0x258] sm:$0xff]
                %254 = vst [vmem:[%s174 + $0x138] sm:$0xff] %v253
                %v255 = vld [vmem:[%s173 + $0x280] sm:$0xff]
                %256 = vst [vmem:[%s174 + $0x140] sm:$0xff] %v255
                %v257 = vld [vmem:[%s173 + $0x288] sm:$0xff]
                %258 = vst [vmem:[%s174 + $0x148] sm:$0xff] %v257
                %v259 = vld [vmem:[%s173 + $0x290] sm:$0xff]
                %260 = vst [vmem:[%s174 + $0x150] sm:$0xff] %v259
                %v261 = vld [vmem:[%s173 + $0x298] sm:$0xff]
                %262 = vst [vmem:[%s174 + $0x158] sm:$0xff] %v261
                %v263 = vld [vmem:[%s173 + $0x2c0] sm:$0xff]
                %264 = vst [vmem:[%s174 + $0x160] sm:$0xff] %v263
                %v265 = vld [vmem:[%s173 + $0x2c8] sm:$0xff]
                %266 = vst [vmem:[%s174 + $0x168] sm:$0xff] %v265
                %v267 = vld [vmem:[%s173 + $0x2d0] sm:$0xff]
                %268 = vst [vmem:[%s174 + $0x170] sm:$0xff] %v267
                %v269 = vld [vmem:[%s173 + $0x2d8] sm:$0xff]
                %270 = vst [vmem:[%s174 + $0x178] sm:$0xff] %v269
                %v271 = vld [vmem:[%s173 + $0x300] sm:$0xff]
                %272 = vst [vmem:[%s174 + $0x180] sm:$0xff] %v271
                %v273 = vld [vmem:[%s173 + $0x308] sm:$0xff]
                %274 = vst [vmem:[%s174 + $0x188] sm:$0xff] %v273
                %v275 = vld [vmem:[%s173 + $0x310] sm:$0xff]
                %276 = vst [vmem:[%s174 + $0x190] sm:$0xff] %v275
                %v277 = vld [vmem:[%s173 + $0x318] sm:$0xff]
                %278 = vst [vmem:[%s174 + $0x198] sm:$0xff] %v277
                %v279 = vld [vmem:[%s173 + $0x340] sm:$0xff]
                %280 = vst [vmem:[%s174 + $0x1a0] sm:$0xff] %v279
                %v281 = vld [vmem:[%s173 + $0x348] sm:$0xff]
                %282 = vst [vmem:[%s174 + $0x1a8] sm:$0xff] %v281
                %v283 = vld [vmem:[%s173 + $0x350] sm:$0xff]
                %284 = vst [vmem:[%s174 + $0x1b0] sm:$0xff] %v283
                %v285 = vld [vmem:[%s173 + $0x358] sm:$0xff]
                %286 = vst [vmem:[%s174 + $0x1b8] sm:$0xff] %v285
                %v287 = vld [vmem:[%s173 + $0x380] sm:$0xff]
                %288 = vst [vmem:[%s174 + $0x1c0] sm:$0xff] %v287
                %v289 = vld [vmem:[%s173 + $0x388] sm:$0xff]
                %290 = vst [vmem:[%s174 + $0x1c8] sm:$0xff] %v289
                %v291 = vld [vmem:[%s173 + $0x390] sm:$0xff]
                %292 = vst [vmem:[%s174 + $0x1d0] sm:$0xff] %v291
                %v293 = vld [vmem:[%s173 + $0x398] sm:$0xff]
                %294 = vst [vmem:[%s174 + $0x1d8] sm:$0xff] %v293
                %v295 = vld [vmem:[%s173 + $0x3c0] sm:$0xff]
                %296 = vst [vmem:[%s174 + $0x1e0] sm:$0xff] %v295
                %v297 = vld [vmem:[%s173 + $0x3c8] sm:$0xff]
                %298 = vst [vmem:[%s174 + $0x1e8] sm:$0xff] %v297
                %v299 = vld [vmem:[%s173 + $0x3d0] sm:$0xff]
                %300 = vst [vmem:[%s174 + $0x1f0] sm:$0xff] %v299
                %v301 = vld [vmem:[%s173 + $0x3d8] sm:$0xff]
                %302 = vst [vmem:[%s174 + $0x1f8] sm:$0xff] %v301
                %v303 = vld [vmem:[%s173 + $0x400] sm:$0xff]
                %304 = vst [vmem:[%s174 + $0x200] sm:$0xff] %v303
                %v305 = vld [vmem:[%s173 + $0x408] sm:$0xff]
                %306 = vst [vmem:[%s174 + $0x208] sm:$0xff] %v305
                %v307 = vld [vmem:[%s173 + $0x410] sm:$0xff]
                %308 = vst [vmem:[%s174 + $0x210] sm:$0xff] %v307
                %v309 = vld [vmem:[%s173 + $0x418] sm:$0xff]
                %310 = vst [vmem:[%s174 + $0x218] sm:$0xff] %v309
                %v311 = vld [vmem:[%s173 + $0x440] sm:$0xff]
                %312 = vst [vmem:[%s174 + $0x220] sm:$0xff] %v311
                %v313 = vld [vmem:[%s173 + $0x448] sm:$0xff]
                %314 = vst [vmem:[%s174 + $0x228] sm:$0xff] %v313
                %v315 = vld [vmem:[%s173 + $0x450] sm:$0xff]
                %316 = vst [vmem:[%s174 + $0x230] sm:$0xff] %v315
                %v317 = vld [vmem:[%s173 + $0x458] sm:$0xff]
                %318 = vst [vmem:[%s174 + $0x238] sm:$0xff] %v317
                %v319 = vld [vmem:[%s173 + $0x480] sm:$0xff]
                %320 = vst [vmem:[%s174 + $0x240] sm:$0xff] %v319
                %v321 = vld [vmem:[%s173 + $0x488] sm:$0xff]
                %322 = vst [vmem:[%s174 + $0x248] sm:$0xff] %v321
                %v323 = vld [vmem:[%s173 + $0x490] sm:$0xff]
                %324 = vst [vmem:[%s174 + $0x250] sm:$0xff] %v323
                %v325 = vld [vmem:[%s173 + $0x498] sm:$0xff]
                %326 = vst [vmem:[%s174 + $0x258] sm:$0xff] %v325
              $region45: #{forward_pallas.21} parent=39 // loop_footer
                %s172 = sadd.s32 1, %s168
              $region46: #{forward_pallas.21} parent=39 // loop_footer_branch
                %167 = sbr.rel target = $region42
              $region47: #{forward_pallas.21} parent=39 // loop_exit
                _
            $region40: #{forward_pallas.21} parent=35 // pred_fallthru
              _
            // Predicated region
            $region48: #{forward_pallas.21} parent=35 // pred_check
              _
            $region49: #{forward_pallas.21} parent=35 // pred_check_branch
              %328 = sbr.rel target = $region51
            $region50: #{forward_pallas.21} parent=35 // pred_region
              _
            $region51: #{forward_pallas.21} parent=35 // pred_fallthru
              _
          $region36: #{forward_pallas.21} parent=31 // pred_fallthru
            _
          %329 = vnop
        $region32: #{forward_pallas.21} parent=27 // pred_fallthru
          _
      $region28: #{forward_pallas.21} parent=5 // pred_fallthru
        _
      %p330 = scmp.le.s32.totalorder 1, %s10
      %p331 = scmp.lt.s32.totalorder %s10, 3
      %p332 = pnand %p330, %p331
      %p333 = pneg %p332
      // Predicated region
      $region52: #{forward_pallas.21} parent=5 // pred_check
        _
      $region53: #{forward_pallas.21} parent=5 // pred_check_branch
        %335 = sbr.rel (%p332) target = $region55
      $region54: #{forward_pallas.21} parent=5 // pred_region
        %s336 = ssub.s32 %s10, 1
        %s337 = sand.u32 %s23, 1
        %s338 = sand.u32 %s23, 1
        %s339 = smul.addr %s338, 608
        %s340 = scalar_lea.vmem [#allocation2], %s339
        // Predicated region
        $region56: #{forward_pallas.21} parent=54 // pred_check
          %p341 = pneg %p36
        $region57: #{forward_pallas.21} parent=54 // pred_check_branch
          %343 = sbr.rel (%p341) target = $region59
        $region58: #{forward_pallas.21} parent=54 // pred_region
          _
        $region59: #{forward_pallas.21} parent=54 // pred_fallthru
          _
        %s344 = sand.u32 %s23, 1
        %s345 = sand.u32 %s23, 1
        %s346 = smul.addr %s345, 608
        %s347 = scalar_lea.vmem [#allocation2], %s346
        %p348 = pneg %p36
        %p349 = pneg %p33
        %p350 = pneg %p57
        %p351 = pneg %p54
        %p352 = pneg %p78
        %p353 = pneg %p75
        %p354 = pneg %p99
        %p355 = pneg %p96
        %p356 = pneg %p125
        %p357 = pneg %p122
        %s358 = sand.u32 %s112, 1
        %s359 = sand.u32 %s112, 1
        %s360 = smul.addr %s359, 64
        %s361 = scalar_lea.vmem [#allocation3], %s360
        %s362 = smul.u32 4, %s15
        %s363 = smul.u32 4, %s15
        %v364 = vld [vmem:[%s340] sm:$0xff]
        %v365 = vld [vmem:[%s340 + $0x8] sm:$0xff]
        %v366 = vld [vmem:[%s340 + $0x10] sm:$0xff]
        %v367 = vld [vmem:[%s340 + $0x18] sm:$0xff]
        %v368 = vld [vmem:[%s340 + $0x20] sm:$0xff]
        %v369 = vld [vmem:[%s340 + $0x28] sm:$0xff]
        %v370 = vld [vmem:[%s340 + $0x30] sm:$0xff]
        %v371 = vld [vmem:[%s340 + $0x38] sm:$0xff]
        %v372 = vld [vmem:[%s340 + $0x40] sm:$0xff]
        %v373 = vld [vmem:[%s340 + $0x48] sm:$0xff]
        %v374 = vld [vmem:[%s340 + $0x50] sm:$0xff]
        %v375 = vld [vmem:[%s340 + $0x58] sm:$0xff]
        %v376 = vld [vmem:[%s340 + $0x60] sm:$0xff]
        %v377 = vld [vmem:[%s340 + $0x68] sm:$0xff]
        %v378 = vld [vmem:[%s340 + $0x70] sm:$0xff]
        %v379 = vld [vmem:[%s340 + $0x78] sm:$0xff]
        %v380 = vld [vmem:[%s340 + $0x80] sm:$0xff]
        %v381 = vld [vmem:[%s340 + $0x88] sm:$0xff]
        %v382 = vld [vmem:[%s340 + $0x90] sm:$0xff]
        %v383 = vld [vmem:[%s340 + $0x98] sm:$0xff]
        %v384 = vld [vmem:[%s340 + $0xa0] sm:$0xff]
        %v385 = vld [vmem:[%s340 + $0xa8] sm:$0xff]
        %v386 = vld [vmem:[%s340 + $0xb0] sm:$0xff]
        %v387 = vld [vmem:[%s340 + $0xb8] sm:$0xff]
        %v388 = vld [vmem:[%s340 + $0xc0] sm:$0xff]
        %v389 = vld [vmem:[%s340 + $0xc8] sm:$0xff]
        %v390 = vld [vmem:[%s340 + $0xd0] sm:$0xff]
        %v391 = vld [vmem:[%s340 + $0xd8] sm:$0xff]
        %v392 = vld [vmem:[%s340 + $0xe0] sm:$0xff]
        %v393 = vld [vmem:[%s340 + $0xe8] sm:$0xff]
        %v394 = vld [vmem:[%s340 + $0xf0] sm:$0xff]
        %v395 = vld [vmem:[%s340 + $0xf8] sm:$0xff]
        %v396 = vld [vmem:[%s340 + $0x100] sm:$0xff]
        %v397 = vld [vmem:[%s340 + $0x108] sm:$0xff]
        %v398 = vld [vmem:[%s340 + $0x110] sm:$0xff]
        %v399 = vld [vmem:[%s340 + $0x118] sm:$0xff]
        %v400 = vld [vmem:[%s340 + $0x120] sm:$0xff]
        %v401 = vld [vmem:[%s340 + $0x128] sm:$0xff]
        %v402 = vld [vmem:[%s340 + $0x130] sm:$0xff]
        %v403 = vld [vmem:[%s340 + $0x138] sm:$0xff]
        %v404 = vld [vmem:[%s340 + $0x140] sm:$0xff]
        %v405 = vld [vmem:[%s340 + $0x148] sm:$0xff]
        %v406 = vld [vmem:[%s340 + $0x150] sm:$0xff]
        %v407 = vld [vmem:[%s340 + $0x158] sm:$0xff]
        %v408 = vld [vmem:[%s340 + $0x160] sm:$0xff]
        %v409 = vld [vmem:[%s340 + $0x168] sm:$0xff]
        %v410 = vld [vmem:[%s340 + $0x170] sm:$0xff]
        %v411 = vld [vmem:[%s340 + $0x178] sm:$0xff]
        %v412 = vld [vmem:[%s340 + $0x180] sm:$0xff]
        %v413 = vld [vmem:[%s340 + $0x188] sm:$0xff]
        %v414 = vld [vmem:[%s340 + $0x190] sm:$0xff]
        %v415 = vld [vmem:[%s340 + $0x198] sm:$0xff]
        %v416 = vld [vmem:[%s340 + $0x1a0] sm:$0xff]
        %v417 = vld [vmem:[%s340 + $0x1a8] sm:$0xff]
        %v418 = vld [vmem:[%s340 + $0x1b0] sm:$0xff]
        %v419 = vld [vmem:[%s340 + $0x1b8] sm:$0xff]
        %v420 = vld [vmem:[%s340 + $0x1c0] sm:$0xff]
        %v421 = vld [vmem:[%s340 + $0x1c8] sm:$0xff]
        %v422 = vld [vmem:[%s340 + $0x1d0] sm:$0xff]
        %v423 = vld [vmem:[%s340 + $0x1d8] sm:$0xff]
        %v424 = vld [vmem:[%s340 + $0x1e0] sm:$0xff]
        %v425 = vld [vmem:[%s340 + $0x1e8] sm:$0xff]
        %v426 = vld [vmem:[%s340 + $0x1f0] sm:$0xff]
        %v427 = vld [vmem:[%s340 + $0x1f8] sm:$0xff]
        %v428 = vld [vmem:[%s340 + $0x200] sm:$0xff]
        %v429 = vld [vmem:[%s340 + $0x208] sm:$0xff]
        %v430 = vld [vmem:[%s340 + $0x210] sm:$0xff]
        %v431 = vld [vmem:[%s340 + $0x218] sm:$0xff]
        %v432 = vld [vmem:[%s340 + $0x220] sm:$0xff]
        %v433 = vld [vmem:[%s340 + $0x228] sm:$0xff]
        %v434 = vld [vmem:[%s340 + $0x230] sm:$0xff]
        %v435 = vld [vmem:[%s340 + $0x238] sm:$0xff]
        %v436 = vld [vmem:[%s340 + $0x240] sm:$0x7]
        %v437 = vld [vmem:[%s340 + $0x248] sm:$0x7]
        %v438 = vld [vmem:[%s340 + $0x250] sm:$0x7]
        %v439 = vld [vmem:[%s340 + $0x258] sm:$0x7]
        %v440 = vld [vmem:[%s1] sm:$0xff]
        %v441 = vld [vmem:[%s1 + $0x8] sm:$0xff]
        %v442 = vld [vmem:[%s1 + $0x10] sm:$0xff]
        %v443 = vld [vmem:[%s1 + $0x18] sm:$0xff]
        %vm444 = vcmask 154624
        %v446 = vsel %vm444, %v441, 0
        %v449 = vsel %vm444, %v443, 0
        %vm451 = vcmask 1042432
        %v453 = vsel %vm451, %v436, 0
        %v456 = vsel %vm451, %v437, 0
        %v459 = vsel %vm451, %v438, 0
        %v462 = vsel %vm451, %v439, 0
        %464 = vmatpush.msra.mxu0 %v424
        %465 = vmatpush.msra.mxu0 %v420
        %466 = vmatpush.msra.mxu0 %v416
        %467 = vmatpush.msra.mxu0 %v412
        %468 = vmatpush.msra.mxu0 %v408
        %469 = vmatpush.msra.mxu0 %v404
        %470 = vmatpush.msra.mxu0 %v400
        %471 = vmatpush.msra.mxu0 %v396
        %472 = vmatpush.msra.mxu0 %v392
        %473 = vmatpush.msra.mxu0 %v388
        %474 = vmatpush.msra.mxu0 %v384
        %475 = vmatpush.msra.mxu0 %v380
        %476 = vmatpush.msra.mxu0 %v376
        %477 = vmatpush.msra.mxu0 %v372
        %478 = vmatpush.msra.mxu0 %v368
        %479 = vmatpush.msra.mxu0 %v364
        %480 = vmatmul.f32.gmra.mxu0 %v440
        %v481 = vpop.f32.mrf.mxu0
        %v482 = vadd.f32 0.0, %v481
        %483 = vmatmul.f32.gmra.mxu0 %v442
        %v484 = vpop.f32.mrf.mxu0
        %v485 = vadd.f32 0.0, %v484
        %486 = vdwg.mxu0
        %487 = vmatpush.msra.mxu0 0.0
        %488 = vmatpush.msra.mxu0 0.0
        %489 = vmatpush.msra.mxu0 0.0
        %490 = vmatpush.msra.mxu0 0.0
        %491 = vmatpush.msra.mxu0 0.0
        %492 = vmatpush.msra.mxu0 0.0
        %493 = vmatpush.msra.mxu0 0.0
        %494 = vmatpush.msra.mxu0 0.0
        %495 = vmatpush.msra.mxu0 0.0
        %496 = vmatpush.msra.mxu0 0.0
        %497 = vmatpush.msra.mxu0 0.0
        %498 = vmatpush.msra.mxu0 0.0
        %499 = vmatpush.msra.mxu0 0.0
        %500 = vmatpush.msra.mxu0 %v453
        %501 = vmatpush.msra.mxu0 %v432
        %502 = vmatpush.msra.mxu0 %v428
        %503 = vmatmul.f32.gmra.mxu0 %v446
        %v504 = vpop.f32.mrf.mxu0
        %v505 = vadd.f32 %v482, %v504
        %506 = vmatmul.f32.gmra.mxu0 %v449
        %v507 = vpop.f32.mrf.mxu0
        %v508 = vadd.f32 %v485, %v507
        %509 = vdwg.mxu0
        %510 = vmatpush.msra.mxu0 %v425
        %511 = vmatpush.msra.mxu0 %v421
        %512 = vmatpush.msra.mxu0 %v417
        %513 = vmatpush.msra.mxu0 %v413
        %514 = vmatpush.msra.mxu0 %v409
        %515 = vmatpush.msra.mxu0 %v405
        %516 = vmatpush.msra.mxu0 %v401
        %517 = vmatpush.msra.mxu0 %v397
        %518 = vmatpush.msra.mxu0 %v393
        %519 = vmatpush.msra.mxu0 %v389
        %520 = vmatpush.msra.mxu0 %v385
        %521 = vmatpush.msra.mxu0 %v381
        %522 = vmatpush.msra.mxu0 %v377
        %523 = vmatpush.msra.mxu0 %v373
        %524 = vmatpush.msra.mxu0 %v369
        %525 = vmatpush.msra.mxu0 %v365
        %526 = vmatmul.f32.gmra.mxu0 %v440
        %v527 = vpop.f32.mrf.mxu0
        %v528 = vadd.f32 0.0, %v527
        %529 = vmatmul.f32.gmra.mxu0 %v442
        %v530 = vpop.f32.mrf.mxu0
        %v531 = vadd.f32 0.0, %v530
        %532 = vdwg.mxu0
        %533 = vmatpush.msra.mxu0 0.0
        %534 = vmatpush.msra.mxu0 0.0
        %535 = vmatpush.msra.mxu0 0.0
        %536 = vmatpush.msra.mxu0 0.0
        %537 = vmatpush.msra.mxu0 0.0
        %538 = vmatpush.msra.mxu0 0.0
        %539 = vmatpush.msra.mxu0 0.0
        %540 = vmatpush.msra.mxu0 0.0
        %541 = vmatpush.msra.mxu0 0.0
        %542 = vmatpush.msra.mxu0 0.0
        %543 = vmatpush.msra.mxu0 0.0
        %544 = vmatpush.msra.mxu0 0.0
        %545 = vmatpush.msra.mxu0 0.0
        %546 = vmatpush.msra.mxu0 %v456
        %547 = vmatpush.msra.mxu0 %v433
        %548 = vmatpush.msra.mxu0 %v429
        %549 = vmatmul.f32.gmra.mxu0 %v446
        %v550 = vpop.f32.mrf.mxu0
        %v551 = vadd.f32 %v528, %v550
        %552 = vmatmul.f32.gmra.mxu0 %v449
        %v553 = vpop.f32.mrf.mxu0
        %v554 = vadd.f32 %v531, %v553
        %555 = vdwg.mxu0
        %556 = vmatpush.msra.mxu0 %v426
        %557 = vmatpush.msra.mxu0 %v422
        %558 = vmatpush.msra.mxu0 %v418
        %559 = vmatpush.msra.mxu0 %v414
        %560 = vmatpush.msra.mxu0 %v410
        %561 = vmatpush.msra.mxu0 %v406
        %562 = vmatpush.msra.mxu0 %v402
        %563 = vmatpush.msra.mxu0 %v398
        %564 = vmatpush.msra.mxu0 %v394
        %565 = vmatpush.msra.mxu0 %v390
        %566 = vmatpush.msra.mxu0 %v386
        %567 = vmatpush.msra.mxu0 %v382
        %568 = vmatpush.msra.mxu0 %v378
        %569 = vmatpush.msra.mxu0 %v374
        %570 = vmatpush.msra.mxu0 %v370
        %571 = vmatpush.msra.mxu0 %v366
        %572 = vmatmul.f32.gmra.mxu0 %v440
        %v573 = vpop.f32.mrf.mxu0
        %v574 = vadd.f32 0.0, %v573
        %575 = vmatmul.f32.gmra.mxu0 %v442
        %v576 = vpop.f32.mrf.mxu0
        %v577 = vadd.f32 0.0, %v576
        %578 = vdwg.mxu0
        %579 = vmatpush.msra.mxu0 0.0
        %580 = vmatpush.msra.mxu0 0.0
        %581 = vmatpush.msra.mxu0 0.0
        %582 = vmatpush.msra.mxu0 0.0
        %583 = vmatpush.msra.mxu0 0.0
        %584 = vmatpush.msra.mxu0 0.0
        %585 = vmatpush.msra.mxu0 0.0
        %586 = vmatpush.msra.mxu0 0.0
        %587 = vmatpush.msra.mxu0 0.0
        %588 = vmatpush.msra.mxu0 0.0
        %589 = vmatpush.msra.mxu0 0.0
        %590 = vmatpush.msra.mxu0 0.0
        %591 = vmatpush.msra.mxu0 0.0
        %592 = vmatpush.msra.mxu0 %v459
        %593 = vmatpush.msra.mxu0 %v434
        %594 = vmatpush.msra.mxu0 %v430
        %595 = vmatmul.f32.gmra.mxu0 %v446
        %v596 = vpop.f32.mrf.mxu0
        %v597 = vadd.f32 %v574, %v596
        %598 = vmatmul.f32.gmra.mxu0 %v449
        %v599 = vpop.f32.mrf.mxu0
        %v600 = vadd.f32 %v577, %v599
        %601 = vdwg.mxu0
        %602 = vmatpush.msra.mxu0 %v427
        %603 = vmatpush.msra.mxu0 %v423
        %604 = vmatpush.msra.mxu0 %v419
        %605 = vmatpush.msra.mxu0 %v415
        %606 = vmatpush.msra.mxu0 %v411
        %607 = vmatpush.msra.mxu0 %v407
        %608 = vmatpush.msra.mxu0 %v403
        %609 = vmatpush.msra.mxu0 %v399
        %610 = vmatpush.msra.mxu0 %v395
        %611 = vmatpush.msra.mxu0 %v391
        %612 = vmatpush.msra.mxu0 %v387
        %613 = vmatpush.msra.mxu0 %v383
        %614 = vmatpush.msra.mxu0 %v379
        %615 = vmatpush.msra.mxu0 %v375
        %616 = vmatpush.msra.mxu0 %v371
        %617 = vmatpush.msra.mxu0 %v367
        %618 = vmatmul.f32.gmra.mxu0 %v440
        %v619 = vpop.f32.mrf.mxu0
        %v620 = vadd.f32 0.0, %v619
        %621 = vmatmul.f32.gmra.mxu0 %v442
        %v622 = vpop.f32.mrf.mxu0
        %v623 = vadd.f32 0.0, %v622
        %624 = vdwg.mxu0
        %625 = vmatpush.msra.mxu0 0.0
        %626 = vmatpush.msra.mxu0 0.0
        %627 = vmatpush.msra.mxu0 0.0
        %628 = vmatpush.msra.mxu0 0.0
        %629 = vmatpush.msra.mxu0 0.0
        %630 = vmatpush.msra.mxu0 0.0
        %631 = vmatpush.msra.mxu0 0.0
        %632 = vmatpush.msra.mxu0 0.0
        %633 = vmatpush.msra.mxu0 0.0
        %634 = vmatpush.msra.mxu0 0.0
        %635 = vmatpush.msra.mxu0 0.0
        %636 = vmatpush.msra.mxu0 0.0
        %637 = vmatpush.msra.mxu0 0.0
        %638 = vmatpush.msra.mxu0 %v462
        %639 = vmatpush.msra.mxu0 %v435
        %640 = vmatpush.msra.mxu0 %v431
        %641 = vmatmul.f32.gmra.mxu0 %v446
        %v642 = vpop.f32.mrf.mxu0
        %v643 = vadd.f32 %v620, %v642
        %644 = vmatmul.f32.gmra.mxu0 %v449
        %v645 = vpop.f32.mrf.mxu0
        %v646 = vadd.f32 %v623, %v645
        %647 = vdwg.mxu0
        %v648 = vld [vmem:[%s2] sm:$0xff]
        %v649 = vld [vmem:[%s2 + $0x8] sm:$0xff]
        %651 = vset.pattern.permute.xlu0 0
        %652 = vperm.xlu0 %651, %v648
        %v653 = vpop.permute.xlu0 %652
        %656 = vset.pattern.permute.xlu0 0
        %657 = vperm.xlu0 %656, %v649
        %v658 = vpop.permute.xlu0 %657
        %v660 = vmul.f32 %v505, %v653
        %v661 = vmul.f32 %v551, %v653
        %v662 = vmul.f32 %v597, %v653
        %v663 = vmul.f32 %v643, %v653
        %v664 = vmul.f32 %v508, %v658
        %v665 = vmul.f32 %v554, %v658
        %v666 = vmul.f32 %v600, %v658
        %v667 = vmul.f32 %v646, %v658
        %v668 = vld [vmem:[%s3] sm:$0xff]
        %v669 = vld [vmem:[%s3 + $0x8] sm:$0xff]
        %671 = vset.pattern.permute.xlu0 0
        %672 = vperm.xlu0 %671, %v668
        %v673 = vpop.permute.xlu0 %672
        %676 = vset.pattern.permute.xlu0 0
        %677 = vperm.xlu0 %676, %v669
        %v678 = vpop.permute.xlu0 %677
        %v680 = vadd.f32 %v660, %v673
        %v681 = vadd.f32 %v661, %v673
        %v682 = vadd.f32 %v662, %v673
        %v683 = vadd.f32 %v663, %v673
        %v684 = vadd.f32 %v664, %v678
        %v685 = vadd.f32 %v665, %v678
        %v686 = vadd.f32 %v666, %v678
        %v687 = vadd.f32 %v667, %v678
        %v688 = vmax.f32 %v680, 0.0
        %v689 = vmax.f32 %v681, 0.0
        %v690 = vmax.f32 %v682, 0.0
        %v691 = vmax.f32 %v683, 0.0
        %v692 = vmax.f32 %v684, 0.0
        %v693 = vmax.f32 %v685, 0.0
        %v694 = vmax.f32 %v686, 0.0
        %v695 = vmax.f32 %v687, 0.0
        %696 = vst [vmem:[%s361] sm:$0xff] %v688
        %697 = vst [vmem:[%s361 + $0x8] sm:$0xff] %v689
        %698 = vst [vmem:[%s361 + $0x10] sm:$0xff] %v690
        %699 = vst [vmem:[%s361 + $0x18] sm:$0xff] %v691
        %700 = vst [vmem:[%s361 + $0x20] sm:$0xff] %v692
        %701 = vst [vmem:[%s361 + $0x28] sm:$0xff] %v693
        %702 = vst [vmem:[%s361 + $0x30] sm:$0xff] %v694
        %703 = vst [vmem:[%s361 + $0x38] sm:$0xff] %v695
        %s704 = sand.u32 %s112, 1
        %s705 = sand.u32 %s112, 1
        %s706 = smul.addr %s705, 64
        %s707 = scalar_lea.vmem [#allocation3], %s706
        // Predicated region
        $region60: #{forward_pallas.21} parent=54 // pred_check
          %p708 = pneg %p122
        $region61: #{forward_pallas.21} parent=54 // pred_check_branch
          %710 = sbr.rel (%p708) target = $region63
        $region62: #{forward_pallas.21} parent=54 // pred_region
          %s711 = smul.u32 4, %s15
          %s712 = smul.addr %s711, 8
          %s713 = scalar_lea.vmem %s4, %s712
          // Predicated region
          $region64: #{forward_pallas.21} parent=62 // pred_check
            _
          $region65: #{forward_pallas.21} parent=62 // pred_check_branch
            %715 = sbr.rel (0) target = $region67
          $region66: #{forward_pallas.21} parent=62 // pred_region
            // Predicated region
            $region68: #{forward_pallas.21} parent=66 // pred_check
              _
            $region69: #{forward_pallas.21} parent=66 // pred_check_branch
              %717 = sbr.rel (0) target = $region71
            $region70: #{forward_pallas.21} parent=66 // pred_region
              loop: start=0, step=1, limit=1
              $region72: #{forward_pallas.21} parent=70 // loop_pre_header
                _
              $region73: #{forward_pallas.21} parent=70 // loop_header
                %s719 = sphi 0, %s723
                %p720 = scmp.ge.s32.totalorder %s719, 1
                %s724 = sphi %s707, %s707
                %s725 = sphi %s713, %s713
              $region74: #{forward_pallas.21} parent=70 // loop_header_branch
                %722 = sbr.rel (%p720) target = $region78
              $region75: #{forward_pallas.21} parent=70 // loop_body
                %v726 = vld [vmem:[%s724] sm:$0xff]
                %727 = vst [vmem:[%s725] sm:$0xff] %v726
                %v728 = vld [vmem:[%s724 + $0x8] sm:$0xff]
                %729 = vst [vmem:[%s725 + $0x8] sm:$0xff] %v728
                %v730 = vld [vmem:[%s724 + $0x10] sm:$0xff]
                %731 = vst [vmem:[%s725 + $0x10] sm:$0xff] %v730
                %v732 = vld [vmem:[%s724 + $0x18] sm:$0xff]
                %733 = vst [vmem:[%s725 + $0x18] sm:$0xff] %v732
                %v734 = vld [vmem:[%s724 + $0x20] sm:$0xff]
                %735 = vst [vmem:[%s725 + $0x40] sm:$0xff] %v734
                %v736 = vld [vmem:[%s724 + $0x28] sm:$0xff]
                %737 = vst [vmem:[%s725 + $0x48] sm:$0xff] %v736
                %v738 = vld [vmem:[%s724 + $0x30] sm:$0xff]
                %739 = vst [vmem:[%s725 + $0x50] sm:$0xff] %v738
                %v740 = vld [vmem:[%s724 + $0x38] sm:$0xff]
                %741 = vst [vmem:[%s725 + $0x58] sm:$0xff] %v740
              $region76: #{forward_pallas.21} parent=70 // loop_footer
                %s723 = sadd.s32 1, %s719
              $region77: #{forward_pallas.21} parent=70 // loop_footer_branch
                %718 = sbr.rel target = $region73
              $region78: #{forward_pallas.21} parent=70 // loop_exit
                _
            $region71: #{forward_pallas.21} parent=66 // pred_fallthru
              _
            // Predicated region
            $region79: #{forward_pallas.21} parent=66 // pred_check
              _
            $region80: #{forward_pallas.21} parent=66 // pred_check_branch
              %743 = sbr.rel target = $region82
            $region81: #{forward_pallas.21} parent=66 // pred_region
              _
            $region82: #{forward_pallas.21} parent=66 // pred_fallthru
              _
          $region67: #{forward_pallas.21} parent=62 // pred_fallthru
            _
          %744 = vnop
        $region63: #{forward_pallas.21} parent=54 // pred_fallthru
          _
      $region55: #{forward_pallas.21} parent=5 // pred_fallthru
        _
      %p745 = scmp.le.s32.totalorder 2, %s10
      // Predicated region
      $region83: #{forward_pallas.21} parent=5 // pred_check
        %p746 = pneg %p745
      $region84: #{forward_pallas.21} parent=5 // pred_check_branch
        %748 = sbr.rel (%p746) target = $region86
      $region85: #{forward_pallas.21} parent=5 // pred_region
        %s749 = ssub.s32 %s10, 2
        // Predicated region
        $region87: #{forward_pallas.21} parent=85 // pred_check
          %p750 = pneg %p128
        $region88: #{forward_pallas.21} parent=85 // pred_check_branch
          %752 = sbr.rel (%p750) target = $region90
        $region89: #{forward_pallas.21} parent=85 // pred_region
          %s753 = sand.u32 %s113, 1
          %s754 = sand.u32 %s113, 1
          %s755 = smul.addr %s754, 64
          %s756 = scalar_lea.vmem [#allocation3], %s755
        $region90: #{forward_pallas.21} parent=85 // pred_fallthru
          _
      $region86: #{forward_pallas.21} parent=5 // pred_fallthru
        _
    $region6: #{forward_pallas.21} parent=1 // loop_footer
      %s14 = sadd.s32 1, %s10
    $region7: #{forward_pallas.21} parent=1 // loop_footer_branch
      %9 = sbr.rel target = $region3
    $region8: #{forward_pallas.21} parent=1 // loop_exit
      _

// kernel: forward_pallas.24
$region0: #{forward_pallas.24}
  #allocation0 [shape = 'u32[]', space=smem, size = 0x4, offset = 0x4, fixed_abs, tag = 'smem constant byte address 0x4 - core index']
  #allocation1 [shape = 'u32[72,128]{1,0:T(1,128)}', space=vmem, size = 0x9000, scoped, tag = 'internal scratch']
  %s0 = inlined_call_operand.vmem [shape: f32[24,1024], index: 0, kind: input, shape index: {}]
  %s1 = inlined_call_operand.vmem [shape: f32[16,24], index: 1, kind: input, shape index: {}]
  %s2 = inlined_call_operand.vmem [shape: f32[24,1], index: 2, kind: input, shape index: {}]
  %s3 = inlined_call_operand.vmem [shape: f32[24,1], index: 3, kind: input, shape index: {}]
  %s4 = inlined_call_operand.vmem [shape: f32[16,1], index: 4, kind: input, shape index: {}]
  %s5 = inlined_call_operand.vmem [shape: f32[16,1], index: 5, kind: input, shape index: {}]
  %s6 = inlined_call_operand.vmem [shape: f32[16,1024], index: 6, kind: output, shape index: {}]
  %s7 = sld [smem:[#allocation0]]
  $region99: #{forward_pallas.24} parent=0
    _
  %s9 = ssub.s32 1, %s7
  %s10 = scalar_select 0, %s9, %s7
  $region1: #{forward_pallas.24} parent=0
    #allocation2 [shape = 'u8[98304]{0}', space=vmem, size = 0x18000, scoped, tag = 'input window, operand 0']
    #allocation3 [shape = 'u8[65536]{0}', space=vmem, size = 0x10000, scoped, tag = 'output window, operand 0']
    loop: start=0, step=1, limit=4
    $region2: #{forward_pallas.24} parent=1 // loop_pre_header
      _
    $region3: #{forward_pallas.24} parent=1 // loop_header
      %s12 = sphi 0, %s16
      %p13 = scmp.ge.s32.totalorder %s12, 4
      %s22 = sphi 0, %s24
      %s25 = sphi 0, %s22
      %s26 = sphi 0, %s25
      %s42 = sphi 0, %s26
      %s46 = sphi 0, %s46
      %s48 = sphi 0, %s46
      %s49 = sphi 0, %s48
      %s63 = sphi 0, %s49
      %s67 = sphi 0, %s67
      %s69 = sphi 0, %s67
      %s70 = sphi 0, %s69
      %s84 = sphi 0, %s70
      %s88 = sphi 0, %s88
      %s90 = sphi 0, %s88
      %s91 = sphi 0, %s90
      %s105 = sphi 0, %s91
      %s109 = sphi 0, %s109
      %s111 = sphi 0, %s109
      %s112 = sphi 0, %s111
      %s126 = sphi 0, %s112
      %s130 = sphi 0, %s130
      %s132 = sphi 0, %s130
      %s133 = sphi 0, %s132
      %s147 = sphi 0, %s133
      %s153 = sphi 0, %s155
      %s156 = sphi 0, %s153
      %s157 = sphi 0, %s156
      %s173 = sphi 0, %s157
    $region4: #{forward_pallas.24} parent=1 // loop_header_branch
      %15 = sbr.rel (%p13) target = $region8
    $region5: #{forward_pallas.24} parent=1 // loop_body
      %s17 = ssub.s32 %s12, 1
      %s18 = ssub.s32 %s12, 2
      %s19 = sadd.s32 %s12, 1
      %s20 = ssub.s32 %s12, %s19
      %p21 = scmp.eq.s32.totalorder %s20, 0
      %s23 = sadd.s32 %s22, 1
      %s24 = scalar_select %p21, %s22, %s23
      %p27 = pneg %p21
      %p28 = scmp.eq.s32.totalorder %s12, 1
      %p29 = por %p27, %p28
      %p30 = scmp.ne.s32.totalorder %s22, %s25
      %p31 = scmp.eq.s32.totalorder %s12, 0
      %p32 = por %p30, %p31
      %p33 = scmp.ne.s32.totalorder %s22, %s25
      %p34 = scmp.eq.s32.totalorder %s17, 1
      %p35 = por %p33, %p34
      %p36 = scmp.ne.s32.totalorder %s25, %s26
      %p37 = scmp.eq.s32.totalorder %s17, 0
      %p38 = por %p36, %p37
      %p39 = scmp.ne.s32.totalorder %s25, %s26
      %p40 = scmp.eq.s32.totalorder %s18, 1
      %p41 = por %p39, %p40
      %p43 = scmp.ne.s32.totalorder %s26, %s42
      %p44 = scmp.eq.s32.totalorder %s18, 0
      %p45 = por %p43, %p44
      %s47 = sadd.s32 %s46, 1
      %p50 = scmp.eq.s32.totalorder %s12, 1
      %p51 = scmp.ne.s32.totalorder %s46, %s48
      %p52 = scmp.eq.s32.totalorder %s12, 0
      %p53 = por %p51, %p52
      %p54 = scmp.ne.s32.totalorder %s46, %s48
      %p55 = scmp.eq.s32.totalorder %s17, 1
      %p56 = por %p54, %p55
      %p57 = scmp.ne.s32.totalorder %s48, %s49
      %p58 = scmp.eq.s32.totalorder %s17, 0
      %p59 = por %p57, %p58
      %p60 = scmp.ne.s32.totalorder %s48, %s49
      %p61 = scmp.eq.s32.totalorder %s18, 1
      %p62 = por %p60, %p61
      %p64 = scmp.ne.s32.totalorder %s49, %s63
      %p65 = scmp.eq.s32.totalorder %s18, 0
      %p66 = por %p64, %p65
      %s68 = sadd.s32 %s67, 1
      %p71 = scmp.eq.s32.totalorder %s12, 1
      %p72 = scmp.ne.s32.totalorder %s67, %s69
      %p73 = scmp.eq.s32.totalorder %s12, 0
      %p74 = por %p72, %p73
      %p75 = scmp.ne.s32.totalorder %s67, %s69
      %p76 = scmp.eq.s32.totalorder %s17, 1
      %p77 = por %p75, %p76
      %p78 = scmp.ne.s32.totalorder %s69, %s70
      %p79 = scmp.eq.s32.totalorder %s17, 0
      %p80 = por %p78, %p79
      %p81 = scmp.ne.s32.totalorder %s69, %s70
      %p82 = scmp.eq.s32.totalorder %s18, 1
      %p83 = por %p81, %p82
      %p85 = scmp.ne.s32.totalorder %s70, %s84
      %p86 = scmp.eq.s32.totalorder %s18, 0
      %p87 = por %p85, %p86
      %s89 = sadd.s32 %s88, 1
      %p92 = scmp.eq.s32.totalorder %s12, 1
      %p93 = scmp.ne.s32.totalorder %s88, %s90
      %p94 = scmp.eq.s32.totalorder %s12, 0
      %p95 = por %p93, %p94
      %p96 = scmp.ne.s32.totalorder %s88, %s90
      %p97 = scmp.eq.s32.totalorder %s17, 1
      %p98 = por %p96, %p97
      %p99 = scmp.ne.s32.totalorder %s90, %s91
      %p100 = scmp.eq.s32.totalorder %s17, 0
      %p101 = por %p99, %p100
      %p102 = scmp.ne.s32.totalorder %s90, %s91
      %p103 = scmp.eq.s32.totalorder %s18, 1
      %p104 = por %p102, %p103
      %p106 = scmp.ne.s32.totalorder %s91, %s105
      %p107 = scmp.eq.s32.totalorder %s18, 0
      %p108 = por %p106, %p107
      %s110 = sadd.s32 %s109, 1
      %p113 = scmp.eq.s32.totalorder %s12, 1
      %p114 = scmp.ne.s32.totalorder %s109, %s111
      %p115 = scmp.eq.s32.totalorder %s12, 0
      %p116 = por %p114, %p115
      %p117 = scmp.ne.s32.totalorder %s109, %s111
      %p118 = scmp.eq.s32.totalorder %s17, 1
      %p119 = por %p117, %p118
      %p120 = scmp.ne.s32.totalorder %s111, %s112
      %p121 = scmp.eq.s32.totalorder %s17, 0
      %p122 = por %p120, %p121
      %p123 = scmp.ne.s32.totalorder %s111, %s112
      %p124 = scmp.eq.s32.totalorder %s18, 1
      %p125 = por %p123, %p124
      %p127 = scmp.ne.s32.totalorder %s112, %s126
      %p128 = scmp.eq.s32.totalorder %s18, 0
      %p129 = por %p127, %p128
      %s131 = sadd.s32 %s130, 1
      %p134 = scmp.eq.s32.totalorder %s12, 1
      %p135 = scmp.ne.s32.totalorder %s130, %s132
      %p136 = scmp.eq.s32.totalorder %s12, 0
      %p137 = por %p135, %p136
      %p138 = scmp.ne.s32.totalorder %s130, %s132
      %p139 = scmp.eq.s32.totalorder %s17, 1
      %p140 = por %p138, %p139
      %p141 = scmp.ne.s32.totalorder %s132, %s133
      %p142 = scmp.eq.s32.totalorder %s17, 0
      %p143 = por %p141, %p142
      %p144 = scmp.ne.s32.totalorder %s132, %s133
      %p145 = scmp.eq.s32.totalorder %s18, 1
      %p146 = por %p144, %p145
      %p148 = scmp.ne.s32.totalorder %s133, %s147
      %p149 = scmp.eq.s32.totalorder %s18, 0
      %p150 = por %p148, %p149
      %s151 = ssub.s32 %s12, %s19
      %p152 = scmp.eq.s32.totalorder %s151, 0
      %s154 = sadd.s32 %s153, 1
      %s155 = scalar_select %p152, %s153, %s154
      %p158 = pneg %p152
      %p159 = scmp.eq.s32.totalorder %s12, 1
      %p160 = por %p158, %p159
      %p161 = scmp.ne.s32.totalorder %s153, %s156
      %p162 = scmp.eq.s32.totalorder %s12, 0
      %p163 = por %p161, %p162
      %p164 = scmp.ne.s32.totalorder %s153, %s156
      %p165 = scmp.eq.s32.totalorder %s17, 1
      %p166 = por %p164, %p165
      %p167 = scmp.ne.s32.totalorder %s156, %s157
      %p168 = scmp.eq.s32.totalorder %s17, 0
      %p169 = por %p167, %p168
      %p170 = scmp.ne.s32.totalorder %s156, %s157
      %p171 = scmp.eq.s32.totalorder %s18, 1
      %p172 = por %p170, %p171
      %p174 = scmp.ne.s32.totalorder %s157, %s173
      %p175 = scmp.eq.s32.totalorder %s18, 0
      %p176 = por %p174, %p175
      %p177 = scmp.le.s32.totalorder 1, %s12
      %p178 = scmp.lt.s32.totalorder %s12, 3
      %p179 = pnand %p177, %p178
      %p180 = pneg %p179
      // Predicated region
      $region9: #{forward_pallas.24} parent=5 // pred_check
        _
      $region10: #{forward_pallas.24} parent=5 // pred_check_branch
        %182 = sbr.rel (%p179) target = $region12
      $region11: #{forward_pallas.24} parent=5 // pred_region
        %s183 = ssub.s32 %s12, 1
        // Predicated region
        $region13: #{forward_pallas.24} parent=11 // pred_check
          %p184 = pneg %p59
        $region14: #{forward_pallas.24} parent=11 // pred_check_branch
          %186 = sbr.rel (%p184) target = $region16
        $region15: #{forward_pallas.24} parent=11 // pred_region
          _
        $region16: #{forward_pallas.24} parent=11 // pred_fallthru
          _
        // Predicated region
        $region17: #{forward_pallas.24} parent=11 // pred_check
          %p187 = pneg %p80
        $region18: #{forward_pallas.24} parent=11 // pred_check_branch
          %189 = sbr.rel (%p187) target = $region20
        $region19: #{forward_pallas.24} parent=11 // pred_region
          _
        $region20: #{forward_pallas.24} parent=11 // pred_fallthru
          _
        // Predicated region
        $region21: #{forward_pallas.24} parent=11 // pred_check
          %p190 = pneg %p101
        $region22: #{forward_pallas.24} parent=11 // pred_check_branch
          %192 = sbr.rel (%p190) target = $region24
        $region23: #{forward_pallas.24} parent=11 // pred_region
          _
        $region24: #{forward_pallas.24} parent=11 // pred_fallthru
          _
        // Predicated region
        $region25: #{forward_pallas.24} parent=11 // pred_check
          %p193 = pneg %p122
        $region26: #{forward_pallas.24} parent=11 // pred_check_branch
          %195 = sbr.rel (%p193) target = $region28
        $region27: #{forward_pallas.24} parent=11 // pred_region
          _
        $region28: #{forward_pallas.24} parent=11 // pred_fallthru
          _
        // Predicated region
        $region29: #{forward_pallas.24} parent=11 // pred_check
          %p196 = pneg %p143
        $region30: #{forward_pallas.24} parent=11 // pred_check_branch
          %198 = sbr.rel (%p196) target = $region32
        $region31: #{forward_pallas.24} parent=11 // pred_region
          _
        $region32: #{forward_pallas.24} parent=11 // pred_fallthru
          _
      $region12: #{forward_pallas.24} parent=5 // pred_fallthru
        _
      %p199 = scmp.lt.s32.totalorder %s12, 2
      // Predicated region
      $region33: #{forward_pallas.24} parent=5 // pred_check
        %p200 = pneg %p199
      $region34: #{forward_pallas.24} parent=5 // pred_check_branch
        %202 = sbr.rel (%p200) target = $region36
      $region35: #{forward_pallas.24} parent=5 // pred_region
        // Predicated region
        $region37: #{forward_pallas.24} parent=35 // pred_check
          %p203 = pneg %p32
        $region38: #{forward_pallas.24} parent=35 // pred_check_branch
          %205 = sbr.rel (%p203) target = $region40
        $region39: #{forward_pallas.24} parent=35 // pred_region
          %s206 = sand.u32 %s22, 1
          %s207 = sand.u32 %s22, 1
          %s208 = smul.addr %s207, 96
          %s209 = scalar_lea.vmem [#allocation2], %s208
          %s210 = smul.u32 4, %s12
          %s211 = smul.addr %s210, 8
          %s212 = scalar_lea.vmem %s0, %s211
          // Predicated region
          $region41: #{forward_pallas.24} parent=39 // pred_check
            _
          $region42: #{forward_pallas.24} parent=39 // pred_check_branch
            %214 = sbr.rel (0) target = $region44
          $region43: #{forward_pallas.24} parent=39 // pred_region
            // Predicated region
            $region45: #{forward_pallas.24} parent=43 // pred_check
              _
            $region46: #{forward_pallas.24} parent=43 // pred_check_branch
              %216 = sbr.rel (0) target = $region48
            $region47: #{forward_pallas.24} parent=43 // pred_region
              loop: start=0, step=1, limit=1
              $region49: #{forward_pallas.24} parent=47 // loop_pre_header
                _
              $region50: #{forward_pallas.24} parent=47 // loop_header
                %s218 = sphi 0, %s222
                %p219 = scmp.ge.s32.totalorder %s218, 1
                %s223 = sphi %s212, %s212
                %s224 = sphi %s209, %s209
              $region51: #{forward_pallas.24} parent=47 // loop_header_branch
                %221 = sbr.rel (%p219) target = $region55
              $region52: #{forward_pallas.24} parent=47 // loop_body
                %v225 = vld [vmem:[%s223] sm:$0xff]
                %226 = vst [vmem:[%s224] sm:$0xff] %v225
                %v227 = vld [vmem:[%s223 + $0x8] sm:$0xff]
                %228 = vst [vmem:[%s224 + $0x8] sm:$0xff] %v227
                %v229 = vld [vmem:[%s223 + $0x10] sm:$0xff]
                %230 = vst [vmem:[%s224 + $0x10] sm:$0xff] %v229
                %v231 = vld [vmem:[%s223 + $0x18] sm:$0xff]
                %232 = vst [vmem:[%s224 + $0x18] sm:$0xff] %v231
                %v233 = vld [vmem:[%s223 + $0x40] sm:$0xff]
                %234 = vst [vmem:[%s224 + $0x20] sm:$0xff] %v233
                %v235 = vld [vmem:[%s223 + $0x48] sm:$0xff]
                %236 = vst [vmem:[%s224 + $0x28] sm:$0xff] %v235
                %v237 = vld [vmem:[%s223 + $0x50] sm:$0xff]
                %238 = vst [vmem:[%s224 + $0x30] sm:$0xff] %v237
                %v239 = vld [vmem:[%s223 + $0x58] sm:$0xff]
                %240 = vst [vmem:[%s224 + $0x38] sm:$0xff] %v239
                %v241 = vld [vmem:[%s223 + $0x80] sm:$0xff]
                %242 = vst [vmem:[%s224 + $0x40] sm:$0xff] %v241
                %v243 = vld [vmem:[%s223 + $0x88] sm:$0xff]
                %244 = vst [vmem:[%s224 + $0x48] sm:$0xff] %v243
                %v245 = vld [vmem:[%s223 + $0x90] sm:$0xff]
                %246 = vst [vmem:[%s224 + $0x50] sm:$0xff] %v245
                %v247 = vld [vmem:[%s223 + $0x98] sm:$0xff]
                %248 = vst [vmem:[%s224 + $0x58] sm:$0xff] %v247
              $region53: #{forward_pallas.24} parent=47 // loop_footer
                %s222 = sadd.s32 1, %s218
              $region54: #{forward_pallas.24} parent=47 // loop_footer_branch
                %217 = sbr.rel target = $region50
              $region55: #{forward_pallas.24} parent=47 // loop_exit
                _
            $region48: #{forward_pallas.24} parent=43 // pred_fallthru
              _
            // Predicated region
            $region56: #{forward_pallas.24} parent=43 // pred_check
              _
            $region57: #{forward_pallas.24} parent=43 // pred_check_branch
              %250 = sbr.rel target = $region59
            $region58: #{forward_pallas.24} parent=43 // pred_region
              _
            $region59: #{forward_pallas.24} parent=43 // pred_fallthru
              _
          $region44: #{forward_pallas.24} parent=39 // pred_fallthru
            _
          %251 = vnop
        $region40: #{forward_pallas.24} parent=35 // pred_fallthru
          _
      $region36: #{forward_pallas.24} parent=5 // pred_fallthru
        _
      %p252 = scmp.le.s32.totalorder 1, %s12
      %p253 = scmp.lt.s32.totalorder %s12, 3
      %p254 = pnand %p252, %p253
      %p255 = pneg %p254
      // Predicated region
      $region60: #{forward_pallas.24} parent=5 // pred_check
        _
      $region61: #{forward_pallas.24} parent=5 // pred_check_branch
        %257 = sbr.rel (%p254) target = $region63
      $region62: #{forward_pallas.24} parent=5 // pred_region
        %s258 = ssub.s32 %s12, 1
        %s259 = sand.u32 %s25, 1
        %s260 = sand.u32 %s25, 1
        %s261 = smul.addr %s260, 96
        %s262 = scalar_lea.vmem [#allocation2], %s261
        // Predicated region
        $region64: #{forward_pallas.24} parent=62 // pred_check
          %p263 = pneg %p38
        $region65: #{forward_pallas.24} parent=62 // pred_check_branch
          %265 = sbr.rel (%p263) target = $region67
        $region66: #{forward_pallas.24} parent=62 // pred_region
          _
        $region67: #{forward_pallas.24} parent=62 // pred_fallthru
          _
        %s266 = sand.u32 %s25, 1
        %s267 = sand.u32 %s25, 1
        %s268 = smul.addr %s267, 96
        %s269 = scalar_lea.vmem [#allocation2], %s268
        %p270 = pneg %p38
        %p271 = pneg %p35
        %p272 = pneg %p59
        %p273 = pneg %p56
        %p274 = pneg %p80
        %p275 = pneg %p77
        %p276 = pneg %p101
        %p277 = pneg %p98
        %p278 = pneg %p122
        %p279 = pneg %p119
        %p280 = pneg %p143
        %p281 = pneg %p140
        %p282 = pneg %p169
        %p283 = pneg %p166
        %s284 = sand.u32 %s156, 1
        %s285 = sand.u32 %s156, 1
        %s286 = smul.addr %s285, 64
        %s287 = scalar_lea.vmem [#allocation3], %s286
        %s288 = smul.u32 4, %s17
        %s289 = smul.u32 4, %s17
        %v290 = vld [vmem:[%s262] sm:$0xff]
        %v291 = vld [vmem:[%s262 + $0x8] sm:$0xff]
        %v292 = vld [vmem:[%s262 + $0x10] sm:$0xff]
        %v293 = vld [vmem:[%s262 + $0x18] sm:$0xff]
        %v294 = vld [vmem:[%s262 + $0x20] sm:$0xff]
        %v295 = vld [vmem:[%s262 + $0x28] sm:$0xff]
        %v296 = vld [vmem:[%s262 + $0x30] sm:$0xff]
        %v297 = vld [vmem:[%s262 + $0x38] sm:$0xff]
        %v298 = vld [vmem:[%s262 + $0x40] sm:$0xff]
        %v299 = vld [vmem:[%s262 + $0x48] sm:$0xff]
        %v300 = vld [vmem:[%s262 + $0x50] sm:$0xff]
        %v301 = vld [vmem:[%s262 + $0x58] sm:$0xff]
        %v302 = vld [vmem:[%s2] sm:$0xff]
        %v303 = vld [vmem:[%s2 + $0x8] sm:$0xff]
        %v304 = vld [vmem:[%s2 + $0x10] sm:$0xff]
        %306 = vset.pattern.permute.xlu0 0
        %307 = vperm.xlu0 %306, %v302
        %v308 = vpop.permute.xlu0 %307
        %311 = vset.pattern.permute.xlu0 0
        %312 = vperm.xlu0 %311, %v303
        %v313 = vpop.permute.xlu0 %312
        %316 = vset.pattern.permute.xlu0 0
        %317 = vperm.xlu0 %316, %v304
        %v318 = vpop.permute.xlu0 %317
        %v320 = vmul.f32 %v290, %v308
        %v321 = vmul.f32 %v291, %v308
        %v322 = vmul.f32 %v292, %v308
        %v323 = vmul.f32 %v293, %v308
        %v324 = vmul.f32 %v294, %v313
        %v325 = vmul.f32 %v295, %v313
        %v326 = vmul.f32 %v296, %v313
        %v327 = vmul.f32 %v297, %v313
        %v328 = vmul.f32 %v298, %v318
        %v329 = vmul.f32 %v299, %v318
        %v330 = vmul.f32 %v300, %v318
        %v331 = vmul.f32 %v301, %v318
        %v332 = vld [vmem:[%s3] sm:$0xff]
        %v333 = vld [vmem:[%s3 + $0x8] sm:$0xff]
        %v334 = vld [vmem:[%s3 + $0x10] sm:$0xff]
        %336 = vset.pattern.permute.xlu0 0
        %337 = vperm.xlu0 %336, %v332
        %v338 = vpop.permute.xlu0 %337
        %341 = vset.pattern.permute.xlu0 0
        %342 = vperm.xlu0 %341, %v333
        %v343 = vpop.permute.xlu0 %342
        %346 = vset.pattern.permute.xlu0 0
        %347 = vperm.xlu0 %346, %v334
        %v348 = vpop.permute.xlu0 %347
        %v350 = vadd.f32 %v320, %v338
        %v351 = vadd.f32 %v321, %v338
        %v352 = vadd.f32 %v322, %v338
        %v353 = vadd.f32 %v323, %v338
        %v354 = vadd.f32 %v324, %v343
        %v355 = vadd.f32 %v325, %v343
        %v356 = vadd.f32 %v326, %v343
        %v357 = vadd.f32 %v327, %v343
        %v358 = vadd.f32 %v328, %v348
        %v359 = vadd.f32 %v329, %v348
        %v360 = vadd.f32 %v330, %v348
        %v361 = vadd.f32 %v331, %v348
        %v362 = vmax.f32 %v350, 0.0
        %v363 = vmax.f32 %v351, 0.0
        %v364 = vmax.f32 %v352, 0.0
        %v365 = vmax.f32 %v353, 0.0
        %v366 = vmax.f32 %v354, 0.0
        %v367 = vmax.f32 %v355, 0.0
        %v368 = vmax.f32 %v356, 0.0
        %v369 = vmax.f32 %v357, 0.0
        %v370 = vmax.f32 %v358, 0.0
        %v371 = vmax.f32 %v359, 0.0
        %v372 = vmax.f32 %v360, 0.0
        %v373 = vmax.f32 %v361, 0.0
        %v374 = vld [vmem:[%s1] sm:$0xff]
        %v375 = vld [vmem:[%s1 + $0x8] sm:$0xff]
        %vm376 = vcmask 195584
        %v378 = vsel %vm376, %v374, 0
        %v381 = vsel %vm376, %v375, 0
        %383 = vmatpush.msra.mxu0 0.0
        %384 = vmatpush.msra.mxu0 0.0
        %385 = vmatpush.msra.mxu0 0.0
        %386 = vmatpush.msra.mxu0 0.0
        %387 = vmatpush.msra.mxu0 0.0
        %388 = vmatpush.msra.mxu0 0.0
        %389 = vmatpush.msra.mxu0 0.0
        %390 = vmatpush.msra.mxu0 0.0
        %391 = vmatpush.msra.mxu0 0.0
        %392 = vmatpush.msra.mxu0 0.0
        %393 = vmatpush.msra.mxu0 0.0
        %394 = vmatpush.msra.mxu0 0.0
        %395 = vmatpush.msra.mxu0 0.0
        %396 = vmatpush.msra.mxu0 %v370
        %397 = vmatpush.msra.mxu0 %v366
        %398 = vmatpush.msra.mxu0 %v362
        %399 = vmatmul.f32.gmra.mxu0 %v378
        %v400 = vpop.f32.mrf.mxu0
        %v401 = vadd.f32 0.0, %v400
        %402 = vmatmul.f32.gmra.mxu0 %v381
        %v403 = vpop.f32.mrf.mxu0
        %v404 = vadd.f32 0.0, %v403
        %405 = vdwg.mxu0
        %406 = vmatpush.msra.mxu0 0.0
        %407 = vmatpush.msra.mxu0 0.0
        %408 = vmatpush.msra.mxu0 0.0
        %409 = vmatpush.msra.mxu0 0.0
        %410 = vmatpush.msra.mxu0 0.0
        %411 = vmatpush.msra.mxu0 0.0
        %412 = vmatpush.msra.mxu0 0.0
        %413 = vmatpush.msra.mxu0 0.0
        %414 = vmatpush.msra.mxu0 0.0
        %415 = vmatpush.msra.mxu0 0.0
        %416 = vmatpush.msra.mxu0 0.0
        %417 = vmatpush.msra.mxu0 0.0
        %418 = vmatpush.msra.mxu0 0.0
        %419 = vmatpush.msra.mxu0 %v371
        %420 = vmatpush.msra.mxu0 %v367
        %421 = vmatpush.msra.mxu0 %v363
        %422 = vmatmul.f32.gmra.mxu0 %v378
        %v423 = vpop.f32.mrf.mxu0
        %v424 = vadd.f32 0.0, %v423
        %425 = vmatmul.f32.gmra.mxu0 %v381
        %v426 = vpop.f32.mrf.mxu0
        %v427 = vadd.f32 0.0, %v426
        %428 = vdwg.mxu0
        %429 = vmatpush.msra.mxu0 0.0
        %430 = vmatpush.msra.mxu0 0.0
        %431 = vmatpush.msra.mxu0 0.0
        %432 = vmatpush.msra.mxu0 0.0
        %433 = vmatpush.msra.mxu0 0.0
        %434 = vmatpush.msra.mxu0 0.0
        %435 = vmatpush.msra.mxu0 0.0
        %436 = vmatpush.msra.mxu0 0.0
        %437 = vmatpush.msra.mxu0 0.0
        %438 = vmatpush.msra.mxu0 0.0
        %439 = vmatpush.msra.mxu0 0.0
        %440 = vmatpush.msra.mxu0 0.0
        %441 = vmatpush.msra.mxu0 0.0
        %442 = vmatpush.msra.mxu0 %v372
        %443 = vmatpush.msra.mxu0 %v368
        %444 = vmatpush.msra.mxu0 %v364
        %445 = vmatmul.f32.gmra.mxu0 %v378
        %v446 = vpop.f32.mrf.mxu0
        %v447 = vadd.f32 0.0, %v446
        %448 = vmatmul.f32.gmra.mxu0 %v381
        %v449 = vpop.f32.mrf.mxu0
        %v450 = vadd.f32 0.0, %v449
        %451 = vdwg.mxu0
        %452 = vmatpush.msra.mxu0 0.0
        %453 = vmatpush.msra.mxu0 0.0
        %454 = vmatpush.msra.mxu0 0.0
        %455 = vmatpush.msra.mxu0 0.0
        %456 = vmatpush.msra.mxu0 0.0
        %457 = vmatpush.msra.mxu0 0.0
        %458 = vmatpush.msra.mxu0 0.0
        %459 = vmatpush.msra.mxu0 0.0
        %460 = vmatpush.msra.mxu0 0.0
        %461 = vmatpush.msra.mxu0 0.0
        %462 = vmatpush.msra.mxu0 0.0
        %463 = vmatpush.msra.mxu0 0.0
        %464 = vmatpush.msra.mxu0 0.0
        %465 = vmatpush.msra.mxu0 %v373
        %466 = vmatpush.msra.mxu0 %v369
        %467 = vmatpush.msra.mxu0 %v365
        %468 = vmatmul.f32.gmra.mxu0 %v378
        %v469 = vpop.f32.mrf.mxu0
        %v470 = vadd.f32 0.0, %v469
        %471 = vmatmul.f32.gmra.mxu0 %v381
        %v472 = vpop.f32.mrf.mxu0
        %v473 = vadd.f32 0.0, %v472
        %474 = vdwg.mxu0
        %v475 = vld [vmem:[%s4] sm:$0xff]
        %v476 = vld [vmem:[%s4 + $0x8] sm:$0xff]
        %478 = vset.pattern.permute.xlu0 0
        %479 = vperm.xlu0 %478, %v475
        %v480 = vpop.permute.xlu0 %479
        %483 = vset.pattern.permute.xlu0 0
        %484 = vperm.xlu0 %483, %v476
        %v485 = vpop.permute.xlu0 %484
        %v487 = vmul.f32 %v401, %v480
        %v488 = vmul.f32 %v424, %v480
        %v489 = vmul.f32 %v447, %v480
        %v490 = vmul.f32 %v470, %v480
        %v491 = vmul.f32 %v404, %v485
        %v492 = vmul.f32 %v427, %v485
        %v493 = vmul.f32 %v450, %v485
        %v494 = vmul.f32 %v473, %v485
        %v495 = vld [vmem:[%s5] sm:$0xff]
        %v496 = vld [vmem:[%s5 + $0x8] sm:$0xff]
        %498 = vset.pattern.permute.xlu0 0
        %499 = vperm.xlu0 %498, %v495
        %v500 = vpop.permute.xlu0 %499
        %503 = vset.pattern.permute.xlu0 0
        %504 = vperm.xlu0 %503, %v496
        %v505 = vpop.permute.xlu0 %504
        %v507 = vadd.f32 %v487, %v500
        %v508 = vadd.f32 %v488, %v500
        %v509 = vadd.f32 %v489, %v500
        %v510 = vadd.f32 %v490, %v500
        %v511 = vadd.f32 %v491, %v505
        %v512 = vadd.f32 %v492, %v505
        %v513 = vadd.f32 %v493, %v505
        %v514 = vadd.f32 %v494, %v505
        %v515 = vmax.f32 %v507, 0.0
        %v516 = vmax.f32 %v508, 0.0
        %v517 = vmax.f32 %v509, 0.0
        %v518 = vmax.f32 %v510, 0.0
        %v519 = vmax.f32 %v511, 0.0
        %v520 = vmax.f32 %v512, 0.0
        %v521 = vmax.f32 %v513, 0.0
        %v522 = vmax.f32 %v514, 0.0
        %523 = vst [vmem:[%s287] sm:$0xff] %v515
        %524 = vst [vmem:[%s287 + $0x8] sm:$0xff] %v516
        %525 = vst [vmem:[%s287 + $0x10] sm:$0xff] %v517
        %526 = vst [vmem:[%s287 + $0x18] sm:$0xff] %v518
        %527 = vst [vmem:[%s287 + $0x20] sm:$0xff] %v519
        %528 = vst [vmem:[%s287 + $0x28] sm:$0xff] %v520
        %529 = vst [vmem:[%s287 + $0x30] sm:$0xff] %v521
        %530 = vst [vmem:[%s287 + $0x38] sm:$0xff] %v522
        %s531 = sand.u32 %s156, 1
        %s532 = sand.u32 %s156, 1
        %s533 = smul.addr %s532, 64
        %s534 = scalar_lea.vmem [#allocation3], %s533
        // Predicated region
        $region68: #{forward_pallas.24} parent=62 // pred_check
          %p535 = pneg %p166
        $region69: #{forward_pallas.24} parent=62 // pred_check_branch
          %537 = sbr.rel (%p535) target = $region71
        $region70: #{forward_pallas.24} parent=62 // pred_region
          %s538 = smul.u32 4, %s17
          %s539 = smul.addr %s538, 8
          %s540 = scalar_lea.vmem %s6, %s539
          // Predicated region
          $region72: #{forward_pallas.24} parent=70 // pred_check
            _
          $region73: #{forward_pallas.24} parent=70 // pred_check_branch
            %542 = sbr.rel (0) target = $region75
          $region74: #{forward_pallas.24} parent=70 // pred_region
            // Predicated region
            $region76: #{forward_pallas.24} parent=74 // pred_check
              _
            $region77: #{forward_pallas.24} parent=74 // pred_check_branch
              %544 = sbr.rel (0) target = $region79
            $region78: #{forward_pallas.24} parent=74 // pred_region
              loop: start=0, step=1, limit=1
              $region80: #{forward_pallas.24} parent=78 // loop_pre_header
                _
              $region81: #{forward_pallas.24} parent=78 // loop_header
                %s546 = sphi 0, %s550
                %p547 = scmp.ge.s32.totalorder %s546, 1
                %s551 = sphi %s534, %s534
                %s552 = sphi %s540, %s540
              $region82: #{forward_pallas.24} parent=78 // loop_header_branch
                %549 = sbr.rel (%p547) target = $region86
              $region83: #{forward_pallas.24} parent=78 // loop_body
                %v553 = vld [vmem:[%s551] sm:$0xff]
                %554 = vst [vmem:[%s552] sm:$0xff] %v553
                %v555 = vld [vmem:[%s551 + $0x8] sm:$0xff]
                %556 = vst [vmem:[%s552 + $0x8] sm:$0xff] %v555
                %v557 = vld [vmem:[%s551 + $0x10] sm:$0xff]
                %558 = vst [vmem:[%s552 + $0x10] sm:$0xff] %v557
                %v559 = vld [vmem:[%s551 + $0x18] sm:$0xff]
                %560 = vst [vmem:[%s552 + $0x18] sm:$0xff] %v559
                %v561 = vld [vmem:[%s551 + $0x20] sm:$0xff]
                %562 = vst [vmem:[%s552 + $0x40] sm:$0xff] %v561
                %v563 = vld [vmem:[%s551 + $0x28] sm:$0xff]
                %564 = vst [vmem:[%s552 + $0x48] sm:$0xff] %v563
                %v565 = vld [vmem:[%s551 + $0x30] sm:$0xff]
                %566 = vst [vmem:[%s552 + $0x50] sm:$0xff] %v565
                %v567 = vld [vmem:[%s551 + $0x38] sm:$0xff]
                %568 = vst [vmem:[%s552 + $0x58] sm:$0xff] %v567
              $region84: #{forward_pallas.24} parent=78 // loop_footer
                %s550 = sadd.s32 1, %s546
              $region85: #{forward_pallas.24} parent=78 // loop_footer_branch
                %545 = sbr.rel target = $region81
              $region86: #{forward_pallas.24} parent=78 // loop_exit
                _
            $region79: #{forward_pallas.24} parent=74 // pred_fallthru
              _
            // Predicated region
            $region87: #{forward_pallas.24} parent=74 // pred_check
              _
            $region88: #{forward_pallas.24} parent=74 // pred_check_branch
              %570 = sbr.rel target = $region90
            $region89: #{forward_pallas.24} parent=74 // pred_region
              _
            $region90: #{forward_pallas.24} parent=74 // pred_fallthru
              _
          $region75: #{forward_pallas.24} parent=70 // pred_fallthru
            _
          %571 = vnop
        $region71: #{forward_pallas.24} parent=62 // pred_fallthru
          _
      $region63: #{forward_pallas.24} parent=5 // pred_fallthru
        _
      %p572 = scmp.le.s32.totalorder 2, %s12
      // Predicated region
      $region91: #{forward_pallas.24} parent=5 // pred_check
        %p573 = pneg %p572
      $region92: #{forward_pallas.24} parent=5 // pred_check_branch
        %575 = sbr.rel (%p573) target = $region94
      $region93: #{forward_pallas.24} parent=5 // pred_region
        %s576 = ssub.s32 %s12, 2
        // Predicated region
        $region95: #{forward_pallas.24} parent=93 // pred_check
          %p577 = pneg %p172
        $region96: #{forward_pallas.24} parent=93 // pred_check_branch
          %579 = sbr.rel (%p577) target = $region98
        $region97: #{forward_pallas.24} parent=93 // pred_region
          %s580 = sand.u32 %s157, 1
          %s581 = sand.u32 %s157, 1
          %s582 = smul.addr %s581, 64
          %s583 = scalar_lea.vmem [#allocation3], %s582
        $region98: #{forward_pallas.24} parent=93 // pred_fallthru
          _
      $region94: #{forward_pallas.24} parent=5 // pred_fallthru
        _
    $region6: #{forward_pallas.24} parent=1 // loop_footer
      %s16 = sadd.s32 1, %s12
    $region7: #{forward_pallas.24} parent=1 // loop_footer_branch
      %11 = sbr.rel target = $region3
    $region8: #{forward_pallas.24} parent=1 // loop_exit
      _

// kernel: forward_pallas.23
$region0: #{forward_pallas.23}
  #allocation0 [shape = 'u32[]', space=smem, size = 0x4, offset = 0x4, fixed_abs, tag = 'smem constant byte address 0x4 - core index']
  #allocation1 [shape = 'u32[72,128]{1,0:T(1,128)}', space=vmem, size = 0x9000, scoped, tag = 'internal scratch']
  %s0 = inlined_call_operand.vmem [shape: f32[432,1024], index: 0, kind: input, shape index: {}]
  %s1 = inlined_call_operand.vmem [shape: f32[8,432], index: 1, kind: input, shape index: {}]
  %s2 = inlined_call_operand.vmem [shape: f32[8,1024], index: 2, kind: output, shape index: {}]
  %s3 = sld [smem:[#allocation0]]
  $region64: #{forward_pallas.23} parent=0
    _
  %s5 = ssub.s32 1, %s3
  %s6 = scalar_select 0, %s5, %s3
  $region1: #{forward_pallas.23} parent=0
    #allocation2 [shape = 'u8[1769472]{0}', space=vmem, size = 0x1b0000, scoped, tag = 'input window, operand 0']
    loop: start=0, step=1, limit=4
    $region2: #{forward_pallas.23} parent=1 // loop_pre_header
      _
    $region3: #{forward_pallas.23} parent=1 // loop_header
      %s8 = sphi 0, %s12
      %p9 = scmp.ge.s32.totalorder %s8, 4
      %s18 = sphi 0, %s20
      %s21 = sphi 0, %s18
      %s22 = sphi 0, %s21
      %s38 = sphi 0, %s22
      %s42 = sphi 0, %s42
      %s44 = sphi 0, %s42
      %s45 = sphi 0, %s44
      %s59 = sphi 0, %s45
      %s65 = sphi 0, %s67
      %s68 = sphi 0, %s65
      %s69 = sphi 0, %s68
      %s85 = sphi 0, %s69
    $region4: #{forward_pallas.23} parent=1 // loop_header_branch
      %11 = sbr.rel (%p9) target = $region8
    $region5: #{forward_pallas.23} parent=1 // loop_body
      %s13 = ssub.s32 %s8, 1
      %s14 = ssub.s32 %s8, 2
      %s15 = sadd.s32 %s8, 1
      %s16 = ssub.s32 %s8, %s15
      %p17 = scmp.eq.s32.totalorder %s16, 0
      %s19 = sadd.s32 %s18, 1
      %s20 = scalar_select %p17, %s18, %s19
      %p23 = pneg %p17
      %p24 = scmp.eq.s32.totalorder %s8, 1
      %p25 = por %p23, %p24
      %p26 = scmp.ne.s32.totalorder %s18, %s21
      %p27 = scmp.eq.s32.totalorder %s8, 0
      %p28 = por %p26, %p27
      %p29 = scmp.ne.s32.totalorder %s18, %s21
      %p30 = scmp.eq.s32.totalorder %s13, 1
      %p31 = por %p29, %p30
      %p32 = scmp.ne.s32.totalorder %s21, %s22
      %p33 = scmp.eq.s32.totalorder %s13, 0
      %p34 = por %p32, %p33
      %p35 = scmp.ne.s32.totalorder %s21, %s22
      %p36 = scmp.eq.s32.totalorder %s14, 1
      %p37 = por %p35, %p36
      %p39 = scmp.ne.s32.totalorder %s22, %s38
      %p40 = scmp.eq.s32.totalorder %s14, 0
      %p41 = por %p39, %p40
      %s43 = sadd.s32 %s42, 1
      %p46 = scmp.eq.s32.totalorder %s8, 1
      %p47 = scmp.ne.s32.totalorder %s42, %s44
      %p48 = scmp.eq.s32.totalorder %s8, 0
      %p49 = por %p47, %p48
      %p50 = scmp.ne.s32.totalorder %s42, %s44
      %p51 = scmp.eq.s32.totalorder %s13, 1
      %p52 = por %p50, %p51
      %p53 = scmp.ne.s32.totalorder %s44, %s45
      %p54 = scmp.eq.s32.totalorder %s13, 0
      %p55 = por %p53, %p54
      %p56 = scmp.ne.s32.totalorder %s44, %s45
      %p57 = scmp.eq.s32.totalorder %s14, 1
      %p58 = por %p56, %p57
      %p60 = scmp.ne.s32.totalorder %s45, %s59
      %p61 = scmp.eq.s32.totalorder %s14, 0
      %p62 = por %p60, %p61
      %s63 = ssub.s32 %s8, %s15
      %p64 = scmp.eq.s32.totalorder %s63, 0
      %s66 = sadd.s32 %s65, 1
      %s67 = scalar_select %p64, %s65, %s66
      %p70 = pneg %p64
      %p71 = scmp.eq.s32.totalorder %s8, 1
      %p72 = por %p70, %p71
      %p73 = scmp.ne.s32.totalorder %s65, %s68
      %p74 = scmp.eq.s32.totalorder %s8, 0
      %p75 = por %p73, %p74
      %p76 = scmp.ne.s32.totalorder %s65, %s68
      %p77 = scmp.eq.s32.totalorder %s13, 1
      %p78 = por %p76, %p77
      %p79 = scmp.ne.s32.totalorder %s68, %s69
      %p80 = scmp.eq.s32.totalorder %s13, 0
      %p81 = por %p79, %p80
      %p82 = scmp.ne.s32.totalorder %s68, %s69
      %p83 = scmp.eq.s32.totalorder %s14, 1
      %p84 = por %p82, %p83
      %p86 = scmp.ne.s32.totalorder %s69, %s85
      %p87 = scmp.eq.s32.totalorder %s14, 0
      %p88 = por %p86, %p87
      %p89 = scmp.le.s32.totalorder 1, %s8
      %p90 = scmp.lt.s32.totalorder %s8, 3
      %p91 = pnand %p89, %p90
      %p92 = pneg %p91
      // Predicated region
      $region9: #{forward_pallas.23} parent=5 // pred_check
        _
      $region10: #{forward_pallas.23} parent=5 // pred_check_branch
        %94 = sbr.rel (%p91) target = $region12
      $region11: #{forward_pallas.23} parent=5 // pred_region
        %s95 = ssub.s32 %s8, 1
        // Predicated region
        $region13: #{forward_pallas.23} parent=11 // pred_check
          %p96 = pneg %p55
        $region14: #{forward_pallas.23} parent=11 // pred_check_branch
          %98 = sbr.rel (%p96) target = $region16
        $region15: #{forward_pallas.23} parent=11 // pred_region
          _
        $region16: #{forward_pallas.23} parent=11 // pred_fallthru
          _
      $region12: #{forward_pallas.23} parent=5 // pred_fallthru
        _
      %p99 = scmp.lt.s32.totalorder %s8, 2
      // Predicated region
      $region17: #{forward_pallas.23} parent=5 // pred_check
        %p100 = pneg %p99
      $region18: #{forward_pallas.23} parent=5 // pred_check_branch
        %102 = sbr.rel (%p100) target = $region20
      $region19: #{forward_pallas.23} parent=5 // pred_region
        // Predicated region
        $region21: #{forward_pallas.23} parent=19 // pred_check
          %p103 = pneg %p28
        $region22: #{forward_pallas.23} parent=19 // pred_check_branch
          %105 = sbr.rel (%p103) target = $region24
        $region23: #{forward_pallas.23} parent=19 // pred_region
          %s106 = sand.u32 %s18, 1
          %s107 = sand.u32 %s18, 1
          %s108 = smul.addr %s107, 1728
          %s109 = scalar_lea.vmem [#allocation2], %s108
          %s110 = smul.u32 4, %s8
          %s111 = smul.addr %s110, 8
          %s112 = scalar_lea.vmem %s0, %s111
          // Predicated region
          $region25: #{forward_pallas.23} parent=23 // pred_check
            _
          $region26: #{forward_pallas.23} parent=23 // pred_check_branch
            %114 = sbr.rel (0) target = $region28
          $region27: #{forward_pallas.23} parent=23 // pred_region
            // Predicated region
            $region29: #{forward_pallas.23} parent=27 // pred_check
              _
            $region30: #{forward_pallas.23} parent=27 // pred_check_branch
              %116 = sbr.rel (0) target = $region32
            $region31: #{forward_pallas.23} parent=27 // pred_region
              loop: start=0, step=1, limit=1
              $region33: #{forward_pallas.23} parent=31 // loop_pre_header
                _
              $region34: #{forward_pallas.23} parent=31 // loop_header
                %s118 = sphi 0, %s122
                %p119 = scmp.ge.s32.totalorder %s118, 1
                %s123 = sphi %s112, %s112
                %s124 = sphi %s109, %s109
              $region35: #{forward_pallas.23} parent=31 // loop_header_branch
                %121 = sbr.rel (%p119) target = $region39
              $region36: #{forward_pallas.23} parent=31 // loop_body
                %v125 = vld [vmem:[%s123] sm:$0xff]
                %126 = vst [vmem:[%s124] sm:$0xff] %v125
                %v127 = vld [vmem:[%s123 + $0x8] sm:$0xff]
                %128 = vst [vmem:[%s124 + $0x8] sm:$0xff] %v127
                %v129 = vld [vmem:[%s123 + $0x10] sm:$0xff]
                %130 = vst [vmem:[%s124 + $0x10] sm:$0xff] %v129
                %v131 = vld [vmem:[%s123 + $0x18] sm:$0xff]
                %132 = vst [vmem:[%s124 + $0x18] sm:$0xff] %v131
                %v133 = vld [vmem:[%s123 + $0x40] sm:$0xff]
                %134 = vst [vmem:[%s124 + $0x20] sm:$0xff] %v133
                %v135 = vld [vmem:[%s123 + $0x48] sm:$0xff]
                %136 = vst [vmem:[%s124 + $0x28] sm:$0xff] %v135
                %v137 = vld [vmem:[%s123 + $0x50] sm:$0xff]
                %138 = vst [vmem:[%s124 + $0x30] sm:$0xff] %v137
                %v139 = vld [vmem:[%s123 + $0x58] sm:$0xff]
                %140 = vst [vmem:[%s124 + $0x38] sm:$0xff] %v139
                %v141 = vld [vmem:[%s123 + $0x80] sm:$0xff]
                %142 = vst [vmem:[%s124 + $0x40] sm:$0xff] %v141
                %v143 = vld [vmem:[%s123 + $0x88] sm:$0xff]
                %144 = vst [vmem:[%s124 + $0x48] sm:$0xff] %v143
                %v145 = vld [vmem:[%s123 + $0x90] sm:$0xff]
                %146 = vst [vmem:[%s124 + $0x50] sm:$0xff] %v145
                %v147 = vld [vmem:[%s123 + $0x98] sm:$0xff]
                %148 = vst [vmem:[%s124 + $0x58] sm:$0xff] %v147
                %v149 = vld [vmem:[%s123 + $0xc0] sm:$0xff]
                %150 = vst [vmem:[%s124 + $0x60] sm:$0xff] %v149
                %v151 = vld [vmem:[%s123 + $0xc8] sm:$0xff]
                %152 = vst [vmem:[%s124 + $0x68] sm:$0xff] %v151
                %v153 = vld [vmem:[%s123 + $0xd0] sm:$0xff]
                %154 = vst [vmem:[%s124 + $0x70] sm:$0xff] %v153
                %v155 = vld [vmem:[%s123 + $0xd8] sm:$0xff]
                %156 = vst [vmem:[%s124 + $0x78] sm:$0xff] %v155
                %v157 = vld [vmem:[%s123 + $0x100] sm:$0xff]
                %158 = vst [vmem:[%s124 + $0x80] sm:$0xff] %v157
                %v159 = vld [vmem:[%s123 + $0x108] sm:$0xff]
                %160 = vst [vmem:[%s124 + $0x88] sm:$0xff] %v159
                %v161 = vld [vmem:[%s123 + $0x110] sm:$0xff]
                %162 = vst [vmem:[%s124 + $0x90] sm:$0xff] %v161
                %v163 = vld [vmem:[%s123 + $0x118] sm:$0xff]
                %164 = vst [vmem:[%s124 + $0x98] sm:$0xff] %v163
                %v165 = vld [vmem:[%s123 + $0x140] sm:$0xff]
                %166 = vst [vmem:[%s124 + $0xa0] sm:$0xff] %v165
                %v167 = vld [vmem:[%s123 + $0x148] sm:$0xff]
                %168 = vst [vmem:[%s124 + $0xa8] sm:$0xff] %v167
                %v169 = vld [vmem:[%s123 + $0x150] sm:$0xff]
                %170 = vst [vmem:[%s124 + $0xb0] sm:$0xff] %v169
                %v171 = vld [vmem:[%s123 + $0x158] sm:$0xff]
                %172 = vst [vmem:[%s124 + $0xb8] sm:$0xff] %v171
                %v173 = vld [vmem:[%s123 + $0x180] sm:$0xff]
                %174 = vst [vmem:[%s124 + $0xc0] sm:$0xff] %v173
                %v175 = vld [vmem:[%s123 + $0x188] sm:$0xff]
                %176 = vst [vmem:[%s124 + $0xc8] sm:$0xff] %v175
                %v177 = vld [vmem:[%s123 + $0x190] sm:$0xff]
                %178 = vst [vmem:[%s124 + $0xd0] sm:$0xff] %v177
                %v179 = vld [vmem:[%s123 + $0x198] sm:$0xff]
                %180 = vst [vmem:[%s124 + $0xd8] sm:$0xff] %v179
                %v181 = vld [vmem:[%s123 + $0x1c0] sm:$0xff]
                %182 = vst [vmem:[%s124 + $0xe0] sm:$0xff] %v181
                %v183 = vld [vmem:[%s123 + $0x1c8] sm:$0xff]
                %184 = vst [vmem:[%s124 + $0xe8] sm:$0xff] %v183
                %v185 = vld [vmem:[%s123 + $0x1d0] sm:$0xff]
                %186 = vst [vmem:[%s124 + $0xf0] sm:$0xff] %v185
                %v187 = vld [vmem:[%s123 + $0x1d8] sm:$0xff]
                %188 = vst [vmem:[%s124 + $0xf8] sm:$0xff] %v187
                %v189 = vld [vmem:[%s123 + $0x200] sm:$0xff]
                %190 = vst [vmem:[%s124 + $0x100] sm:$0xff] %v189
                %v191 = vld [vmem:[%s123 + $0x208] sm:$0xff]
                %192 = vst [vmem:[%s124 + $0x108] sm:$0xff] %v191
                %v193 = vld [vmem:[%s123 + $0x210] sm:$0xff]
                %194 = vst [vmem:[%s124 + $0x110] sm:$0xff] %v193
                %v195 = vld [vmem:[%s123 + $0x218] sm:$0xff]
                %196 = vst [vmem:[%s124 + $0x118] sm:$0xff] %v195
                %v197 = vld [vmem:[%s123 + $0x240] sm:$0xff]
                %198 = vst [vmem:[%s124 + $0x120] sm:$0xff] %v197
                %v199 = vld [vmem:[%s123 + $0x248] sm:$0xff]
                %200 = vst [vmem:[%s124 + $0x128] sm:$0xff] %v199
                %v201 = vld [vmem:[%s123 + $0x250] sm:$0xff]
                %202 = vst [vmem:[%s124 + $0x130] sm:$0xff] %v201
                %v203 = vld [vmem:[%s123 + $0x258] sm:$0xff]
                %204 = vst [vmem:[%s124 + $0x138] sm:$0xff] %v203
                %v205 = vld [vmem:[%s123 + $0x280] sm:$0xff]
                %206 = vst [vmem:[%s124 + $0x140] sm:$0xff] %v205
                %v207 = vld [vmem:[%s123 + $0x288] sm:$0xff]
                %208 = vst [vmem:[%s124 + $0x148] sm:$0xff] %v207
                %v209 = vld [vmem:[%s123 + $0x290] sm:$0xff]
                %210 = vst [vmem:[%s124 + $0x150] sm:$0xff] %v209
                %v211 = vld [vmem:[%s123 + $0x298] sm:$0xff]
                %212 = vst [vmem:[%s124 + $0x158] sm:$0xff] %v211
                %v213 = vld [vmem:[%s123 + $0x2c0] sm:$0xff]
                %214 = vst [vmem:[%s124 + $0x160] sm:$0xff] %v213
                %v215 = vld [vmem:[%s123 + $0x2c8] sm:$0xff]
                %216 = vst [vmem:[%s124 + $0x168] sm:$0xff] %v215
                %v217 = vld [vmem:[%s123 + $0x2d0] sm:$0xff]
                %218 = vst [vmem:[%s124 + $0x170] sm:$0xff] %v217
                %v219 = vld [vmem:[%s123 + $0x2d8] sm:$0xff]
                %220 = vst [vmem:[%s124 + $0x178] sm:$0xff] %v219
                %v221 = vld [vmem:[%s123 + $0x300] sm:$0xff]
                %222 = vst [vmem:[%s124 + $0x180] sm:$0xff] %v221
                %v223 = vld [vmem:[%s123 + $0x308] sm:$0xff]
                %224 = vst [vmem:[%s124 + $0x188] sm:$0xff] %v223
                %v225 = vld [vmem:[%s123 + $0x310] sm:$0xff]
                %226 = vst [vmem:[%s124 + $0x190] sm:$0xff] %v225
                %v227 = vld [vmem:[%s123 + $0x318] sm:$0xff]
                %228 = vst [vmem:[%s124 + $0x198] sm:$0xff] %v227
                %v229 = vld [vmem:[%s123 + $0x340] sm:$0xff]
                %230 = vst [vmem:[%s124 + $0x1a0] sm:$0xff] %v229
                %v231 = vld [vmem:[%s123 + $0x348] sm:$0xff]
                %232 = vst [vmem:[%s124 + $0x1a8] sm:$0xff] %v231
                %v233 = vld [vmem:[%s123 + $0x350] sm:$0xff]
                %234 = vst [vmem:[%s124 + $0x1b0] sm:$0xff] %v233
                %v235 = vld [vmem:[%s123 + $0x358] sm:$0xff]
                %236 = vst [vmem:[%s124 + $0x1b8] sm:$0xff] %v235
                %v237 = vld [vmem:[%s123 + $0x380] sm:$0xff]
                %238 = vst [vmem:[%s124 + $0x1c0] sm:$0xff] %v237
                %v239 = vld [vmem:[%s123 + $0x388] sm:$0xff]
                %240 = vst [vmem:[%s124 + $0x1c8] sm:$0xff] %v239
                %v241 = vld [vmem:[%s123 + $0x390] sm:$0xff]
                %242 = vst [vmem:[%s124 + $0x1d0] sm:$0xff] %v241
                %v243 = vld [vmem:[%s123 + $0x398] sm:$0xff]
                %244 = vst [vmem:[%s124 + $0x1d8] sm:$0xff] %v243
                %v245 = vld [vmem:[%s123 + $0x3c0] sm:$0xff]
                %246 = vst [vmem:[%s124 + $0x1e0] sm:$0xff] %v245
                %v247 = vld [vmem:[%s123 + $0x3c8] sm:$0xff]
                %248 = vst [vmem:[%s124 + $0x1e8] sm:$0xff] %v247
                %v249 = vld [vmem:[%s123 + $0x3d0] sm:$0xff]
                %250 = vst [vmem:[%s124 + $0x1f0] sm:$0xff] %v249
                %v251 = vld [vmem:[%s123 + $0x3d8] sm:$0xff]
                %252 = vst [vmem:[%s124 + $0x1f8] sm:$0xff] %v251
                %v253 = vld [vmem:[%s123 + $0x400] sm:$0xff]
                %254 = vst [vmem:[%s124 + $0x200] sm:$0xff] %v253
                %v255 = vld [vmem:[%s123 + $0x408] sm:$0xff]
                %256 = vst [vmem:[%s124 + $0x208] sm:$0xff] %v255
                %v257 = vld [vmem:[%s123 + $0x410] sm:$0xff]
                %258 = vst [vmem:[%s124 + $0x210] sm:$0xff] %v257
                %v259 = vld [vmem:[%s123 + $0x418] sm:$0xff]
                %260 = vst [vmem:[%s124 + $0x218] sm:$0xff] %v259
                %v261 = vld [vmem:[%s123 + $0x440] sm:$0xff]
                %262 = vst [vmem:[%s124 + $0x220] sm:$0xff] %v261
                %v263 = vld [vmem:[%s123 + $0x448] sm:$0xff]
                %264 = vst [vmem:[%s124 + $0x228] sm:$0xff] %v263
                %v265 = vld [vmem:[%s123 + $0x450] sm:$0xff]
                %266 = vst [vmem:[%s124 + $0x230] sm:$0xff] %v265
                %v267 = vld [vmem:[%s123 + $0x458] sm:$0xff]
                %268 = vst [vmem:[%s124 + $0x238] sm:$0xff] %v267
                %v269 = vld [vmem:[%s123 + $0x480] sm:$0xff]
                %270 = vst [vmem:[%s124 + $0x240] sm:$0xff] %v269
                %v271 = vld [vmem:[%s123 + $0x488] sm:$0xff]
                %272 = vst [vmem:[%s124 + $0x248] sm:$0xff] %v271
                %v273 = vld [vmem:[%s123 + $0x490] sm:$0xff]
                %274 = vst [vmem:[%s124 + $0x250] sm:$0xff] %v273
                %v275 = vld [vmem:[%s123 + $0x498] sm:$0xff]
                %276 = vst [vmem:[%s124 + $0x258] sm:$0xff] %v275
                %v277 = vld [vmem:[%s123 + $0x4c0] sm:$0xff]
                %278 = vst [vmem:[%s124 + $0x260] sm:$0xff] %v277
                %v279 = vld [vmem:[%s123 + $0x4c8] sm:$0xff]
                %280 = vst [vmem:[%s124 + $0x268] sm:$0xff] %v279
                %v281 = vld [vmem:[%s123 + $0x4d0] sm:$0xff]
                %282 = vst [vmem:[%s124 + $0x270] sm:$0xff] %v281
                %v283 = vld [vmem:[%s123 + $0x4d8] sm:$0xff]
                %284 = vst [vmem:[%s124 + $0x278] sm:$0xff] %v283
                %v285 = vld [vmem:[%s123 + $0x500] sm:$0xff]
                %286 = vst [vmem:[%s124 + $0x280] sm:$0xff] %v285
                %v287 = vld [vmem:[%s123 + $0x508] sm:$0xff]
                %288 = vst [vmem:[%s124 + $0x288] sm:$0xff] %v287
                %v289 = vld [vmem:[%s123 + $0x510] sm:$0xff]
                %290 = vst [vmem:[%s124 + $0x290] sm:$0xff] %v289
                %v291 = vld [vmem:[%s123 + $0x518] sm:$0xff]
                %292 = vst [vmem:[%s124 + $0x298] sm:$0xff] %v291
                %v293 = vld [vmem:[%s123 + $0x540] sm:$0xff]
                %294 = vst [vmem:[%s124 + $0x2a0] sm:$0xff] %v293
                %v295 = vld [vmem:[%s123 + $0x548] sm:$0xff]
                %296 = vst [vmem:[%s124 + $0x2a8] sm:$0xff] %v295
                %v297 = vld [vmem:[%s123 + $0x550] sm:$0xff]
                %298 = vst [vmem:[%s124 + $0x2b0] sm:$0xff] %v297
                %v299 = vld [vmem:[%s123 + $0x558] sm:$0xff]
                %300 = vst [vmem:[%s124 + $0x2b8] sm:$0xff] %v299
                %v301 = vld [vmem:[%s123 + $0x580] sm:$0xff]
                %302 = vst [vmem:[%s124 + $0x2c0] sm:$0xff] %v301
                %v303 = vld [vmem:[%s123 + $0x588] sm:$0xff]
                %304 = vst [vmem:[%s124 + $0x2c8] sm:$0xff] %v303
                %v305 = vld [vmem:[%s123 + $0x590] sm:$0xff]
                %306 = vst [vmem:[%s124 + $0x2d0] sm:$0xff] %v305
                %v307 = vld [vmem:[%s123 + $0x598] sm:$0xff]
                %308 = vst [vmem:[%s124 + $0x2d8] sm:$0xff] %v307
                %v309 = vld [vmem:[%s123 + $0x5c0] sm:$0xff]
                %310 = vst [vmem:[%s124 + $0x2e0] sm:$0xff] %v309
                %v311 = vld [vmem:[%s123 + $0x5c8] sm:$0xff]
                %312 = vst [vmem:[%s124 + $0x2e8] sm:$0xff] %v311
                %v313 = vld [vmem:[%s123 + $0x5d0] sm:$0xff]
                %314 = vst [vmem:[%s124 + $0x2f0] sm:$0xff] %v313
                %v315 = vld [vmem:[%s123 + $0x5d8] sm:$0xff]
                %316 = vst [vmem:[%s124 + $0x2f8] sm:$0xff] %v315
                %v317 = vld [vmem:[%s123 + $0x600] sm:$0xff]
                %318 = vst [vmem:[%s124 + $0x300] sm:$0xff] %v317
                %v319 = vld [vmem:[%s123 + $0x608] sm:$0xff]
                %320 = vst [vmem:[%s124 + $0x308] sm:$0xff] %v319
                %v321 = vld [vmem:[%s123 + $0x610] sm:$0xff]
                %322 = vst [vmem:[%s124 + $0x310] sm:$0xff] %v321
                %v323 = vld [vmem:[%s123 + $0x618] sm:$0xff]
                %324 = vst [vmem:[%s124 + $0x318] sm:$0xff] %v323
                %v325 = vld [vmem:[%s123 + $0x640] sm:$0xff]
                %326 = vst [vmem:[%s124 + $0x320] sm:$0xff] %v325
                %v327 = vld [vmem:[%s123 + $0x648] sm:$0xff]
                %328 = vst [vmem:[%s124 + $0x328] sm:$0xff] %v327
                %v329 = vld [vmem:[%s123 + $0x650] sm:$0xff]
                %330 = vst [vmem:[%s124 + $0x330] sm:$0xff] %v329
                %v331 = vld [vmem:[%s123 + $0x658] sm:$0xff]
                %332 = vst [vmem:[%s124 + $0x338] sm:$0xff] %v331
                %v333 = vld [vmem:[%s123 + $0x680] sm:$0xff]
                %334 = vst [vmem:[%s124 + $0x340] sm:$0xff] %v333
                %v335 = vld [vmem:[%s123 + $0x688] sm:$0xff]
                %336 = vst [vmem:[%s124 + $0x348] sm:$0xff] %v335
                %v337 = vld [vmem:[%s123 + $0x690] sm:$0xff]
                %338 = vst [vmem:[%s124 + $0x350] sm:$0xff] %v337
                %v339 = vld [vmem:[%s123 + $0x698] sm:$0xff]
                %340 = vst [vmem:[%s124 + $0x358] sm:$0xff] %v339
                %v341 = vld [vmem:[%s123 + $0x6c0] sm:$0xff]
                %342 = vst [vmem:[%s124 + $0x360] sm:$0xff] %v341
                %v343 = vld [vmem:[%s123 + $0x6c8] sm:$0xff]
                %344 = vst [vmem:[%s124 + $0x368] sm:$0xff] %v343
                %v345 = vld [vmem:[%s123 + $0x6d0] sm:$0xff]
                %346 = vst [vmem:[%s124 + $0x370] sm:$0xff] %v345
                %v347 = vld [vmem:[%s123 + $0x6d8] sm:$0xff]
                %348 = vst [vmem:[%s124 + $0x378] sm:$0xff] %v347
                %v349 = vld [vmem:[%s123 + $0x700] sm:$0xff]
                %350 = vst [vmem:[%s124 + $0x380] sm:$0xff] %v349
                %v351 = vld [vmem:[%s123 + $0x708] sm:$0xff]
                %352 = vst [vmem:[%s124 + $0x388] sm:$0xff] %v351
                %v353 = vld [vmem:[%s123 + $0x710] sm:$0xff]
                %354 = vst [vmem:[%s124 + $0x390] sm:$0xff] %v353
                %v355 = vld [vmem:[%s123 + $0x718] sm:$0xff]
                %356 = vst [vmem:[%s124 + $0x398] sm:$0xff] %v355
                %v357 = vld [vmem:[%s123 + $0x740] sm:$0xff]
                %358 = vst [vmem:[%s124 + $0x3a0] sm:$0xff] %v357
                %v359 = vld [vmem:[%s123 + $0x748] sm:$0xff]
                %360 = vst [vmem:[%s124 + $0x3a8] sm:$0xff] %v359
                %v361 = vld [vmem:[%s123 + $0x750] sm:$0xff]
                %362 = vst [vmem:[%s124 + $0x3b0] sm:$0xff] %v361
                %v363 = vld [vmem:[%s123 + $0x758] sm:$0xff]
                %364 = vst [vmem:[%s124 + $0x3b8] sm:$0xff] %v363
                %v365 = vld [vmem:[%s123 + $0x780] sm:$0xff]
                %366 = vst [vmem:[%s124 + $0x3c0] sm:$0xff] %v365
                %v367 = vld [vmem:[%s123 + $0x788] sm:$0xff]
                %368 = vst [vmem:[%s124 + $0x3c8] sm:$0xff] %v367
                %v369 = vld [vmem:[%s123 + $0x790] sm:$0xff]
                %370 = vst [vmem:[%s124 + $0x3d0] sm:$0xff] %v369
                %v371 = vld [vmem:[%s123 + $0x798] sm:$0xff]
                %372 = vst [vmem:[%s124 + $0x3d8] sm:$0xff] %v371
                %v373 = vld [vmem:[%s123 + $0x7c0] sm:$0xff]
                %374 = vst [vmem:[%s124 + $0x3e0] sm:$0xff] %v373
                %v375 = vld [vmem:[%s123 + $0x7c8] sm:$0xff]
                %376 = vst [vmem:[%s124 + $0x3e8] sm:$0xff] %v375
                %v377 = vld [vmem:[%s123 + $0x7d0] sm:$0xff]
                %378 = vst [vmem:[%s124 + $0x3f0] sm:$0xff] %v377
                %v379 = vld [vmem:[%s123 + $0x7d8] sm:$0xff]
                %380 = vst [vmem:[%s124 + $0x3f8] sm:$0xff] %v379
                %v381 = vld [vmem:[%s123 + $0x800] sm:$0xff]
                %382 = vst [vmem:[%s124 + $0x400] sm:$0xff] %v381
                %v383 = vld [vmem:[%s123 + $0x808] sm:$0xff]
                %384 = vst [vmem:[%s124 + $0x408] sm:$0xff] %v383
                %v385 = vld [vmem:[%s123 + $0x810] sm:$0xff]
                %386 = vst [vmem:[%s124 + $0x410] sm:$0xff] %v385
                %v387 = vld [vmem:[%s123 + $0x818] sm:$0xff]
                %388 = vst [vmem:[%s124 + $0x418] sm:$0xff] %v387
                %v389 = vld [vmem:[%s123 + $0x840] sm:$0xff]
                %390 = vst [vmem:[%s124 + $0x420] sm:$0xff] %v389
                %v391 = vld [vmem:[%s123 + $0x848] sm:$0xff]
                %392 = vst [vmem:[%s124 + $0x428] sm:$0xff] %v391
                %v393 = vld [vmem:[%s123 + $0x850] sm:$0xff]
                %394 = vst [vmem:[%s124 + $0x430] sm:$0xff] %v393
                %v395 = vld [vmem:[%s123 + $0x858] sm:$0xff]
                %396 = vst [vmem:[%s124 + $0x438] sm:$0xff] %v395
                %v397 = vld [vmem:[%s123 + $0x880] sm:$0xff]
                %398 = vst [vmem:[%s124 + $0x440] sm:$0xff] %v397
                %v399 = vld [vmem:[%s123 + $0x888] sm:$0xff]
                %400 = vst [vmem:[%s124 + $0x448] sm:$0xff] %v399
                %v401 = vld [vmem:[%s123 + $0x890] sm:$0xff]
                %402 = vst [vmem:[%s124 + $0x450] sm:$0xff] %v401
                %v403 = vld [vmem:[%s123 + $0x898] sm:$0xff]
                %404 = vst [vmem:[%s124 + $0x458] sm:$0xff] %v403
                %v405 = vld [vmem:[%s123 + $0x8c0] sm:$0xff]
                %406 = vst [vmem:[%s124 + $0x460] sm:$0xff] %v405
                %v407 = vld [vmem:[%s123 + $0x8c8] sm:$0xff]
                %408 = vst [vmem:[%s124 + $0x468] sm:$0xff] %v407
                %v409 = vld [vmem:[%s123 + $0x8d0] sm:$0xff]
                %410 = vst [vmem:[%s124 + $0x470] sm:$0xff] %v409
                %v411 = vld [vmem:[%s123 + $0x8d8] sm:$0xff]
                %412 = vst [vmem:[%s124 + $0x478] sm:$0xff] %v411
                %v413 = vld [vmem:[%s123 + $0x900] sm:$0xff]
                %414 = vst [vmem:[%s124 + $0x480] sm:$0xff] %v413
                %v415 = vld [vmem:[%s123 + $0x908] sm:$0xff]
                %416 = vst [vmem:[%s124 + $0x488] sm:$0xff] %v415
                %v417 = vld [vmem:[%s123 + $0x910] sm:$0xff]
                %418 = vst [vmem:[%s124 + $0x490] sm:$0xff] %v417
                %v419 = vld [vmem:[%s123 + $0x918] sm:$0xff]
                %420 = vst [vmem:[%s124 + $0x498] sm:$0xff] %v419
                %v421 = vld [vmem:[%s123 + $0x940] sm:$0xff]
                %422 = vst [vmem:[%s124 + $0x4a0] sm:$0xff] %v421
                %v423 = vld [vmem:[%s123 + $0x948] sm:$0xff]
                %424 = vst [vmem:[%s124 + $0x4a8] sm:$0xff] %v423
                %v425 = vld [vmem:[%s123 + $0x950] sm:$0xff]
                %426 = vst [vmem:[%s124 + $0x4b0] sm:$0xff] %v425
                %v427 = vld [vmem:[%s123 + $0x958] sm:$0xff]
                %428 = vst [vmem:[%s124 + $0x4b8] sm:$0xff] %v427
                %v429 = vld [vmem:[%s123 + $0x980] sm:$0xff]
                %430 = vst [vmem:[%s124 + $0x4c0] sm:$0xff] %v429
                %v431 = vld [vmem:[%s123 + $0x988] sm:$0xff]
                %432 = vst [vmem:[%s124 + $0x4c8] sm:$0xff] %v431
                %v433 = vld [vmem:[%s123 + $0x990] sm:$0xff]
                %434 = vst [vmem:[%s124 + $0x4d0] sm:$0xff] %v433
                %v435 = vld [vmem:[%s123 + $0x998] sm:$0xff]
                %436 = vst [vmem:[%s124 + $0x4d8] sm:$0xff] %v435
                %v437 = vld [vmem:[%s123 + $0x9c0] sm:$0xff]
                %438 = vst [vmem:[%s124 + $0x4e0] sm:$0xff] %v437
                %v439 = vld [vmem:[%s123 + $0x9c8] sm:$0xff]
                %440 = vst [vmem:[%s124 + $0x4e8] sm:$0xff] %v439
                %v441 = vld [vmem:[%s123 + $0x9d0] sm:$0xff]
                %442 = vst [vmem:[%s124 + $0x4f0] sm:$0xff] %v441
                %v443 = vld [vmem:[%s123 + $0x9d8] sm:$0xff]
                %444 = vst [vmem:[%s124 + $0x4f8] sm:$0xff] %v443
                %v445 = vld [vmem:[%s123 + $0xa00] sm:$0xff]
                %446 = vst [vmem:[%s124 + $0x500] sm:$0xff] %v445
                %v447 = vld [vmem:[%s123 + $0xa08] sm:$0xff]
                %448 = vst [vmem:[%s124 + $0x508] sm:$0xff] %v447
                %v449 = vld [vmem:[%s123 + $0xa10] sm:$0xff]
                %450 = vst [vmem:[%s124 + $0x510] sm:$0xff] %v449
                %v451 = vld [vmem:[%s123 + $0xa18] sm:$0xff]
                %452 = vst [vmem:[%s124 + $0x518] sm:$0xff] %v451
                %v453 = vld [vmem:[%s123 + $0xa40] sm:$0xff]
                %454 = vst [vmem:[%s124 + $0x520] sm:$0xff] %v453
                %v455 = vld [vmem:[%s123 + $0xa48] sm:$0xff]
                %456 = vst [vmem:[%s124 + $0x528] sm:$0xff] %v455
                %v457 = vld [vmem:[%s123 + $0xa50] sm:$0xff]
                %458 = vst [vmem:[%s124 + $0x530] sm:$0xff] %v457
                %v459 = vld [vmem:[%s123 + $0xa58] sm:$0xff]
                %460 = vst [vmem:[%s124 + $0x538] sm:$0xff] %v459
                %v461 = vld [vmem:[%s123 + $0xa80] sm:$0xff]
                %462 = vst [vmem:[%s124 + $0x540] sm:$0xff] %v461
                %v463 = vld [vmem:[%s123 + $0xa88] sm:$0xff]
                %464 = vst [vmem:[%s124 + $0x548] sm:$0xff] %v463
                %v465 = vld [vmem:[%s123 + $0xa90] sm:$0xff]
                %466 = vst [vmem:[%s124 + $0x550] sm:$0xff] %v465
                %v467 = vld [vmem:[%s123 + $0xa98] sm:$0xff]
                %468 = vst [vmem:[%s124 + $0x558] sm:$0xff] %v467
                %v469 = vld [vmem:[%s123 + $0xac0] sm:$0xff]
                %470 = vst [vmem:[%s124 + $0x560] sm:$0xff] %v469
                %v471 = vld [vmem:[%s123 + $0xac8] sm:$0xff]
                %472 = vst [vmem:[%s124 + $0x568] sm:$0xff] %v471
                %v473 = vld [vmem:[%s123 + $0xad0] sm:$0xff]
                %474 = vst [vmem:[%s124 + $0x570] sm:$0xff] %v473
                %v475 = vld [vmem:[%s123 + $0xad8] sm:$0xff]
                %476 = vst [vmem:[%s124 + $0x578] sm:$0xff] %v475
                %v477 = vld [vmem:[%s123 + $0xb00] sm:$0xff]
                %478 = vst [vmem:[%s124 + $0x580] sm:$0xff] %v477
                %v479 = vld [vmem:[%s123 + $0xb08] sm:$0xff]
                %480 = vst [vmem:[%s124 + $0x588] sm:$0xff] %v479
                %v481 = vld [vmem:[%s123 + $0xb10] sm:$0xff]
                %482 = vst [vmem:[%s124 + $0x590] sm:$0xff] %v481
                %v483 = vld [vmem:[%s123 + $0xb18] sm:$0xff]
                %484 = vst [vmem:[%s124 + $0x598] sm:$0xff] %v483
                %v485 = vld [vmem:[%s123 + $0xb40] sm:$0xff]
                %486 = vst [vmem:[%s124 + $0x5a0] sm:$0xff] %v485
                %v487 = vld [vmem:[%s123 + $0xb48] sm:$0xff]
                %488 = vst [vmem:[%s124 + $0x5a8] sm:$0xff] %v487
                %v489 = vld [vmem:[%s123 + $0xb50] sm:$0xff]
                %490 = vst [vmem:[%s124 + $0x5b0] sm:$0xff] %v489
                %v491 = vld [vmem:[%s123 + $0xb58] sm:$0xff]
                %492 = vst [vmem:[%s124 + $0x5b8] sm:$0xff] %v491
                %v493 = vld [vmem:[%s123 + $0xb80] sm:$0xff]
                %494 = vst [vmem:[%s124 + $0x5c0] sm:$0xff] %v493
                %v495 = vld [vmem:[%s123 + $0xb88] sm:$0xff]
                %496 = vst [vmem:[%s124 + $0x5c8] sm:$0xff] %v495
                %v497 = vld [vmem:[%s123 + $0xb90] sm:$0xff]
                %498 = vst [vmem:[%s124 + $0x5d0] sm:$0xff] %v497
                %v499 = vld [vmem:[%s123 + $0xb98] sm:$0xff]
                %500 = vst [vmem:[%s124 + $0x5d8] sm:$0xff] %v499
                %v501 = vld [vmem:[%s123 + $0xbc0] sm:$0xff]
                %502 = vst [vmem:[%s124 + $0x5e0] sm:$0xff] %v501
                %v503 = vld [vmem:[%s123 + $0xbc8] sm:$0xff]
                %504 = vst [vmem:[%s124 + $0x5e8] sm:$0xff] %v503
                %v505 = vld [vmem:[%s123 + $0xbd0] sm:$0xff]
                %506 = vst [vmem:[%s124 + $0x5f0] sm:$0xff] %v505
                %v507 = vld [vmem:[%s123 + $0xbd8] sm:$0xff]
                %508 = vst [vmem:[%s124 + $0x5f8] sm:$0xff] %v507
                %v509 = vld [vmem:[%s123 + $0xc00] sm:$0xff]
                %510 = vst [vmem:[%s124 + $0x600] sm:$0xff] %v509
                %v511 = vld [vmem:[%s123 + $0xc08] sm:$0xff]
                %512 = vst [vmem:[%s124 + $0x608] sm:$0xff] %v511
                %v513 = vld [vmem:[%s123 + $0xc10] sm:$0xff]
                %514 = vst [vmem:[%s124 + $0x610] sm:$0xff] %v513
                %v515 = vld [vmem:[%s123 + $0xc18] sm:$0xff]
                %516 = vst [vmem:[%s124 + $0x618] sm:$0xff] %v515
                %v517 = vld [vmem:[%s123 + $0xc40] sm:$0xff]
                %518 = vst [vmem:[%s124 + $0x620] sm:$0xff] %v517
                %v519 = vld [vmem:[%s123 + $0xc48] sm:$0xff]
                %520 = vst [vmem:[%s124 + $0x628] sm:$0xff] %v519
                %v521 = vld [vmem:[%s123 + $0xc50] sm:$0xff]
                %522 = vst [vmem:[%s124 + $0x630] sm:$0xff] %v521
                %v523 = vld [vmem:[%s123 + $0xc58] sm:$0xff]
                %524 = vst [vmem:[%s124 + $0x638] sm:$0xff] %v523
                %v525 = vld [vmem:[%s123 + $0xc80] sm:$0xff]
                %526 = vst [vmem:[%s124 + $0x640] sm:$0xff] %v525
                %v527 = vld [vmem:[%s123 + $0xc88] sm:$0xff]
                %528 = vst [vmem:[%s124 + $0x648] sm:$0xff] %v527
                %v529 = vld [vmem:[%s123 + $0xc90] sm:$0xff]
                %530 = vst [vmem:[%s124 + $0x650] sm:$0xff] %v529
                %v531 = vld [vmem:[%s123 + $0xc98] sm:$0xff]
                %532 = vst [vmem:[%s124 + $0x658] sm:$0xff] %v531
                %v533 = vld [vmem:[%s123 + $0xcc0] sm:$0xff]
                %534 = vst [vmem:[%s124 + $0x660] sm:$0xff] %v533
                %v535 = vld [vmem:[%s123 + $0xcc8] sm:$0xff]
                %536 = vst [vmem:[%s124 + $0x668] sm:$0xff] %v535
                %v537 = vld [vmem:[%s123 + $0xcd0] sm:$0xff]
                %538 = vst [vmem:[%s124 + $0x670] sm:$0xff] %v537
                %v539 = vld [vmem:[%s123 + $0xcd8] sm:$0xff]
                %540 = vst [vmem:[%s124 + $0x678] sm:$0xff] %v539
                %v541 = vld [vmem:[%s123 + $0xd00] sm:$0xff]
                %542 = vst [vmem:[%s124 + $0x680] sm:$0xff] %v541
                %v543 = vld [vmem:[%s123 + $0xd08] sm:$0xff]
                %544 = vst [vmem:[%s124 + $0x688] sm:$0xff] %v543
                %v545 = vld [vmem:[%s123 + $0xd10] sm:$0xff]
                %546 = vst [vmem:[%s124 + $0x690] sm:$0xff] %v545
                %v547 = vld [vmem:[%s123 + $0xd18] sm:$0xff]
                %548 = vst [vmem:[%s124 + $0x698] sm:$0xff] %v547
                %v549 = vld [vmem:[%s123 + $0xd40] sm:$0xff]
                %550 = vst [vmem:[%s124 + $0x6a0] sm:$0xff] %v549
                %v551 = vld [vmem:[%s123 + $0xd48] sm:$0xff]
                %552 = vst [vmem:[%s124 + $0x6a8] sm:$0xff] %v551
                %v553 = vld [vmem:[%s123 + $0xd50] sm:$0xff]
                %554 = vst [vmem:[%s124 + $0x6b0] sm:$0xff] %v553
                %v555 = vld [vmem:[%s123 + $0xd58] sm:$0xff]
                %556 = vst [vmem:[%s124 + $0x6b8] sm:$0xff] %v555
              $region37: #{forward_pallas.23} parent=31 // loop_footer
                %s122 = sadd.s32 1, %s118
              $region38: #{forward_pallas.23} parent=31 // loop_footer_branch
                %117 = sbr.rel target = $region34
              $region39: #{forward_pallas.23} parent=31 // loop_exit
                _
            $region32: #{forward_pallas.23} parent=27 // pred_fallthru
              _
            // Predicated region
            $region40: #{forward_pallas.23} parent=27 // pred_check
              _
            $region41: #{forward_pallas.23} parent=27 // pred_check_branch
              %558 = sbr.rel target = $region43
            $region42: #{forward_pallas.23} parent=27 // pred_region
              _
            $region43: #{forward_pallas.23} parent=27 // pred_fallthru
              _
          $region28: #{forward_pallas.23} parent=23 // pred_fallthru
            _
          %559 = vnop
        $region24: #{forward_pallas.23} parent=19 // pred_fallthru
          _
      $region20: #{forward_pallas.23} parent=5 // pred_fallthru
        _
      %p560 = scmp.le.s32.totalorder 1, %s8
      %p561 = scmp.lt.s32.totalorder %s8, 3
      %p562 = pnand %p560, %p561
      %p563 = pneg %p562
      // Predicated region
      $region44: #{forward_pallas.23} parent=5 // pred_check
        _
      $region45: #{forward_pallas.23} parent=5 // pred_check_branch
        %565 = sbr.rel (%p562) target = $region47
      $region46: #{forward_pallas.23} parent=5 // pred_region
        %s566 = ssub.s32 %s8, 1
        %s567 = sand.u32 %s21, 1
        %s568 = sand.u32 %s21, 1
        %s569 = smul.addr %s568, 1728
        %s570 = scalar_lea.vmem [#allocation2], %s569
        // Predicated region
        $region48: #{forward_pallas.23} parent=46 // pred_check
          %p571 = pneg %p34
        $region49: #{forward_pallas.23} parent=46 // pred_check_branch
          %573 = sbr.rel (%p571) target = $region51
        $region50: #{forward_pallas.23} parent=46 // pred_region
          _
        $region51: #{forward_pallas.23} parent=46 // pred_fallthru
          _
        %s574 = sand.u32 %s21, 1
        %s575 = sand.u32 %s21, 1
        %s576 = smul.addr %s575, 1728
        %s577 = scalar_lea.vmem [#allocation2], %s576
        %p578 = pneg %p34
        %p579 = pneg %p31
        %p580 = pneg %p55
        %p581 = pneg %p52
        %p582 = pneg %p81
        %p583 = pneg %p78
        %s584 = smul.u32 4, %s13
        %p585 = scmp.lt.s32.totalorder %s584, 7
        %s586 = scalar_select %p585, %s584, 7
        %s587 = smul.addr %s586, 8
        %s588 = scalar_lea.vmem %s2, %s587
        %s589 = smul.u32 4, %s13
        %s590 = smul.u32 4, %s13
        %p591 = scmp.lt.s32.totalorder %s590, 7
        %s592 = scalar_select %p591, %s590, 7
        %s593 = smul.addr %s592, 8
        %s594 = scalar_lea.vmem %s2, %s593
        %s595 = smul.u32 4, %s13
        %v596 = vld [vmem:[%s570] sm:$0xff]
        %v597 = vld [vmem:[%s570 + $0x8] sm:$0xff]
        %v598 = vld [vmem:[%s570 + $0x10] sm:$0xff]
        %v599 = vld [vmem:[%s570 + $0x18] sm:$0xff]
        %v600 = vld [vmem:[%s570 + $0x20] sm:$0xff]
        %v601 = vld [vmem:[%s570 + $0x28] sm:$0xff]
        %v602 = vld [vmem:[%s570 + $0x30] sm:$0xff]
        %v603 = vld [vmem:[%s570 + $0x38] sm:$0xff]
        %v604 = vld [vmem:[%s570 + $0x40] sm:$0xff]
        %v605 = vld [vmem:[%s570 + $0x48] sm:$0xff]
        %v606 = vld [vmem:[%s570 + $0x50] sm:$0xff]
        %v607 = vld [vmem:[%s570 + $0x58] sm:$0xff]
        %v608 = vld [vmem:[%s570 + $0x60] sm:$0xff]
        %v609 = vld [vmem:[%s570 + $0x68] sm:$0xff]
        %v610 = vld [vmem:[%s570 + $0x70] sm:$0xff]
        %v611 = vld [vmem:[%s570 + $0x78] sm:$0xff]
        %v612 = vld [vmem:[%s570 + $0x80] sm:$0xff]
        %v613 = vld [vmem:[%s570 + $0x88] sm:$0xff]
        %v614 = vld [vmem:[%s570 + $0x90] sm:$0xff]
        %v615 = vld [vmem:[%s570 + $0x98] sm:$0xff]
        %v616 = vld [vmem:[%s570 + $0xa0] sm:$0xff]
        %v617 = vld [vmem:[%s570 + $0xa8] sm:$0xff]
        %v618 = vld [vmem:[%s570 + $0xb0] sm:$0xff]
        %v619 = vld [vmem:[%s570 + $0xb8] sm:$0xff]
        %v620 = vld [vmem:[%s570 + $0xc0] sm:$0xff]
        %v621 = vld [vmem:[%s570 + $0xc8] sm:$0xff]
        %v622 = vld [vmem:[%s570 + $0xd0] sm:$0xff]
        %v623 = vld [vmem:[%s570 + $0xd8] sm:$0xff]
        %v624 = vld [vmem:[%s570 + $0xe0] sm:$0xff]
        %v625 = vld [vmem:[%s570 + $0xe8] sm:$0xff]
        %v626 = vld [vmem:[%s570 + $0xf0] sm:$0xff]
        %v627 = vld [vmem:[%s570 + $0xf8] sm:$0xff]
        %v628 = vld [vmem:[%s570 + $0x100] sm:$0xff]
        %v629 = vld [vmem:[%s570 + $0x108] sm:$0xff]
        %v630 = vld [vmem:[%s570 + $0x110] sm:$0xff]
        %v631 = vld [vmem:[%s570 + $0x118] sm:$0xff]
        %v632 = vld [vmem:[%s570 + $0x120] sm:$0xff]
        %v633 = vld [vmem:[%s570 + $0x128] sm:$0xff]
        %v634 = vld [vmem:[%s570 + $0x130] sm:$0xff]
        %v635 = vld [vmem:[%s570 + $0x138] sm:$0xff]
        %v636 = vld [vmem:[%s570 + $0x140] sm:$0xff]
        %v637 = vld [vmem:[%s570 + $0x148] sm:$0xff]
        %v638 = vld [vmem:[%s570 + $0x150] sm:$0xff]
        %v639 = vld [vmem:[%s570 + $0x158] sm:$0xff]
        %v640 = vld [vmem:[%s570 + $0x160] sm:$0xff]
        %v641 = vld [vmem:[%s570 + $0x168] sm:$0xff]
        %v642 = vld [vmem:[%s570 + $0x170] sm:$0xff]
        %v643 = vld [vmem:[%s570 + $0x178] sm:$0xff]
        %v644 = vld [vmem:[%s570 + $0x180] sm:$0xff]
        %v645 = vld [vmem:[%s570 + $0x188] sm:$0xff]
        %v646 = vld [vmem:[%s570 + $0x190] sm:$0xff]
        %v647 = vld [vmem:[%s570 + $0x198] sm:$0xff]
        %v648 = vld [vmem:[%s570 + $0x1a0] sm:$0xff]
        %v649 = vld [vmem:[%s570 + $0x1a8] sm:$0xff]
        %v650 = vld [vmem:[%s570 + $0x1b0] sm:$0xff]
        %v651 = vld [vmem:[%s570 + $0x1b8] sm:$0xff]
        %v652 = vld [vmem:[%s570 + $0x1c0] sm:$0xff]
        %v653 = vld [vmem:[%s570 + $0x1c8] sm:$0xff]
        %v654 = vld [vmem:[%s570 + $0x1d0] sm:$0xff]
        %v655 = vld [vmem:[%s570 + $0x1d8] sm:$0xff]
        %v656 = vld [vmem:[%s570 + $0x1e0] sm:$0xff]
        %v657 = vld [vmem:[%s570 + $0x1e8] sm:$0xff]
        %v658 = vld [vmem:[%s570 + $0x1f0] sm:$0xff]
        %v659 = vld [vmem:[%s570 + $0x1f8] sm:$0xff]
        %v660 = vld [vmem:[%s570 + $0x200] sm:$0xff]
        %v661 = vld [vmem:[%s570 + $0x208] sm:$0xff]
        %v662 = vld [vmem:[%s570 + $0x210] sm:$0xff]
        %v663 = vld [vmem:[%s570 + $0x218] sm:$0xff]
        %v664 = vld [vmem:[%s570 + $0x220] sm:$0xff]
        %v665 = vld [vmem:[%s570 + $0x228] sm:$0xff]
        %v666 = vld [vmem:[%s570 + $0x230] sm:$0xff]
        %v667 = vld [vmem:[%s570 + $0x238] sm:$0xff]
        %v668 = vld [vmem:[%s570 + $0x240] sm:$0xff]
        %v669 = vld [vmem:[%s570 + $0x248] sm:$0xff]
        %v670 = vld [vmem:[%s570 + $0x250] sm:$0xff]
        %v671 = vld [vmem:[%s570 + $0x258] sm:$0xff]
        %v672 = vld [vmem:[%s570 + $0x260] sm:$0xff]
        %v673 = vld [vmem:[%s570 + $0x268] sm:$0xff]
        %v674 = vld [vmem:[%s570 + $0x270] sm:$0xff]
        %v675 = vld [vmem:[%s570 + $0x278] sm:$0xff]
        %v676 = vld [vmem:[%s570 + $0x280] sm:$0xff]
        %v677 = vld [vmem:[%s570 + $0x288] sm:$0xff]
        %v678 = vld [vmem:[%s570 + $0x290] sm:$0xff]
        %v679 = vld [vmem:[%s570 + $0x298] sm:$0xff]
        %v680 = vld [vmem:[%s570 + $0x2a0] sm:$0xff]
        %v681 = vld [vmem:[%s570 + $0x2a8] sm:$0xff]
        %v682 = vld [vmem:[%s570 + $0x2b0] sm:$0xff]
        %v683 = vld [vmem:[%s570 + $0x2b8] sm:$0xff]
        %v684 = vld [vmem:[%s570 + $0x2c0] sm:$0xff]
        %v685 = vld [vmem:[%s570 + $0x2c8] sm:$0xff]
        %v686 = vld [vmem:[%s570 + $0x2d0] sm:$0xff]
        %v687 = vld [vmem:[%s570 + $0x2d8] sm:$0xff]
        %v688 = vld [vmem:[%s570 + $0x2e0] sm:$0xff]
        %v689 = vld [vmem:[%s570 + $0x2e8] sm:$0xff]
        %v690 = vld [vmem:[%s570 + $0x2f0] sm:$0xff]
        %v691 = vld [vmem:[%s570 + $0x2f8] sm:$0xff]
        %v692 = vld [vmem:[%s570 + $0x300] sm:$0xff]
        %v693 = vld [vmem:[%s570 + $0x308] sm:$0xff]
        %v694 = vld [vmem:[%s570 + $0x310] sm:$0xff]
        %v695 = vld [vmem:[%s570 + $0x318] sm:$0xff]
        %v696 = vld [vmem:[%s570 + $0x320] sm:$0xff]
        %v697 = vld [vmem:[%s570 + $0x328] sm:$0xff]
        %v698 = vld [vmem:[%s570 + $0x330] sm:$0xff]
        %v699 = vld [vmem:[%s570 + $0x338] sm:$0xff]
        %v700 = vld [vmem:[%s570 + $0x340] sm:$0xff]
        %v701 = vld [vmem:[%s570 + $0x348] sm:$0xff]
        %v702 = vld [vmem:[%s570 + $0x350] sm:$0xff]
        %v703 = vld [vmem:[%s570 + $0x358] sm:$0xff]
        %v704 = vld [vmem:[%s570 + $0x360] sm:$0xff]
        %v705 = vld [vmem:[%s570 + $0x368] sm:$0xff]
        %v706 = vld [vmem:[%s570 + $0x370] sm:$0xff]
        %v707 = vld [vmem:[%s570 + $0x378] sm:$0xff]
        %v708 = vld [vmem:[%s570 + $0x380] sm:$0xff]
        %v709 = vld [vmem:[%s570 + $0x388] sm:$0xff]
        %v710 = vld [vmem:[%s570 + $0x390] sm:$0xff]
        %v711 = vld [vmem:[%s570 + $0x398] sm:$0xff]
        %v712 = vld [vmem:[%s570 + $0x3a0] sm:$0xff]
        %v713 = vld [vmem:[%s570 + $0x3a8] sm:$0xff]
        %v714 = vld [vmem:[%s570 + $0x3b0] sm:$0xff]
        %v715 = vld [vmem:[%s570 + $0x3b8] sm:$0xff]
        %v716 = vld [vmem:[%s570 + $0x3c0] sm:$0xff]
        %v717 = vld [vmem:[%s570 + $0x3c8] sm:$0xff]
        %v718 = vld [vmem:[%s570 + $0x3d0] sm:$0xff]
        %v719 = vld [vmem:[%s570 + $0x3d8] sm:$0xff]
        %v720 = vld [vmem:[%s570 + $0x3e0] sm:$0xff]
        %v721 = vld [vmem:[%s570 + $0x3e8] sm:$0xff]
        %v722 = vld [vmem:[%s570 + $0x3f0] sm:$0xff]
        %v723 = vld [vmem:[%s570 + $0x3f8] sm:$0xff]
        %v724 = vld [vmem:[%s570 + $0x400] sm:$0xff]
        %v725 = vld [vmem:[%s570 + $0x408] sm:$0xff]
        %v726 = vld [vmem:[%s570 + $0x410] sm:$0xff]
        %v727 = vld [vmem:[%s570 + $0x418] sm:$0xff]
        %v728 = vld [vmem:[%s570 + $0x420] sm:$0xff]
        %v729 = vld [vmem:[%s570 + $0x428] sm:$0xff]
        %v730 = vld [vmem:[%s570 + $0x430] sm:$0xff]
        %v731 = vld [vmem:[%s570 + $0x438] sm:$0xff]
        %v732 = vld [vmem:[%s570 + $0x440] sm:$0xff]
        %v733 = vld [vmem:[%s570 + $0x448] sm:$0xff]
        %v734 = vld [vmem:[%s570 + $0x450] sm:$0xff]
        %v735 = vld [vmem:[%s570 + $0x458] sm:$0xff]
        %v736 = vld [vmem:[%s570 + $0x460] sm:$0xff]
        %v737 = vld [vmem:[%s570 + $0x468] sm:$0xff]
        %v738 = vld [vmem:[%s570 + $0x470] sm:$0xff]
        %v739 = vld [vmem:[%s570 + $0x478] sm:$0xff]
        %v740 = vld [vmem:[%s570 + $0x480] sm:$0xff]
        %v741 = vld [vmem:[%s570 + $0x488] sm:$0xff]
        %v742 = vld [vmem:[%s570 + $0x490] sm:$0xff]
        %v743 = vld [vmem:[%s570 + $0x498] sm:$0xff]
        %v744 = vld [vmem:[%s570 + $0x4a0] sm:$0xff]
        %v745 = vld [vmem:[%s570 + $0x4a8] sm:$0xff]
        %v746 = vld [vmem:[%s570 + $0x4b0] sm:$0xff]
        %v747 = vld [vmem:[%s570 + $0x4b8] sm:$0xff]
        %v748 = vld [vmem:[%s570 + $0x4c0] sm:$0xff]
        %v749 = vld [vmem:[%s570 + $0x4c8] sm:$0xff]
        %v750 = vld [vmem:[%s570 + $0x4d0] sm:$0xff]
        %v751 = vld [vmem:[%s570 + $0x4d8] sm:$0xff]
        %v752 = vld [vmem:[%s570 + $0x4e0] sm:$0xff]
        %v753 = vld [vmem:[%s570 + $0x4e8] sm:$0xff]
        %v754 = vld [vmem:[%s570 + $0x4f0] sm:$0xff]
        %v755 = vld [vmem:[%s570 + $0x4f8] sm:$0xff]
        %v756 = vld [vmem:[%s570 + $0x500] sm:$0xff]
        %v757 = vld [vmem:[%s570 + $0x508] sm:$0xff]
        %v758 = vld [vmem:[%s570 + $0x510] sm:$0xff]
        %v759 = vld [vmem:[%s570 + $0x518] sm:$0xff]
        %v760 = vld [vmem:[%s570 + $0x520] sm:$0xff]
        %v761 = vld [vmem:[%s570 + $0x528] sm:$0xff]
        %v762 = vld [vmem:[%s570 + $0x530] sm:$0xff]
        %v763 = vld [vmem:[%s570 + $0x538] sm:$0xff]
        %v764 = vld [vmem:[%s570 + $0x540] sm:$0xff]
        %v765 = vld [vmem:[%s570 + $0x548] sm:$0xff]
        %v766 = vld [vmem:[%s570 + $0x550] sm:$0xff]
        %v767 = vld [vmem:[%s570 + $0x558] sm:$0xff]
        %v768 = vld [vmem:[%s570 + $0x560] sm:$0xff]
        %v769 = vld [vmem:[%s570 + $0x568] sm:$0xff]
        %v770 = vld [vmem:[%s570 + $0x570] sm:$0xff]
        %v771 = vld [vmem:[%s570 + $0x578] sm:$0xff]
        %v772 = vld [vmem:[%s570 + $0x580] sm:$0xff]
        %v773 = vld [vmem:[%s570 + $0x588] sm:$0xff]
        %v774 = vld [vmem:[%s570 + $0x590] sm:$0xff]
        %v775 = vld [vmem:[%s570 + $0x598] sm:$0xff]
        %v776 = vld [vmem:[%s570 + $0x5a0] sm:$0xff]
        %v777 = vld [vmem:[%s570 + $0x5a8] sm:$0xff]
        %v778 = vld [vmem:[%s570 + $0x5b0] sm:$0xff]
        %v779 = vld [vmem:[%s570 + $0x5b8] sm:$0xff]
        %v780 = vld [vmem:[%s570 + $0x5c0] sm:$0xff]
        %v781 = vld [vmem:[%s570 + $0x5c8] sm:$0xff]
        %v782 = vld [vmem:[%s570 + $0x5d0] sm:$0xff]
        %v783 = vld [vmem:[%s570 + $0x5d8] sm:$0xff]
        %v784 = vld [vmem:[%s570 + $0x5e0] sm:$0xff]
        %v785 = vld [vmem:[%s570 + $0x5e8] sm:$0xff]
        %v786 = vld [vmem:[%s570 + $0x5f0] sm:$0xff]
        %v787 = vld [vmem:[%s570 + $0x5f8] sm:$0xff]
        %v788 = vld [vmem:[%s570 + $0x600] sm:$0xff]
        %v789 = vld [vmem:[%s570 + $0x608] sm:$0xff]
        %v790 = vld [vmem:[%s570 + $0x610] sm:$0xff]
        %v791 = vld [vmem:[%s570 + $0x618] sm:$0xff]
        %v792 = vld [vmem:[%s570 + $0x620] sm:$0xff]
        %v793 = vld [vmem:[%s570 + $0x628] sm:$0xff]
        %v794 = vld [vmem:[%s570 + $0x630] sm:$0xff]
        %v795 = vld [vmem:[%s570 + $0x638] sm:$0xff]
        %v796 = vld [vmem:[%s570 + $0x640] sm:$0xff]
        %v797 = vld [vmem:[%s570 + $0x648] sm:$0xff]
        %v798 = vld [vmem:[%s570 + $0x650] sm:$0xff]
        %v799 = vld [vmem:[%s570 + $0x658] sm:$0xff]
        %v800 = vld [vmem:[%s570 + $0x660] sm:$0xff]
        %v801 = vld [vmem:[%s570 + $0x668] sm:$0xff]
        %v802 = vld [vmem:[%s570 + $0x670] sm:$0xff]
        %v803 = vld [vmem:[%s570 + $0x678] sm:$0xff]
        %v804 = vld [vmem:[%s570 + $0x680] sm:$0xff]
        %v805 = vld [vmem:[%s570 + $0x688] sm:$0xff]
        %v806 = vld [vmem:[%s570 + $0x690] sm:$0xff]
        %v807 = vld [vmem:[%s570 + $0x698] sm:$0xff]
        %v808 = vld [vmem:[%s570 + $0x6a0] sm:$0xff]
        %v809 = vld [vmem:[%s570 + $0x6a8] sm:$0xff]
        %v810 = vld [vmem:[%s570 + $0x6b0] sm:$0xff]
        %v811 = vld [vmem:[%s570 + $0x6b8] sm:$0xff]
        %v812 = vld [vmem:[%s1] sm:$0xff]
        %v813 = vld [vmem:[%s1 + $0x8] sm:$0xff]
        %v814 = vld [vmem:[%s1 + $0x10] sm:$0xff]
        %v815 = vld [vmem:[%s1 + $0x18] sm:$0xff]
        %vm816 = vcmask 392192
        %v818 = vsel %vm816, %v815, 0
        %820 = vmatpush.msra.mxu0 %v656
        %821 = vmatpush.msra.mxu0 %v652
        %822 = vmatpush.msra.mxu0 %v648
        %823 = vmatpush.msra.mxu0 %v644
        %824 = vmatpush.msra.mxu0 %v640
        %825 = vmatpush.msra.mxu0 %v636
        %826 = vmatpush.msra.mxu0 %v632
        %827 = vmatpush.msra.mxu0 %v628
        %828 = vmatpush.msra.mxu0 %v624
        %829 = vmatpush.msra.mxu0 %v620
        %830 = vmatpush.msra.mxu0 %v616
        %831 = vmatpush.msra.mxu0 %v612
        %832 = vmatpush.msra.mxu0 %v608
        %833 = vmatpush.msra.mxu0 %v604
        %834 = vmatpush.msra.mxu0 %v600
        %835 = vmatpush.msra.mxu0 %v596
        %836 = vmatmul.f32.gmra.mxu0 %v812
        %v837 = vpop.f32.mrf.mxu0
        %v838 = vadd.f32 0.0, %v837
        %839 = vdwg.mxu0
        %840 = vmatpush.msra.mxu0 %v720
        %841 = vmatpush.msra.mxu0 %v716
        %842 = vmatpush.msra.mxu0 %v712
        %843 = vmatpush.msra.mxu0 %v708
        %844 = vmatpush.msra.mxu0 %v704
        %845 = vmatpush.msra.mxu0 %v700
        %846 = vmatpush.msra.mxu0 %v696
        %847 = vmatpush.msra.mxu0 %v692
        %848 = vmatpush.msra.mxu0 %v688
        %849 = vmatpush.msra.mxu0 %v684
        %850 = vmatpush.msra.mxu0 %v680
        %851 = vmatpush.msra.mxu0 %v676
        %852 = vmatpush.msra.mxu0 %v672
        %853 = vmatpush.msra.mxu0 %v668
        %854 = vmatpush.msra.mxu0 %v664
        %855 = vmatpush.msra.mxu0 %v660
        %856 = vmatmul.f32.gmra.mxu0 %v813
        %v857 = vpop.f32.mrf.mxu0
        %v858 = vadd.f32 %v838, %v857
        %859 = vdwg.mxu0
        %860 = vmatpush.msra.mxu0 %v784
        %861 = vmatpush.msra.mxu0 %v780
        %862 = vmatpush.msra.mxu0 %v776
        %863 = vmatpush.msra.mxu0 %v772
        %864 = vmatpush.msra.mxu0 %v768
        %865 = vmatpush.msra.mxu0 %v764
        %866 = vmatpush.msra.mxu0 %v760
        %867 = vmatpush.msra.mxu0 %v756
        %868 = vmatpush.msra.mxu0 %v752
        %869 = vmatpush.msra.mxu0 %v748
        %870 = vmatpush.msra.mxu0 %v744
        %871 = vmatpush.msra.mxu0 %v740
        %872 = vmatpush.msra.mxu0 %v736
        %873 = vmatpush.msra.mxu0 %v732
        %874 = vmatpush.msra.mxu0 %v728
        %875 = vmatpush.msra.mxu0 %v724
        %876 = vmatmul.f32.gmra.mxu0 %v814
        %v877 = vpop.f32.mrf.mxu0
        %v878 = vadd.f32 %v858, %v877
        %879 = vdwg.mxu0
        %880 = vmatpush.msra.mxu0 0.0
        %881 = vmatpush.msra.mxu0 0.0
        %882 = vmatpush.msra.mxu0 0.0
        %883 = vmatpush.msra.mxu0 0.0
        %884 = vmatpush.msra.mxu0 0.0
        %885 = vmatpush.msra.mxu0 0.0
        %886 = vmatpush.msra.mxu0 0.0
        %887 = vmatpush.msra.mxu0 0.0
        %888 = vmatpush.msra.mxu0 0.0
        %889 = vmatpush.msra.mxu0 0.0
        %890 = vmatpush.msra.mxu0 %v808
        %891 = vmatpush.msra.mxu0 %v804
        %892 = vmatpush.msra.mxu0 %v800
        %893 = vmatpush.msra.mxu0 %v796
        %894 = vmatpush.msra.mxu0 %v792
        %895 = vmatpush.msra.mxu0 %v788
        %896 = vmatmul.f32.gmra.mxu0 %v818
        %v897 = vpop.f32.mrf.mxu0
        %v898 = vadd.f32 %v878, %v897
        %899 = vdwg.mxu0
        %900 = vmatpush.msra.mxu0 %v657
        %901 = vmatpush.msra.mxu0 %v653
        %902 = vmatpush.msra.mxu0 %v649
        %903 = vmatpush.msra.mxu0 %v645
        %904 = vmatpush.msra.mxu0 %v641
        %905 = vmatpush.msra.mxu0 %v637
        %906 = vmatpush.msra.mxu0 %v633
        %907 = vmatpush.msra.mxu0 %v629
        %908 = vmatpush.msra.mxu0 %v625
        %909 = vmatpush.msra.mxu0 %v621
        %910 = vmatpush.msra.mxu0 %v617
        %911 = vmatpush.msra.mxu0 %v613
        %912 = vmatpush.msra.mxu0 %v609
        %913 = vmatpush.msra.mxu0 %v605
        %914 = vmatpush.msra.mxu0 %v601
        %915 = vmatpush.msra.mxu0 %v597
        %916 = vmatmul.f32.gmra.mxu0 %v812
        %v917 = vpop.f32.mrf.mxu0
        %v918 = vadd.f32 0.0, %v917
        %919 = vdwg.mxu0
        %920 = vmatpush.msra.mxu0 %v721
        %921 = vmatpush.msra.mxu0 %v717
        %922 = vmatpush.msra.mxu0 %v713
        %923 = vmatpush.msra.mxu0 %v709
        %924 = vmatpush.msra.mxu0 %v705
        %925 = vmatpush.msra.mxu0 %v701
        %926 = vmatpush.msra.mxu0 %v697
        %927 = vmatpush.msra.mxu0 %v693
        %928 = vmatpush.msra.mxu0 %v689
        %929 = vmatpush.msra.mxu0 %v685
        %930 = vmatpush.msra.mxu0 %v681
        %931 = vmatpush.msra.mxu0 %v677
        %932 = vmatpush.msra.mxu0 %v673
        %933 = vmatpush.msra.mxu0 %v669
        %934 = vmatpush.msra.mxu0 %v665
        %935 = vmatpush.msra.mxu0 %v661
        %936 = vmatmul.f32.gmra.mxu0 %v813
        %v937 = vpop.f32.mrf.mxu0
        %v938 = vadd.f32 %v918, %v937
        %939 = vdwg.mxu0
        %940 = vmatpush.msra.mxu0 %v785
        %941 = vmatpush.msra.mxu0 %v781
        %942 = vmatpush.msra.mxu0 %v777
        %943 = vmatpush.msra.mxu0 %v773
        %944 = vmatpush.msra.mxu0 %v769
        %945 = vmatpush.msra.mxu0 %v765
        %946 = vmatpush.msra.mxu0 %v761
        %947 = vmatpush.msra.mxu0 %v757
        %948 = vmatpush.msra.mxu0 %v753
        %949 = vmatpush.msra.mxu0 %v749
        %950 = vmatpush.msra.mxu0 %v745
        %951 = vmatpush.msra.mxu0 %v741
        %952 = vmatpush.msra.mxu0 %v737
        %953 = vmatpush.msra.mxu0 %v733
        %954 = vmatpush.msra.mxu0 %v729
        %955 = vmatpush.msra.mxu0 %v725
        %956 = vmatmul.f32.gmra.mxu0 %v814
        %v957 = vpop.f32.mrf.mxu0
        %v958 = vadd.f32 %v938, %v957
        %959 = vdwg.mxu0
        %960 = vmatpush.msra.mxu0 0.0
        %961 = vmatpush.msra.mxu0 0.0
        %962 = vmatpush.msra.mxu0 0.0
        %963 = vmatpush.msra.mxu0 0.0
        %964 = vmatpush.msra.mxu0 0.0
        %965 = vmatpush.msra.mxu0 0.0
        %966 = vmatpush.msra.mxu0 0.0
        %967 = vmatpush.msra.mxu0 0.0
        %968 = vmatpush.msra.mxu0 0.0
        %969 = vmatpush.msra.mxu0 0.0
        %970 = vmatpush.msra.mxu0 %v809
        %971 = vmatpush.msra.mxu0 %v805
        %972 = vmatpush.msra.mxu0 %v801
        %973 = vmatpush.msra.mxu0 %v797
        %974 = vmatpush.msra.mxu0 %v793
        %975 = vmatpush.msra.mxu0 %v789
        %976 = vmatmul.f32.gmra.mxu0 %v818
        %v977 = vpop.f32.mrf.mxu0
        %v978 = vadd.f32 %v958, %v977
        %979 = vdwg.mxu0
        %980 = vmatpush.msra.mxu0 %v658
        %981 = vmatpush.msra.mxu0 %v654
        %982 = vmatpush.msra.mxu0 %v650
        %983 = vmatpush.msra.mxu0 %v646
        %984 = vmatpush.msra.mxu0 %v642
        %985 = vmatpush.msra.mxu0 %v638
        %986 = vmatpush.msra.mxu0 %v634
        %987 = vmatpush.msra.mxu0 %v630
        %988 = vmatpush.msra.mxu0 %v626
        %989 = vmatpush.msra.mxu0 %v622
        %990 = vmatpush.msra.mxu0 %v618
        %991 = vmatpush.msra.mxu0 %v614
        %992 = vmatpush.msra.mxu0 %v610
        %993 = vmatpush.msra.mxu0 %v606
        %994 = vmatpush.msra.mxu0 %v602
        %995 = vmatpush.msra.mxu0 %v598
        %996 = vmatmul.f32.gmra.mxu0 %v812
        %v997 = vpop.f32.mrf.mxu0
        %v998 = vadd.f32 0.0, %v997
        %999 = vdwg.mxu0
        %1000 = vmatpush.msra.mxu0 %v722
        %1001 = vmatpush.msra.mxu0 %v718
        %1002 = vmatpush.msra.mxu0 %v714
        %1003 = vmatpush.msra.mxu0 %v710
        %1004 = vmatpush.msra.mxu0 %v706
        %1005 = vmatpush.msra.mxu0 %v702
        %1006 = vmatpush.msra.mxu0 %v698
        %1007 = vmatpush.msra.mxu0 %v694
        %1008 = vmatpush.msra.mxu0 %v690
        %1009 = vmatpush.msra.mxu0 %v686
        %1010 = vmatpush.msra.mxu0 %v682
        %1011 = vmatpush.msra.mxu0 %v678
        %1012 = vmatpush.msra.mxu0 %v674
        %1013 = vmatpush.msra.mxu0 %v670
        %1014 = vmatpush.msra.mxu0 %v666
        %1015 = vmatpush.msra.mxu0 %v662
        %1016 = vmatmul.f32.gmra.mxu0 %v813
        %v1017 = vpop.f32.mrf.mxu0
        %v1018 = vadd.f32 %v998, %v1017
        %1019 = vdwg.mxu0
        %1020 = vmatpush.msra.mxu0 %v786
        %1021 = vmatpush.msra.mxu0 %v782
        %1022 = vmatpush.msra.mxu0 %v778
        %1023 = vmatpush.msra.mxu0 %v774
        %1024 = vmatpush.msra.mxu0 %v770
        %1025 = vmatpush.msra.mxu0 %v766
        %1026 = vmatpush.msra.mxu0 %v762
        %1027 = vmatpush.msra.mxu0 %v758
        %1028 = vmatpush.msra.mxu0 %v754
        %1029 = vmatpush.msra.mxu0 %v750
        %1030 = vmatpush.msra.mxu0 %v746
        %1031 = vmatpush.msra.mxu0 %v742
        %1032 = vmatpush.msra.mxu0 %v738
        %1033 = vmatpush.msra.mxu0 %v734
        %1034 = vmatpush.msra.mxu0 %v730
        %1035 = vmatpush.msra.mxu0 %v726
        %1036 = vmatmul.f32.gmra.mxu0 %v814
        %v1037 = vpop.f32.mrf.mxu0
        %v1038 = vadd.f32 %v1018, %v1037
        %1039 = vdwg.mxu0
        %1040 = vmatpush.msra.mxu0 0.0
        %1041 = vmatpush.msra.mxu0 0.0
        %1042 = vmatpush.msra.mxu0 0.0
        %1043 = vmatpush.msra.mxu0 0.0
        %1044 = vmatpush.msra.mxu0 0.0
        %1045 = vmatpush.msra.mxu0 0.0
        %1046 = vmatpush.msra.mxu0 0.0
        %1047 = vmatpush.msra.mxu0 0.0
        %1048 = vmatpush.msra.mxu0 0.0
        %1049 = vmatpush.msra.mxu0 0.0
        %1050 = vmatpush.msra.mxu0 %v810
        %1051 = vmatpush.msra.mxu0 %v806
        %1052 = vmatpush.msra.mxu0 %v802
        %1053 = vmatpush.msra.mxu0 %v798
        %1054 = vmatpush.msra.mxu0 %v794
        %1055 = vmatpush.msra.mxu0 %v790
        %1056 = vmatmul.f32.gmra.mxu0 %v818
        %v1057 = vpop.f32.mrf.mxu0
        %v1058 = vadd.f32 %v1038, %v1057
        %1059 = vdwg.mxu0
        %1060 = vmatpush.msra.mxu0 %v659
        %1061 = vmatpush.msra.mxu0 %v655
        %1062 = vmatpush.msra.mxu0 %v651
        %1063 = vmatpush.msra.mxu0 %v647
        %1064 = vmatpush.msra.mxu0 %v643
        %1065 = vmatpush.msra.mxu0 %v639
        %1066 = vmatpush.msra.mxu0 %v635
        %1067 = vmatpush.msra.mxu0 %v631
        %1068 = vmatpush.msra.mxu0 %v627
        %1069 = vmatpush.msra.mxu0 %v623
        %1070 = vmatpush.msra.mxu0 %v619
        %1071 = vmatpush.msra.mxu0 %v615
        %1072 = vmatpush.msra.mxu0 %v611
        %1073 = vmatpush.msra.mxu0 %v607
        %1074 = vmatpush.msra.mxu0 %v603
        %1075 = vmatpush.msra.mxu0 %v599
        %1076 = vmatmul.f32.gmra.mxu0 %v812
        %v1077 = vpop.f32.mrf.mxu0
        %v1078 = vadd.f32 0.0, %v1077
        %1079 = vdwg.mxu0
        %1080 = vmatpush.msra.mxu0 %v723
        %1081 = vmatpush.msra.mxu0 %v719
        %1082 = vmatpush.msra.mxu0 %v715
        %1083 = vmatpush.msra.mxu0 %v711
        %1084 = vmatpush.msra.mxu0 %v707
        %1085 = vmatpush.msra.mxu0 %v703
        %1086 = vmatpush.msra.mxu0 %v699
        %1087 = vmatpush.msra.mxu0 %v695
        %1088 = vmatpush.msra.mxu0 %v691
        %1089 = vmatpush.msra.mxu0 %v687
        %1090 = vmatpush.msra.mxu0 %v683
        %1091 = vmatpush.msra.mxu0 %v679
        %1092 = vmatpush.msra.mxu0 %v675
        %1093 = vmatpush.msra.mxu0 %v671
        %1094 = vmatpush.msra.mxu0 %v667
        %1095 = vmatpush.msra.mxu0 %v663
        %1096 = vmatmul.f32.gmra.mxu0 %v813
        %v1097 = vpop.f32.mrf.mxu0
        %v1098 = vadd.f32 %v1078, %v1097
        %1099 = vdwg.mxu0
        %1100 = vmatpush.msra.mxu0 %v787
        %1101 = vmatpush.msra.mxu0 %v783
        %1102 = vmatpush.msra.mxu0 %v779
        %1103 = vmatpush.msra.mxu0 %v775
        %1104 = vmatpush.msra.mxu0 %v771
        %1105 = vmatpush.msra.mxu0 %v767
        %1106 = vmatpush.msra.mxu0 %v763
        %1107 = vmatpush.msra.mxu0 %v759
        %1108 = vmatpush.msra.mxu0 %v755
        %1109 = vmatpush.msra.mxu0 %v751
        %1110 = vmatpush.msra.mxu0 %v747
        %1111 = vmatpush.msra.mxu0 %v743
        %1112 = vmatpush.msra.mxu0 %v739
        %1113 = vmatpush.msra.mxu0 %v735
        %1114 = vmatpush.msra.mxu0 %v731
        %1115 = vmatpush.msra.mxu0 %v727
        %1116 = vmatmul.f32.gmra.mxu0 %v814
        %v1117 = vpop.f32.mrf.mxu0
        %v1118 = vadd.f32 %v1098, %v1117
        %1119 = vdwg.mxu0
        %1120 = vmatpush.msra.mxu0 0.0
        %1121 = vmatpush.msra.mxu0 0.0
        %1122 = vmatpush.msra.mxu0 0.0
        %1123 = vmatpush.msra.mxu0 0.0
        %1124 = vmatpush.msra.mxu0 0.0
        %1125 = vmatpush.msra.mxu0 0.0
        %1126 = vmatpush.msra.mxu0 0.0
        %1127 = vmatpush.msra.mxu0 0.0
        %1128 = vmatpush.msra.mxu0 0.0
        %1129 = vmatpush.msra.mxu0 0.0
        %1130 = vmatpush.msra.mxu0 %v811
        %1131 = vmatpush.msra.mxu0 %v807
        %1132 = vmatpush.msra.mxu0 %v803
        %1133 = vmatpush.msra.mxu0 %v799
        %1134 = vmatpush.msra.mxu0 %v795
        %1135 = vmatpush.msra.mxu0 %v791
        %1136 = vmatmul.f32.gmra.mxu0 %v818
        %v1137 = vpop.f32.mrf.mxu0
        %v1138 = vadd.f32 %v1118, %v1137
        %1139 = vdwg.mxu0
        %1140 = vst [vmem:[%s594] sm:$0xff] %v898
        %1141 = vst [vmem:[%s594 + $0x8] sm:$0xff] %v978
        %1142 = vst [vmem:[%s594 + $0x10] sm:$0xff] %v1058
        %1143 = vst [vmem:[%s594 + $0x18] sm:$0xff] %v1138
        %s1144 = smul.u32 4, %s13
        %p1145 = scmp.lt.s32.totalorder %s1144, 7
        %s1146 = scalar_select %p1145, %s1144, 7
        %s1147 = smul.addr %s1146, 8
        %s1148 = scalar_lea.vmem %s2, %s1147
        // Predicated region
        $region52: #{forward_pallas.23} parent=46 // pred_check
          %p1149 = pneg %p78
        $region53: #{forward_pallas.23} parent=46 // pred_check_branch
          %1151 = sbr.rel (%p1149) target = $region55
        $region54: #{forward_pallas.23} parent=46 // pred_region
          %s1152 = smul.u32 4, %s13
        $region55: #{forward_pallas.23} parent=46 // pred_fallthru
          _
      $region47: #{forward_pallas.23} parent=5 // pred_fallthru
        _
      %p1153 = scmp.le.s32.totalorder 2, %s8
      // Predicated region
      $region56: #{forward_pallas.23} parent=5 // pred_check
        %p1154 = pneg %p1153
      $region57: #{forward_pallas.23} parent=5 // pred_check_branch
        %1156 = sbr.rel (%p1154) target = $region59
      $region58: #{forward_pallas.23} parent=5 // pred_region
        %s1157 = ssub.s32 %s8, 2
        // Predicated region
        $region60: #{forward_pallas.23} parent=58 // pred_check
          %p1158 = pneg %p84
        $region61: #{forward_pallas.23} parent=58 // pred_check_branch
          %1160 = sbr.rel (%p1158) target = $region63
        $region62: #{forward_pallas.23} parent=58 // pred_region
          %s1161 = smul.u32 4, %s14
          %p1162 = scmp.lt.s32.totalorder %s1161, 7
          %s1163 = scalar_select %p1162, %s1161, 7
          %s1164 = smul.addr %s1163, 8
          %s1165 = scalar_lea.vmem %s2, %s1164
        $region63: #{forward_pallas.23} parent=58 // pred_fallthru
          _
      $region59: #{forward_pallas.23} parent=5 // pred_fallthru
        _
    $region6: #{forward_pallas.23} parent=1 // loop_footer
      %s12 = sadd.s32 1, %s8
    $region7: #{forward_pallas.23} parent=1 // loop_footer_branch
      %7 = sbr.rel target = $region3
    $region8: #{forward_pallas.23} parent=1 // loop_exit
      _

// kernel: forward_pallas.27
$region0: #{forward_pallas.27}
  #allocation0 [shape = 'u32[]', space=smem, size = 0x4, offset = 0x4, fixed_abs, tag = 'smem constant byte address 0x4 - core index']
  #allocation1 [shape = 'u32[72,128]{1,0:T(1,128)}', space=vmem, size = 0x9000, scoped, tag = 'internal scratch']
  %s0 = inlined_call_operand.vmem [shape: f32[16,128], index: 0, kind: input, shape index: {}]
  %s1 = inlined_call_operand.vmem [shape: f32[16,16], index: 1, kind: input, shape index: {}]
  %s2 = inlined_call_operand.vmem [shape: f32[16,1], index: 2, kind: input, shape index: {}]
  %s3 = inlined_call_operand.vmem [shape: f32[16,1], index: 3, kind: input, shape index: {}]
  %s4 = inlined_call_operand.vmem [shape: f32[16,1], index: 4, kind: input, shape index: {}]
  %s5 = inlined_call_operand.vmem [shape: f32[16,1], index: 5, kind: input, shape index: {}]
  %s6 = inlined_call_operand.vmem [shape: f32[16,128], index: 6, kind: output, shape index: {}]
  %s7 = sld [smem:[#allocation0]]
  $region34: #{forward_pallas.27} parent=0
    _
  %s9 = ssub.s32 1, %s7
  %s10 = scalar_select 0, %s9, %s7
  // Predicated region
  $region2: #{forward_pallas.27} parent=0 // pred_check
    _
  $region3: #{forward_pallas.27} parent=0 // pred_check_branch
    %12 = sbr.rel (0) target = $region5
  $region4: #{forward_pallas.27} parent=0 // pred_region
    _
  $region5: #{forward_pallas.27} parent=0 // pred_fallthru
    _
  // Predicated region
  $region6: #{forward_pallas.27} parent=0 // pred_check
    _
  $region7: #{forward_pallas.27} parent=0 // pred_check_branch
    %14 = sbr.rel (0) target = $region9
  $region8: #{forward_pallas.27} parent=0 // pred_region
    _
  $region9: #{forward_pallas.27} parent=0 // pred_fallthru
    _
  // Predicated region
  $region10: #{forward_pallas.27} parent=0 // pred_check
    _
  $region11: #{forward_pallas.27} parent=0 // pred_check_branch
    %16 = sbr.rel (0) target = $region13
  $region12: #{forward_pallas.27} parent=0 // pred_region
    _
  $region13: #{forward_pallas.27} parent=0 // pred_fallthru
    _
  // Predicated region
  $region14: #{forward_pallas.27} parent=0 // pred_check
    _
  $region15: #{forward_pallas.27} parent=0 // pred_check_branch
    %18 = sbr.rel (0) target = $region17
  $region16: #{forward_pallas.27} parent=0 // pred_region
    _
  $region17: #{forward_pallas.27} parent=0 // pred_fallthru
    _
  // Predicated region
  $region18: #{forward_pallas.27} parent=0 // pred_check
    _
  $region19: #{forward_pallas.27} parent=0 // pred_check_branch
    %20 = sbr.rel (0) target = $region21
  $region20: #{forward_pallas.27} parent=0 // pred_region
    _
  $region21: #{forward_pallas.27} parent=0 // pred_fallthru
    _
  // Predicated region
  $region22: #{forward_pallas.27} parent=0 // pred_check
    _
  $region23: #{forward_pallas.27} parent=0 // pred_check_branch
    %22 = sbr.rel (0) target = $region25
  $region24: #{forward_pallas.27} parent=0 // pred_region
    _
  $region25: #{forward_pallas.27} parent=0 // pred_fallthru
    _
  %v23 = vld [vmem:[%s0] sm:$0xff]
  %v24 = vld [vmem:[%s0 + $0x8] sm:$0xff]
  %v25 = vld [vmem:[%s2] sm:$0xff]
  %v26 = vld [vmem:[%s2 + $0x8] sm:$0xff]
  %28 = vset.pattern.permute.xlu0 0
  %29 = vperm.xlu0 %28, %v25
  %v30 = vpop.permute.xlu0 %29
  %33 = vset.pattern.permute.xlu0 0
  %34 = vperm.xlu0 %33, %v26
  %v35 = vpop.permute.xlu0 %34
  %v37 = vmul.f32 %v23, %v30
  %v38 = vmul.f32 %v24, %v35
  %v39 = vld [vmem:[%s3] sm:$0xff]
  %v40 = vld [vmem:[%s3 + $0x8] sm:$0xff]
  %42 = vset.pattern.permute.xlu0 0
  %43 = vperm.xlu0 %42, %v39
  %v44 = vpop.permute.xlu0 %43
  %47 = vset.pattern.permute.xlu0 0
  %48 = vperm.xlu0 %47, %v40
  %v49 = vpop.permute.xlu0 %48
  %v51 = vadd.f32 %v37, %v44
  %v52 = vadd.f32 %v38, %v49
  %v53 = vmax.f32 %v51, 0.0
  %v54 = vmax.f32 %v52, 0.0
  %v55 = vld [vmem:[%s1] sm:$0xff]
  %v56 = vld [vmem:[%s1 + $0x8] sm:$0xff]
  %vm57 = vcmask 130048
  %v59 = vsel %vm57, %v55, 0
  %v62 = vsel %vm57, %v56, 0
  %64 = vmatpush.msra.mxu0 0.0
  %65 = vmatpush.msra.mxu0 0.0
  %66 = vmatpush.msra.mxu0 0.0
  %67 = vmatpush.msra.mxu0 0.0
  %68 = vmatpush.msra.mxu0 0.0
  %69 = vmatpush.msra.mxu0 0.0
  %70 = vmatpush.msra.mxu0 0.0
  %71 = vmatpush.msra.mxu0 0.0
  %72 = vmatpush.msra.mxu0 0.0
  %73 = vmatpush.msra.mxu0 0.0
  %74 = vmatpush.msra.mxu0 0.0
  %75 = vmatpush.msra.mxu0 0.0
  %76 = vmatpush.msra.mxu0 0.0
  %77 = vmatpush.msra.mxu0 0.0
  %78 = vmatpush.msra.mxu0 %v54
  %79 = vmatpush.msra.mxu0 %v53
  %80 = vmatmul.f32.gmra.mxu0 %v59
  %v81 = vpop.f32.mrf.mxu0
  %v82 = vadd.f32 0.0, %v81
  %83 = vmatmul.f32.gmra.mxu0 %v62
  %v84 = vpop.f32.mrf.mxu0
  %v85 = vadd.f32 0.0, %v84
  %86 = vdwg.mxu0
  %v87 = vld [vmem:[%s4] sm:$0xff]
  %v88 = vld [vmem:[%s4 + $0x8] sm:$0xff]
  %90 = vset.pattern.permute.xlu0 0
  %91 = vperm.xlu0 %90, %v87
  %v92 = vpop.permute.xlu0 %91
  %95 = vset.pattern.permute.xlu0 0
  %96 = vperm.xlu0 %95, %v88
  %v97 = vpop.permute.xlu0 %96
  %v99 = vmul.f32 %v82, %v92
  %v100 = vmul.f32 %v85, %v97
  %v101 = vld [vmem:[%s5] sm:$0xff]
  %v102 = vld [vmem:[%s5 + $0x8] sm:$0xff]
  %104 = vset.pattern.permute.xlu0 0
  %105 = vperm.xlu0 %104, %v101
  %v106 = vpop.permute.xlu0 %105
  %109 = vset.pattern.permute.xlu0 0
  %110 = vperm.xlu0 %109, %v102
  %v111 = vpop.permute.xlu0 %110
  %v113 = vadd.f32 %v99, %v106
  %v114 = vadd.f32 %v100, %v111
  %v115 = vmax.f32 %v113, 0.0
  %v116 = vmax.f32 %v114, 0.0
  %117 = vst [vmem:[%s6] sm:$0xff] %v115
  %118 = vst [vmem:[%s6 + $0x8] sm:$0xff] %v116
  // Predicated region
  $region26: #{forward_pallas.27} parent=0 // pred_check
    _
  $region27: #{forward_pallas.27} parent=0 // pred_check_branch
    %120 = sbr.rel (0) target = $region29
  $region28: #{forward_pallas.27} parent=0 // pred_region
    _
  $region29: #{forward_pallas.27} parent=0 // pred_fallthru
    _
  // Predicated region
  $region30: #{forward_pallas.27} parent=0 // pred_check
    _
  $region31: #{forward_pallas.27} parent=0 // pred_check_branch
    %122 = sbr.rel (0) target = $region33
  $region32: #{forward_pallas.27} parent=0 // pred_region
    _
  $region33: #{forward_pallas.27} parent=0 // pred_fallthru
    _

// kernel: forward_pallas.26
$region0: #{forward_pallas.26}
  #allocation0 [shape = 'u32[]', space=smem, size = 0x4, offset = 0x4, fixed_abs, tag = 'smem constant byte address 0x4 - core index']
  #allocation1 [shape = 'u32[72,128]{1,0:T(1,128)}', space=vmem, size = 0x9000, scoped, tag = 'internal scratch']
  %s0 = inlined_call_operand.vmem [shape: f32[32,8,128], index: 0, kind: input, shape index: {}]
  %s1 = inlined_call_operand.vmem [shape: f32[32,1,1], index: 1, kind: input, shape index: {}]
  %s2 = inlined_call_operand.vmem [shape: f32[32,1,1], index: 2, kind: input, shape index: {}]
  %s3 = inlined_call_operand.vmem [shape: f32[16,32], index: 3, kind: input, shape index: {}]
  %s4 = inlined_call_operand.vmem [shape: f32[16,128], index: 4, kind: output, shape index: {}]
  %s5 = sld [smem:[#allocation0]]
  $region26: #{forward_pallas.26} parent=0
    _
  %s7 = ssub.s32 1, %s5
  %s8 = scalar_select 0, %s7, %s5
  // Predicated region
  $region2: #{forward_pallas.26} parent=0 // pred_check
    _
  $region3: #{forward_pallas.26} parent=0 // pred_check_branch
    %10 = sbr.rel (0) target = $region5
  $region4: #{forward_pallas.26} parent=0 // pred_region
    _
  $region5: #{forward_pallas.26} parent=0 // pred_fallthru
    _
  // Predicated region
  $region6: #{forward_pallas.26} parent=0 // pred_check
    _
  $region7: #{forward_pallas.26} parent=0 // pred_check_branch
    %12 = sbr.rel (0) target = $region9
  $region8: #{forward_pallas.26} parent=0 // pred_region
    _
  $region9: #{forward_pallas.26} parent=0 // pred_fallthru
    _
  // Predicated region
  $region10: #{forward_pallas.26} parent=0 // pred_check
    _
  $region11: #{forward_pallas.26} parent=0 // pred_check_branch
    %14 = sbr.rel (0) target = $region13
  $region12: #{forward_pallas.26} parent=0 // pred_region
    _
  $region13: #{forward_pallas.26} parent=0 // pred_fallthru
    _
  // Predicated region
  $region14: #{forward_pallas.26} parent=0 // pred_check
    _
  $region15: #{forward_pallas.26} parent=0 // pred_check_branch
    %16 = sbr.rel (0) target = $region17
  $region16: #{forward_pallas.26} parent=0 // pred_region
    _
  $region17: #{forward_pallas.26} parent=0 // pred_fallthru
    _
  %v17 = vld [vmem:[%s0] sm:$0xff]
  %v18 = vld [vmem:[%s0 + $0x8] sm:$0xff]
  %v19 = vld [vmem:[%s0 + $0x10] sm:$0xff]
  %v20 = vld [vmem:[%s0 + $0x18] sm:$0xff]
  %v21 = vld [vmem:[%s0 + $0x20] sm:$0xff]
  %v22 = vld [vmem:[%s0 + $0x28] sm:$0xff]
  %v23 = vld [vmem:[%s0 + $0x30] sm:$0xff]
  %v24 = vld [vmem:[%s0 + $0x38] sm:$0xff]
  %v25 = vld [vmem:[%s0 + $0x40] sm:$0xff]
  %v26 = vld [vmem:[%s0 + $0x48] sm:$0xff]
  %v27 = vld [vmem:[%s0 + $0x50] sm:$0xff]
  %v28 = vld [vmem:[%s0 + $0x58] sm:$0xff]
  %v29 = vld [vmem:[%s0 + $0x60] sm:$0xff]
  %v30 = vld [vmem:[%s0 + $0x68] sm:$0xff]
  %v31 = vld [vmem:[%s0 + $0x70] sm:$0xff]
  %v32 = vld [vmem:[%s0 + $0x78] sm:$0xff]
  %v33 = vld [vmem:[%s0 + $0x80] sm:$0xff]
  %v34 = vld [vmem:[%s0 + $0x88] sm:$0xff]
  %v35 = vld [vmem:[%s0 + $0x90] sm:$0xff]
  %v36 = vld [vmem:[%s0 + $0x98] sm:$0xff]
  %v37 = vld [vmem:[%s0 + $0xa0] sm:$0xff]
  %v38 = vld [vmem:[%s0 + $0xa8] sm:$0xff]
  %v39 = vld [vmem:[%s0 + $0xb0] sm:$0xff]
  %v40 = vld [vmem:[%s0 + $0xb8] sm:$0xff]
  %v41 = vld [vmem:[%s0 + $0xc0] sm:$0xff]
  %v42 = vld [vmem:[%s0 + $0xc8] sm:$0xff]
  %v43 = vld [vmem:[%s0 + $0xd0] sm:$0xff]
  %v44 = vld [vmem:[%s0 + $0xd8] sm:$0xff]
  %v45 = vld [vmem:[%s0 + $0xe0] sm:$0xff]
  %v46 = vld [vmem:[%s0 + $0xe8] sm:$0xff]
  %v47 = vld [vmem:[%s0 + $0xf0] sm:$0xff]
  %v48 = vld [vmem:[%s0 + $0xf8] sm:$0xff]
  %v49 = vld [vmem:[%s1] sm:$0x1]
  %v50 = vld [vmem:[%s1 + $0x1] sm:$0x1]
  %v51 = vld [vmem:[%s1 + $0x2] sm:$0x1]
  %v52 = vld [vmem:[%s1 + $0x3] sm:$0x1]
  %v53 = vld [vmem:[%s1 + $0x4] sm:$0x1]
  %v54 = vld [vmem:[%s1 + $0x5] sm:$0x1]
  %v55 = vld [vmem:[%s1 + $0x6] sm:$0x1]
  %v56 = vld [vmem:[%s1 + $0x7] sm:$0x1]
  %v57 = vld [vmem:[%s1 + $0x8] sm:$0x1]
  %v58 = vld [vmem:[%s1 + $0x9] sm:$0x1]
  %v59 = vld [vmem:[%s1 + $0xa] sm:$0x1]
  %v60 = vld [vmem:[%s1 + $0xb] sm:$0x1]
  %v61 = vld [vmem:[%s1 + $0xc] sm:$0x1]
  %v62 = vld [vmem:[%s1 + $0xd] sm:$0x1]
  %v63 = vld [vmem:[%s1 + $0xe] sm:$0x1]
  %v64 = vld [vmem:[%s1 + $0xf] sm:$0x1]
  %v65 = vld [vmem:[%s1 + $0x10] sm:$0x1]
  %v66 = vld [vmem:[%s1 + $0x11] sm:$0x1]
  %v67 = vld [vmem:[%s1 + $0x12] sm:$0x1]
  %v68 = vld [vmem:[%s1 + $0x13] sm:$0x1]
  %v69 = vld [vmem:[%s1 + $0x14] sm:$0x1]
  %v70 = vld [vmem:[%s1 + $0x15] sm:$0x1]
  %v71 = vld [vmem:[%s1 + $0x16] sm:$0x1]
  %v72 = vld [vmem:[%s1 + $0x17] sm:$0x1]
  %v73 = vld [vmem:[%s1 + $0x18] sm:$0x1]
  %v74 = vld [vmem:[%s1 + $0x19] sm:$0x1]
  %v75 = vld [vmem:[%s1 + $0x1a] sm:$0x1]
  %v76 = vld [vmem:[%s1 + $0x1b] sm:$0x1]
  %v77 = vld [vmem:[%s1 + $0x1c] sm:$0x1]
  %v78 = vld [vmem:[%s1 + $0x1d] sm:$0x1]
  %v79 = vld [vmem:[%s1 + $0x1e] sm:$0x1]
  %v80 = vld [vmem:[%s1 + $0x1f] sm:$0x1]
  %v113 = vperm.slane %v49, 0
  %v114 = vperm.slane %v50, 0
  %v115 = vperm.slane %v51, 0
  %v116 = vperm.slane %v52, 0
  %v117 = vperm.slane %v53, 0
  %v118 = vperm.slane %v54, 0
  %v119 = vperm.slane %v55, 0
  %v120 = vperm.slane %v56, 0
  %v121 = vperm.slane %v57, 0
  %v122 = vperm.slane %v58, 0
  %v123 = vperm.slane %v59, 0
  %v124 = vperm.slane %v60, 0
  %v125 = vperm.slane %v61, 0
  %v126 = vperm.slane %v62, 0
  %v127 = vperm.slane %v63, 0
  %v128 = vperm.slane %v64, 0
  %v129 = vperm.slane %v65, 0
  %v130 = vperm.slane %v66, 0
  %v131 = vperm.slane %v67, 0
  %v132 = vperm.slane %v68, 0
  %v133 = vperm.slane %v69, 0
  %v134 = vperm.slane %v70, 0
  %v135 = vperm.slane %v71, 0
  %v136 = vperm.slane %v72, 0
  %v137 = vperm.slane %v73, 0
  %v138 = vperm.slane %v74, 0
  %v139 = vperm.slane %v75, 0
  %v140 = vperm.slane %v76, 0
  %v141 = vperm.slane %v77, 0
  %v142 = vperm.slane %v78, 0
  %v143 = vperm.slane %v79, 0
  %v144 = vperm.slane %v80, 0
  %145 = vset.pattern.permute.xlu0 0
  %146 = vperm.xlu0 %145, %v113
  %v147 = vpop.permute.xlu0 %146
  %149 = vset.pattern.permute.xlu0 0
  %150 = vperm.xlu0 %149, %v114
  %v151 = vpop.permute.xlu0 %150
  %153 = vset.pattern.permute.xlu0 0
  %154 = vperm.xlu0 %153, %v115
  %v155 = vpop.permute.xlu0 %154
  %157 = vset.pattern.permute.xlu0 0
  %158 = vperm.xlu0 %157, %v116
  %v159 = vpop.permute.xlu0 %158
  %161 = vset.pattern.permute.xlu0 0
  %162 = vperm.xlu0 %161, %v117
  %v163 = vpop.permute.xlu0 %162
  %165 = vset.pattern.permute.xlu0 0
  %166 = vperm.xlu0 %165, %v118
  %v167 = vpop.permute.xlu0 %166
  %169 = vset.pattern.permute.xlu0 0
  %170 = vperm.xlu0 %169, %v119
  %v171 = vpop.permute.xlu0 %170
  %173 = vset.pattern.permute.xlu0 0
  %174 = vperm.xlu0 %173, %v120
  %v175 = vpop.permute.xlu0 %174
  %177 = vset.pattern.permute.xlu0 0
  %178 = vperm.xlu0 %177, %v121
  %v179 = vpop.permute.xlu0 %178
  %181 = vset.pattern.permute.xlu0 0
  %182 = vperm.xlu0 %181, %v122
  %v183 = vpop.permute.xlu0 %182
  %185 = vset.pattern.permute.xlu0 0
  %186 = vperm.xlu0 %185, %v123
  %v187 = vpop.permute.xlu0 %186
  %189 = vset.pattern.permute.xlu0 0
  %190 = vperm.xlu0 %189, %v124
  %v191 = vpop.permute.xlu0 %190
  %193 = vset.pattern.permute.xlu0 0
  %194 = vperm.xlu0 %193, %v125
  %v195 = vpop.permute.xlu0 %194
  %197 = vset.pattern.permute.xlu0 0
  %198 = vperm.xlu0 %197, %v126
  %v199 = vpop.permute.xlu0 %198
  %201 = vset.pattern.permute.xlu0 0
  %202 = vperm.xlu0 %201, %v127
  %v203 = vpop.permute.xlu0 %202
  %205 = vset.pattern.permute.xlu0 0
  %206 = vperm.xlu0 %205, %v128
  %v207 = vpop.permute.xlu0 %206
  %209 = vset.pattern.permute.xlu0 0
  %210 = vperm.xlu0 %209, %v129
  %v211 = vpop.permute.xlu0 %210
  %213 = vset.pattern.permute.xlu0 0
  %214 = vperm.xlu0 %213, %v130
  %v215 = vpop.permute.xlu0 %214
  %217 = vset.pattern.permute.xlu0 0
  %218 = vperm.xlu0 %217, %v131
  %v219 = vpop.permute.xlu0 %218
  %221 = vset.pattern.permute.xlu0 0
  %222 = vperm.xlu0 %221, %v132
  %v223 = vpop.permute.xlu0 %222
  %225 = vset.pattern.permute.xlu0 0
  %226 = vperm.xlu0 %225, %v133
  %v227 = vpop.permute.xlu0 %226
  %229 = vset.pattern.permute.xlu0 0
  %230 = vperm.xlu0 %229, %v134
  %v231 = vpop.permute.xlu0 %230
  %233 = vset.pattern.permute.xlu0 0
  %234 = vperm.xlu0 %233, %v135
  %v235 = vpop.permute.xlu0 %234
  %237 = vset.pattern.permute.xlu0 0
  %238 = vperm.xlu0 %237, %v136
  %v239 = vpop.permute.xlu0 %238
  %241 = vset.pattern.permute.xlu0 0
  %242 = vperm.xlu0 %241, %v137
  %v243 = vpop.permute.xlu0 %242
  %245 = vset.pattern.permute.xlu0 0
  %246 = vperm.xlu0 %245, %v138
  %v247 = vpop.permute.xlu0 %246
  %249 = vset.pattern.permute.xlu0 0
  %250 = vperm.xlu0 %249, %v139
  %v251 = vpop.permute.xlu0 %250
  %253 = vset.pattern.permute.xlu0 0
  %254 = vperm.xlu0 %253, %v140
  %v255 = vpop.permute.xlu0 %254
  %257 = vset.pattern.permute.xlu0 0
  %258 = vperm.xlu0 %257, %v141
  %v259 = vpop.permute.xlu0 %258
  %261 = vset.pattern.permute.xlu0 0
  %262 = vperm.xlu0 %261, %v142
  %v263 = vpop.permute.xlu0 %262
  %265 = vset.pattern.permute.xlu0 0
  %266 = vperm.xlu0 %265, %v143
  %v267 = vpop.permute.xlu0 %266
  %269 = vset.pattern.permute.xlu0 0
  %270 = vperm.xlu0 %269, %v144
  %v271 = vpop.permute.xlu0 %270
  %v273 = vmul.f32 %v17, %v147
  %v274 = vmul.f32 %v18, %v151
  %v275 = vmul.f32 %v19, %v155
  %v276 = vmul.f32 %v20, %v159
  %v277 = vmul.f32 %v21, %v163
  %v278 = vmul.f32 %v22, %v167
  %v279 = vmul.f32 %v23, %v171
  %v280 = vmul.f32 %v24, %v175
  %v281 = vmul.f32 %v25, %v179
  %v282 = vmul.f32 %v26, %v183
  %v283 = vmul.f32 %v27, %v187
  %v284 = vmul.f32 %v28, %v191
  %v285 = vmul.f32 %v29, %v195
  %v286 = vmul.f32 %v30, %v199
  %v287 = vmul.f32 %v31, %v203
  %v288 = vmul.f32 %v32, %v207
  %v289 = vmul.f32 %v33, %v211
  %v290 = vmul.f32 %v34, %v215
  %v291 = vmul.f32 %v35, %v219
  %v292 = vmul.f32 %v36, %v223
  %v293 = vmul.f32 %v37, %v227
  %v294 = vmul.f32 %v38, %v231
  %v295 = vmul.f32 %v39, %v235
  %v296 = vmul.f32 %v40, %v239
  %v297 = vmul.f32 %v41, %v243
  %v298 = vmul.f32 %v42, %v247
  %v299 = vmul.f32 %v43, %v251
  %v300 = vmul.f32 %v44, %v255
  %v301 = vmul.f32 %v45, %v259
  %v302 = vmul.f32 %v46, %v263
  %v303 = vmul.f32 %v47, %v267
  %v304 = vmul.f32 %v48, %v271
  %v305 = vld [vmem:[%s2] sm:$0x1]
  %v306 = vld [vmem:[%s2 + $0x1] sm:$0x1]
  %v307 = vld [vmem:[%s2 + $0x2] sm:$0x1]
  %v308 = vld [vmem:[%s2 + $0x3] sm:$0x1]
  %v309 = vld [vmem:[%s2 + $0x4] sm:$0x1]
  %v310 = vld [vmem:[%s2 + $0x5] sm:$0x1]
  %v311 = vld [vmem:[%s2 + $0x6] sm:$0x1]
  %v312 = vld [vmem:[%s2 + $0x7] sm:$0x1]
  %v313 = vld [vmem:[%s2 + $0x8] sm:$0x1]
  %v314 = vld [vmem:[%s2 + $0x9] sm:$0x1]
  %v315 = vld [vmem:[%s2 + $0xa] sm:$0x1]
  %v316 = vld [vmem:[%s2 + $0xb] sm:$0x1]
  %v317 = vld [vmem:[%s2 + $0xc] sm:$0x1]
  %v318 = vld [vmem:[%s2 + $0xd] sm:$0x1]
  %v319 = vld [vmem:[%s2 + $0xe] sm:$0x1]
  %v320 = vld [vmem:[%s2 + $0xf] sm:$0x1]
  %v321 = vld [vmem:[%s2 + $0x10] sm:$0x1]
  %v322 = vld [vmem:[%s2 + $0x11] sm:$0x1]
  %v323 = vld [vmem:[%s2 + $0x12] sm:$0x1]
  %v324 = vld [vmem:[%s2 + $0x13] sm:$0x1]
  %v325 = vld [vmem:[%s2 + $0x14] sm:$0x1]
  %v326 = vld [vmem:[%s2 + $0x15] sm:$0x1]
  %v327 = vld [vmem:[%s2 + $0x16] sm:$0x1]
  %v328 = vld [vmem:[%s2 + $0x17] sm:$0x1]
  %v329 = vld [vmem:[%s2 + $0x18] sm:$0x1]
  %v330 = vld [vmem:[%s2 + $0x19] sm:$0x1]
  %v331 = vld [vmem:[%s2 + $0x1a] sm:$0x1]
  %v332 = vld [vmem:[%s2 + $0x1b] sm:$0x1]
  %v333 = vld [vmem:[%s2 + $0x1c] sm:$0x1]
  %v334 = vld [vmem:[%s2 + $0x1d] sm:$0x1]
  %v335 = vld [vmem:[%s2 + $0x1e] sm:$0x1]
  %v336 = vld [vmem:[%s2 + $0x1f] sm:$0x1]
  %v369 = vperm.slane %v305, 0
  %v370 = vperm.slane %v306, 0
  %v371 = vperm.slane %v307, 0
  %v372 = vperm.slane %v308, 0
  %v373 = vperm.slane %v309, 0
  %v374 = vperm.slane %v310, 0
  %v375 = vperm.slane %v311, 0
  %v376 = vperm.slane %v312, 0
  %v377 = vperm.slane %v313, 0
  %v378 = vperm.slane %v314, 0
  %v379 = vperm.slane %v315, 0
  %v380 = vperm.slane %v316, 0
  %v381 = vperm.slane %v317, 0
  %v382 = vperm.slane %v318, 0
  %v383 = vperm.slane %v319, 0
  %v384 = vperm.slane %v320, 0
  %v385 = vperm.slane %v321, 0
  %v386 = vperm.slane %v322, 0
  %v387 = vperm.slane %v323, 0
  %v388 = vperm.slane %v324, 0
  %v389 = vperm.slane %v325, 0
  %v390 = vperm.slane %v326, 0
  %v391 = vperm.slane %v327, 0
  %v392 = vperm.slane %v328, 0
  %v393 = vperm.slane %v329, 0
  %v394 = vperm.slane %v330, 0
  %v395 = vperm.slane %v331, 0
  %v396 = vperm.slane %v332, 0
  %v397 = vperm.slane %v333, 0
  %v398 = vperm.slane %v334, 0
  %v399 = vperm.slane %v335, 0
  %v400 = vperm.slane %v336, 0
  %401 = vset.pattern.permute.xlu0 0
  %402 = vperm.xlu0 %401, %v369
  %v403 = vpop.permute.xlu0 %402
  %405 = vset.pattern.permute.xlu0 0
  %406 = vperm.xlu0 %405, %v370
  %v407 = vpop.permute.xlu0 %406
  %409 = vset.pattern.permute.xlu0 0
  %410 = vperm.xlu0 %409, %v371
  %v411 = vpop.permute.xlu0 %410
  %413 = vset.pattern.permute.xlu0 0
  %414 = vperm.xlu0 %413, %v372
  %v415 = vpop.permute.xlu0 %414
  %417 = vset.pattern.permute.xlu0 0
  %418 = vperm.xlu0 %417, %v373
  %v419 = vpop.permute.xlu0 %418
  %421 = vset.pattern.permute.xlu0 0
  %422 = vperm.xlu0 %421, %v374
  %v423 = vpop.permute.xlu0 %422
  %425 = vset.pattern.permute.xlu0 0
  %426 = vperm.xlu0 %425, %v375
  %v427 = vpop.permute.xlu0 %426
  %429 = vset.pattern.permute.xlu0 0
  %430 = vperm.xlu0 %429, %v376
  %v431 = vpop.permute.xlu0 %430
  %433 = vset.pattern.permute.xlu0 0
  %434 = vperm.xlu0 %433, %v377
  %v435 = vpop.permute.xlu0 %434
  %437 = vset.pattern.permute.xlu0 0
  %438 = vperm.xlu0 %437, %v378
  %v439 = vpop.permute.xlu0 %438
  %441 = vset.pattern.permute.xlu0 0
  %442 = vperm.xlu0 %441, %v379
  %v443 = vpop.permute.xlu0 %442
  %445 = vset.pattern.permute.xlu0 0
  %446 = vperm.xlu0 %445, %v380
  %v447 = vpop.permute.xlu0 %446
  %449 = vset.pattern.permute.xlu0 0
  %450 = vperm.xlu0 %449, %v381
  %v451 = vpop.permute.xlu0 %450
  %453 = vset.pattern.permute.xlu0 0
  %454 = vperm.xlu0 %453, %v382
  %v455 = vpop.permute.xlu0 %454
  %457 = vset.pattern.permute.xlu0 0
  %458 = vperm.xlu0 %457, %v383
  %v459 = vpop.permute.xlu0 %458
  %461 = vset.pattern.permute.xlu0 0
  %462 = vperm.xlu0 %461, %v384
  %v463 = vpop.permute.xlu0 %462
  %465 = vset.pattern.permute.xlu0 0
  %466 = vperm.xlu0 %465, %v385
  %v467 = vpop.permute.xlu0 %466
  %469 = vset.pattern.permute.xlu0 0
  %470 = vperm.xlu0 %469, %v386
  %v471 = vpop.permute.xlu0 %470
  %473 = vset.pattern.permute.xlu0 0
  %474 = vperm.xlu0 %473, %v387
  %v475 = vpop.permute.xlu0 %474
  %477 = vset.pattern.permute.xlu0 0
  %478 = vperm.xlu0 %477, %v388
  %v479 = vpop.permute.xlu0 %478
  %481 = vset.pattern.permute.xlu0 0
  %482 = vperm.xlu0 %481, %v389
  %v483 = vpop.permute.xlu0 %482
  %485 = vset.pattern.permute.xlu0 0
  %486 = vperm.xlu0 %485, %v390
  %v487 = vpop.permute.xlu0 %486
  %489 = vset.pattern.permute.xlu0 0
  %490 = vperm.xlu0 %489, %v391
  %v491 = vpop.permute.xlu0 %490
  %493 = vset.pattern.permute.xlu0 0
  %494 = vperm.xlu0 %493, %v392
  %v495 = vpop.permute.xlu0 %494
  %497 = vset.pattern.permute.xlu0 0
  %498 = vperm.xlu0 %497, %v393
  %v499 = vpop.permute.xlu0 %498
  %501 = vset.pattern.permute.xlu0 0
  %502 = vperm.xlu0 %501, %v394
  %v503 = vpop.permute.xlu0 %502
  %505 = vset.pattern.permute.xlu0 0
  %506 = vperm.xlu0 %505, %v395
  %v507 = vpop.permute.xlu0 %506
  %509 = vset.pattern.permute.xlu0 0
  %510 = vperm.xlu0 %509, %v396
  %v511 = vpop.permute.xlu0 %510
  %513 = vset.pattern.permute.xlu0 0
  %514 = vperm.xlu0 %513, %v397
  %v515 = vpop.permute.xlu0 %514
  %517 = vset.pattern.permute.xlu0 0
  %518 = vperm.xlu0 %517, %v398
  %v519 = vpop.permute.xlu0 %518
  %521 = vset.pattern.permute.xlu0 0
  %522 = vperm.xlu0 %521, %v399
  %v523 = vpop.permute.xlu0 %522
  %525 = vset.pattern.permute.xlu0 0
  %526 = vperm.xlu0 %525, %v400
  %v527 = vpop.permute.xlu0 %526
  %v529 = vadd.f32 %v273, %v403
  %v530 = vadd.f32 %v274, %v407
  %v531 = vadd.f32 %v275, %v411
  %v532 = vadd.f32 %v276, %v415
  %v533 = vadd.f32 %v277, %v419
  %v534 = vadd.f32 %v278, %v423
  %v535 = vadd.f32 %v279, %v427
  %v536 = vadd.f32 %v280, %v431
  %v537 = vadd.f32 %v281, %v435
  %v538 = vadd.f32 %v282, %v439
  %v539 = vadd.f32 %v283, %v443
  %v540 = vadd.f32 %v284, %v447
  %v541 = vadd.f32 %v285, %v451
  %v542 = vadd.f32 %v286, %v455
  %v543 = vadd.f32 %v287, %v459
  %v544 = vadd.f32 %v288, %v463
  %v545 = vadd.f32 %v289, %v467
  %v546 = vadd.f32 %v290, %v471
  %v547 = vadd.f32 %v291, %v475
  %v548 = vadd.f32 %v292, %v479
  %v549 = vadd.f32 %v293, %v483
  %v550 = vadd.f32 %v294, %v487
  %v551 = vadd.f32 %v295, %v491
  %v552 = vadd.f32 %v296, %v495
  %v553 = vadd.f32 %v297, %v499
  %v554 = vadd.f32 %v298, %v503
  %v555 = vadd.f32 %v299, %v507
  %v556 = vadd.f32 %v300, %v511
  %v557 = vadd.f32 %v301, %v515
  %v558 = vadd.f32 %v302, %v519
  %v559 = vadd.f32 %v303, %v523
  %v560 = vadd.f32 %v304, %v527
  %v561 = vmax.f32 %v529, 0.0
  %v562 = vmax.f32 %v530, 0.0
  %v563 = vmax.f32 %v531, 0.0
  %v564 = vmax.f32 %v532, 0.0
  %v565 = vmax.f32 %v533, 0.0
  %v566 = vmax.f32 %v534, 0.0
  %v567 = vmax.f32 %v535, 0.0
  %v568 = vmax.f32 %v536, 0.0
  %v569 = vmax.f32 %v537, 0.0
  %v570 = vmax.f32 %v538, 0.0
  %v571 = vmax.f32 %v539, 0.0
  %v572 = vmax.f32 %v540, 0.0
  %v573 = vmax.f32 %v541, 0.0
  %v574 = vmax.f32 %v542, 0.0
  %v575 = vmax.f32 %v543, 0.0
  %v576 = vmax.f32 %v544, 0.0
  %v577 = vmax.f32 %v545, 0.0
  %v578 = vmax.f32 %v546, 0.0
  %v579 = vmax.f32 %v547, 0.0
  %v580 = vmax.f32 %v548, 0.0
  %v581 = vmax.f32 %v549, 0.0
  %v582 = vmax.f32 %v550, 0.0
  %v583 = vmax.f32 %v551, 0.0
  %v584 = vmax.f32 %v552, 0.0
  %v585 = vmax.f32 %v553, 0.0
  %v586 = vmax.f32 %v554, 0.0
  %v587 = vmax.f32 %v555, 0.0
  %v588 = vmax.f32 %v556, 0.0
  %v589 = vmax.f32 %v557, 0.0
  %v590 = vmax.f32 %v558, 0.0
  %v591 = vmax.f32 %v559, 0.0
  %v592 = vmax.f32 %v560, 0.0
  %v593 = vrot.slane %v561, 4
  %v594 = vadd.f32 %v561, %v593
  %v595 = vrot.slane %v594, 2
  %v596 = vadd.f32 %v594, %v595
  %v597 = vrot.slane %v596, 1
  %v598 = vadd.f32 %v596, %v597
  %v599 = vrot.slane %v562, 4
  %v600 = vadd.f32 %v562, %v599
  %v601 = vrot.slane %v600, 2
  %v602 = vadd.f32 %v600, %v601
  %v603 = vrot.slane %v602, 1
  %v604 = vadd.f32 %v602, %v603
  %v605 = vrot.slane %v563, 4
  %v606 = vadd.f32 %v563, %v605
  %v607 = vrot.slane %v606, 2
  %v608 = vadd.f32 %v606, %v607
  %v609 = vrot.slane %v608, 1
  %v610 = vadd.f32 %v608, %v609
  %v611 = vrot.slane %v564, 4
  %v612 = vadd.f32 %v564, %v611
  %v613 = vrot.slane %v612, 2
  %v614 = vadd.f32 %v612, %v613
  %v615 = vrot.slane %v614, 1
  %v616 = vadd.f32 %v614, %v615
  %v617 = vrot.slane %v565, 4
  %v618 = vadd.f32 %v565, %v617
  %v619 = vrot.slane %v618, 2
  %v620 = vadd.f32 %v618, %v619
  %v621 = vrot.slane %v620, 1
  %v622 = vadd.f32 %v620, %v621
  %v623 = vrot.slane %v566, 4
  %v624 = vadd.f32 %v566, %v623
  %v625 = vrot.slane %v624, 2
  %v626 = vadd.f32 %v624, %v625
  %v627 = vrot.slane %v626, 1
  %v628 = vadd.f32 %v626, %v627
  %v629 = vrot.slane %v567, 4
  %v630 = vadd.f32 %v567, %v629
  %v631 = vrot.slane %v630, 2
  %v632 = vadd.f32 %v630, %v631
  %v633 = vrot.slane %v632, 1
  %v634 = vadd.f32 %v632, %v633
  %v635 = vrot.slane %v568, 4
  %v636 = vadd.f32 %v568, %v635
  %v637 = vrot.slane %v636, 2
  %v638 = vadd.f32 %v636, %v637
  %v639 = vrot.slane %v638, 1
  %v640 = vadd.f32 %v638, %v639
  %v641 = vrot.slane %v569, 4
  %v642 = vadd.f32 %v569, %v641
  %v643 = vrot.slane %v642, 2
  %v644 = vadd.f32 %v642, %v643
  %v645 = vrot.slane %v644, 1
  %v646 = vadd.f32 %v644, %v645
  %v647 = vrot.slane %v570, 4
  %v648 = vadd.f32 %v570, %v647
  %v649 = vrot.slane %v648, 2
  %v650 = vadd.f32 %v648, %v649
  %v651 = vrot.slane %v650, 1
  %v652 = vadd.f32 %v650, %v651
  %v653 = vrot.slane %v571, 4
  %v654 = vadd.f32 %v571, %v653
  %v655 = vrot.slane %v654, 2
  %v656 = vadd.f32 %v654, %v655
  %v657 = vrot.slane %v656, 1
  %v658 = vadd.f32 %v656, %v657
  %v659 = vrot.slane %v572, 4
  %v660 = vadd.f32 %v572, %v659
  %v661 = vrot.slane %v660, 2
  %v662 = vadd.f32 %v660, %v661
  %v663 = vrot.slane %v662, 1
  %v664 = vadd.f32 %v662, %v663
  %v665 = vrot.slane %v573, 4
  %v666 = vadd.f32 %v573, %v665
  %v667 = vrot.slane %v666, 2
  %v668 = vadd.f32 %v666, %v667
  %v669 = vrot.slane %v668, 1
  %v670 = vadd.f32 %v668, %v669
  %v671 = vrot.slane %v574, 4
  %v672 = vadd.f32 %v574, %v671
  %v673 = vrot.slane %v672, 2
  %v674 = vadd.f32 %v672, %v673
  %v675 = vrot.slane %v674, 1
  %v676 = vadd.f32 %v674, %v675
  %v677 = vrot.slane %v575, 4
  %v678 = vadd.f32 %v575, %v677
  %v679 = vrot.slane %v678, 2
  %v680 = vadd.f32 %v678, %v679
  %v681 = vrot.slane %v680, 1
  %v682 = vadd.f32 %v680, %v681
  %v683 = vrot.slane %v576, 4
  %v684 = vadd.f32 %v576, %v683
  %v685 = vrot.slane %v684, 2
  %v686 = vadd.f32 %v684, %v685
  %v687 = vrot.slane %v686, 1
  %v688 = vadd.f32 %v686, %v687
  %v689 = vrot.slane %v577, 4
  %v690 = vadd.f32 %v577, %v689
  %v691 = vrot.slane %v690, 2
  %v692 = vadd.f32 %v690, %v691
  %v693 = vrot.slane %v692, 1
  %v694 = vadd.f32 %v692, %v693
  %v695 = vrot.slane %v578, 4
  %v696 = vadd.f32 %v578, %v695
  %v697 = vrot.slane %v696, 2
  %v698 = vadd.f32 %v696, %v697
  %v699 = vrot.slane %v698, 1
  %v700 = vadd.f32 %v698, %v699
  %v701 = vrot.slane %v579, 4
  %v702 = vadd.f32 %v579, %v701
  %v703 = vrot.slane %v702, 2
  %v704 = vadd.f32 %v702, %v703
  %v705 = vrot.slane %v704, 1
  %v706 = vadd.f32 %v704, %v705
  %v707 = vrot.slane %v580, 4
  %v708 = vadd.f32 %v580, %v707
  %v709 = vrot.slane %v708, 2
  %v710 = vadd.f32 %v708, %v709
  %v711 = vrot.slane %v710, 1
  %v712 = vadd.f32 %v710, %v711
  %v713 = vrot.slane %v581, 4
  %v714 = vadd.f32 %v581, %v713
  %v715 = vrot.slane %v714, 2
  %v716 = vadd.f32 %v714, %v715
  %v717 = vrot.slane %v716, 1
  %v718 = vadd.f32 %v716, %v717
  %v719 = vrot.slane %v582, 4
  %v720 = vadd.f32 %v582, %v719
  %v721 = vrot.slane %v720, 2
  %v722 = vadd.f32 %v720, %v721
  %v723 = vrot.slane %v722, 1
  %v724 = vadd.f32 %v722, %v723
  %v725 = vrot.slane %v583, 4
  %v726 = vadd.f32 %v583, %v725
  %v727 = vrot.slane %v726, 2
  %v728 = vadd.f32 %v726, %v727
  %v729 = vrot.slane %v728, 1
  %v730 = vadd.f32 %v728, %v729
  %v731 = vrot.slane %v584, 4
  %v732 = vadd.f32 %v584, %v731
  %v733 = vrot.slane %v732, 2
  %v734 = vadd.f32 %v732, %v733
  %v735 = vrot.slane %v734, 1
  %v736 = vadd.f32 %v734, %v735
  %v737 = vrot.slane %v585, 4
  %v738 = vadd.f32 %v585, %v737
  %v739 = vrot.slane %v738, 2
  %v740 = vadd.f32 %v738, %v739
  %v741 = vrot.slane %v740, 1
  %v742 = vadd.f32 %v740, %v741
  %v743 = vrot.slane %v586, 4
  %v744 = vadd.f32 %v586, %v743
  %v745 = vrot.slane %v744, 2
  %v746 = vadd.f32 %v744, %v745
  %v747 = vrot.slane %v746, 1
  %v748 = vadd.f32 %v746, %v747
  %v749 = vrot.slane %v587, 4
  %v750 = vadd.f32 %v587, %v749
  %v751 = vrot.slane %v750, 2
  %v752 = vadd.f32 %v750, %v751
  %v753 = vrot.slane %v752, 1
  %v754 = vadd.f32 %v752, %v753
  %v755 = vrot.slane %v588, 4
  %v756 = vadd.f32 %v588, %v755
  %v757 = vrot.slane %v756, 2
  %v758 = vadd.f32 %v756, %v757
  %v759 = vrot.slane %v758, 1
  %v760 = vadd.f32 %v758, %v759
  %v761 = vrot.slane %v589, 4
  %v762 = vadd.f32 %v589, %v761
  %v763 = vrot.slane %v762, 2
  %v764 = vadd.f32 %v762, %v763
  %v765 = vrot.slane %v764, 1
  %v766 = vadd.f32 %v764, %v765
  %v767 = vrot.slane %v590, 4
  %v768 = vadd.f32 %v590, %v767
  %v769 = vrot.slane %v768, 2
  %v770 = vadd.f32 %v768, %v769
  %v771 = vrot.slane %v770, 1
  %v772 = vadd.f32 %v770, %v771
  %v773 = vrot.slane %v591, 4
  %v774 = vadd.f32 %v591, %v773
  %v775 = vrot.slane %v774, 2
  %v776 = vadd.f32 %v774, %v775
  %v777 = vrot.slane %v776, 1
  %v778 = vadd.f32 %v776, %v777
  %v779 = vrot.slane %v592, 4
  %v780 = vadd.f32 %v592, %v779
  %v781 = vrot.slane %v780, 2
  %v782 = vadd.f32 %v780, %v781
  %v783 = vrot.slane %v782, 1
  %v784 = vadd.f32 %v782, %v783
  %v785 = vmul.f32 %v598, 0.125
  %v786 = vmul.f32 %v604, 0.125
  %v787 = vmul.f32 %v610, 0.125
  %v788 = vmul.f32 %v616, 0.125
  %v789 = vmul.f32 %v622, 0.125
  %v790 = vmul.f32 %v628, 0.125
  %v791 = vmul.f32 %v634, 0.125
  %v792 = vmul.f32 %v640, 0.125
  %v793 = vmul.f32 %v646, 0.125
  %v794 = vmul.f32 %v652, 0.125
  %v795 = vmul.f32 %v658, 0.125
  %v796 = vmul.f32 %v664, 0.125
  %v797 = vmul.f32 %v670, 0.125
  %v798 = vmul.f32 %v676, 0.125
  %v799 = vmul.f32 %v682, 0.125
  %v800 = vmul.f32 %v688, 0.125
  %v801 = vmul.f32 %v694, 0.125
  %v802 = vmul.f32 %v700, 0.125
  %v803 = vmul.f32 %v706, 0.125
  %v804 = vmul.f32 %v712, 0.125
  %v805 = vmul.f32 %v718, 0.125
  %v806 = vmul.f32 %v724, 0.125
  %v807 = vmul.f32 %v730, 0.125
  %v808 = vmul.f32 %v736, 0.125
  %v809 = vmul.f32 %v742, 0.125
  %v810 = vmul.f32 %v748, 0.125
  %v811 = vmul.f32 %v754, 0.125
  %v812 = vmul.f32 %v760, 0.125
  %v813 = vmul.f32 %v766, 0.125
  %v814 = vmul.f32 %v772, 0.125
  %v815 = vmul.f32 %v778, 0.125
  %v816 = vmul.f32 %v784, 0.125
  %v817 = vld [vmem:[%s3] sm:$0xff]
  %v818 = vld [vmem:[%s3 + $0x8] sm:$0xff]
  %vm851 = vcmask 1041409
  %v852 = vsel %vm851, %v786, %v785
  %vm853 = vcmask 1042434
  %v854 = vsel %vm853, %v787, %v852
  %vm855 = vcmask 1043459
  %v856 = vsel %vm855, %v788, %v854
  %vm857 = vcmask 1044484
  %v858 = vsel %vm857, %v789, %v856
  %vm859 = vcmask 1045509
  %v860 = vsel %vm859, %v790, %v858
  %vm861 = vcmask 1046534
  %v862 = vsel %vm861, %v791, %v860
  %vm863 = vcmask 1047559
  %v864 = vsel %vm863, %v792, %v862
  %v865 = vsel %vm851, %v794, %v793
  %v866 = vsel %vm853, %v795, %v865
  %v867 = vsel %vm855, %v796, %v866
  %v868 = vsel %vm857, %v797, %v867
  %v869 = vsel %vm859, %v798, %v868
  %v870 = vsel %vm861, %v799, %v869
  %v871 = vsel %vm863, %v800, %v870
  %v872 = vsel %vm851, %v802, %v801
  %v873 = vsel %vm853, %v803, %v872
  %v874 = vsel %vm855, %v804, %v873
  %v875 = vsel %vm857, %v805, %v874
  %v876 = vsel %vm859, %v806, %v875
  %v877 = vsel %vm861, %v807, %v876
  %v878 = vsel %vm863, %v808, %v877
  %v879 = vsel %vm851, %v810, %v809
  %v880 = vsel %vm853, %v811, %v879
  %v881 = vsel %vm855, %v812, %v880
  %v882 = vsel %vm857, %v813, %v881
  %v883 = vsel %vm859, %v814, %v882
  %v884 = vsel %vm861, %v815, %v883
  %v885 = vsel %vm863, %v816, %v884
  %vm890 = vcmask 261120
  %v892 = vsel %vm890, %v817, 0
  %v895 = vsel %vm890, %v818, 0
  %897 = vmatpush.msra.mxu0 0.0
  %898 = vmatpush.msra.mxu0 0.0
  %899 = vmatpush.msra.mxu0 0.0
  %900 = vmatpush.msra.mxu0 0.0
  %901 = vmatpush.msra.mxu0 0.0
  %902 = vmatpush.msra.mxu0 0.0
  %903 = vmatpush.msra.mxu0 0.0
  %904 = vmatpush.msra.mxu0 0.0
  %905 = vmatpush.msra.mxu0 0.0
  %906 = vmatpush.msra.mxu0 0.0
  %907 = vmatpush.msra.mxu0 0.0
  %908 = vmatpush.msra.mxu0 0.0
  %909 = vmatpush.msra.mxu0 %v885
  %910 = vmatpush.msra.mxu0 %v878
  %911 = vmatpush.msra.mxu0 %v871
  %912 = vmatpush.msra.mxu0 %v864
  %913 = vmatmul.f32.gmra.mxu0 %v892
  %v914 = vpop.f32.mrf.mxu0
  %v915 = vadd.f32 0.0, %v914
  %916 = vmatmul.f32.gmra.mxu0 %v895
  %v917 = vpop.f32.mrf.mxu0
  %v918 = vadd.f32 0.0, %v917
  %919 = vdwg.mxu0
  %920 = vst [vmem:[%s4] sm:$0xff] %v915
  %921 = vst [vmem:[%s4 + $0x8] sm:$0xff] %v918
  // Predicated region
  $region18: #{forward_pallas.26} parent=0 // pred_check
    _
  $region19: #{forward_pallas.26} parent=0 // pred_check_branch
    %923 = sbr.rel (0) target = $region21
  $region20: #{forward_pallas.26} parent=0 // pred_region
    _
  $region21: #{forward_pallas.26} parent=0 // pred_fallthru
    _
  // Predicated region
  $region22: #{forward_pallas.26} parent=0 // pred_check
    _
  $region23: #{forward_pallas.26} parent=0 // pred_check_branch
    %925 = sbr.rel (0) target = $region25
  $region24: #{forward_pallas.26} parent=0 // pred_region
    _
  $region25: #{forward_pallas.26} parent=0 // pred_fallthru
    _

// kernel: forward_pallas.28
$region0: #{forward_pallas.28}
  #allocation0 [shape = 'u32[]', space=smem, size = 0x4, offset = 0x4, fixed_abs, tag = 'smem constant byte address 0x4 - core index']
  #allocation1 [shape = 'u32[72,128]{1,0:T(1,128)}', space=vmem, size = 0x9000, scoped, tag = 'internal scratch']
  %s0 = inlined_call_operand.vmem [shape: f32[432,128], index: 0, kind: input, shape index: {}]
  %s1 = inlined_call_operand.vmem [shape: f32[8,432], index: 1, kind: input, shape index: {}]
  %s2 = inlined_call_operand.vmem [shape: f32[8,128], index: 2, kind: output, shape index: {}]
  %s3 = sld [smem:[#allocation0]]
  $region18: #{forward_pallas.28} parent=0
    _
  %s5 = ssub.s32 1, %s3
  %s6 = scalar_select 0, %s5, %s3
  // Predicated region
  $region2: #{forward_pallas.28} parent=0 // pred_check
    _
  $region3: #{forward_pallas.28} parent=0 // pred_check_branch
    %8 = sbr.rel (0) target = $region5
  $region4: #{forward_pallas.28} parent=0 // pred_region
    _
  $region5: #{forward_pallas.28} parent=0 // pred_fallthru
    _
  // Predicated region
  $region6: #{forward_pallas.28} parent=0 // pred_check
    _
  $region7: #{forward_pallas.28} parent=0 // pred_check_branch
    %10 = sbr.rel (0) target = $region9
  $region8: #{forward_pallas.28} parent=0 // pred_region
    _
  $region9: #{forward_pallas.28} parent=0 // pred_fallthru
    _
  %v11 = vld [vmem:[%s0] sm:$0xff]
  %v12 = vld [vmem:[%s0 + $0x8] sm:$0xff]
  %v13 = vld [vmem:[%s0 + $0x10] sm:$0xff]
  %v14 = vld [vmem:[%s0 + $0x18] sm:$0xff]
  %v15 = vld [vmem:[%s0 + $0x20] sm:$0xff]
  %v16 = vld [vmem:[%s0 + $0x28] sm:$0xff]
  %v17 = vld [vmem:[%s0 + $0x30] sm:$0xff]
  %v18 = vld [vmem:[%s0 + $0x38] sm:$0xff]
  %v19 = vld [vmem:[%s0 + $0x40] sm:$0xff]
  %v20 = vld [vmem:[%s0 + $0x48] sm:$0xff]
  %v21 = vld [vmem:[%s0 + $0x50] sm:$0xff]
  %v22 = vld [vmem:[%s0 + $0x58] sm:$0xff]
  %v23 = vld [vmem:[%s0 + $0x60] sm:$0xff]
  %v24 = vld [vmem:[%s0 + $0x68] sm:$0xff]
  %v25 = vld [vmem:[%s0 + $0x70] sm:$0xff]
  %v26 = vld [vmem:[%s0 + $0x78] sm:$0xff]
  %v27 = vld [vmem:[%s0 + $0x80] sm:$0xff]
  %v28 = vld [vmem:[%s0 + $0x88] sm:$0xff]
  %v29 = vld [vmem:[%s0 + $0x90] sm:$0xff]
  %v30 = vld [vmem:[%s0 + $0x98] sm:$0xff]
  %v31 = vld [vmem:[%s0 + $0xa0] sm:$0xff]
  %v32 = vld [vmem:[%s0 + $0xa8] sm:$0xff]
  %v33 = vld [vmem:[%s0 + $0xb0] sm:$0xff]
  %v34 = vld [vmem:[%s0 + $0xb8] sm:$0xff]
  %v35 = vld [vmem:[%s0 + $0xc0] sm:$0xff]
  %v36 = vld [vmem:[%s0 + $0xc8] sm:$0xff]
  %v37 = vld [vmem:[%s0 + $0xd0] sm:$0xff]
  %v38 = vld [vmem:[%s0 + $0xd8] sm:$0xff]
  %v39 = vld [vmem:[%s0 + $0xe0] sm:$0xff]
  %v40 = vld [vmem:[%s0 + $0xe8] sm:$0xff]
  %v41 = vld [vmem:[%s0 + $0xf0] sm:$0xff]
  %v42 = vld [vmem:[%s0 + $0xf8] sm:$0xff]
  %v43 = vld [vmem:[%s0 + $0x100] sm:$0xff]
  %v44 = vld [vmem:[%s0 + $0x108] sm:$0xff]
  %v45 = vld [vmem:[%s0 + $0x110] sm:$0xff]
  %v46 = vld [vmem:[%s0 + $0x118] sm:$0xff]
  %v47 = vld [vmem:[%s0 + $0x120] sm:$0xff]
  %v48 = vld [vmem:[%s0 + $0x128] sm:$0xff]
  %v49 = vld [vmem:[%s0 + $0x130] sm:$0xff]
  %v50 = vld [vmem:[%s0 + $0x138] sm:$0xff]
  %v51 = vld [vmem:[%s0 + $0x140] sm:$0xff]
  %v52 = vld [vmem:[%s0 + $0x148] sm:$0xff]
  %v53 = vld [vmem:[%s0 + $0x150] sm:$0xff]
  %v54 = vld [vmem:[%s0 + $0x158] sm:$0xff]
  %v55 = vld [vmem:[%s0 + $0x160] sm:$0xff]
  %v56 = vld [vmem:[%s0 + $0x168] sm:$0xff]
  %v57 = vld [vmem:[%s0 + $0x170] sm:$0xff]
  %v58 = vld [vmem:[%s0 + $0x178] sm:$0xff]
  %v59 = vld [vmem:[%s0 + $0x180] sm:$0xff]
  %v60 = vld [vmem:[%s0 + $0x188] sm:$0xff]
  %v61 = vld [vmem:[%s0 + $0x190] sm:$0xff]
  %v62 = vld [vmem:[%s0 + $0x198] sm:$0xff]
  %v63 = vld [vmem:[%s0 + $0x1a0] sm:$0xff]
  %v64 = vld [vmem:[%s0 + $0x1a8] sm:$0xff]
  %v65 = vld [vmem:[%s1] sm:$0xff]
  %v66 = vld [vmem:[%s1 + $0x8] sm:$0xff]
  %v67 = vld [vmem:[%s1 + $0x10] sm:$0xff]
  %v68 = vld [vmem:[%s1 + $0x18] sm:$0xff]
  %vm69 = vcmask 392192
  %v71 = vsel %vm69, %v68, 0
  %73 = vmatpush.msra.mxu0 %v26
  %74 = vmatpush.msra.mxu0 %v25
  %75 = vmatpush.msra.mxu0 %v24
  %76 = vmatpush.msra.mxu0 %v23
  %77 = vmatpush.msra.mxu0 %v22
  %78 = vmatpush.msra.mxu0 %v21
  %79 = vmatpush.msra.mxu0 %v20
  %80 = vmatpush.msra.mxu0 %v19
  %81 = vmatpush.msra.mxu0 %v18
  %82 = vmatpush.msra.mxu0 %v17
  %83 = vmatpush.msra.mxu0 %v16
  %84 = vmatpush.msra.mxu0 %v15
  %85 = vmatpush.msra.mxu0 %v14
  %86 = vmatpush.msra.mxu0 %v13
  %87 = vmatpush.msra.mxu0 %v12
  %88 = vmatpush.msra.mxu0 %v11
  %89 = vmatmul.f32.gmra.mxu0 %v65
  %v90 = vpop.f32.mrf.mxu0
  %v91 = vadd.f32 0.0, %v90
  %92 = vdwg.mxu0
  %93 = vmatpush.msra.mxu0 %v42
  %94 = vmatpush.msra.mxu0 %v41
  %95 = vmatpush.msra.mxu0 %v40
  %96 = vmatpush.msra.mxu0 %v39
  %97 = vmatpush.msra.mxu0 %v38
  %98 = vmatpush.msra.mxu0 %v37
  %99 = vmatpush.msra.mxu0 %v36
  %100 = vmatpush.msra.mxu0 %v35
  %101 = vmatpush.msra.mxu0 %v34
  %102 = vmatpush.msra.mxu0 %v33
  %103 = vmatpush.msra.mxu0 %v32
  %104 = vmatpush.msra.mxu0 %v31
  %105 = vmatpush.msra.mxu0 %v30
  %106 = vmatpush.msra.mxu0 %v29
  %107 = vmatpush.msra.mxu0 %v28
  %108 = vmatpush.msra.mxu0 %v27
  %109 = vmatmul.f32.gmra.mxu0 %v66
  %v110 = vpop.f32.mrf.mxu0
  %v111 = vadd.f32 %v91, %v110
  %112 = vdwg.mxu0
  %113 = vmatpush.msra.mxu0 %v58
  %114 = vmatpush.msra.mxu0 %v57
  %115 = vmatpush.msra.mxu0 %v56
  %116 = vmatpush.msra.mxu0 %v55
  %117 = vmatpush.msra.mxu0 %v54
  %118 = vmatpush.msra.mxu0 %v53
  %119 = vmatpush.msra.mxu0 %v52
  %120 = vmatpush.msra.mxu0 %v51
  %121 = vmatpush.msra.mxu0 %v50
  %122 = vmatpush.msra.mxu0 %v49
  %123 = vmatpush.msra.mxu0 %v48
  %124 = vmatpush.msra.mxu0 %v47
  %125 = vmatpush.msra.mxu0 %v46
  %126 = vmatpush.msra.mxu0 %v45
  %127 = vmatpush.msra.mxu0 %v44
  %128 = vmatpush.msra.mxu0 %v43
  %129 = vmatmul.f32.gmra.mxu0 %v67
  %v130 = vpop.f32.mrf.mxu0
  %v131 = vadd.f32 %v111, %v130
  %132 = vdwg.mxu0
  %133 = vmatpush.msra.mxu0 0.0
  %134 = vmatpush.msra.mxu0 0.0
  %135 = vmatpush.msra.mxu0 0.0
  %136 = vmatpush.msra.mxu0 0.0
  %137 = vmatpush.msra.mxu0 0.0
  %138 = vmatpush.msra.mxu0 0.0
  %139 = vmatpush.msra.mxu0 0.0
  %140 = vmatpush.msra.mxu0 0.0
  %141 = vmatpush.msra.mxu0 0.0
  %142 = vmatpush.msra.mxu0 0.0
  %143 = vmatpush.msra.mxu0 %v64
  %144 = vmatpush.msra.mxu0 %v63
  %145 = vmatpush.msra.mxu0 %v62
  %146 = vmatpush.msra.mxu0 %v61
  %147 = vmatpush.msra.mxu0 %v60
  %148 = vmatpush.msra.mxu0 %v59
  %149 = vmatmul.f32.gmra.mxu0 %v71
  %v150 = vpop.f32.mrf.mxu0
  %v151 = vadd.f32 %v131, %v150
  %152 = vdwg.mxu0
  %153 = vst [vmem:[%s2] sm:$0xff] %v151
  // Predicated region
  $region10: #{forward_pallas.28} parent=0 // pred_check
    _
  $region11: #{forward_pallas.28} parent=0 // pred_check_branch
    %155 = sbr.rel (0) target = $region13
  $region12: #{forward_pallas.28} parent=0 // pred_region
    _
  $region13: #{forward_pallas.28} parent=0 // pred_fallthru
    _
  // Predicated region
  $region14: #{forward_pallas.28} parent=0 // pred_check
    _
  $region15: #{forward_pallas.28} parent=0 // pred_check_branch
    %157 = sbr.rel (0) target = $region17
  $region16: #{forward_pallas.28} parent=0 // pred_region
    _
  $region17: #{forward_pallas.28} parent=0 // pred_fallthru
    _

// kernel: forward_pallas.29
$region0: #{forward_pallas.29}
  #allocation0 [shape = 'u32[]', space=smem, size = 0x4, offset = 0x4, fixed_abs, tag = 'smem constant byte address 0x4 - core index']
  #allocation1 [shape = 'u32[72,128]{1,0:T(1,128)}', space=vmem, size = 0x9000, scoped, tag = 'internal scratch']
  %s0 = inlined_call_operand.vmem [shape: f32[24,128], index: 0, kind: input, shape index: {}]
  %s1 = inlined_call_operand.vmem [shape: f32[16,24], index: 1, kind: input, shape index: {}]
  %s2 = inlined_call_operand.vmem [shape: f32[24,1], index: 2, kind: input, shape index: {}]
  %s3 = inlined_call_operand.vmem [shape: f32[24,1], index: 3, kind: input, shape index: {}]
  %s4 = inlined_call_operand.vmem [shape: f32[16,1], index: 4, kind: input, shape index: {}]
  %s5 = inlined_call_operand.vmem [shape: f32[16,1], index: 5, kind: input, shape index: {}]
  %s6 = inlined_call_operand.vmem [shape: f32[16,128], index: 6, kind: output, shape index: {}]
  %s7 = sld [smem:[#allocation0]]
  $region34: #{forward_pallas.29} parent=0
    _
  %s9 = ssub.s32 1, %s7
  %s10 = scalar_select 0, %s9, %s7
  // Predicated region
  $region2: #{forward_pallas.29} parent=0 // pred_check
    _
  $region3: #{forward_pallas.29} parent=0 // pred_check_branch
    %12 = sbr.rel (0) target = $region5
  $region4: #{forward_pallas.29} parent=0 // pred_region
    _
  $region5: #{forward_pallas.29} parent=0 // pred_fallthru
    _
  // Predicated region
  $region6: #{forward_pallas.29} parent=0 // pred_check
    _
  $region7: #{forward_pallas.29} parent=0 // pred_check_branch
    %14 = sbr.rel (0) target = $region9
  $region8: #{forward_pallas.29} parent=0 // pred_region
    _
  $region9: #{forward_pallas.29} parent=0 // pred_fallthru
    _
  // Predicated region
  $region10: #{forward_pallas.29} parent=0 // pred_check
    _
  $region11: #{forward_pallas.29} parent=0 // pred_check_branch
    %16 = sbr.rel (0) target = $region13
  $region12: #{forward_pallas.29} parent=0 // pred_region
    _
  $region13: #{forward_pallas.29} parent=0 // pred_fallthru
    _
  // Predicated region
  $region14: #{forward_pallas.29} parent=0 // pred_check
    _
  $region15: #{forward_pallas.29} parent=0 // pred_check_branch
    %18 = sbr.rel (0) target = $region17
  $region16: #{forward_pallas.29} parent=0 // pred_region
    _
  $region17: #{forward_pallas.29} parent=0 // pred_fallthru
    _
  // Predicated region
  $region18: #{forward_pallas.29} parent=0 // pred_check
    _
  $region19: #{forward_pallas.29} parent=0 // pred_check_branch
    %20 = sbr.rel (0) target = $region21
  $region20: #{forward_pallas.29} parent=0 // pred_region
    _
  $region21: #{forward_pallas.29} parent=0 // pred_fallthru
    _
  // Predicated region
  $region22: #{forward_pallas.29} parent=0 // pred_check
    _
  $region23: #{forward_pallas.29} parent=0 // pred_check_branch
    %22 = sbr.rel (0) target = $region25
  $region24: #{forward_pallas.29} parent=0 // pred_region
    _
  $region25: #{forward_pallas.29} parent=0 // pred_fallthru
    _
  %v23 = vld [vmem:[%s0] sm:$0xff]
  %v24 = vld [vmem:[%s0 + $0x8] sm:$0xff]
  %v25 = vld [vmem:[%s0 + $0x10] sm:$0xff]
  %v26 = vld [vmem:[%s2] sm:$0xff]
  %v27 = vld [vmem:[%s2 + $0x8] sm:$0xff]
  %v28 = vld [vmem:[%s2 + $0x10] sm:$0xff]
  %30 = vset.pattern.permute.xlu0 0
  %31 = vperm.xlu0 %30, %v26
  %v32 = vpop.permute.xlu0 %31
  %35 = vset.pattern.permute.xlu0 0
  %36 = vperm.xlu0 %35, %v27
  %v37 = vpop.permute.xlu0 %36
  %40 = vset.pattern.permute.xlu0 0
  %41 = vperm.xlu0 %40, %v28
  %v42 = vpop.permute.xlu0 %41
  %v44 = vmul.f32 %v23, %v32
  %v45 = vmul.f32 %v24, %v37
  %v46 = vmul.f32 %v25, %v42
  %v47 = vld [vmem:[%s3] sm:$0xff]
  %v48 = vld [vmem:[%s3 + $0x8] sm:$0xff]
  %v49 = vld [vmem:[%s3 + $0x10] sm:$0xff]
  %51 = vset.pattern.permute.xlu0 0
  %52 = vperm.xlu0 %51, %v47
  %v53 = vpop.permute.xlu0 %52
  %56 = vset.pattern.permute.xlu0 0
  %57 = vperm.xlu0 %56, %v48
  %v58 = vpop.permute.xlu0 %57
  %61 = vset.pattern.permute.xlu0 0
  %62 = vperm.xlu0 %61, %v49
  %v63 = vpop.permute.xlu0 %62
  %v65 = vadd.f32 %v44, %v53
  %v66 = vadd.f32 %v45, %v58
  %v67 = vadd.f32 %v46, %v63
  %v68 = vmax.f32 %v65, 0.0
  %v69 = vmax.f32 %v66, 0.0
  %v70 = vmax.f32 %v67, 0.0
  %v71 = vld [vmem:[%s1] sm:$0xff]
  %v72 = vld [vmem:[%s1 + $0x8] sm:$0xff]
  %vm73 = vcmask 195584
  %v75 = vsel %vm73, %v71, 0
  %v78 = vsel %vm73, %v72, 0
  %80 = vmatpush.msra.mxu0 0.0
  %81 = vmatpush.msra.mxu0 0.0
  %82 = vmatpush.msra.mxu0 0.0
  %83 = vmatpush.msra.mxu0 0.0
  %84 = vmatpush.msra.mxu0 0.0
  %85 = vmatpush.msra.mxu0 0.0
  %86 = vmatpush.msra.mxu0 0.0
  %87 = vmatpush.msra.mxu0 0.0
  %88 = vmatpush.msra.mxu0 0.0
  %89 = vmatpush.msra.mxu0 0.0
  %90 = vmatpush.msra.mxu0 0.0
  %91 = vmatpush.msra.mxu0 0.0
  %92 = vmatpush.msra.mxu0 0.0
  %93 = vmatpush.msra.mxu0 %v70
  %94 = vmatpush.msra.mxu0 %v69
  %95 = vmatpush.msra.mxu0 %v68
  %96 = vmatmul.f32.gmra.mxu0 %v75
  %v97 = vpop.f32.mrf.mxu0
  %v98 = vadd.f32 0.0, %v97
  %99 = vmatmul.f32.gmra.mxu0 %v78
  %v100 = vpop.f32.mrf.mxu0
  %v101 = vadd.f32 0.0, %v100
  %102 = vdwg.mxu0
  %v103 = vld [vmem:[%s4] sm:$0xff]
  %v104 = vld [vmem:[%s4 + $0x8] sm:$0xff]
  %106 = vset.pattern.permute.xlu0 0
  %107 = vperm.xlu0 %106, %v103
  %v108 = vpop.permute.xlu0 %107
  %111 = vset.pattern.permute.xlu0 0
  %112 = vperm.xlu0 %111, %v104
  %v113 = vpop.permute.xlu0 %112
  %v115 = vmul.f32 %v98, %v108
  %v116 = vmul.f32 %v101, %v113
  %v117 = vld [vmem:[%s5] sm:$0xff]
  %v118 = vld [vmem:[%s5 + $0x8] sm:$0xff]
  %120 = vset.pattern.permute.xlu0 0
  %121 = vperm.xlu0 %120, %v117
  %v122 = vpop.permute.xlu0 %121
  %125 = vset.pattern.permute.xlu0 0
  %126 = vperm.xlu0 %125, %v118
  %v127 = vpop.permute.xlu0 %126
  %v129 = vadd.f32 %v115, %v122
  %v130 = vadd.f32 %v116, %v127
  %v131 = vmax.f32 %v129, 0.0
  %v132 = vmax.f32 %v130, 0.0
  %133 = vst [vmem:[%s6] sm:$0xff] %v131
  %134 = vst [vmem:[%s6 + $0x8] sm:$0xff] %v132
  // Predicated region
  $region26: #{forward_pallas.29} parent=0 // pred_check
    _
  $region27: #{forward_pallas.29} parent=0 // pred_check_branch
    %136 = sbr.rel (0) target = $region29
  $region28: #{forward_pallas.29} parent=0 // pred_region
    _
  $region29: #{forward_pallas.29} parent=0 // pred_fallthru
    _
  // Predicated region
  $region30: #{forward_pallas.29} parent=0 // pred_check
    _
  $region31: #{forward_pallas.29} parent=0 // pred_check_branch
    %138 = sbr.rel (0) target = $region33
  $region32: #{forward_pallas.29} parent=0 // pred_region
    _
  $region33: #{forward_pallas.29} parent=0 // pred_fallthru
    _

// kernel: forward_pallas.41
$region0: #{forward_pallas.41}
  #allocation0 [shape = 'u32[]', space=smem, size = 0x4, offset = 0x4, fixed_abs, tag = 'smem constant byte address 0x4 - core index']
  #allocation1 [shape = 'u32[72,128]{1,0:T(1,128)}', space=vmem, size = 0x9000, scoped, tag = 'internal scratch']
  #allocation2 [shape = 'f32[32,2]{1,0:T(8,128)}', space=vmem, size = 0x4000, scoped, tag = 'scratch operand']
  #allocation3 [shape = 'f32[1,1]{1,0:T(1,128)S(1)}', space=vmem, size = 0x200, scoped, tag = 'scoped memory for forward_pallas.41']
  %s0 = inlined_call_operand.vmem [shape: f32[32,2,128], index: 0, kind: input, shape index: {}]
  %s1 = inlined_call_operand.vmem [shape: f32[32,1,1], index: 1, kind: input, shape index: {}]
  %s2 = inlined_call_operand.vmem [shape: f32[32,1,1], index: 2, kind: input, shape index: {}]
  %s3 = inlined_call_operand.vmem [shape: f32[1,32], index: 3, kind: input, shape index: {}]
  %s4 = inlined_call_operand.<no memory space> [shape: f32[1,1], index: 4, kind: input, shape index: {}]
  %s5 = inlined_call_operand.hbm [shape: f32[1,2], index: 5, kind: output, shape index: {}]
  %s6 = sld [smem:[#allocation0]]
  $region38: #{forward_pallas.41} parent=0
    _
  %s8 = ssub.s32 1, %s6
  %s9 = scalar_select 0, %s8, %s6
  %v10 = vstv %s4
  %11 = vst [vmem:[#allocation3] sm:$0x1] %v10
  $region1: #{forward_pallas.41} parent=0
    #allocation4 [shape = 'u8[512]{0}', space=vmem, size = 0x400, scoped, tag = 'output window, operand 0, single buffered']
    #allocation5 [shape = 's32[1]{0}', space=sflag, size = 0x4, scoped, tag = 'scoped memory for forward_pallas.41']
    %12 = vsyncpa [#allocation5], 0
    // Predicated region
    $region2: #{forward_pallas.41} parent=1 // pred_check
      _
    $region3: #{forward_pallas.41} parent=1 // pred_check_branch
      %14 = sbr.rel (0) target = $region5
    $region4: #{forward_pallas.41} parent=1 // pred_region
      _
    $region5: #{forward_pallas.41} parent=1 // pred_fallthru
      _
    // Predicated region
    $region6: #{forward_pallas.41} parent=1 // pred_check
      _
    $region7: #{forward_pallas.41} parent=1 // pred_check_branch
      %16 = sbr.rel (0) target = $region9
    $region8: #{forward_pallas.41} parent=1 // pred_region
      _
    $region9: #{forward_pallas.41} parent=1 // pred_fallthru
      _
    // Predicated region
    $region10: #{forward_pallas.41} parent=1 // pred_check
      _
    $region11: #{forward_pallas.41} parent=1 // pred_check_branch
      %18 = sbr.rel (0) target = $region13
    $region12: #{forward_pallas.41} parent=1 // pred_region
      _
    $region13: #{forward_pallas.41} parent=1 // pred_fallthru
      _
    // Predicated region
    $region14: #{forward_pallas.41} parent=1 // pred_check
      _
    $region15: #{forward_pallas.41} parent=1 // pred_check_branch
      %20 = sbr.rel (0) target = $region17
    $region16: #{forward_pallas.41} parent=1 // pred_region
      _
    $region17: #{forward_pallas.41} parent=1 // pred_fallthru
      _
    // Predicated region
    $region18: #{forward_pallas.41} parent=1 // pred_check
      _
    $region19: #{forward_pallas.41} parent=1 // pred_check_branch
      %22 = sbr.rel (0) target = $region21
    $region20: #{forward_pallas.41} parent=1 // pred_region
      _
    $region21: #{forward_pallas.41} parent=1 // pred_fallthru
      _
    %p23 = scmp.eq.s32.totalorder 0, 0
    // Predicated region
    $region22: #{forward_pallas.41} parent=1 // pred_check
      %p24 = pneg %p23
    $region23: #{forward_pallas.41} parent=1 // pred_check_branch
      %26 = sbr.rel (%p24) target = $region25
    $region24: #{forward_pallas.41} parent=1 // pred_region
      %vm27 = vcmask 15360
      %28 = vst.msk [vmem:[#allocation2] sm:$0xff] %vm27, 0.0
      %29 = vst.msk [vmem:[#allocation2 + $0x8] sm:$0xff] %vm27, 0.0
      %30 = vst.msk [vmem:[#allocation2 + $0x10] sm:$0xff] %vm27, 0.0
      %31 = vst.msk [vmem:[#allocation2 + $0x18] sm:$0xff] %vm27, 0.0
    $region25: #{forward_pallas.41} parent=1 // pred_fallthru
      _
    %v32 = vld [vmem:[%s0] sm:$0x3]
    %v33 = vld [vmem:[%s0 + $0x2] sm:$0x3]
    %v34 = vld [vmem:[%s0 + $0x4] sm:$0x3]
    %v35 = vld [vmem:[%s0 + $0x6] sm:$0x3]
    %v36 = vld [vmem:[%s0 + $0x8] sm:$0x3]
    %v37 = vld [vmem:[%s0 + $0xa] sm:$0x3]
    %v38 = vld [vmem:[%s0 + $0xc] sm:$0x3]
    %v39 = vld [vmem:[%s0 + $0xe] sm:$0x3]
    %v40 = vld [vmem:[%s0 + $0x10] sm:$0x3]
    %v41 = vld [vmem:[%s0 + $0x12] sm:$0x3]
    %v42 = vld [vmem:[%s0 + $0x14] sm:$0x3]
    %v43 = vld [vmem:[%s0 + $0x16] sm:$0x3]
    %v44 = vld [vmem:[%s0 + $0x18] sm:$0x3]
    %v45 = vld [vmem:[%s0 + $0x1a] sm:$0x3]
    %v46 = vld [vmem:[%s0 + $0x1c] sm:$0x3]
    %v47 = vld [vmem:[%s0 + $0x1e] sm:$0x3]
    %v48 = vld [vmem:[%s0 + $0x20] sm:$0x3]
    %v49 = vld [vmem:[%s0 + $0x22] sm:$0x3]
    %v50 = vld [vmem:[%s0 + $0x24] sm:$0x3]
    %v51 = vld [vmem:[%s0 + $0x26] sm:$0x3]
    %v52 = vld [vmem:[%s0 + $0x28] sm:$0x3]
    %v53 = vld [vmem:[%s0 + $0x2a] sm:$0x3]
    %v54 = vld [vmem:[%s0 + $0x2c] sm:$0x3]
    %v55 = vld [vmem:[%s0 + $0x2e] sm:$0x3]
    %v56 = vld [vmem:[%s0 + $0x30] sm:$0x3]
    %v57 = vld [vmem:[%s0 + $0x32] sm:$0x3]
    %v58 = vld [vmem:[%s0 + $0x34] sm:$0x3]
    %v59 = vld [vmem:[%s0 + $0x36] sm:$0x3]
    %v60 = vld [vmem:[%s0 + $0x38] sm:$0x3]
    %v61 = vld [vmem:[%s0 + $0x3a] sm:$0x3]
    %v62 = vld [vmem:[%s0 + $0x3c] sm:$0x3]
    %v63 = vld [vmem:[%s0 + $0x3e] sm:$0x3]
    %v64 = vld [vmem:[%s1] sm:$0x1]
    %v65 = vld [vmem:[%s1 + $0x1] sm:$0x1]
    %v66 = vld [vmem:[%s1 + $0x2] sm:$0x1]
    %v67 = vld [vmem:[%s1 + $0x3] sm:$0x1]
    %v68 = vld [vmem:[%s1 + $0x4] sm:$0x1]
    %v69 = vld [vmem:[%s1 + $0x5] sm:$0x1]
    %v70 = vld [vmem:[%s1 + $0x6] sm:$0x1]
    %v71 = vld [vmem:[%s1 + $0x7] sm:$0x1]
    %v72 = vld [vmem:[%s1 + $0x8] sm:$0x1]
    %v73 = vld [vmem:[%s1 + $0x9] sm:$0x1]
    %v74 = vld [vmem:[%s1 + $0xa] sm:$0x1]
    %v75 = vld [vmem:[%s1 + $0xb] sm:$0x1]
    %v76 = vld [vmem:[%s1 + $0xc] sm:$0x1]
    %v77 = vld [vmem:[%s1 + $0xd] sm:$0x1]
    %v78 = vld [vmem:[%s1 + $0xe] sm:$0x1]
    %v79 = vld [vmem:[%s1 + $0xf] sm:$0x1]
    %v80 = vld [vmem:[%s1 + $0x10] sm:$0x1]
    %v81 = vld [vmem:[%s1 + $0x11] sm:$0x1]
    %v82 = vld [vmem:[%s1 + $0x12] sm:$0x1]
    %v83 = vld [vmem:[%s1 + $0x13] sm:$0x1]
    %v84 = vld [vmem:[%s1 + $0x14] sm:$0x1]
    %v85 = vld [vmem:[%s1 + $0x15] sm:$0x1]
    %v86 = vld [vmem:[%s1 + $0x16] sm:$0x1]
    %v87 = vld [vmem:[%s1 + $0x17] sm:$0x1]
    %v88 = vld [vmem:[%s1 + $0x18] sm:$0x1]
    %v89 = vld [vmem:[%s1 + $0x19] sm:$0x1]
    %v90 = vld [vmem:[%s1 + $0x1a] sm:$0x1]
    %v91 = vld [vmem:[%s1 + $0x1b] sm:$0x1]
    %v92 = vld [vmem:[%s1 + $0x1c] sm:$0x1]
    %v93 = vld [vmem:[%s1 + $0x1d] sm:$0x1]
    %v94 = vld [vmem:[%s1 + $0x1e] sm:$0x1]
    %v95 = vld [vmem:[%s1 + $0x1f] sm:$0x1]
    %v128 = vperm.slane %v64, 0
    %v129 = vperm.slane %v65, 0
    %v130 = vperm.slane %v66, 0
    %v131 = vperm.slane %v67, 0
    %v132 = vperm.slane %v68, 0
    %v133 = vperm.slane %v69, 0
    %v134 = vperm.slane %v70, 0
    %v135 = vperm.slane %v71, 0
    %v136 = vperm.slane %v72, 0
    %v137 = vperm.slane %v73, 0
    %v138 = vperm.slane %v74, 0
    %v139 = vperm.slane %v75, 0
    %v140 = vperm.slane %v76, 0
    %v141 = vperm.slane %v77, 0
    %v142 = vperm.slane %v78, 0
    %v143 = vperm.slane %v79, 0
    %v144 = vperm.slane %v80, 0
    %v145 = vperm.slane %v81, 0
    %v146 = vperm.slane %v82, 0
    %v147 = vperm.slane %v83, 0
    %v148 = vperm.slane %v84, 0
    %v149 = vperm.slane %v85, 0
    %v150 = vperm.slane %v86, 0
    %v151 = vperm.slane %v87, 0
    %v152 = vperm.slane %v88, 0
    %v153 = vperm.slane %v89, 0
    %v154 = vperm.slane %v90, 0
    %v155 = vperm.slane %v91, 0
    %v156 = vperm.slane %v92, 0
    %v157 = vperm.slane %v93, 0
    %v158 = vperm.slane %v94, 0
    %v159 = vperm.slane %v95, 0
    %160 = vset.pattern.permute.xlu0 0
    %161 = vperm.xlu0 %160, %v128
    %v162 = vpop.permute.xlu0 %161
    %164 = vset.pattern.permute.xlu0 0
    %165 = vperm.xlu0 %164, %v129
    %v166 = vpop.permute.xlu0 %165
    %168 = vset.pattern.permute.xlu0 0
    %169 = vperm.xlu0 %168, %v130
    %v170 = vpop.permute.xlu0 %169
    %172 = vset.pattern.permute.xlu0 0
    %173 = vperm.xlu0 %172, %v131
    %v174 = vpop.permute.xlu0 %173
    %176 = vset.pattern.permute.xlu0 0
    %177 = vperm.xlu0 %176, %v132
    %v178 = vpop.permute.xlu0 %177
    %180 = vset.pattern.permute.xlu0 0
    %181 = vperm.xlu0 %180, %v133
    %v182 = vpop.permute.xlu0 %181
    %184 = vset.pattern.permute.xlu0 0
    %185 = vperm.xlu0 %184, %v134
    %v186 = vpop.permute.xlu0 %185
    %188 = vset.pattern.permute.xlu0 0
    %189 = vperm.xlu0 %188, %v135
    %v190 = vpop.permute.xlu0 %189
    %192 = vset.pattern.permute.xlu0 0
    %193 = vperm.xlu0 %192, %v136
    %v194 = vpop.permute.xlu0 %193
    %196 = vset.pattern.permute.xlu0 0
    %197 = vperm.xlu0 %196, %v137
    %v198 = vpop.permute.xlu0 %197
    %200 = vset.pattern.permute.xlu0 0
    %201 = vperm.xlu0 %200, %v138
    %v202 = vpop.permute.xlu0 %201
    %204 = vset.pattern.permute.xlu0 0
    %205 = vperm.xlu0 %204, %v139
    %v206 = vpop.permute.xlu0 %205
    %208 = vset.pattern.permute.xlu0 0
    %209 = vperm.xlu0 %208, %v140
    %v210 = vpop.permute.xlu0 %209
    %212 = vset.pattern.permute.xlu0 0
    %213 = vperm.xlu0 %212, %v141
    %v214 = vpop.permute.xlu0 %213
    %216 = vset.pattern.permute.xlu0 0
    %217 = vperm.xlu0 %216, %v142
    %v218 = vpop.permute.xlu0 %217
    %220 = vset.pattern.permute.xlu0 0
    %221 = vperm.xlu0 %220, %v143
    %v222 = vpop.permute.xlu0 %221
    %224 = vset.pattern.permute.xlu0 0
    %225 = vperm.xlu0 %224, %v144
    %v226 = vpop.permute.xlu0 %225
    %228 = vset.pattern.permute.xlu0 0
    %229 = vperm.xlu0 %228, %v145
    %v230 = vpop.permute.xlu0 %229
    %232 = vset.pattern.permute.xlu0 0
    %233 = vperm.xlu0 %232, %v146
    %v234 = vpop.permute.xlu0 %233
    %236 = vset.pattern.permute.xlu0 0
    %237 = vperm.xlu0 %236, %v147
    %v238 = vpop.permute.xlu0 %237
    %240 = vset.pattern.permute.xlu0 0
    %241 = vperm.xlu0 %240, %v148
    %v242 = vpop.permute.xlu0 %241
    %244 = vset.pattern.permute.xlu0 0
    %245 = vperm.xlu0 %244, %v149
    %v246 = vpop.permute.xlu0 %245
    %248 = vset.pattern.permute.xlu0 0
    %249 = vperm.xlu0 %248, %v150
    %v250 = vpop.permute.xlu0 %249
    %252 = vset.pattern.permute.xlu0 0
    %253 = vperm.xlu0 %252, %v151
    %v254 = vpop.permute.xlu0 %253
    %256 = vset.pattern.permute.xlu0 0
    %257 = vperm.xlu0 %256, %v152
    %v258 = vpop.permute.xlu0 %257
    %260 = vset.pattern.permute.xlu0 0
    %261 = vperm.xlu0 %260, %v153
    %v262 = vpop.permute.xlu0 %261
    %264 = vset.pattern.permute.xlu0 0
    %265 = vperm.xlu0 %264, %v154
    %v266 = vpop.permute.xlu0 %265
    %268 = vset.pattern.permute.xlu0 0
    %269 = vperm.xlu0 %268, %v155
    %v270 = vpop.permute.xlu0 %269
    %272 = vset.pattern.permute.xlu0 0
    %273 = vperm.xlu0 %272, %v156
    %v274 = vpop.permute.xlu0 %273
    %276 = vset.pattern.permute.xlu0 0
    %277 = vperm.xlu0 %276, %v157
    %v278 = vpop.permute.xlu0 %277
    %280 = vset.pattern.permute.xlu0 0
    %281 = vperm.xlu0 %280, %v158
    %v282 = vpop.permute.xlu0 %281
    %284 = vset.pattern.permute.xlu0 0
    %285 = vperm.xlu0 %284, %v159
    %v286 = vpop.permute.xlu0 %285
    %v288 = vmul.f32 %v32, %v162
    %v289 = vmul.f32 %v33, %v166
    %v290 = vmul.f32 %v34, %v170
    %v291 = vmul.f32 %v35, %v174
    %v292 = vmul.f32 %v36, %v178
    %v293 = vmul.f32 %v37, %v182
    %v294 = vmul.f32 %v38, %v186
    %v295 = vmul.f32 %v39, %v190
    %v296 = vmul.f32 %v40, %v194
    %v297 = vmul.f32 %v41, %v198
    %v298 = vmul.f32 %v42, %v202
    %v299 = vmul.f32 %v43, %v206
    %v300 = vmul.f32 %v44, %v210
    %v301 = vmul.f32 %v45, %v214
    %v302 = vmul.f32 %v46, %v218
    %v303 = vmul.f32 %v47, %v222
    %v304 = vmul.f32 %v48, %v226
    %v305 = vmul.f32 %v49, %v230
    %v306 = vmul.f32 %v50, %v234
    %v307 = vmul.f32 %v51, %v238
    %v308 = vmul.f32 %v52, %v242
    %v309 = vmul.f32 %v53, %v246
    %v310 = vmul.f32 %v54, %v250
    %v311 = vmul.f32 %v55, %v254
    %v312 = vmul.f32 %v56, %v258
    %v313 = vmul.f32 %v57, %v262
    %v314 = vmul.f32 %v58, %v266
    %v315 = vmul.f32 %v59, %v270
    %v316 = vmul.f32 %v60, %v274
    %v317 = vmul.f32 %v61, %v278
    %v318 = vmul.f32 %v62, %v282
    %v319 = vmul.f32 %v63, %v286
    %v320 = vld [vmem:[%s2] sm:$0x1]
    %v321 = vld [vmem:[%s2 + $0x1] sm:$0x1]
    %v322 = vld [vmem:[%s2 + $0x2] sm:$0x1]
    %v323 = vld [vmem:[%s2 + $0x3] sm:$0x1]
    %v324 = vld [vmem:[%s2 + $0x4] sm:$0x1]
    %v325 = vld [vmem:[%s2 + $0x5] sm:$0x1]
    %v326 = vld [vmem:[%s2 + $0x6] sm:$0x1]
    %v327 = vld [vmem:[%s2 + $0x7] sm:$0x1]
    %v328 = vld [vmem:[%s2 + $0x8] sm:$0x1]
    %v329 = vld [vmem:[%s2 + $0x9] sm:$0x1]
    %v330 = vld [vmem:[%s2 + $0xa] sm:$0x1]
    %v331 = vld [vmem:[%s2 + $0xb] sm:$0x1]
    %v332 = vld [vmem:[%s2 + $0xc] sm:$0x1]
    %v333 = vld [vmem:[%s2 + $0xd] sm:$0x1]
    %v334 = vld [vmem:[%s2 + $0xe] sm:$0x1]
    %v335 = vld [vmem:[%s2 + $0xf] sm:$0x1]
    %v336 = vld [vmem:[%s2 + $0x10] sm:$0x1]
    %v337 = vld [vmem:[%s2 + $0x11] sm:$0x1]
    %v338 = vld [vmem:[%s2 + $0x12] sm:$0x1]
    %v339 = vld [vmem:[%s2 + $0x13] sm:$0x1]
    %v340 = vld [vmem:[%s2 + $0x14] sm:$0x1]
    %v341 = vld [vmem:[%s2 + $0x15] sm:$0x1]
    %v342 = vld [vmem:[%s2 + $0x16] sm:$0x1]
    %v343 = vld [vmem:[%s2 + $0x17] sm:$0x1]
    %v344 = vld [vmem:[%s2 + $0x18] sm:$0x1]
    %v345 = vld [vmem:[%s2 + $0x19] sm:$0x1]
    %v346 = vld [vmem:[%s2 + $0x1a] sm:$0x1]
    %v347 = vld [vmem:[%s2 + $0x1b] sm:$0x1]
    %v348 = vld [vmem:[%s2 + $0x1c] sm:$0x1]
    %v349 = vld [vmem:[%s2 + $0x1d] sm:$0x1]
    %v350 = vld [vmem:[%s2 + $0x1e] sm:$0x1]
    %v351 = vld [vmem:[%s2 + $0x1f] sm:$0x1]
    %v384 = vperm.slane %v320, 0
    %v385 = vperm.slane %v321, 0
    %v386 = vperm.slane %v322, 0
    %v387 = vperm.slane %v323, 0
    %v388 = vperm.slane %v324, 0
    %v389 = vperm.slane %v325, 0
    %v390 = vperm.slane %v326, 0
    %v391 = vperm.slane %v327, 0
    %v392 = vperm.slane %v328, 0
    %v393 = vperm.slane %v329, 0
    %v394 = vperm.slane %v330, 0
    %v395 = vperm.slane %v331, 0
    %v396 = vperm.slane %v332, 0
    %v397 = vperm.slane %v333, 0
    %v398 = vperm.slane %v334, 0
    %v399 = vperm.slane %v335, 0
    %v400 = vperm.slane %v336, 0
    %v401 = vperm.slane %v337, 0
    %v402 = vperm.slane %v338, 0
    %v403 = vperm.slane %v339, 0
    %v404 = vperm.slane %v340, 0
    %v405 = vperm.slane %v341, 0
    %v406 = vperm.slane %v342, 0
    %v407 = vperm.slane %v343, 0
    %v408 = vperm.slane %v344, 0
    %v409 = vperm.slane %v345, 0
    %v410 = vperm.slane %v346, 0
    %v411 = vperm.slane %v347, 0
    %v412 = vperm.slane %v348, 0
    %v413 = vperm.slane %v349, 0
    %v414 = vperm.slane %v350, 0
    %v415 = vperm.slane %v351, 0
    %416 = vset.pattern.permute.xlu0 0
    %417 = vperm.xlu0 %416, %v384
    %v418 = vpop.permute.xlu0 %417
    %420 = vset.pattern.permute.xlu0 0
    %421 = vperm.xlu0 %420, %v385
    %v422 = vpop.permute.xlu0 %421
    %424 = vset.pattern.permute.xlu0 0
    %425 = vperm.xlu0 %424, %v386
    %v426 = vpop.permute.xlu0 %425
    %428 = vset.pattern.permute.xlu0 0
    %429 = vperm.xlu0 %428, %v387
    %v430 = vpop.permute.xlu0 %429
    %432 = vset.pattern.permute.xlu0 0
    %433 = vperm.xlu0 %432, %v388
    %v434 = vpop.permute.xlu0 %433
    %436 = vset.pattern.permute.xlu0 0
    %437 = vperm.xlu0 %436, %v389
    %v438 = vpop.permute.xlu0 %437
    %440 = vset.pattern.permute.xlu0 0
    %441 = vperm.xlu0 %440, %v390
    %v442 = vpop.permute.xlu0 %441
    %444 = vset.pattern.permute.xlu0 0
    %445 = vperm.xlu0 %444, %v391
    %v446 = vpop.permute.xlu0 %445
    %448 = vset.pattern.permute.xlu0 0
    %449 = vperm.xlu0 %448, %v392
    %v450 = vpop.permute.xlu0 %449
    %452 = vset.pattern.permute.xlu0 0
    %453 = vperm.xlu0 %452, %v393
    %v454 = vpop.permute.xlu0 %453
    %456 = vset.pattern.permute.xlu0 0
    %457 = vperm.xlu0 %456, %v394
    %v458 = vpop.permute.xlu0 %457
    %460 = vset.pattern.permute.xlu0 0
    %461 = vperm.xlu0 %460, %v395
    %v462 = vpop.permute.xlu0 %461
    %464 = vset.pattern.permute.xlu0 0
    %465 = vperm.xlu0 %464, %v396
    %v466 = vpop.permute.xlu0 %465
    %468 = vset.pattern.permute.xlu0 0
    %469 = vperm.xlu0 %468, %v397
    %v470 = vpop.permute.xlu0 %469
    %472 = vset.pattern.permute.xlu0 0
    %473 = vperm.xlu0 %472, %v398
    %v474 = vpop.permute.xlu0 %473
    %476 = vset.pattern.permute.xlu0 0
    %477 = vperm.xlu0 %476, %v399
    %v478 = vpop.permute.xlu0 %477
    %480 = vset.pattern.permute.xlu0 0
    %481 = vperm.xlu0 %480, %v400
    %v482 = vpop.permute.xlu0 %481
    %484 = vset.pattern.permute.xlu0 0
    %485 = vperm.xlu0 %484, %v401
    %v486 = vpop.permute.xlu0 %485
    %488 = vset.pattern.permute.xlu0 0
    %489 = vperm.xlu0 %488, %v402
    %v490 = vpop.permute.xlu0 %489
    %492 = vset.pattern.permute.xlu0 0
    %493 = vperm.xlu0 %492, %v403
    %v494 = vpop.permute.xlu0 %493
    %496 = vset.pattern.permute.xlu0 0
    %497 = vperm.xlu0 %496, %v404
    %v498 = vpop.permute.xlu0 %497
    %500 = vset.pattern.permute.xlu0 0
    %501 = vperm.xlu0 %500, %v405
    %v502 = vpop.permute.xlu0 %501
    %504 = vset.pattern.permute.xlu0 0
    %505 = vperm.xlu0 %504, %v406
    %v506 = vpop.permute.xlu0 %505
    %508 = vset.pattern.permute.xlu0 0
    %509 = vperm.xlu0 %508, %v407
    %v510 = vpop.permute.xlu0 %509
    %512 = vset.pattern.permute.xlu0 0
    %513 = vperm.xlu0 %512, %v408
    %v514 = vpop.permute.xlu0 %513
    %516 = vset.pattern.permute.xlu0 0
    %517 = vperm.xlu0 %516, %v409
    %v518 = vpop.permute.xlu0 %517
    %520 = vset.pattern.permute.xlu0 0
    %521 = vperm.xlu0 %520, %v410
    %v522 = vpop.permute.xlu0 %521
    %524 = vset.pattern.permute.xlu0 0
    %525 = vperm.xlu0 %524, %v411
    %v526 = vpop.permute.xlu0 %525
    %528 = vset.pattern.permute.xlu0 0
    %529 = vperm.xlu0 %528, %v412
    %v530 = vpop.permute.xlu0 %529
    %532 = vset.pattern.permute.xlu0 0
    %533 = vperm.xlu0 %532, %v413
    %v534 = vpop.permute.xlu0 %533
    %536 = vset.pattern.permute.xlu0 0
    %537 = vperm.xlu0 %536, %v414
    %v538 = vpop.permute.xlu0 %537
    %540 = vset.pattern.permute.xlu0 0
    %541 = vperm.xlu0 %540, %v415
    %v542 = vpop.permute.xlu0 %541
    %v544 = vadd.f32 %v288, %v418
    %v545 = vadd.f32 %v289, %v422
    %v546 = vadd.f32 %v290, %v426
    %v547 = vadd.f32 %v291, %v430
    %v548 = vadd.f32 %v292, %v434
    %v549 = vadd.f32 %v293, %v438
    %v550 = vadd.f32 %v294, %v442
    %v551 = vadd.f32 %v295, %v446
    %v552 = vadd.f32 %v296, %v450
    %v553 = vadd.f32 %v297, %v454
    %v554 = vadd.f32 %v298, %v458
    %v555 = vadd.f32 %v299, %v462
    %v556 = vadd.f32 %v300, %v466
    %v557 = vadd.f32 %v301, %v470
    %v558 = vadd.f32 %v302, %v474
    %v559 = vadd.f32 %v303, %v478
    %v560 = vadd.f32 %v304, %v482
    %v561 = vadd.f32 %v305, %v486
    %v562 = vadd.f32 %v306, %v490
    %v563 = vadd.f32 %v307, %v494
    %v564 = vadd.f32 %v308, %v498
    %v565 = vadd.f32 %v309, %v502
    %v566 = vadd.f32 %v310, %v506
    %v567 = vadd.f32 %v311, %v510
    %v568 = vadd.f32 %v312, %v514
    %v569 = vadd.f32 %v313, %v518
    %v570 = vadd.f32 %v314, %v522
    %v571 = vadd.f32 %v315, %v526
    %v572 = vadd.f32 %v316, %v530
    %v573 = vadd.f32 %v317, %v534
    %v574 = vadd.f32 %v318, %v538
    %v575 = vadd.f32 %v319, %v542
    %v576 = vmax.f32 %v544, 0.0
    %v577 = vmax.f32 %v545, 0.0
    %v578 = vmax.f32 %v546, 0.0
    %v579 = vmax.f32 %v547, 0.0
    %v580 = vmax.f32 %v548, 0.0
    %v581 = vmax.f32 %v549, 0.0
    %v582 = vmax.f32 %v550, 0.0
    %v583 = vmax.f32 %v551, 0.0
    %v584 = vmax.f32 %v552, 0.0
    %v585 = vmax.f32 %v553, 0.0
    %v586 = vmax.f32 %v554, 0.0
    %v587 = vmax.f32 %v555, 0.0
    %v588 = vmax.f32 %v556, 0.0
    %v589 = vmax.f32 %v557, 0.0
    %v590 = vmax.f32 %v558, 0.0
    %v591 = vmax.f32 %v559, 0.0
    %v592 = vmax.f32 %v560, 0.0
    %v593 = vmax.f32 %v561, 0.0
    %v594 = vmax.f32 %v562, 0.0
    %v595 = vmax.f32 %v563, 0.0
    %v596 = vmax.f32 %v564, 0.0
    %v597 = vmax.f32 %v565, 0.0
    %v598 = vmax.f32 %v566, 0.0
    %v599 = vmax.f32 %v567, 0.0
    %v600 = vmax.f32 %v568, 0.0
    %v601 = vmax.f32 %v569, 0.0
    %v602 = vmax.f32 %v570, 0.0
    %v603 = vmax.f32 %v571, 0.0
    %v604 = vmax.f32 %v572, 0.0
    %v605 = vmax.f32 %v573, 0.0
    %v606 = vmax.f32 %v574, 0.0
    %v607 = vmax.f32 %v575, 0.0
    %s608 = smul.u32 0, 128
    %v609 = vlaneseq
    %v610 = vand.u32 %v609, 127
    %v611 = vstv %s608
    %v612 = vadd.s32 %v611, %v610
    %vm613 = vcmp.lt.s32.totalorder %v612, 1
    %v614 = vsel %vm613, %v576, 0.0
    %v615 = vsel %vm613, %v577, 0.0
    %v616 = vsel %vm613, %v578, 0.0
    %v617 = vsel %vm613, %v579, 0.0
    %v618 = vsel %vm613, %v580, 0.0
    %v619 = vsel %vm613, %v581, 0.0
    %v620 = vsel %vm613, %v582, 0.0
    %v621 = vsel %vm613, %v583, 0.0
    %v622 = vsel %vm613, %v584, 0.0
    %v623 = vsel %vm613, %v585, 0.0
    %v624 = vsel %vm613, %v586, 0.0
    %v625 = vsel %vm613, %v587, 0.0
    %v626 = vsel %vm613, %v588, 0.0
    %v627 = vsel %vm613, %v589, 0.0
    %v628 = vsel %vm613, %v590, 0.0
    %v629 = vsel %vm613, %v591, 0.0
    %v630 = vsel %vm613, %v592, 0.0
    %v631 = vsel %vm613, %v593, 0.0
    %v632 = vsel %vm613, %v594, 0.0
    %v633 = vsel %vm613, %v595, 0.0
    %v634 = vsel %vm613, %v596, 0.0
    %v635 = vsel %vm613, %v597, 0.0
    %v636 = vsel %vm613, %v598, 0.0
    %v637 = vsel %vm613, %v599, 0.0
    %v638 = vsel %vm613, %v600, 0.0
    %v639 = vsel %vm613, %v601, 0.0
    %v640 = vsel %vm613, %v602, 0.0
    %v641 = vsel %vm613, %v603, 0.0
    %v642 = vsel %vm613, %v604, 0.0
    %v643 = vsel %vm613, %v605, 0.0
    %v644 = vsel %vm613, %v606, 0.0
    %v645 = vsel %vm613, %v607, 0.0
    %v646 = vld [vmem:[#allocation2] sm:$0xff]
    %v647 = vld [vmem:[#allocation2 + $0x8] sm:$0xff]
    %v648 = vld [vmem:[#allocation2 + $0x10] sm:$0xff]
    %v649 = vld [vmem:[#allocation2 + $0x18] sm:$0xff]
    %vm650 = vcmask 1041408
    %v651 = vsel %vm650, %v614, 0.0
    %652 = vadd.xlane.f32.xlu0 %v651
    %v653 = vpop.xlane.xlu0 %652
    %v654 = vsel %vm650, %v615, 0.0
    %655 = vadd.xlane.f32.xlu0 %v654
    %v656 = vpop.xlane.xlu0 %655
    %v657 = vsel %vm650, %v616, 0.0
    %658 = vadd.xlane.f32.xlu0 %v657
    %v659 = vpop.xlane.xlu0 %658
    %v660 = vsel %vm650, %v617, 0.0
    %661 = vadd.xlane.f32.xlu0 %v660
    %v662 = vpop.xlane.xlu0 %661
    %v663 = vsel %vm650, %v618, 0.0
    %664 = vadd.xlane.f32.xlu0 %v663
    %v665 = vpop.xlane.xlu0 %664
    %v666 = vsel %vm650, %v619, 0.0
    %667 = vadd.xlane.f32.xlu0 %v666
    %v668 = vpop.xlane.xlu0 %667
    %v669 = vsel %vm650, %v620, 0.0
    %670 = vadd.xlane.f32.xlu0 %v669
    %v671 = vpop.xlane.xlu0 %670
    %v672 = vsel %vm650, %v621, 0.0
    %673 = vadd.xlane.f32.xlu0 %v672
    %v674 = vpop.xlane.xlu0 %673
    %v675 = vsel %vm650, %v622, 0.0
    %676 = vadd.xlane.f32.xlu0 %v675
    %v677 = vpop.xlane.xlu0 %676
    %v678 = vsel %vm650, %v623, 0.0
    %679 = vadd.xlane.f32.xlu0 %v678
    %v680 = vpop.xlane.xlu0 %679
    %v681 = vsel %vm650, %v624, 0.0
    %682 = vadd.xlane.f32.xlu0 %v681
    %v683 = vpop.xlane.xlu0 %682
    %v684 = vsel %vm650, %v625, 0.0
    %685 = vadd.xlane.f32.xlu0 %v684
    %v686 = vpop.xlane.xlu0 %685
    %v687 = vsel %vm650, %v626, 0.0
    %688 = vadd.xlane.f32.xlu0 %v687
    %v689 = vpop.xlane.xlu0 %688
    %v690 = vsel %vm650, %v627, 0.0
    %691 = vadd.xlane.f32.xlu0 %v690
    %v692 = vpop.xlane.xlu0 %691
    %v693 = vsel %vm650, %v628, 0.0
    %694 = vadd.xlane.f32.xlu0 %v693
    %v695 = vpop.xlane.xlu0 %694
    %v696 = vsel %vm650, %v629, 0.0
    %697 = vadd.xlane.f32.xlu0 %v696
    %v698 = vpop.xlane.xlu0 %697
    %v699 = vsel %vm650, %v630, 0.0
    %700 = vadd.xlane.f32.xlu0 %v699
    %v701 = vpop.xlane.xlu0 %700
    %v702 = vsel %vm650, %v631, 0.0
    %703 = vadd.xlane.f32.xlu0 %v702
    %v704 = vpop.xlane.xlu0 %703
    %v705 = vsel %vm650, %v632, 0.0
    %706 = vadd.xlane.f32.xlu0 %v705
    %v707 = vpop.xlane.xlu0 %706
    %v708 = vsel %vm650, %v633, 0.0
    %709 = vadd.xlane.f32.xlu0 %v708
    %v710 = vpop.xlane.xlu0 %709
    %v711 = vsel %vm650, %v634, 0.0
    %712 = vadd.xlane.f32.xlu0 %v711
    %v713 = vpop.xlane.xlu0 %712
    %v714 = vsel %vm650, %v635, 0.0
    %715 = vadd.xlane.f32.xlu0 %v714
    %v716 = vpop.xlane.xlu0 %715
    %v717 = vsel %vm650, %v636, 0.0
    %718 = vadd.xlane.f32.xlu0 %v717
    %v719 = vpop.xlane.xlu0 %718
    %v720 = vsel %vm650, %v637, 0.0
    %721 = vadd.xlane.f32.xlu0 %v720
    %v722 = vpop.xlane.xlu0 %721
    %v723 = vsel %vm650, %v638, 0.0
    %724 = vadd.xlane.f32.xlu0 %v723
    %v725 = vpop.xlane.xlu0 %724
    %v726 = vsel %vm650, %v639, 0.0
    %727 = vadd.xlane.f32.xlu0 %v726
    %v728 = vpop.xlane.xlu0 %727
    %v729 = vsel %vm650, %v640, 0.0
    %730 = vadd.xlane.f32.xlu0 %v729
    %v731 = vpop.xlane.xlu0 %730
    %v732 = vsel %vm650, %v641, 0.0
    %733 = vadd.xlane.f32.xlu0 %v732
    %v734 = vpop.xlane.xlu0 %733
    %v735 = vsel %vm650, %v642, 0.0
    %736 = vadd.xlane.f32.xlu0 %v735
    %v737 = vpop.xlane.xlu0 %736
    %v738 = vsel %vm650, %v643, 0.0
    %739 = vadd.xlane.f32.xlu0 %v738
    %v740 = vpop.xlane.xlu0 %739
    %v741 = vsel %vm650, %v644, 0.0
    %742 = vadd.xlane.f32.xlu0 %v741
    %v743 = vpop.xlane.xlu0 %742
    %v744 = vsel %vm650, %v645, 0.0
    %745 = vadd.xlane.f32.xlu0 %v744
    %v746 = vpop.xlane.xlu0 %745
    %v779 = vperm.slane %v653, %v610
    %v780 = vperm.slane %v656, %v610
    %v781 = vperm.slane %v659, %v610
    %v782 = vperm.slane %v662, %v610
    %v783 = vperm.slane %v665, %v610
    %v784 = vperm.slane %v668, %v610
    %v785 = vperm.slane %v671, %v610
    %v786 = vperm.slane %v674, %v610
    %v787 = vperm.slane %v677, %v610
    %v788 = vperm.slane %v680, %v610
    %v789 = vperm.slane %v683, %v610
    %v790 = vperm.slane %v686, %v610
    %v791 = vperm.slane %v689, %v610
    %v792 = vperm.slane %v692, %v610
    %v793 = vperm.slane %v695, %v610
    %v794 = vperm.slane %v698, %v610
    %v795 = vperm.slane %v701, %v610
    %v796 = vperm.slane %v704, %v610
    %v797 = vperm.slane %v707, %v610
    %v798 = vperm.slane %v710, %v610
    %v799 = vperm.slane %v713, %v610
    %v800 = vperm.slane %v716, %v610
    %v801 = vperm.slane %v719, %v610
    %v802 = vperm.slane %v722, %v610
    %v803 = vperm.slane %v725, %v610
    %v804 = vperm.slane %v728, %v610
    %v805 = vperm.slane %v731, %v610
    %v806 = vperm.slane %v734, %v610
    %v807 = vperm.slane %v737, %v610
    %v808 = vperm.slane %v740, %v610
    %v809 = vperm.slane %v743, %v610
    %v810 = vperm.slane %v746, %v610
    %vm811 = vcmask 1041409
    %v812 = vsel %vm811, %v780, %v779
    %vm813 = vcmask 1042434
    %v814 = vsel %vm813, %v781, %v812
    %vm815 = vcmask 1043459
    %v816 = vsel %vm815, %v782, %v814
    %vm817 = vcmask 1044484
    %v818 = vsel %vm817, %v783, %v816
    %vm819 = vcmask 1045509
    %v820 = vsel %vm819, %v784, %v818
    %vm821 = vcmask 1046534
    %v822 = vsel %vm821, %v785, %v820
    %vm823 = vcmask 1047559
    %v824 = vsel %vm823, %v786, %v822
    %v825 = vsel %vm811, %v788, %v787
    %v826 = vsel %vm813, %v789, %v825
    %v827 = vsel %vm815, %v790, %v826
    %v828 = vsel %vm817, %v791, %v827
    %v829 = vsel %vm819, %v792, %v828
    %v830 = vsel %vm821, %v793, %v829
    %v831 = vsel %vm823, %v794, %v830
    %v832 = vsel %vm811, %v796, %v795
    %v833 = vsel %vm813, %v797, %v832
    %v834 = vsel %vm815, %v798, %v833
    %v835 = vsel %vm817, %v799, %v834
    %v836 = vsel %vm819, %v800, %v835
    %v837 = vsel %vm821, %v801, %v836
    %v838 = vsel %vm823, %v802, %v837
    %v839 = vsel %vm811, %v804, %v803
    %v840 = vsel %vm813, %v805, %v839
    %v841 = vsel %vm815, %v806, %v840
    %v842 = vsel %vm817, %v807, %v841
    %v843 = vsel %vm819, %v808, %v842
    %v844 = vsel %vm821, %v809, %v843
    %v845 = vsel %vm823, %v810, %v844
    %v850 = vadd.f32 %v646, %v824
    %v851 = vadd.f32 %v647, %v831
    %v852 = vadd.f32 %v648, %v838
    %v853 = vadd.f32 %v649, %v845
    %vm854 = vcmask 15360
    %855 = vst.msk [vmem:[#allocation2] sm:$0xff] %vm854, %v850
    %856 = vst.msk [vmem:[#allocation2 + $0x8] sm:$0xff] %vm854, %v851
    %857 = vst.msk [vmem:[#allocation2 + $0x10] sm:$0xff] %vm854, %v852
    %858 = vst.msk [vmem:[#allocation2 + $0x18] sm:$0xff] %vm854, %v853
    // Predicated region
    $region26: #{forward_pallas.41} parent=1 // pred_check
      %p859 = pneg %p23
    $region27: #{forward_pallas.41} parent=1 // pred_check_branch
      %861 = sbr.rel (%p859) target = $region29
    $region28: #{forward_pallas.41} parent=1 // pred_region
      %v862 = vld [vmem:[#allocation2] sm:$0xff]
      %v863 = vld [vmem:[#allocation2 + $0x8] sm:$0xff]
      %v864 = vld [vmem:[#allocation2 + $0x10] sm:$0xff]
      %v865 = vld [vmem:[#allocation2 + $0x18] sm:$0xff]
      %v866 = vld [vmem:[%s3] sm:$0x1]
      %v867 = vperm.slane %v866, 0
      %v868 = vlaneseq
      %v869 = vshrl.u32 %v868, 7
      %871 = vset.pattern.permute.xlu0 %v869
      %872 = vperm.xlu0 %871, %v867
      %v873 = vpop.permute.xlu0 %872
      %v874 = vlaneseq
      %v875 = vshrl.u32 %v874, 7
      %v876 = vadd.s32 %v875, 8
      %877 = vset.pattern.permute.xlu0 %v876
      %878 = vperm.xlu0 %877, %v867
      %v879 = vpop.permute.xlu0 %878
      %v880 = vlaneseq
      %v881 = vshrl.u32 %v880, 7
      %v882 = vadd.s32 %v881, 16
      %883 = vset.pattern.permute.xlu0 %v882
      %884 = vperm.xlu0 %883, %v867
      %v885 = vpop.permute.xlu0 %884
      %v886 = vlaneseq
      %v887 = vshrl.u32 %v886, 7
      %v888 = vadd.s32 %v887, 24
      %889 = vset.pattern.permute.xlu0 %v888
      %890 = vperm.xlu0 %889, %v867
      %v891 = vpop.permute.xlu0 %890
      %v892 = vmul.f32 %v873, %v862
      %v893 = vmul.f32 %v879, %v863
      %v894 = vmul.f32 %v885, %v864
      %v895 = vmul.f32 %v891, %v865
      %v896 = vsel %vm854, %v892, 0.0
      %v897 = vsel %vm854, %v893, 0.0
      %v898 = vadd.f32 %v896, %v897
      %v899 = vsel %vm854, %v894, 0.0
      %v900 = vadd.f32 %v898, %v899
      %v901 = vsel %vm854, %v895, 0.0
      %v902 = vadd.f32 %v900, %v901
      %v903 = vrot.slane %v902, 4
      %v904 = vadd.f32 %v902, %v903
      %v905 = vrot.slane %v904, 2
      %v906 = vadd.f32 %v904, %v905
      %v907 = vrot.slane %v906, 1
      %v908 = vadd.f32 %v906, %v907
      %v909 = vld [vmem:[#allocation3] sm:$0x1]
      %911 = vset.pattern.permute.xlu0 0
      %912 = vperm.xlu0 %911, %v909
      %v913 = vpop.permute.xlu0 %912
      %v915 = vperm.slane %v913, 0
      %v916 = vadd.f32 %v908, %v915
      %vm917 = vcmask 8192
      %918 = vst.msk [vmem:[#allocation4] sm:$0x1] %vm917, %v916
    $region29: #{forward_pallas.41} parent=1 // pred_fallthru
      _
    // Predicated region
    $region30: #{forward_pallas.41} parent=1 // pred_check
      _
    $region31: #{forward_pallas.41} parent=1 // pred_check_branch
      %920 = sbr.rel (0) target = $region33
    $region32: #{forward_pallas.41} parent=1 // pred_region
      %922 = vsyncadd [#allocation5], 0
      %s924 = sshll.u32 [#allocation4], 4
      %s925 = int_to_ptr.vmem [resolvable:$true] %s924
      %s926 = sshll.u32 %s5, 4
      %s927 = int_to_ptr.hbm [resolvable:$true] %s926
      %929 = dma.vmem_to_hbm [thread:$0]  %s925, 16, %s927, [#allocation5]
    $region33: #{forward_pallas.41} parent=1 // pred_fallthru
      _
    // Predicated region
    $region34: #{forward_pallas.41} parent=1 // pred_check
      _
    $region35: #{forward_pallas.41} parent=1 // pred_check_branch
      %931 = sbr.rel (0) target = $region37
    $region36: #{forward_pallas.41} parent=1 // pred_region
      %933 = dma.done [#allocation5], 16
    $region37: #{forward_pallas.41} parent=1 // pred_fallthru
      _
    %934 = vsyncpa [#allocation5], 1

</llo_original>
